<compile_context>
chip_gen: v5e
topology: v5e:2x2
jax: 0.10.0
libtpu: 0.0.40
codegen_flags: <defaults>
</compile_context>

<pallas_src>
import functools
import math

import jax
import jax.numpy as jnp
from jax import lax
from jax.experimental import pallas as pl
from jax.experimental.pallas import tpu as pltpu


# ---------------------------------------------------------------------------
# Fused multi-layer AttentionalGNN kernel.
#   grid = (num_layers,), "arbitrary" (layers are sequential).
#   Refs: cross flags (SMEM, scalar-prefetch), desc slab, column mask, key bias,
#         13 per-layer weight slabs, output slab, desc scratch, attn-out scratch.
# ---------------------------------------------------------------------------
def _gnn_kernel(cross_ref, x_ref, colmask_ref, kbias_ref,
                wq_ref, bq_ref, wkv_ref, bkv_ref, wm_ref, bm_ref,
                w1x_ref, w1m_ref, b1_ref, g_ref, bt_ref, w2_ref, b2_ref,
                o_ref, desc_ref, attn_ref,
                *, num_heads, head_dim, batch, n_valid, np_pad, use_bf16):
    D = num_heads * head_dim
    layer = pl.program_id(0)
    n_layers = pl.num_programs(0)

    # Load the input descriptors into the resident VMEM slab once, at layer 0.
    @pl.when(layer == 0)
    def _():
        desc_ref[...] = x_ref[...]

    def cast(a):
        return a.astype(jnp.bfloat16) if use_bf16 else a

    def mm(a, b, dims):
        return lax.dot_general(a, b, dimension_numbers=(dims, ((), ())),
                               preferred_element_type=jnp.float32)

    colmask = colmask_ref[...]            # (1, Mp) f32: 1 on valid cols, 0 on padding
    kbias = kbias_ref[...]                # (1, Np) f32: 0 on valid keys, -1e9 on padding

    # Per-layer parameters (weight matrices already bf16 from the host when use_bf16).
    wq = wq_ref[0]; bq = bq_ref[0]
    wkv = wkv_ref[0]; bkv = bkv_ref[0]
    wm = wm_ref[0]; bm = bm_ref[0]
    w1x = w1x_ref[0]; w1m = w1m_ref[0]; b1 = b1_ref[0]
    gamma = g_ref[0]; beta = bt_ref[0]
    w2 = w2_ref[0]; b2 = b2_ref[0]

    is_cross = cross_ref[layer] != 0
    scale = 1.0 / math.sqrt(float(head_dim))
    inv_count = 1.0 / float(batch * n_valid)

    x0 = desc_ref[0]                      # (D, Mp) pre-update descriptors, side 0
    x1 = desc_ref[1]
    xs = (x0, x1)

    deltas = []
    for s in range(2):
        x = xs[s]
        src = jnp.where(is_cross, xs[1 - s], xs[s])     # runtime self/cross selection
        xb = cast(x)                                     # hoisted bf16 casts
        srcb = cast(src)

        # 1x1-conv projections: q from x, stacked (k, v) from source.
        q = mm(wq, xb, ((1,), (0,))) + bq                # (D, Mp) f32
        kv = mm(wkv, srcb, ((1,), (0,))) + bkv           # (2D, Mp) f32
        qb = cast(q * scale)                             # fold 1/sqrt(d) into q
        kb = cast(kv[:D])
        vb = cast(kv[D:])

        # Per (batch, head) attention; 128-aligned column blocks, 8-aligned row blocks.
        for b in range(batch):
            c0 = b * np_pad
            for h in range(num_heads):
                r0 = h * head_dim
                q_bh = qb[r0:r0 + head_dim, c0:c0 + np_pad]     # (d, Np)
                k_bh = kb[r0:r0 + head_dim, c0:c0 + np_pad]
                v_bh = vb[r0:r0 + head_dim, c0:c0 + np_pad]
                # scores: contract dim 0 of both operands (no transpose), f32 acc.
                sc = mm(q_bh, k_bh, ((0,), (0,))) + kbias       # (Np, Np) f32
                smax = jnp.max(sc, axis=-1, keepdims=True)
                e = jnp.exp(sc - smax)
                denom = jnp.sum(e, axis=-1, keepdims=True)
                prob = e * pl.reciprocal(denom, approx=True)
                # out[c, n] = sum_m v[c, m] * prob[n, m]
                o_bh = mm(v_bh, cast(prob), ((1,), (1,)))       # (d, Np) f32
                attn_ref[r0:r0 + head_dim, c0:c0 + np_pad] = o_bh

        # Single full-depth merge matmul over all heads and batches.
        message = mm(wm, cast(attn_ref[...]), ((1,), (0,))) + bm        # (D, Mp)

        # MLP: concat-free Conv1d(2D->2D), masked one-pass BN stats, ReLU, Conv1d(2D->D).
        h1 = (mm(w1x, xb, ((1,), (0,)))
              + mm(w1m, cast(message), ((1,), (0,)))
              + b1)                                                     # (2D, Mp) f32
        h1m = h1 * colmask
        s1 = jnp.sum(h1m, axis=1, keepdims=True)
        s2 = jnp.sum(h1m * h1, axis=1, keepdims=True)
        mean = s1 * inv_count
        var = jnp.maximum(s2 * inv_count - mean * mean, 0.0)
        h1n = (h1 - mean) * lax.rsqrt(var + 1e-5) * gamma + beta
        h1r = jnp.maximum(h1n, 0.0)
        delta = mm(w2, cast(h1r), ((1,), (0,))) + b2                    # (D, Mp) f32
        deltas.append(delta)

    # Both deltas came from the pre-update descriptors; apply both, keep padding at 0.
    desc_ref[0] = (x0 + deltas[0]) * colmask
    desc_ref[1] = (x1 + deltas[1]) * colmask

    @pl.when(layer == n_layers - 1)
    def _():
        o_ref[...] = desc_ref[...]


# ---------------------------------------------------------------------------
# Host-side, one-time parameter preparation (pure relabeling, exact semantics).
# ---------------------------------------------------------------------------
def prepare_layer_params(p, num_heads):
    D = p["wq"].shape[0]
    d = D // num_heads
    # PyTorch views conv output channels as (d_idx, h) with c = d_idx*H + h.
    # Permuting projection rows / merge columns makes head h occupy contiguous
    # channels [h*d, (h+1)*d) so the kernel slices heads with zero layout cost.
    perm = jnp.asarray([j * num_heads + h for h in range(num_heads) for j in range(d)],
                       dtype=jnp.int32)
    wk, bk = p["wk"][perm], p["bk"][perm]
    wv, bv = p["wv"][perm], p["bv"][perm]
    return {
        "wq": p["wq"][perm],
        "bq": p["bq"][perm].reshape(D, 1),
        "wkv": jnp.concatenate([wk, wv], axis=0),              # stacked k/v projection
        "bkv": jnp.concatenate([bk, bv], axis=0).reshape(2 * D, 1),
        "wm": p["wm"][:, perm],
        "bm": p["bm"].reshape(D, 1),
        "w1x": p["w1"][:, :D],                                 # split W1 -> no concat
        "w1m": p["w1"][:, D:],
        "b1": p["b1"].reshape(2 * D, 1),
        "gamma": p["gamma"].reshape(2 * D, 1),
        "beta": p["beta"].reshape(2 * D, 1),
        "w2": p["w2"],
        "b2": p["b2"].reshape(D, 1),
    }


_WEIGHT_NAMES = ("wq", "bq", "wkv", "bkv", "wm", "bm", "w1x", "w1m",
                 "b1", "gamma", "beta", "w2", "b2")
_BF16_WEIGHTS = frozenset(("wq", "wkv", "wm", "w1x", "w1m", "w2"))


def prepare_and_stack_params(layer_params, num_heads, use_bf16):
    prepped = [prepare_layer_params(p, num_heads) for p in layer_params]
    stacked = {}
    for name in _WEIGHT_NAMES:
        arr = jnp.stack([p[name] for p in prepped], axis=0)    # (L, ...)
        if use_bf16 and name in _BF16_WEIGHTS:
            arr = arr.astype(jnp.bfloat16)                     # halve weight DMA/VMEM
        stacked[name] = arr
    return stacked


# ---------------------------------------------------------------------------
# Full GNN: pad + slab on the host, one fused pallas_call for all layers.
# ---------------------------------------------------------------------------
def attentional_gnn(desc0, desc1, layer_params, layer_names, num_heads=4,
                    use_bf16=True):
    B, D, N = desc0.shape
    Np = max(128, ((N + 127) // 128) * 128)   # lane-align the per-batch point axis
    Mp = B * Np
    L = len(layer_names)

    def to_slab(t):    # (B, D, N) -> (D, B*Np), channel-major, zero-padded lanes
        t = jnp.transpose(t, (1, 0, 2))                        # (D, B, N)
        t = jnp.pad(t, ((0, 0), (0, 0), (0, Np - N)))
        return t.reshape(D, Mp)

    def from_slab(s):  # (D, B*Np) -> (B, D, N)
        return jnp.transpose(s.reshape(D, B, Np)[:, :, :N], (1, 0, 2))

    desc = jnp.stack([to_slab(desc0), to_slab(desc1)], axis=0)   # (2, D, Mp)

    valid = (jnp.arange(Np) < N)
    colmask = jnp.tile(valid.astype(jnp.float32), (B,)).reshape(1, Mp)
    kbias = jnp.where(valid, 0.0, -1e9).astype(jnp.float32).reshape(1, Np)
    cross_flags = jnp.asarray([1 if n == "cross" else 0 for n in layer_names],
                              jnp.int32)

    p = prepare_and_stack_params(layer_params, num_heads, use_bf16)

    kernel = functools.partial(
        _gnn_kernel, num_heads=num_heads, head_dim=D // num_heads,
        batch=B, n_valid=N, np_pad=Np, use_bf16=use_bf16)

    in_specs = [
        pl.BlockSpec((2, D, Mp), lambda l, cr: (0, 0, 0)),       # desc (fetched once)
        pl.BlockSpec((1, Mp), lambda l, cr: (0, 0)),             # column mask
        pl.BlockSpec((1, Np), lambda l, cr: (0, 0)),             # key bias
    ] + [
        pl.BlockSpec((1,) + tuple(p[name].shape[1:]), lambda l, cr: (l, 0, 0))
        for name in _WEIGHT_NAMES                                # per-layer weights
    ]
    out_spec = pl.BlockSpec((2, D, Mp), lambda l, cr: (0, 0, 0))

    grid_spec = pltpu.PrefetchScalarGridSpec(
        num_scalar_prefetch=1,
        grid=(L,),
        in_specs=in_specs,
        out_specs=out_spec,
        scratch_shapes=[
            pltpu.VMEM((2, D, Mp), jnp.float32),   # resident descriptor slab
            pltpu.VMEM((D, Mp), jnp.float32),      # per-side attention output slab
        ])

    out = pl.pallas_call(
        kernel,
        grid_spec=grid_spec,
        out_shape=jax.ShapeDtypeStruct((2, D, Mp), jnp.float32),
        compiler_params=pltpu.CompilerParams(
            dimension_semantics=("arbitrary",)),
    )(cross_flags, desc, colmask, kbias, *[p[name] for name in _WEIGHT_NAMES])

    return from_slab(out[0]), from_slab(out[1])


# ---------------------------------------------------------------------------
# Deterministic parameter initialization (shapes from the PyTorch __init__).
# ---------------------------------------------------------------------------
def _uniform(key, shape, fan_in):
    bound = 1.0 / math.sqrt(fan_in)
    return jax.random.uniform(key, shape, jnp.float32, -bound, bound)


def init_layer_params(key, D):
    ks = jax.random.split(key, 12)
    return {
        # MultiHeadedAttention: 3 projection convs + merge conv, all Conv1d(D, D, 1)
        "wq": _uniform(ks[0], (D, D), D), "bq": _uniform(ks[1], (D,), D),
        "wk": _uniform(ks[2], (D, D), D), "bk": _uniform(ks[3], (D,), D),
        "wv": _uniform(ks[4], (D, D), D), "bv": _uniform(ks[5], (D,), D),
        "wm": _uniform(ks[6], (D, D), D), "bm": _uniform(ks[7], (D,), D),
        # MLP([2D, 2D, D]): Conv1d(2D,2D) + BN(2D) + ReLU + Conv1d(2D,D)
        "w1": _uniform(ks[8], (2 * D, 2 * D), 2 * D),
        "b1": _uniform(ks[9], (2 * D,), 2 * D),
        "gamma": jnp.ones((2 * D,), jnp.float32),
        "beta": jnp.zeros((2 * D,), jnp.float32),
        "w2": _uniform(ks[10], (D, 2 * D), 2 * D),
        "b2": jnp.zeros((D,), jnp.float32),        # nn.init.constant_(mlp[-1].bias, 0.0)
    }


if __name__ == "__main__":
    B, D, N = 2, 32, 8                # batch, feature_dim, num_points
    num_heads = 4                     # AttentionalPropagation(feature_dim, 4)
    layer_names = ["self", "cross"]   # AttentionalGNN(feature_dim, layer_names)

    key = jax.random.PRNGKey(0)
    k0, k1, kp = jax.random.split(key, 3)
    desc0 = jax.random.normal(k0, (B, D, N), jnp.float32)
    desc1 = jax.random.normal(k1, (B, D, N), jnp.float32)

    layer_params = [init_layer_params(k, D)
                    for k in jax.random.split(kp, len(layer_names))]

    out0, out1 = attentional_gnn(desc0, desc1, layer_params, layer_names, num_heads)
    out0 = jax.block_until_ready(out0)
    out1 = jax.block_until_ready(out1)

    assert out0.shape == (B, D, N) and out1.shape == (B, D, N)
    assert bool(jnp.all(jnp.isfinite(out0))) and bool(jnp.all(jnp.isfinite(out1)))
    print("KERNEL_OK")
</pallas_src>

<mosaic_0001>
module attributes {stable_mosaic.version = 11 : i64} {
  func.func @_gnn_kernel(%arg0: i32, %arg1: memref<2xi32, #tpu.memory_space<smem>>, %arg2: memref<2x32x256xf32, #tpu.memory_space<vmem>>, %arg3: memref<1x256xf32, #tpu.memory_space<vmem>>, %arg4: memref<1x128xf32, #tpu.memory_space<vmem>>, %arg5: memref<1x32x32xbf16, #tpu.memory_space<vmem>>, %arg6: memref<1x32x1xf32, #tpu.memory_space<vmem>>, %arg7: memref<1x64x32xbf16, #tpu.memory_space<vmem>>, %arg8: memref<1x64x1xf32, #tpu.memory_space<vmem>>, %arg9: memref<1x32x32xbf16, #tpu.memory_space<vmem>>, %arg10: memref<1x32x1xf32, #tpu.memory_space<vmem>>, %arg11: memref<1x64x32xbf16, #tpu.memory_space<vmem>>, %arg12: memref<1x64x32xbf16, #tpu.memory_space<vmem>>, %arg13: memref<1x64x1xf32, #tpu.memory_space<vmem>>, %arg14: memref<1x64x1xf32, #tpu.memory_space<vmem>>, %arg15: memref<1x64x1xf32, #tpu.memory_space<vmem>>, %arg16: memref<1x32x64xbf16, #tpu.memory_space<vmem>>, %arg17: memref<1x32x1xf32, #tpu.memory_space<vmem>>, %arg18: memref<2x32x256xf32, #tpu.memory_space<vmem>>, %arg19: memref<2x32x256xf32, #tpu.memory_space<vmem>>, %arg20: memref<32x256xf32, #tpu.memory_space<vmem>>) attributes {dimension_semantics = [#tpu.dimension_semantics<arbitrary>], iteration_bounds = array<i64: 2>, scalar_prefetch = 1 : i64, scratch_operands = 2 : i64, tpu.core_type = #tpu.core_type<tc>, window_params = [{pipeline_mode = #tpu.pipeline_mode<synchronous>, transform_indices = @transform_0, window_bounds = array<i64: 2, 32, 256>}, {pipeline_mode = #tpu.pipeline_mode<synchronous>, transform_indices = @transform_1, window_bounds = array<i64: 1, 256>}, {pipeline_mode = #tpu.pipeline_mode<synchronous>, transform_indices = @transform_2, window_bounds = array<i64: 1, 128>}, {transform_indices = @transform_3, window_bounds = array<i64: 1, 32, 32>}, {transform_indices = @transform_4, window_bounds = array<i64: 1, 32, 1>}, {transform_indices = @transform_5, window_bounds = array<i64: 1, 64, 32>}, {transform_indices = @transform_6, window_bounds = array<i64: 1, 64, 1>}, {transform_indices = @transform_7, window_bounds = array<i64: 1, 32, 32>}, {transform_indices = @transform_8, window_bounds = array<i64: 1, 32, 1>}, {transform_indices = @transform_9, window_bounds = array<i64: 1, 64, 32>}, {transform_indices = @transform_10, window_bounds = array<i64: 1, 64, 32>}, {transform_indices = @transform_11, window_bounds = array<i64: 1, 64, 1>}, {transform_indices = @transform_12, window_bounds = array<i64: 1, 64, 1>}, {transform_indices = @transform_13, window_bounds = array<i64: 1, 64, 1>}, {transform_indices = @transform_14, window_bounds = array<i64: 1, 32, 64>}, {transform_indices = @transform_15, window_bounds = array<i64: 1, 32, 1>}, {pipeline_mode = #tpu.pipeline_mode<synchronous>, transform_indices = @transform_16, window_bounds = array<i64: 2, 32, 256>}]} {
    %c0_i32 = arith.constant 0 : i32
    %0 = arith.cmpi eq, %arg0, %c0_i32 : i32
    %1 = arith.extui %0 : i1 to i32
    %c0_i32_0 = arith.constant 0 : i32
    %2 = arith.cmpi ne, %1, %c0_i32_0 : i32
    scf.if %2 {
      %c0_179 = arith.constant 0 : index
      %c0_180 = arith.constant 0 : index
      %c0_181 = arith.constant 0 : index
      %475 = vector.load %arg2[%c0_179, %c0_180, %c0_181] : memref<2x32x256xf32, #tpu.memory_space<vmem>>, vector<2x32x256xf32>
      %c0_182 = arith.constant 0 : index
      %c0_183 = arith.constant 0 : index
      %c0_184 = arith.constant 0 : index
      %476 = vector.load %arg19[%c0_182, %c0_183, %c0_184] : memref<2x32x256xf32, #tpu.memory_space<vmem>>, vector<2x32x256xf32>
      tpu.vector_store %arg19[%c0_182, %c0_183, %c0_184], %475 {strides = array<i32>} : memref<2x32x256xf32, #tpu.memory_space<vmem>>, vector<2x32x256xf32>,
    } else {
    }
    %c0 = arith.constant 0 : index
    %c0_1 = arith.constant 0 : index
    %3 = vector.load %arg3[%c0, %c0_1] : memref<1x256xf32, #tpu.memory_space<vmem>>, vector<1x256xf32>
    %c0_2 = arith.constant 0 : index
    %c0_3 = arith.constant 0 : index
    %4 = vector.load %arg4[%c0_2, %c0_3] : memref<1x128xf32, #tpu.memory_space<vmem>>, vector<1x128xf32>
    %c0_4 = arith.constant 0 : index
    %c0_5 = arith.constant 0 : index
    %c0_6 = arith.constant 0 : index
    %5 = vector.load %arg5[%c0_4, %c0_5, %c0_6] : memref<1x32x32xbf16, #tpu.memory_space<vmem>>, vector<1x32x32xbf16>
    %6 = vector.shape_cast %5 : vector<1x32x32xbf16> to vector<32x32xbf16>
    %c0_7 = arith.constant 0 : index
    %c0_8 = arith.constant 0 : index
    %c0_9 = arith.constant 0 : index
    %7 = vector.load %arg6[%c0_7, %c0_8, %c0_9] : memref<1x32x1xf32, #tpu.memory_space<vmem>>, vector<1x32x1xf32>
    %8 = vector.shape_cast %7 : vector<1x32x1xf32> to vector<32x1xf32>
    %c0_10 = arith.constant 0 : index
    %c0_11 = arith.constant 0 : index
    %c0_12 = arith.constant 0 : index
    %9 = vector.load %arg7[%c0_10, %c0_11, %c0_12] : memref<1x64x32xbf16, #tpu.memory_space<vmem>>, vector<1x64x32xbf16>
    %10 = vector.shape_cast %9 : vector<1x64x32xbf16> to vector<64x32xbf16>
    %c0_13 = arith.constant 0 : index
    %c0_14 = arith.constant 0 : index
    %c0_15 = arith.constant 0 : index
    %11 = vector.load %arg8[%c0_13, %c0_14, %c0_15] : memref<1x64x1xf32, #tpu.memory_space<vmem>>, vector<1x64x1xf32>
    %12 = vector.shape_cast %11 : vector<1x64x1xf32> to vector<64x1xf32>
    %c0_16 = arith.constant 0 : index
    %c0_17 = arith.constant 0 : index
    %c0_18 = arith.constant 0 : index
    %13 = vector.load %arg9[%c0_16, %c0_17, %c0_18] : memref<1x32x32xbf16, #tpu.memory_space<vmem>>, vector<1x32x32xbf16>
    %14 = vector.shape_cast %13 : vector<1x32x32xbf16> to vector<32x32xbf16>
    %c0_19 = arith.constant 0 : index
    %c0_20 = arith.constant 0 : index
    %c0_21 = arith.constant 0 : index
    %15 = vector.load %arg10[%c0_19, %c0_20, %c0_21] : memref<1x32x1xf32, #tpu.memory_space<vmem>>, vector<1x32x1xf32>
    %16 = vector.shape_cast %15 : vector<1x32x1xf32> to vector<32x1xf32>
    %c0_22 = arith.constant 0 : index
    %c0_23 = arith.constant 0 : index
    %c0_24 = arith.constant 0 : index
    %17 = vector.load %arg11[%c0_22, %c0_23, %c0_24] : memref<1x64x32xbf16, #tpu.memory_space<vmem>>, vector<1x64x32xbf16>
    %18 = vector.shape_cast %17 : vector<1x64x32xbf16> to vector<64x32xbf16>
    %c0_25 = arith.constant 0 : index
    %c0_26 = arith.constant 0 : index
    %c0_27 = arith.constant 0 : index
    %19 = vector.load %arg12[%c0_25, %c0_26, %c0_27] : memref<1x64x32xbf16, #tpu.memory_space<vmem>>, vector<1x64x32xbf16>
    %20 = vector.shape_cast %19 : vector<1x64x32xbf16> to vector<64x32xbf16>
    %c0_28 = arith.constant 0 : index
    %c0_29 = arith.constant 0 : index
    %c0_30 = arith.constant 0 : index
    %21 = vector.load %arg13[%c0_28, %c0_29, %c0_30] : memref<1x64x1xf32, #tpu.memory_space<vmem>>, vector<1x64x1xf32>
    %22 = vector.shape_cast %21 : vector<1x64x1xf32> to vector<64x1xf32>
    %c0_31 = arith.constant 0 : index
    %c0_32 = arith.constant 0 : index
    %c0_33 = arith.constant 0 : index
    %23 = vector.load %arg14[%c0_31, %c0_32, %c0_33] : memref<1x64x1xf32, #tpu.memory_space<vmem>>, vector<1x64x1xf32>
    %24 = vector.shape_cast %23 : vector<1x64x1xf32> to vector<64x1xf32>
    %c0_34 = arith.constant 0 : index
    %c0_35 = arith.constant 0 : index
    %c0_36 = arith.constant 0 : index
    %25 = vector.load %arg15[%c0_34, %c0_35, %c0_36] : memref<1x64x1xf32, #tpu.memory_space<vmem>>, vector<1x64x1xf32>
    %26 = vector.shape_cast %25 : vector<1x64x1xf32> to vector<64x1xf32>
    %c0_37 = arith.constant 0 : index
    %c0_38 = arith.constant 0 : index
    %c0_39 = arith.constant 0 : index
    %27 = vector.load %arg16[%c0_37, %c0_38, %c0_39] : memref<1x32x64xbf16, #tpu.memory_space<vmem>>, vector<1x32x64xbf16>
    %28 = vector.shape_cast %27 : vector<1x32x64xbf16> to vector<32x64xbf16>
    %c0_40 = arith.constant 0 : index
    %c0_41 = arith.constant 0 : index
    %c0_42 = arith.constant 0 : index
    %29 = vector.load %arg17[%c0_40, %c0_41, %c0_42] : memref<1x32x1xf32, #tpu.memory_space<vmem>>, vector<1x32x1xf32>
    %30 = vector.shape_cast %29 : vector<1x32x1xf32> to vector<32x1xf32>
    %31 = arith.index_cast %arg0 : i32 to index
    %32 = memref.load %arg1[%31] : memref<2xi32, #tpu.memory_space<smem>>
    %c0_i32_43 = arith.constant 0 : i32
    %33 = arith.cmpi ne, %32, %c0_i32_43 : i32
    %c0_44 = arith.constant 0 : index
    %c0_45 = arith.constant 0 : index
    %c0_46 = arith.constant 0 : index
    %34 = vector.load %arg19[%c0_44, %c0_45, %c0_46] : memref<2x32x256xf32, #tpu.memory_space<vmem>>, vector<1x32x256xf32>
    %35 = vector.shape_cast %34 : vector<1x32x256xf32> to vector<32x256xf32>
    %c1 = arith.constant 1 : index
    %c0_47 = arith.constant 0 : index
    %c0_48 = arith.constant 0 : index
    %36 = vector.load %arg19[%c1, %c0_47, %c0_48] : memref<2x32x256xf32, #tpu.memory_space<vmem>>, vector<1x32x256xf32>
    %37 = vector.shape_cast %36 : vector<1x32x256xf32> to vector<32x256xf32>
    %38 = arith.select %33, %37, %35 : vector<32x256xf32>
    %39 = arith.truncf %35 : vector<32x256xf32> to vector<32x256xbf16>
    %40 = arith.truncf %38 : vector<32x256xf32> to vector<32x256xbf16>
    %cst = arith.constant dense<0.000000e+00> : vector<32x256xf32>
    %41 = tpu.matmul %6, %39, %cst {dimension_numbers = #tpu.dot_dimension_numbers<[1], [0], [0], [1], [0, 0, 1, 1], [], []>} : vector<32x32xbf16>, vector<32x256xbf16>, vector<32x256xf32> -> vector<32x256xf32>
    %42 = vector.broadcast %8 : vector<32x1xf32> to vector<32x256xf32>
    %43 = arith.addf %41, %42 : vector<32x256xf32>
    %cst_49 = arith.constant dense<0.000000e+00> : vector<64x256xf32>
    %44 = tpu.matmul %10, %40, %cst_49 {dimension_numbers = #tpu.dot_dimension_numbers<[1], [0], [0], [1], [0, 0, 1, 1], [], []>} : vector<64x32xbf16>, vector<32x256xbf16>, vector<64x256xf32> -> vector<64x256xf32>
    %45 = vector.broadcast %12 : vector<64x1xf32> to vector<64x256xf32>
    %46 = arith.addf %44, %45 : vector<64x256xf32>
    %cst_50 = arith.constant 0.353553385 : f32
    %47 = vector.broadcast %cst_50 : f32 to vector<32x256xf32>
    %48 = arith.mulf %43, %47 : vector<32x256xf32>
    %49 = arith.truncf %48 : vector<32x256xf32> to vector<32x256xbf16>
    %50 = vector.extract_strided_slice %46 {offsets = [0, 0], sizes = [32, 256], strides = [1, 1]} : vector<64x256xf32> to vector<32x256xf32>
    %51 = arith.truncf %50 : vector<32x256xf32> to vector<32x256xbf16>
    %52 = vector.extract_strided_slice %46 {offsets = [32, 0], sizes = [32, 256], strides = [1, 1]} : vector<64x256xf32> to vector<32x256xf32>
    %53 = arith.truncf %52 : vector<32x256xf32> to vector<32x256xbf16>
    %54 = vector.extract_strided_slice %49 {offsets = [0, 0], sizes = [8, 128], strides = [1, 1]} : vector<32x256xbf16> to vector<8x128xbf16>
    %55 = vector.extract_strided_slice %51 {offsets = [0, 0], sizes = [8, 128], strides = [1, 1]} : vector<32x256xbf16> to vector<8x128xbf16>
    %56 = vector.extract_strided_slice %53 {offsets = [0, 0], sizes = [8, 128], strides = [1, 1]} : vector<32x256xbf16> to vector<8x128xbf16>
    %cst_51 = arith.constant dense<0.000000e+00> : vector<128x128xf32>
    %57 = tpu.matmul %54, %55, %cst_51 {dimension_numbers = #tpu.dot_dimension_numbers<[0], [0], [1], [1], [0, 1, 1, 1], [], []>} : vector<8x128xbf16>, vector<8x128xbf16>, vector<128x128xf32> -> vector<128x128xf32>
    %58 = vector.broadcast %4 : vector<1x128xf32> to vector<128x128xf32>
    %59 = arith.addf %57, %58 : vector<128x128xf32>
    %cst_52 = arith.constant dense<0xFF800000> : vector<128xf32>
    %60 = vector.multi_reduction <maximumf>, %59, %cst_52 [1] : vector<128x128xf32> to vector<128xf32>
    %61 = vector.shape_cast %60 : vector<128xf32> to vector<128x1xf32>
    %62 = vector.broadcast %61 : vector<128x1xf32> to vector<128x128xf32>
    %63 = arith.subf %59, %62 : vector<128x128xf32>
    %64 = math.exp %63 : vector<128x128xf32>
    %cst_53 = arith.constant dense<0.000000e+00> : vector<128xf32>
    %65 = vector.multi_reduction <add>, %64, %cst_53 [1] : vector<128x128xf32> to vector<128xf32>
    %66 = vector.shape_cast %65 : vector<128xf32> to vector<128x1xf32>
    %67 = tpu.reciprocal %66 {approx = true} : vector<128x1xf32> -> vector<128x1xf32>
    %68 = vector.broadcast %67 : vector<128x1xf32> to vector<128x128xf32>
    %69 = arith.mulf %64, %68 : vector<128x128xf32>
    %70 = arith.truncf %69 : vector<128x128xf32> to vector<128x128xbf16>
    %cst_54 = arith.constant dense<0.000000e+00> : vector<8x128xf32>
    %71 = tpu.matmul %56, %70, %cst_54 {dimension_numbers = #tpu.dot_dimension_numbers<[1], [1], [0], [0], [0, 0, 1, 0], [], []>} : vector<8x128xbf16>, vector<128x128xbf16>, vector<8x128xf32> -> vector<8x128xf32>
    %c0_55 = arith.constant 0 : index
    %c0_56 = arith.constant 0 : index
    %72 = vector.load %arg20[%c0_55, %c0_56] : memref<32x256xf32, #tpu.memory_space<vmem>>, vector<8x128xf32>
    tpu.vector_store %arg20[%c0_55, %c0_56], %71 {strides = array<i32>} : memref<32x256xf32, #tpu.memory_space<vmem>>, vector<8x128xf32>,
    %73 = vector.extract_strided_slice %49 {offsets = [8, 0], sizes = [8, 128], strides = [1, 1]} : vector<32x256xbf16> to vector<8x128xbf16>
    %74 = vector.extract_strided_slice %51 {offsets = [8, 0], sizes = [8, 128], strides = [1, 1]} : vector<32x256xbf16> to vector<8x128xbf16>
    %75 = vector.extract_strided_slice %53 {offsets = [8, 0], sizes = [8, 128], strides = [1, 1]} : vector<32x256xbf16> to vector<8x128xbf16>
    %cst_57 = arith.constant dense<0.000000e+00> : vector<128x128xf32>
    %76 = tpu.matmul %73, %74, %cst_57 {dimension_numbers = #tpu.dot_dimension_numbers<[0], [0], [1], [1], [0, 1, 1, 1], [], []>} : vector<8x128xbf16>, vector<8x128xbf16>, vector<128x128xf32> -> vector<128x128xf32>
    %77 = vector.broadcast %4 : vector<1x128xf32> to vector<128x128xf32>
    %78 = arith.addf %76, %77 : vector<128x128xf32>
    %cst_58 = arith.constant dense<0xFF800000> : vector<128xf32>
    %79 = vector.multi_reduction <maximumf>, %78, %cst_58 [1] : vector<128x128xf32> to vector<128xf32>
    %80 = vector.shape_cast %79 : vector<128xf32> to vector<128x1xf32>
    %81 = vector.broadcast %80 : vector<128x1xf32> to vector<128x128xf32>
    %82 = arith.subf %78, %81 : vector<128x128xf32>
    %83 = math.exp %82 : vector<128x128xf32>
    %cst_59 = arith.constant dense<0.000000e+00> : vector<128xf32>
    %84 = vector.multi_reduction <add>, %83, %cst_59 [1] : vector<128x128xf32> to vector<128xf32>
    %85 = vector.shape_cast %84 : vector<128xf32> to vector<128x1xf32>
    %86 = tpu.reciprocal %85 {approx = true} : vector<128x1xf32> -> vector<128x1xf32>
    %87 = vector.broadcast %86 : vector<128x1xf32> to vector<128x128xf32>
    %88 = arith.mulf %83, %87 : vector<128x128xf32>
    %89 = arith.truncf %88 : vector<128x128xf32> to vector<128x128xbf16>
    %cst_60 = arith.constant dense<0.000000e+00> : vector<8x128xf32>
    %90 = tpu.matmul %75, %89, %cst_60 {dimension_numbers = #tpu.dot_dimension_numbers<[1], [1], [0], [0], [0, 0, 1, 0], [], []>} : vector<8x128xbf16>, vector<128x128xbf16>, vector<8x128xf32> -> vector<8x128xf32>
    %c8 = arith.constant 8 : index
    %c0_61 = arith.constant 0 : index
    %91 = vector.load %arg20[%c8, %c0_61] : memref<32x256xf32, #tpu.memory_space<vmem>>, vector<8x128xf32>
    tpu.vector_store %arg20[%c8, %c0_61], %90 {strides = array<i32>} : memref<32x256xf32, #tpu.memory_space<vmem>>, vector<8x128xf32>,
    %92 = vector.extract_strided_slice %49 {offsets = [16, 0], sizes = [8, 128], strides = [1, 1]} : vector<32x256xbf16> to vector<8x128xbf16>
    %93 = vector.extract_strided_slice %51 {offsets = [16, 0], sizes = [8, 128], strides = [1, 1]} : vector<32x256xbf16> to vector<8x128xbf16>
    %94 = vector.extract_strided_slice %53 {offsets = [16, 0], sizes = [8, 128], strides = [1, 1]} : vector<32x256xbf16> to vector<8x128xbf16>
    %cst_62 = arith.constant dense<0.000000e+00> : vector<128x128xf32>
    %95 = tpu.matmul %92, %93, %cst_62 {dimension_numbers = #tpu.dot_dimension_numbers<[0], [0], [1], [1], [0, 1, 1, 1], [], []>} : vector<8x128xbf16>, vector<8x128xbf16>, vector<128x128xf32> -> vector<128x128xf32>
    %96 = vector.broadcast %4 : vector<1x128xf32> to vector<128x128xf32>
    %97 = arith.addf %95, %96 : vector<128x128xf32>
    %cst_63 = arith.constant dense<0xFF800000> : vector<128xf32>
    %98 = vector.multi_reduction <maximumf>, %97, %cst_63 [1] : vector<128x128xf32> to vector<128xf32>
    %99 = vector.shape_cast %98 : vector<128xf32> to vector<128x1xf32>
    %100 = vector.broadcast %99 : vector<128x1xf32> to vector<128x128xf32>
    %101 = arith.subf %97, %100 : vector<128x128xf32>
    %102 = math.exp %101 : vector<128x128xf32>
    %cst_64 = arith.constant dense<0.000000e+00> : vector<128xf32>
    %103 = vector.multi_reduction <add>, %102, %cst_64 [1] : vector<128x128xf32> to vector<128xf32>
    %104 = vector.shape_cast %103 : vector<128xf32> to vector<128x1xf32>
    %105 = tpu.reciprocal %104 {approx = true} : vector<128x1xf32> -> vector<128x1xf32>
    %106 = vector.broadcast %105 : vector<128x1xf32> to vector<128x128xf32>
    %107 = arith.mulf %102, %106 : vector<128x128xf32>
    %108 = arith.truncf %107 : vector<128x128xf32> to vector<128x128xbf16>
    %cst_65 = arith.constant dense<0.000000e+00> : vector<8x128xf32>
    %109 = tpu.matmul %94, %108, %cst_65 {dimension_numbers = #tpu.dot_dimension_numbers<[1], [1], [0], [0], [0, 0, 1, 0], [], []>} : vector<8x128xbf16>, vector<128x128xbf16>, vector<8x128xf32> -> vector<8x128xf32>
    %c16 = arith.constant 16 : index
    %c0_66 = arith.constant 0 : index
    %110 = vector.load %arg20[%c16, %c0_66] : memref<32x256xf32, #tpu.memory_space<vmem>>, vector<8x128xf32>
    tpu.vector_store %arg20[%c16, %c0_66], %109 {strides = array<i32>} : memref<32x256xf32, #tpu.memory_space<vmem>>, vector<8x128xf32>,
    %111 = vector.extract_strided_slice %49 {offsets = [24, 0], sizes = [8, 128], strides = [1, 1]} : vector<32x256xbf16> to vector<8x128xbf16>
    %112 = vector.extract_strided_slice %51 {offsets = [24, 0], sizes = [8, 128], strides = [1, 1]} : vector<32x256xbf16> to vector<8x128xbf16>
    %113 = vector.extract_strided_slice %53 {offsets = [24, 0], sizes = [8, 128], strides = [1, 1]} : vector<32x256xbf16> to vector<8x128xbf16>
    %cst_67 = arith.constant dense<0.000000e+00> : vector<128x128xf32>
    %114 = tpu.matmul %111, %112, %cst_67 {dimension_numbers = #tpu.dot_dimension_numbers<[0], [0], [1], [1], [0, 1, 1, 1], [], []>} : vector<8x128xbf16>, vector<8x128xbf16>, vector<128x128xf32> -> vector<128x128xf32>
    %115 = vector.broadcast %4 : vector<1x128xf32> to vector<128x128xf32>
    %116 = arith.addf %114, %115 : vector<128x128xf32>
    %cst_68 = arith.constant dense<0xFF800000> : vector<128xf32>
    %117 = vector.multi_reduction <maximumf>, %116, %cst_68 [1] : vector<128x128xf32> to vector<128xf32>
    %118 = vector.shape_cast %117 : vector<128xf32> to vector<128x1xf32>
    %119 = vector.broadcast %118 : vector<128x1xf32> to vector<128x128xf32>
    %120 = arith.subf %116, %119 : vector<128x128xf32>
    %121 = math.exp %120 : vector<128x128xf32>
    %cst_69 = arith.constant dense<0.000000e+00> : vector<128xf32>
    %122 = vector.multi_reduction <add>, %121, %cst_69 [1] : vector<128x128xf32> to vector<128xf32>
    %123 = vector.shape_cast %122 : vector<128xf32> to vector<128x1xf32>
    %124 = tpu.reciprocal %123 {approx = true} : vector<128x1xf32> -> vector<128x1xf32>
    %125 = vector.broadcast %124 : vector<128x1xf32> to vector<128x128xf32>
    %126 = arith.mulf %121, %125 : vector<128x128xf32>
    %127 = arith.truncf %126 : vector<128x128xf32> to vector<128x128xbf16>
    %cst_70 = arith.constant dense<0.000000e+00> : vector<8x128xf32>
    %128 = tpu.matmul %113, %127, %cst_70 {dimension_numbers = #tpu.dot_dimension_numbers<[1], [1], [0], [0], [0, 0, 1, 0], [], []>} : vector<8x128xbf16>, vector<128x128xbf16>, vector<8x128xf32> -> vector<8x128xf32>
    %c24 = arith.constant 24 : index
    %c0_71 = arith.constant 0 : index
    %129 = vector.load %arg20[%c24, %c0_71] : memref<32x256xf32, #tpu.memory_space<vmem>>, vector<8x128xf32>
    tpu.vector_store %arg20[%c24, %c0_71], %128 {strides = array<i32>} : memref<32x256xf32, #tpu.memory_space<vmem>>, vector<8x128xf32>,
    %130 = vector.extract_strided_slice %49 {offsets = [0, 128], sizes = [8, 128], strides = [1, 1]} : vector<32x256xbf16> to vector<8x128xbf16>
    %131 = vector.extract_strided_slice %51 {offsets = [0, 128], sizes = [8, 128], strides = [1, 1]} : vector<32x256xbf16> to vector<8x128xbf16>
    %132 = vector.extract_strided_slice %53 {offsets = [0, 128], sizes = [8, 128], strides = [1, 1]} : vector<32x256xbf16> to vector<8x128xbf16>
    %cst_72 = arith.constant dense<0.000000e+00> : vector<128x128xf32>
    %133 = tpu.matmul %130, %131, %cst_72 {dimension_numbers = #tpu.dot_dimension_numbers<[0], [0], [1], [1], [0, 1, 1, 1], [], []>} : vector<8x128xbf16>, vector<8x128xbf16>, vector<128x128xf32> -> vector<128x128xf32>
    %134 = vector.broadcast %4 : vector<1x128xf32> to vector<128x128xf32>
    %135 = arith.addf %133, %134 : vector<128x128xf32>
    %cst_73 = arith.constant dense<0xFF800000> : vector<128xf32>
    %136 = vector.multi_reduction <maximumf>, %135, %cst_73 [1] : vector<128x128xf32> to vector<128xf32>
    %137 = vector.shape_cast %136 : vector<128xf32> to vector<128x1xf32>
    %138 = vector.broadcast %137 : vector<128x1xf32> to vector<128x128xf32>
    %139 = arith.subf %135, %138 : vector<128x128xf32>
    %140 = math.exp %139 : vector<128x128xf32>
    %cst_74 = arith.constant dense<0.000000e+00> : vector<128xf32>
    %141 = vector.multi_reduction <add>, %140, %cst_74 [1] : vector<128x128xf32> to vector<128xf32>
    %142 = vector.shape_cast %141 : vector<128xf32> to vector<128x1xf32>
    %143 = tpu.reciprocal %142 {approx = true} : vector<128x1xf32> -> vector<128x1xf32>
    %144 = vector.broadcast %143 : vector<128x1xf32> to vector<128x128xf32>
    %145 = arith.mulf %140, %144 : vector<128x128xf32>
    %146 = arith.truncf %145 : vector<128x128xf32> to vector<128x128xbf16>
    %cst_75 = arith.constant dense<0.000000e+00> : vector<8x128xf32>
    %147 = tpu.matmul %132, %146, %cst_75 {dimension_numbers = #tpu.dot_dimension_numbers<[1], [1], [0], [0], [0, 0, 1, 0], [], []>} : vector<8x128xbf16>, vector<128x128xbf16>, vector<8x128xf32> -> vector<8x128xf32>
    %c0_76 = arith.constant 0 : index
    %c128 = arith.constant 128 : index
    %148 = vector.load %arg20[%c0_76, %c128] : memref<32x256xf32, #tpu.memory_space<vmem>>, vector<8x128xf32>
    tpu.vector_store %arg20[%c0_76, %c128], %147 {strides = array<i32>} : memref<32x256xf32, #tpu.memory_space<vmem>>, vector<8x128xf32>,
    %149 = vector.extract_strided_slice %49 {offsets = [8, 128], sizes = [8, 128], strides = [1, 1]} : vector<32x256xbf16> to vector<8x128xbf16>
    %150 = vector.extract_strided_slice %51 {offsets = [8, 128], sizes = [8, 128], strides = [1, 1]} : vector<32x256xbf16> to vector<8x128xbf16>
    %151 = vector.extract_strided_slice %53 {offsets = [8, 128], sizes = [8, 128], strides = [1, 1]} : vector<32x256xbf16> to vector<8x128xbf16>
    %cst_77 = arith.constant dense<0.000000e+00> : vector<128x128xf32>
    %152 = tpu.matmul %149, %150, %cst_77 {dimension_numbers = #tpu.dot_dimension_numbers<[0], [0], [1], [1], [0, 1, 1, 1], [], []>} : vector<8x128xbf16>, vector<8x128xbf16>, vector<128x128xf32> -> vector<128x128xf32>
    %153 = vector.broadcast %4 : vector<1x128xf32> to vector<128x128xf32>
    %154 = arith.addf %152, %153 : vector<128x128xf32>
    %cst_78 = arith.constant dense<0xFF800000> : vector<128xf32>
    %155 = vector.multi_reduction <maximumf>, %154, %cst_78 [1] : vector<128x128xf32> to vector<128xf32>
    %156 = vector.shape_cast %155 : vector<128xf32> to vector<128x1xf32>
    %157 = vector.broadcast %156 : vector<128x1xf32> to vector<128x128xf32>
    %158 = arith.subf %154, %157 : vector<128x128xf32>
    %159 = math.exp %158 : vector<128x128xf32>
    %cst_79 = arith.constant dense<0.000000e+00> : vector<128xf32>
    %160 = vector.multi_reduction <add>, %159, %cst_79 [1] : vector<128x128xf32> to vector<128xf32>
    %161 = vector.shape_cast %160 : vector<128xf32> to vector<128x1xf32>
    %162 = tpu.reciprocal %161 {approx = true} : vector<128x1xf32> -> vector<128x1xf32>
    %163 = vector.broadcast %162 : vector<128x1xf32> to vector<128x128xf32>
    %164 = arith.mulf %159, %163 : vector<128x128xf32>
    %165 = arith.truncf %164 : vector<128x128xf32> to vector<128x128xbf16>
    %cst_80 = arith.constant dense<0.000000e+00> : vector<8x128xf32>
    %166 = tpu.matmul %151, %165, %cst_80 {dimension_numbers = #tpu.dot_dimension_numbers<[1], [1], [0], [0], [0, 0, 1, 0], [], []>} : vector<8x128xbf16>, vector<128x128xbf16>, vector<8x128xf32> -> vector<8x128xf32>
    %c8_81 = arith.constant 8 : index
    %c128_82 = arith.constant 128 : index
    %167 = vector.load %arg20[%c8_81, %c128_82] : memref<32x256xf32, #tpu.memory_space<vmem>>, vector<8x128xf32>
    tpu.vector_store %arg20[%c8_81, %c128_82], %166 {strides = array<i32>} : memref<32x256xf32, #tpu.memory_space<vmem>>, vector<8x128xf32>,
    %168 = vector.extract_strided_slice %49 {offsets = [16, 128], sizes = [8, 128], strides = [1, 1]} : vector<32x256xbf16> to vector<8x128xbf16>
    %169 = vector.extract_strided_slice %51 {offsets = [16, 128], sizes = [8, 128], strides = [1, 1]} : vector<32x256xbf16> to vector<8x128xbf16>
    %170 = vector.extract_strided_slice %53 {offsets = [16, 128], sizes = [8, 128], strides = [1, 1]} : vector<32x256xbf16> to vector<8x128xbf16>
    %cst_83 = arith.constant dense<0.000000e+00> : vector<128x128xf32>
    %171 = tpu.matmul %168, %169, %cst_83 {dimension_numbers = #tpu.dot_dimension_numbers<[0], [0], [1], [1], [0, 1, 1, 1], [], []>} : vector<8x128xbf16>, vector<8x128xbf16>, vector<128x128xf32> -> vector<128x128xf32>
    %172 = vector.broadcast %4 : vector<1x128xf32> to vector<128x128xf32>
    %173 = arith.addf %171, %172 : vector<128x128xf32>
    %cst_84 = arith.constant dense<0xFF800000> : vector<128xf32>
    %174 = vector.multi_reduction <maximumf>, %173, %cst_84 [1] : vector<128x128xf32> to vector<128xf32>
    %175 = vector.shape_cast %174 : vector<128xf32> to vector<128x1xf32>
    %176 = vector.broadcast %175 : vector<128x1xf32> to vector<128x128xf32>
    %177 = arith.subf %173, %176 : vector<128x128xf32>
    %178 = math.exp %177 : vector<128x128xf32>
    %cst_85 = arith.constant dense<0.000000e+00> : vector<128xf32>
    %179 = vector.multi_reduction <add>, %178, %cst_85 [1] : vector<128x128xf32> to vector<128xf32>
    %180 = vector.shape_cast %179 : vector<128xf32> to vector<128x1xf32>
    %181 = tpu.reciprocal %180 {approx = true} : vector<128x1xf32> -> vector<128x1xf32>
    %182 = vector.broadcast %181 : vector<128x1xf32> to vector<128x128xf32>
    %183 = arith.mulf %178, %182 : vector<128x128xf32>
    %184 = arith.truncf %183 : vector<128x128xf32> to vector<128x128xbf16>
    %cst_86 = arith.constant dense<0.000000e+00> : vector<8x128xf32>
    %185 = tpu.matmul %170, %184, %cst_86 {dimension_numbers = #tpu.dot_dimension_numbers<[1], [1], [0], [0], [0, 0, 1, 0], [], []>} : vector<8x128xbf16>, vector<128x128xbf16>, vector<8x128xf32> -> vector<8x128xf32>
    %c16_87 = arith.constant 16 : index
    %c128_88 = arith.constant 128 : index
    %186 = vector.load %arg20[%c16_87, %c128_88] : memref<32x256xf32, #tpu.memory_space<vmem>>, vector<8x128xf32>
    tpu.vector_store %arg20[%c16_87, %c128_88], %185 {strides = array<i32>} : memref<32x256xf32, #tpu.memory_space<vmem>>, vector<8x128xf32>,
    %187 = vector.extract_strided_slice %49 {offsets = [24, 128], sizes = [8, 128], strides = [1, 1]} : vector<32x256xbf16> to vector<8x128xbf16>
    %188 = vector.extract_strided_slice %51 {offsets = [24, 128], sizes = [8, 128], strides = [1, 1]} : vector<32x256xbf16> to vector<8x128xbf16>
    %189 = vector.extract_strided_slice %53 {offsets = [24, 128], sizes = [8, 128], strides = [1, 1]} : vector<32x256xbf16> to vector<8x128xbf16>
    %cst_89 = arith.constant dense<0.000000e+00> : vector<128x128xf32>
    %190 = tpu.matmul %187, %188, %cst_89 {dimension_numbers = #tpu.dot_dimension_numbers<[0], [0], [1], [1], [0, 1, 1, 1], [], []>} : vector<8x128xbf16>, vector<8x128xbf16>, vector<128x128xf32> -> vector<128x128xf32>
    %191 = vector.broadcast %4 : vector<1x128xf32> to vector<128x128xf32>
    %192 = arith.addf %190, %191 : vector<128x128xf32>
    %cst_90 = arith.constant dense<0xFF800000> : vector<128xf32>
    %193 = vector.multi_reduction <maximumf>, %192, %cst_90 [1] : vector<128x128xf32> to vector<128xf32>
    %194 = vector.shape_cast %193 : vector<128xf32> to vector<128x1xf32>
    %195 = vector.broadcast %194 : vector<128x1xf32> to vector<128x128xf32>
    %196 = arith.subf %192, %195 : vector<128x128xf32>
    %197 = math.exp %196 : vector<128x128xf32>
    %cst_91 = arith.constant dense<0.000000e+00> : vector<128xf32>
    %198 = vector.multi_reduction <add>, %197, %cst_91 [1] : vector<128x128xf32> to vector<128xf32>
    %199 = vector.shape_cast %198 : vector<128xf32> to vector<128x1xf32>
    %200 = tpu.reciprocal %199 {approx = true} : vector<128x1xf32> -> vector<128x1xf32>
    %201 = vector.broadcast %200 : vector<128x1xf32> to vector<128x128xf32>
    %202 = arith.mulf %197, %201 : vector<128x128xf32>
    %203 = arith.truncf %202 : vector<128x128xf32> to vector<128x128xbf16>
    %cst_92 = arith.constant dense<0.000000e+00> : vector<8x128xf32>
    %204 = tpu.matmul %189, %203, %cst_92 {dimension_numbers = #tpu.dot_dimension_numbers<[1], [1], [0], [0], [0, 0, 1, 0], [], []>} : vector<8x128xbf16>, vector<128x128xbf16>, vector<8x128xf32> -> vector<8x128xf32>
    %c24_93 = arith.constant 24 : index
    %c128_94 = arith.constant 128 : index
    %205 = vector.load %arg20[%c24_93, %c128_94] : memref<32x256xf32, #tpu.memory_space<vmem>>, vector<8x128xf32>
    tpu.vector_store %arg20[%c24_93, %c128_94], %204 {strides = array<i32>} : memref<32x256xf32, #tpu.memory_space<vmem>>, vector<8x128xf32>,
    %c0_95 = arith.constant 0 : index
    %c0_96 = arith.constant 0 : index
    %206 = vector.load %arg20[%c0_95, %c0_96] : memref<32x256xf32, #tpu.memory_space<vmem>>, vector<32x256xf32>
    %207 = arith.truncf %206 : vector<32x256xf32> to vector<32x256xbf16>
    %cst_97 = arith.constant dense<0.000000e+00> : vector<32x256xf32>
    %208 = tpu.matmul %14, %207, %cst_97 {dimension_numbers = #tpu.dot_dimension_numbers<[1], [0], [0], [1], [0, 0, 1, 1], [], []>} : vector<32x32xbf16>, vector<32x256xbf16>, vector<32x256xf32> -> vector<32x256xf32>
    %209 = vector.broadcast %16 : vector<32x1xf32> to vector<32x256xf32>
    %210 = arith.addf %208, %209 : vector<32x256xf32>
    %cst_98 = arith.constant dense<0.000000e+00> : vector<64x256xf32>
    %211 = tpu.matmul %18, %39, %cst_98 {dimension_numbers = #tpu.dot_dimension_numbers<[1], [0], [0], [1], [0, 0, 1, 1], [], []>} : vector<64x32xbf16>, vector<32x256xbf16>, vector<64x256xf32> -> vector<64x256xf32>
    %212 = arith.truncf %210 : vector<32x256xf32> to vector<32x256xbf16>
    %cst_99 = arith.constant dense<0.000000e+00> : vector<64x256xf32>
    %213 = tpu.matmul %20, %212, %cst_99 {dimension_numbers = #tpu.dot_dimension_numbers<[1], [0], [0], [1], [0, 0, 1, 1], [], []>} : vector<64x32xbf16>, vector<32x256xbf16>, vector<64x256xf32> -> vector<64x256xf32>
    %214 = arith.addf %211, %213 : vector<64x256xf32>
    %215 = vector.broadcast %22 : vector<64x1xf32> to vector<64x256xf32>
    %216 = arith.addf %214, %215 : vector<64x256xf32>
    %217 = vector.broadcast %3 : vector<1x256xf32> to vector<64x256xf32>
    %218 = arith.mulf %216, %217 : vector<64x256xf32>
    %cst_100 = arith.constant dense<0.000000e+00> : vector<64xf32>
    %219 = vector.multi_reduction <add>, %218, %cst_100 [1] : vector<64x256xf32> to vector<64xf32>
    %220 = vector.shape_cast %219 : vector<64xf32> to vector<64x1xf32>
    %221 = arith.mulf %218, %216 : vector<64x256xf32>
    %cst_101 = arith.constant dense<0.000000e+00> : vector<64xf32>
    %222 = vector.multi_reduction <add>, %221, %cst_101 [1] : vector<64x256xf32> to vector<64xf32>
    %223 = vector.shape_cast %222 : vector<64xf32> to vector<64x1xf32>
    %cst_102 = arith.constant 6.250000e-02 : f32
    %224 = vector.broadcast %cst_102 : f32 to vector<64x1xf32>
    %225 = arith.mulf %220, %224 : vector<64x1xf32>
    %cst_103 = arith.constant 6.250000e-02 : f32
    %226 = vector.broadcast %cst_103 : f32 to vector<64x1xf32>
    %227 = arith.mulf %223, %226 : vector<64x1xf32>
    %228 = arith.mulf %225, %225 : vector<64x1xf32>
    %229 = arith.subf %227, %228 : vector<64x1xf32>
    %cst_104 = arith.constant 0.000000e+00 : f32
    %230 = vector.broadcast %cst_104 : f32 to vector<64x1xf32>
    %231 = arith.maximumf %229, %230 : vector<64x1xf32>
    %232 = vector.broadcast %225 : vector<64x1xf32> to vector<64x256xf32>
    %233 = arith.subf %216, %232 : vector<64x256xf32>
    %cst_105 = arith.constant 9.99999974E-6 : f32
    %234 = vector.broadcast %cst_105 : f32 to vector<64x1xf32>
    %235 = arith.addf %231, %234 : vector<64x1xf32>
    %236 = math.rsqrt %235 : vector<64x1xf32>
    %237 = vector.broadcast %236 : vector<64x1xf32> to vector<64x256xf32>
    %238 = arith.mulf %233, %237 : vector<64x256xf32>
    %239 = vector.broadcast %24 : vector<64x1xf32> to vector<64x256xf32>
    %240 = arith.mulf %238, %239 : vector<64x256xf32>
    %241 = vector.broadcast %26 : vector<64x1xf32> to vector<64x256xf32>
    %242 = arith.addf %240, %241 : vector<64x256xf32>
    %cst_106 = arith.constant 0.000000e+00 : f32
    %243 = vector.broadcast %cst_106 : f32 to vector<64x256xf32>
    %244 = arith.maximumf %242, %243 : vector<64x256xf32>
    %245 = arith.truncf %244 : vector<64x256xf32> to vector<64x256xbf16>
    %cst_107 = arith.constant dense<0.000000e+00> : vector<32x256xf32>
    %246 = tpu.matmul %28, %245, %cst_107 {dimension_numbers = #tpu.dot_dimension_numbers<[1], [0], [0], [1], [0, 0, 1, 1], [], []>} : vector<32x64xbf16>, vector<64x256xbf16>, vector<32x256xf32> -> vector<32x256xf32>
    %247 = vector.broadcast %30 : vector<32x1xf32> to vector<32x256xf32>
    %248 = arith.addf %246, %247 : vector<32x256xf32>
    %249 = arith.select %33, %35, %37 : vector<32x256xf32>
    %250 = arith.truncf %37 : vector<32x256xf32> to vector<32x256xbf16>
    %251 = arith.truncf %249 : vector<32x256xf32> to vector<32x256xbf16>
    %cst_108 = arith.constant dense<0.000000e+00> : vector<32x256xf32>
    %252 = tpu.matmul %6, %250, %cst_108 {dimension_numbers = #tpu.dot_dimension_numbers<[1], [0], [0], [1], [0, 0, 1, 1], [], []>} : vector<32x32xbf16>, vector<32x256xbf16>, vector<32x256xf32> -> vector<32x256xf32>
    %253 = vector.broadcast %8 : vector<32x1xf32> to vector<32x256xf32>
    %254 = arith.addf %252, %253 : vector<32x256xf32>
    %cst_109 = arith.constant dense<0.000000e+00> : vector<64x256xf32>
    %255 = tpu.matmul %10, %251, %cst_109 {dimension_numbers = #tpu.dot_dimension_numbers<[1], [0], [0], [1], [0, 0, 1, 1], [], []>} : vector<64x32xbf16>, vector<32x256xbf16>, vector<64x256xf32> -> vector<64x256xf32>
    %256 = vector.broadcast %12 : vector<64x1xf32> to vector<64x256xf32>
    %257 = arith.addf %255, %256 : vector<64x256xf32>
    %cst_110 = arith.constant 0.353553385 : f32
    %258 = vector.broadcast %cst_110 : f32 to vector<32x256xf32>
    %259 = arith.mulf %254, %258 : vector<32x256xf32>
    %260 = arith.truncf %259 : vector<32x256xf32> to vector<32x256xbf16>
    %261 = vector.extract_strided_slice %257 {offsets = [0, 0], sizes = [32, 256], strides = [1, 1]} : vector<64x256xf32> to vector<32x256xf32>
    %262 = arith.truncf %261 : vector<32x256xf32> to vector<32x256xbf16>
    %263 = vector.extract_strided_slice %257 {offsets = [32, 0], sizes = [32, 256], strides = [1, 1]} : vector<64x256xf32> to vector<32x256xf32>
    %264 = arith.truncf %263 : vector<32x256xf32> to vector<32x256xbf16>
    %265 = vector.extract_strided_slice %260 {offsets = [0, 0], sizes = [8, 128], strides = [1, 1]} : vector<32x256xbf16> to vector<8x128xbf16>
    %266 = vector.extract_strided_slice %262 {offsets = [0, 0], sizes = [8, 128], strides = [1, 1]} : vector<32x256xbf16> to vector<8x128xbf16>
    %267 = vector.extract_strided_slice %264 {offsets = [0, 0], sizes = [8, 128], strides = [1, 1]} : vector<32x256xbf16> to vector<8x128xbf16>
    %cst_111 = arith.constant dense<0.000000e+00> : vector<128x128xf32>
    %268 = tpu.matmul %265, %266, %cst_111 {dimension_numbers = #tpu.dot_dimension_numbers<[0], [0], [1], [1], [0, 1, 1, 1], [], []>} : vector<8x128xbf16>, vector<8x128xbf16>, vector<128x128xf32> -> vector<128x128xf32>
    %269 = vector.broadcast %4 : vector<1x128xf32> to vector<128x128xf32>
    %270 = arith.addf %268, %269 : vector<128x128xf32>
    %cst_112 = arith.constant dense<0xFF800000> : vector<128xf32>
    %271 = vector.multi_reduction <maximumf>, %270, %cst_112 [1] : vector<128x128xf32> to vector<128xf32>
    %272 = vector.shape_cast %271 : vector<128xf32> to vector<128x1xf32>
    %273 = vector.broadcast %272 : vector<128x1xf32> to vector<128x128xf32>
    %274 = arith.subf %270, %273 : vector<128x128xf32>
    %275 = math.exp %274 : vector<128x128xf32>
    %cst_113 = arith.constant dense<0.000000e+00> : vector<128xf32>
    %276 = vector.multi_reduction <add>, %275, %cst_113 [1] : vector<128x128xf32> to vector<128xf32>
    %277 = vector.shape_cast %276 : vector<128xf32> to vector<128x1xf32>
    %278 = tpu.reciprocal %277 {approx = true} : vector<128x1xf32> -> vector<128x1xf32>
    %279 = vector.broadcast %278 : vector<128x1xf32> to vector<128x128xf32>
    %280 = arith.mulf %275, %279 : vector<128x128xf32>
    %281 = arith.truncf %280 : vector<128x128xf32> to vector<128x128xbf16>
    %cst_114 = arith.constant dense<0.000000e+00> : vector<8x128xf32>
    %282 = tpu.matmul %267, %281, %cst_114 {dimension_numbers = #tpu.dot_dimension_numbers<[1], [1], [0], [0], [0, 0, 1, 0], [], []>} : vector<8x128xbf16>, vector<128x128xbf16>, vector<8x128xf32> -> vector<8x128xf32>
    %c0_115 = arith.constant 0 : index
    %c0_116 = arith.constant 0 : index
    %283 = vector.load %arg20[%c0_115, %c0_116] : memref<32x256xf32, #tpu.memory_space<vmem>>, vector<8x128xf32>
    tpu.vector_store %arg20[%c0_115, %c0_116], %282 {strides = array<i32>} : memref<32x256xf32, #tpu.memory_space<vmem>>, vector<8x128xf32>,
    %284 = vector.extract_strided_slice %260 {offsets = [8, 0], sizes = [8, 128], strides = [1, 1]} : vector<32x256xbf16> to vector<8x128xbf16>
    %285 = vector.extract_strided_slice %262 {offsets = [8, 0], sizes = [8, 128], strides = [1, 1]} : vector<32x256xbf16> to vector<8x128xbf16>
    %286 = vector.extract_strided_slice %264 {offsets = [8, 0], sizes = [8, 128], strides = [1, 1]} : vector<32x256xbf16> to vector<8x128xbf16>
    %cst_117 = arith.constant dense<0.000000e+00> : vector<128x128xf32>
    %287 = tpu.matmul %284, %285, %cst_117 {dimension_numbers = #tpu.dot_dimension_numbers<[0], [0], [1], [1], [0, 1, 1, 1], [], []>} : vector<8x128xbf16>, vector<8x128xbf16>, vector<128x128xf32> -> vector<128x128xf32>
    %288 = vector.broadcast %4 : vector<1x128xf32> to vector<128x128xf32>
    %289 = arith.addf %287, %288 : vector<128x128xf32>
    %cst_118 = arith.constant dense<0xFF800000> : vector<128xf32>
    %290 = vector.multi_reduction <maximumf>, %289, %cst_118 [1] : vector<128x128xf32> to vector<128xf32>
    %291 = vector.shape_cast %290 : vector<128xf32> to vector<128x1xf32>
    %292 = vector.broadcast %291 : vector<128x1xf32> to vector<128x128xf32>
    %293 = arith.subf %289, %292 : vector<128x128xf32>
    %294 = math.exp %293 : vector<128x128xf32>
    %cst_119 = arith.constant dense<0.000000e+00> : vector<128xf32>
    %295 = vector.multi_reduction <add>, %294, %cst_119 [1] : vector<128x128xf32> to vector<128xf32>
    %296 = vector.shape_cast %295 : vector<128xf32> to vector<128x1xf32>
    %297 = tpu.reciprocal %296 {approx = true} : vector<128x1xf32> -> vector<128x1xf32>
    %298 = vector.broadcast %297 : vector<128x1xf32> to vector<128x128xf32>
    %299 = arith.mulf %294, %298 : vector<128x128xf32>
    %300 = arith.truncf %299 : vector<128x128xf32> to vector<128x128xbf16>
    %cst_120 = arith.constant dense<0.000000e+00> : vector<8x128xf32>
    %301 = tpu.matmul %286, %300, %cst_120 {dimension_numbers = #tpu.dot_dimension_numbers<[1], [1], [0], [0], [0, 0, 1, 0], [], []>} : vector<8x128xbf16>, vector<128x128xbf16>, vector<8x128xf32> -> vector<8x128xf32>
    %c8_121 = arith.constant 8 : index
    %c0_122 = arith.constant 0 : index
    %302 = vector.load %arg20[%c8_121, %c0_122] : memref<32x256xf32, #tpu.memory_space<vmem>>, vector<8x128xf32>
    tpu.vector_store %arg20[%c8_121, %c0_122], %301 {strides = array<i32>} : memref<32x256xf32, #tpu.memory_space<vmem>>, vector<8x128xf32>,
    %303 = vector.extract_strided_slice %260 {offsets = [16, 0], sizes = [8, 128], strides = [1, 1]} : vector<32x256xbf16> to vector<8x128xbf16>
    %304 = vector.extract_strided_slice %262 {offsets = [16, 0], sizes = [8, 128], strides = [1, 1]} : vector<32x256xbf16> to vector<8x128xbf16>
    %305 = vector.extract_strided_slice %264 {offsets = [16, 0], sizes = [8, 128], strides = [1, 1]} : vector<32x256xbf16> to vector<8x128xbf16>
    %cst_123 = arith.constant dense<0.000000e+00> : vector<128x128xf32>
    %306 = tpu.matmul %303, %304, %cst_123 {dimension_numbers = #tpu.dot_dimension_numbers<[0], [0], [1], [1], [0, 1, 1, 1], [], []>} : vector<8x128xbf16>, vector<8x128xbf16>, vector<128x128xf32> -> vector<128x128xf32>
    %307 = vector.broadcast %4 : vector<1x128xf32> to vector<128x128xf32>
    %308 = arith.addf %306, %307 : vector<128x128xf32>
    %cst_124 = arith.constant dense<0xFF800000> : vector<128xf32>
    %309 = vector.multi_reduction <maximumf>, %308, %cst_124 [1] : vector<128x128xf32> to vector<128xf32>
    %310 = vector.shape_cast %309 : vector<128xf32> to vector<128x1xf32>
    %311 = vector.broadcast %310 : vector<128x1xf32> to vector<128x128xf32>
    %312 = arith.subf %308, %311 : vector<128x128xf32>
    %313 = math.exp %312 : vector<128x128xf32>
    %cst_125 = arith.constant dense<0.000000e+00> : vector<128xf32>
    %314 = vector.multi_reduction <add>, %313, %cst_125 [1] : vector<128x128xf32> to vector<128xf32>
    %315 = vector.shape_cast %314 : vector<128xf32> to vector<128x1xf32>
    %316 = tpu.reciprocal %315 {approx = true} : vector<128x1xf32> -> vector<128x1xf32>
    %317 = vector.broadcast %316 : vector<128x1xf32> to vector<128x128xf32>
    %318 = arith.mulf %313, %317 : vector<128x128xf32>
    %319 = arith.truncf %318 : vector<128x128xf32> to vector<128x128xbf16>
    %cst_126 = arith.constant dense<0.000000e+00> : vector<8x128xf32>
    %320 = tpu.matmul %305, %319, %cst_126 {dimension_numbers = #tpu.dot_dimension_numbers<[1], [1], [0], [0], [0, 0, 1, 0], [], []>} : vector<8x128xbf16>, vector<128x128xbf16>, vector<8x128xf32> -> vector<8x128xf32>
    %c16_127 = arith.constant 16 : index
    %c0_128 = arith.constant 0 : index
    %321 = vector.load %arg20[%c16_127, %c0_128] : memref<32x256xf32, #tpu.memory_space<vmem>>, vector<8x128xf32>
    tpu.vector_store %arg20[%c16_127, %c0_128], %320 {strides = array<i32>} : memref<32x256xf32, #tpu.memory_space<vmem>>, vector<8x128xf32>,
    %322 = vector.extract_strided_slice %260 {offsets = [24, 0], sizes = [8, 128], strides = [1, 1]} : vector<32x256xbf16> to vector<8x128xbf16>
    %323 = vector.extract_strided_slice %262 {offsets = [24, 0], sizes = [8, 128], strides = [1, 1]} : vector<32x256xbf16> to vector<8x128xbf16>
    %324 = vector.extract_strided_slice %264 {offsets = [24, 0], sizes = [8, 128], strides = [1, 1]} : vector<32x256xbf16> to vector<8x128xbf16>
    %cst_129 = arith.constant dense<0.000000e+00> : vector<128x128xf32>
    %325 = tpu.matmul %322, %323, %cst_129 {dimension_numbers = #tpu.dot_dimension_numbers<[0], [0], [1], [1], [0, 1, 1, 1], [], []>} : vector<8x128xbf16>, vector<8x128xbf16>, vector<128x128xf32> -> vector<128x128xf32>
    %326 = vector.broadcast %4 : vector<1x128xf32> to vector<128x128xf32>
    %327 = arith.addf %325, %326 : vector<128x128xf32>
    %cst_130 = arith.constant dense<0xFF800000> : vector<128xf32>
    %328 = vector.multi_reduction <maximumf>, %327, %cst_130 [1] : vector<128x128xf32> to vector<128xf32>
    %329 = vector.shape_cast %328 : vector<128xf32> to vector<128x1xf32>
    %330 = vector.broadcast %329 : vector<128x1xf32> to vector<128x128xf32>
    %331 = arith.subf %327, %330 : vector<128x128xf32>
    %332 = math.exp %331 : vector<128x128xf32>
    %cst_131 = arith.constant dense<0.000000e+00> : vector<128xf32>
    %333 = vector.multi_reduction <add>, %332, %cst_131 [1] : vector<128x128xf32> to vector<128xf32>
    %334 = vector.shape_cast %333 : vector<128xf32> to vector<128x1xf32>
    %335 = tpu.reciprocal %334 {approx = true} : vector<128x1xf32> -> vector<128x1xf32>
    %336 = vector.broadcast %335 : vector<128x1xf32> to vector<128x128xf32>
    %337 = arith.mulf %332, %336 : vector<128x128xf32>
    %338 = arith.truncf %337 : vector<128x128xf32> to vector<128x128xbf16>
    %cst_132 = arith.constant dense<0.000000e+00> : vector<8x128xf32>
    %339 = tpu.matmul %324, %338, %cst_132 {dimension_numbers = #tpu.dot_dimension_numbers<[1], [1], [0], [0], [0, 0, 1, 0], [], []>} : vector<8x128xbf16>, vector<128x128xbf16>, vector<8x128xf32> -> vector<8x128xf32>
    %c24_133 = arith.constant 24 : index
    %c0_134 = arith.constant 0 : index
    %340 = vector.load %arg20[%c24_133, %c0_134] : memref<32x256xf32, #tpu.memory_space<vmem>>, vector<8x128xf32>
    tpu.vector_store %arg20[%c24_133, %c0_134], %339 {strides = array<i32>} : memref<32x256xf32, #tpu.memory_space<vmem>>, vector<8x128xf32>,
    %341 = vector.extract_strided_slice %260 {offsets = [0, 128], sizes = [8, 128], strides = [1, 1]} : vector<32x256xbf16> to vector<8x128xbf16>
    %342 = vector.extract_strided_slice %262 {offsets = [0, 128], sizes = [8, 128], strides = [1, 1]} : vector<32x256xbf16> to vector<8x128xbf16>
    %343 = vector.extract_strided_slice %264 {offsets = [0, 128], sizes = [8, 128], strides = [1, 1]} : vector<32x256xbf16> to vector<8x128xbf16>
    %cst_135 = arith.constant dense<0.000000e+00> : vector<128x128xf32>
    %344 = tpu.matmul %341, %342, %cst_135 {dimension_numbers = #tpu.dot_dimension_numbers<[0], [0], [1], [1], [0, 1, 1, 1], [], []>} : vector<8x128xbf16>, vector<8x128xbf16>, vector<128x128xf32> -> vector<128x128xf32>
    %345 = vector.broadcast %4 : vector<1x128xf32> to vector<128x128xf32>
    %346 = arith.addf %344, %345 : vector<128x128xf32>
    %cst_136 = arith.constant dense<0xFF800000> : vector<128xf32>
    %347 = vector.multi_reduction <maximumf>, %346, %cst_136 [1] : vector<128x128xf32> to vector<128xf32>
    %348 = vector.shape_cast %347 : vector<128xf32> to vector<128x1xf32>
    %349 = vector.broadcast %348 : vector<128x1xf32> to vector<128x128xf32>
    %350 = arith.subf %346, %349 : vector<128x128xf32>
    %351 = math.exp %350 : vector<128x128xf32>
    %cst_137 = arith.constant dense<0.000000e+00> : vector<128xf32>
    %352 = vector.multi_reduction <add>, %351, %cst_137 [1] : vector<128x128xf32> to vector<128xf32>
    %353 = vector.shape_cast %352 : vector<128xf32> to vector<128x1xf32>
    %354 = tpu.reciprocal %353 {approx = true} : vector<128x1xf32> -> vector<128x1xf32>
    %355 = vector.broadcast %354 : vector<128x1xf32> to vector<128x128xf32>
    %356 = arith.mulf %351, %355 : vector<128x128xf32>
    %357 = arith.truncf %356 : vector<128x128xf32> to vector<128x128xbf16>
    %cst_138 = arith.constant dense<0.000000e+00> : vector<8x128xf32>
    %358 = tpu.matmul %343, %357, %cst_138 {dimension_numbers = #tpu.dot_dimension_numbers<[1], [1], [0], [0], [0, 0, 1, 0], [], []>} : vector<8x128xbf16>, vector<128x128xbf16>, vector<8x128xf32> -> vector<8x128xf32>
    %c0_139 = arith.constant 0 : index
    %c128_140 = arith.constant 128 : index
    %359 = vector.load %arg20[%c0_139, %c128_140] : memref<32x256xf32, #tpu.memory_space<vmem>>, vector<8x128xf32>
    tpu.vector_store %arg20[%c0_139, %c128_140], %358 {strides = array<i32>} : memref<32x256xf32, #tpu.memory_space<vmem>>, vector<8x128xf32>,
    %360 = vector.extract_strided_slice %260 {offsets = [8, 128], sizes = [8, 128], strides = [1, 1]} : vector<32x256xbf16> to vector<8x128xbf16>
    %361 = vector.extract_strided_slice %262 {offsets = [8, 128], sizes = [8, 128], strides = [1, 1]} : vector<32x256xbf16> to vector<8x128xbf16>
    %362 = vector.extract_strided_slice %264 {offsets = [8, 128], sizes = [8, 128], strides = [1, 1]} : vector<32x256xbf16> to vector<8x128xbf16>
    %cst_141 = arith.constant dense<0.000000e+00> : vector<128x128xf32>
    %363 = tpu.matmul %360, %361, %cst_141 {dimension_numbers = #tpu.dot_dimension_numbers<[0], [0], [1], [1], [0, 1, 1, 1], [], []>} : vector<8x128xbf16>, vector<8x128xbf16>, vector<128x128xf32> -> vector<128x128xf32>
    %364 = vector.broadcast %4 : vector<1x128xf32> to vector<128x128xf32>
    %365 = arith.addf %363, %364 : vector<128x128xf32>
    %cst_142 = arith.constant dense<0xFF800000> : vector<128xf32>
    %366 = vector.multi_reduction <maximumf>, %365, %cst_142 [1] : vector<128x128xf32> to vector<128xf32>
    %367 = vector.shape_cast %366 : vector<128xf32> to vector<128x1xf32>
    %368 = vector.broadcast %367 : vector<128x1xf32> to vector<128x128xf32>
    %369 = arith.subf %365, %368 : vector<128x128xf32>
    %370 = math.exp %369 : vector<128x128xf32>
    %cst_143 = arith.constant dense<0.000000e+00> : vector<128xf32>
    %371 = vector.multi_reduction <add>, %370, %cst_143 [1] : vector<128x128xf32> to vector<128xf32>
    %372 = vector.shape_cast %371 : vector<128xf32> to vector<128x1xf32>
    %373 = tpu.reciprocal %372 {approx = true} : vector<128x1xf32> -> vector<128x1xf32>
    %374 = vector.broadcast %373 : vector<128x1xf32> to vector<128x128xf32>
    %375 = arith.mulf %370, %374 : vector<128x128xf32>
    %376 = arith.truncf %375 : vector<128x128xf32> to vector<128x128xbf16>
    %cst_144 = arith.constant dense<0.000000e+00> : vector<8x128xf32>
    %377 = tpu.matmul %362, %376, %cst_144 {dimension_numbers = #tpu.dot_dimension_numbers<[1], [1], [0], [0], [0, 0, 1, 0], [], []>} : vector<8x128xbf16>, vector<128x128xbf16>, vector<8x128xf32> -> vector<8x128xf32>
    %c8_145 = arith.constant 8 : index
    %c128_146 = arith.constant 128 : index
    %378 = vector.load %arg20[%c8_145, %c128_146] : memref<32x256xf32, #tpu.memory_space<vmem>>, vector<8x128xf32>
    tpu.vector_store %arg20[%c8_145, %c128_146], %377 {strides = array<i32>} : memref<32x256xf32, #tpu.memory_space<vmem>>, vector<8x128xf32>,
    %379 = vector.extract_strided_slice %260 {offsets = [16, 128], sizes = [8, 128], strides = [1, 1]} : vector<32x256xbf16> to vector<8x128xbf16>
    %380 = vector.extract_strided_slice %262 {offsets = [16, 128], sizes = [8, 128], strides = [1, 1]} : vector<32x256xbf16> to vector<8x128xbf16>
    %381 = vector.extract_strided_slice %264 {offsets = [16, 128], sizes = [8, 128], strides = [1, 1]} : vector<32x256xbf16> to vector<8x128xbf16>
    %cst_147 = arith.constant dense<0.000000e+00> : vector<128x128xf32>
    %382 = tpu.matmul %379, %380, %cst_147 {dimension_numbers = #tpu.dot_dimension_numbers<[0], [0], [1], [1], [0, 1, 1, 1], [], []>} : vector<8x128xbf16>, vector<8x128xbf16>, vector<128x128xf32> -> vector<128x128xf32>
    %383 = vector.broadcast %4 : vector<1x128xf32> to vector<128x128xf32>
    %384 = arith.addf %382, %383 : vector<128x128xf32>
    %cst_148 = arith.constant dense<0xFF800000> : vector<128xf32>
    %385 = vector.multi_reduction <maximumf>, %384, %cst_148 [1] : vector<128x128xf32> to vector<128xf32>
    %386 = vector.shape_cast %385 : vector<128xf32> to vector<128x1xf32>
    %387 = vector.broadcast %386 : vector<128x1xf32> to vector<128x128xf32>
    %388 = arith.subf %384, %387 : vector<128x128xf32>
    %389 = math.exp %388 : vector<128x128xf32>
    %cst_149 = arith.constant dense<0.000000e+00> : vector<128xf32>
    %390 = vector.multi_reduction <add>, %389, %cst_149 [1] : vector<128x128xf32> to vector<128xf32>
    %391 = vector.shape_cast %390 : vector<128xf32> to vector<128x1xf32>
    %392 = tpu.reciprocal %391 {approx = true} : vector<128x1xf32> -> vector<128x1xf32>
    %393 = vector.broadcast %392 : vector<128x1xf32> to vector<128x128xf32>
    %394 = arith.mulf %389, %393 : vector<128x128xf32>
    %395 = arith.truncf %394 : vector<128x128xf32> to vector<128x128xbf16>
    %cst_150 = arith.constant dense<0.000000e+00> : vector<8x128xf32>
    %396 = tpu.matmul %381, %395, %cst_150 {dimension_numbers = #tpu.dot_dimension_numbers<[1], [1], [0], [0], [0, 0, 1, 0], [], []>} : vector<8x128xbf16>, vector<128x128xbf16>, vector<8x128xf32> -> vector<8x128xf32>
    %c16_151 = arith.constant 16 : index
    %c128_152 = arith.constant 128 : index
    %397 = vector.load %arg20[%c16_151, %c128_152] : memref<32x256xf32, #tpu.memory_space<vmem>>, vector<8x128xf32>
    tpu.vector_store %arg20[%c16_151, %c128_152], %396 {strides = array<i32>} : memref<32x256xf32, #tpu.memory_space<vmem>>, vector<8x128xf32>,
    %398 = vector.extract_strided_slice %260 {offsets = [24, 128], sizes = [8, 128], strides = [1, 1]} : vector<32x256xbf16> to vector<8x128xbf16>
    %399 = vector.extract_strided_slice %262 {offsets = [24, 128], sizes = [8, 128], strides = [1, 1]} : vector<32x256xbf16> to vector<8x128xbf16>
    %400 = vector.extract_strided_slice %264 {offsets = [24, 128], sizes = [8, 128], strides = [1, 1]} : vector<32x256xbf16> to vector<8x128xbf16>
    %cst_153 = arith.constant dense<0.000000e+00> : vector<128x128xf32>
    %401 = tpu.matmul %398, %399, %cst_153 {dimension_numbers = #tpu.dot_dimension_numbers<[0], [0], [1], [1], [0, 1, 1, 1], [], []>} : vector<8x128xbf16>, vector<8x128xbf16>, vector<128x128xf32> -> vector<128x128xf32>
    %402 = vector.broadcast %4 : vector<1x128xf32> to vector<128x128xf32>
    %403 = arith.addf %401, %402 : vector<128x128xf32>
    %cst_154 = arith.constant dense<0xFF800000> : vector<128xf32>
    %404 = vector.multi_reduction <maximumf>, %403, %cst_154 [1] : vector<128x128xf32> to vector<128xf32>
    %405 = vector.shape_cast %404 : vector<128xf32> to vector<128x1xf32>
    %406 = vector.broadcast %405 : vector<128x1xf32> to vector<128x128xf32>
    %407 = arith.subf %403, %406 : vector<128x128xf32>
    %408 = math.exp %407 : vector<128x128xf32>
    %cst_155 = arith.constant dense<0.000000e+00> : vector<128xf32>
    %409 = vector.multi_reduction <add>, %408, %cst_155 [1] : vector<128x128xf32> to vector<128xf32>
    %410 = vector.shape_cast %409 : vector<128xf32> to vector<128x1xf32>
    %411 = tpu.reciprocal %410 {approx = true} : vector<128x1xf32> -> vector<128x1xf32>
    %412 = vector.broadcast %411 : vector<128x1xf32> to vector<128x128xf32>
    %413 = arith.mulf %408, %412 : vector<128x128xf32>
    %414 = arith.truncf %413 : vector<128x128xf32> to vector<128x128xbf16>
    %cst_156 = arith.constant dense<0.000000e+00> : vector<8x128xf32>
    %415 = tpu.matmul %400, %414, %cst_156 {dimension_numbers = #tpu.dot_dimension_numbers<[1], [1], [0], [0], [0, 0, 1, 0], [], []>} : vector<8x128xbf16>, vector<128x128xbf16>, vector<8x128xf32> -> vector<8x128xf32>
    %c24_157 = arith.constant 24 : index
    %c128_158 = arith.constant 128 : index
    %416 = vector.load %arg20[%c24_157, %c128_158] : memref<32x256xf32, #tpu.memory_space<vmem>>, vector<8x128xf32>
    tpu.vector_store %arg20[%c24_157, %c128_158], %415 {strides = array<i32>} : memref<32x256xf32, #tpu.memory_space<vmem>>, vector<8x128xf32>,
    %c0_159 = arith.constant 0 : index
    %c0_160 = arith.constant 0 : index
    %417 = vector.load %arg20[%c0_159, %c0_160] : memref<32x256xf32, #tpu.memory_space<vmem>>, vector<32x256xf32>
    %418 = arith.truncf %417 : vector<32x256xf32> to vector<32x256xbf16>
    %cst_161 = arith.constant dense<0.000000e+00> : vector<32x256xf32>
    %419 = tpu.matmul %14, %418, %cst_161 {dimension_numbers = #tpu.dot_dimension_numbers<[1], [0], [0], [1], [0, 0, 1, 1], [], []>} : vector<32x32xbf16>, vector<32x256xbf16>, vector<32x256xf32> -> vector<32x256xf32>
    %420 = vector.broadcast %16 : vector<32x1xf32> to vector<32x256xf32>
    %421 = arith.addf %419, %420 : vector<32x256xf32>
    %cst_162 = arith.constant dense<0.000000e+00> : vector<64x256xf32>
    %422 = tpu.matmul %18, %250, %cst_162 {dimension_numbers = #tpu.dot_dimension_numbers<[1], [0], [0], [1], [0, 0, 1, 1], [], []>} : vector<64x32xbf16>, vector<32x256xbf16>, vector<64x256xf32> -> vector<64x256xf32>
    %423 = arith.truncf %421 : vector<32x256xf32> to vector<32x256xbf16>
    %cst_163 = arith.constant dense<0.000000e+00> : vector<64x256xf32>
    %424 = tpu.matmul %20, %423, %cst_163 {dimension_numbers = #tpu.dot_dimension_numbers<[1], [0], [0], [1], [0, 0, 1, 1], [], []>} : vector<64x32xbf16>, vector<32x256xbf16>, vector<64x256xf32> -> vector<64x256xf32>
    %425 = arith.addf %422, %424 : vector<64x256xf32>
    %426 = vector.broadcast %22 : vector<64x1xf32> to vector<64x256xf32>
    %427 = arith.addf %425, %426 : vector<64x256xf32>
    %428 = vector.broadcast %3 : vector<1x256xf32> to vector<64x256xf32>
    %429 = arith.mulf %427, %428 : vector<64x256xf32>
    %cst_164 = arith.constant dense<0.000000e+00> : vector<64xf32>
    %430 = vector.multi_reduction <add>, %429, %cst_164 [1] : vector<64x256xf32> to vector<64xf32>
    %431 = vector.shape_cast %430 : vector<64xf32> to vector<64x1xf32>
    %432 = arith.mulf %429, %427 : vector<64x256xf32>
    %cst_165 = arith.constant dense<0.000000e+00> : vector<64xf32>
    %433 = vector.multi_reduction <add>, %432, %cst_165 [1] : vector<64x256xf32> to vector<64xf32>
    %434 = vector.shape_cast %433 : vector<64xf32> to vector<64x1xf32>
    %cst_166 = arith.constant 6.250000e-02 : f32
    %435 = vector.broadcast %cst_166 : f32 to vector<64x1xf32>
    %436 = arith.mulf %431, %435 : vector<64x1xf32>
    %cst_167 = arith.constant 6.250000e-02 : f32
    %437 = vector.broadcast %cst_167 : f32 to vector<64x1xf32>
    %438 = arith.mulf %434, %437 : vector<64x1xf32>
    %439 = arith.mulf %436, %436 : vector<64x1xf32>
    %440 = arith.subf %438, %439 : vector<64x1xf32>
    %cst_168 = arith.constant 0.000000e+00 : f32
    %441 = vector.broadcast %cst_168 : f32 to vector<64x1xf32>
    %442 = arith.maximumf %440, %441 : vector<64x1xf32>
    %443 = vector.broadcast %436 : vector<64x1xf32> to vector<64x256xf32>
    %444 = arith.subf %427, %443 : vector<64x256xf32>
    %cst_169 = arith.constant 9.99999974E-6 : f32
    %445 = vector.broadcast %cst_169 : f32 to vector<64x1xf32>
    %446 = arith.addf %442, %445 : vector<64x1xf32>
    %447 = math.rsqrt %446 : vector<64x1xf32>
    %448 = vector.broadcast %447 : vector<64x1xf32> to vector<64x256xf32>
    %449 = arith.mulf %444, %448 : vector<64x256xf32>
    %450 = vector.broadcast %24 : vector<64x1xf32> to vector<64x256xf32>
    %451 = arith.mulf %449, %450 : vector<64x256xf32>
    %452 = vector.broadcast %26 : vector<64x1xf32> to vector<64x256xf32>
    %453 = arith.addf %451, %452 : vector<64x256xf32>
    %cst_170 = arith.constant 0.000000e+00 : f32
    %454 = vector.broadcast %cst_170 : f32 to vector<64x256xf32>
    %455 = arith.maximumf %453, %454 : vector<64x256xf32>
    %456 = arith.truncf %455 : vector<64x256xf32> to vector<64x256xbf16>
    %cst_171 = arith.constant dense<0.000000e+00> : vector<32x256xf32>
    %457 = tpu.matmul %28, %456, %cst_171 {dimension_numbers = #tpu.dot_dimension_numbers<[1], [0], [0], [1], [0, 0, 1, 1], [], []>} : vector<32x64xbf16>, vector<64x256xbf16>, vector<32x256xf32> -> vector<32x256xf32>
    %458 = vector.broadcast %30 : vector<32x1xf32> to vector<32x256xf32>
    %459 = arith.addf %457, %458 : vector<32x256xf32>
    %460 = arith.addf %35, %248 : vector<32x256xf32>
    %461 = vector.broadcast %3 : vector<1x256xf32> to vector<32x256xf32>
    %462 = arith.mulf %460, %461 : vector<32x256xf32>
    %c0_172 = arith.constant 0 : index
    %c0_173 = arith.constant 0 : index
    %c0_174 = arith.constant 0 : index
    %463 = vector.load %arg19[%c0_172, %c0_173, %c0_174] : memref<2x32x256xf32, #tpu.memory_space<vmem>>, vector<1x32x256xf32>
    %464 = vector.shape_cast %463 : vector<1x32x256xf32> to vector<32x256xf32>
    %465 = vector.shape_cast %462 : vector<32x256xf32> to vector<1x32x256xf32>
    tpu.vector_store %arg19[%c0_172, %c0_173, %c0_174], %465 {strides = array<i32>} : memref<2x32x256xf32, #tpu.memory_space<vmem>>, vector<1x32x256xf32>,
    %466 = arith.addf %37, %459 : vector<32x256xf32>
    %467 = vector.broadcast %3 : vector<1x256xf32> to vector<32x256xf32>
    %468 = arith.mulf %466, %467 : vector<32x256xf32>
    %c1_175 = arith.constant 1 : index
    %c0_176 = arith.constant 0 : index
    %c0_177 = arith.constant 0 : index
    %469 = vector.load %arg19[%c1_175, %c0_176, %c0_177] : memref<2x32x256xf32, #tpu.memory_space<vmem>>, vector<1x32x256xf32>
    %470 = vector.shape_cast %469 : vector<1x32x256xf32> to vector<32x256xf32>
    %471 = vector.shape_cast %468 : vector<32x256xf32> to vector<1x32x256xf32>
    tpu.vector_store %arg19[%c1_175, %c0_176, %c0_177], %471 {strides = array<i32>} : memref<2x32x256xf32, #tpu.memory_space<vmem>>, vector<1x32x256xf32>,
    %c1_i32 = arith.constant 1 : i32
    %472 = arith.cmpi eq, %arg0, %c1_i32 : i32
    %473 = arith.extui %472 : i1 to i32
    %c0_i32_178 = arith.constant 0 : i32
    %474 = arith.cmpi ne, %473, %c0_i32_178 : i32
    scf.if %474 {
      %c0_179 = arith.constant 0 : index
      %c0_180 = arith.constant 0 : index
      %c0_181 = arith.constant 0 : index
      %475 = vector.load %arg19[%c0_179, %c0_180, %c0_181] : memref<2x32x256xf32, #tpu.memory_space<vmem>>, vector<2x32x256xf32>
      %c0_182 = arith.constant 0 : index
      %c0_183 = arith.constant 0 : index
      %c0_184 = arith.constant 0 : index
      %476 = vector.load %arg18[%c0_182, %c0_183, %c0_184] : memref<2x32x256xf32, #tpu.memory_space<vmem>>, vector<2x32x256xf32>
      tpu.vector_store %arg18[%c0_182, %c0_183, %c0_184], %475 {strides = array<i32>} : memref<2x32x256xf32, #tpu.memory_space<vmem>>, vector<2x32x256xf32>,
    } else {
    }
    return
  }
  func.func @transform_0(%arg0: i32, %arg1: memref<2xi32, #tpu.memory_space<smem>>) -> (i32, i32, i32) {
    %c0_i32 = arith.constant 0 : i32
    %c0_i32_0 = arith.constant 0 : i32
    %c0_i32_1 = arith.constant 0 : i32
    %c0_i32_2 = arith.constant 0 : i32
    return %c0_i32, %c0_i32_0, %c0_i32_1 : i32, i32, i32
  }
  func.func @transform_1(%arg0: i32, %arg1: memref<2xi32, #tpu.memory_space<smem>>) -> (i32, i32) {
    %c0_i32 = arith.constant 0 : i32
    %c0_i32_0 = arith.constant 0 : i32
    %c0_i32_1 = arith.constant 0 : i32
    return %c0_i32, %c0_i32_0 : i32, i32
  }
  func.func @transform_2(%arg0: i32, %arg1: memref<2xi32, #tpu.memory_space<smem>>) -> (i32, i32) {
    %c0_i32 = arith.constant 0 : i32
    %c0_i32_0 = arith.constant 0 : i32
    %c0_i32_1 = arith.constant 0 : i32
    return %c0_i32, %c0_i32_0 : i32, i32
  }
  func.func @transform_3(%arg0: i32, %arg1: memref<2xi32, #tpu.memory_space<smem>>) -> (i32, i32, i32) {
    %c0_i32 = arith.constant 0 : i32
    %c0_i32_0 = arith.constant 0 : i32
    %c0_i32_1 = arith.constant 0 : i32
    return %arg0, %c0_i32, %c0_i32_0 : i32, i32, i32
  }
  func.func @transform_4(%arg0: i32, %arg1: memref<2xi32, #tpu.memory_space<smem>>) -> (i32, i32, i32) {
    %c0_i32 = arith.constant 0 : i32
    %c0_i32_0 = arith.constant 0 : i32
    %c0_i32_1 = arith.constant 0 : i32
    return %arg0, %c0_i32, %c0_i32_0 : i32, i32, i32
  }
  func.func @transform_5(%arg0: i32, %arg1: memref<2xi32, #tpu.memory_space<smem>>) -> (i32, i32, i32) {
    %c0_i32 = arith.constant 0 : i32
    %c0_i32_0 = arith.constant 0 : i32
    %c0_i32_1 = arith.constant 0 : i32
    return %arg0, %c0_i32, %c0_i32_0 : i32, i32, i32
  }
  func.func @transform_6(%arg0: i32, %arg1: memref<2xi32, #tpu.memory_space<smem>>) -> (i32, i32, i32) {
    %c0_i32 = arith.constant 0 : i32
    %c0_i32_0 = arith.constant 0 : i32
    %c0_i32_1 = arith.constant 0 : i32
    return %arg0, %c0_i32, %c0_i32_0 : i32, i32, i32
  }
  func.func @transform_7(%arg0: i32, %arg1: memref<2xi32, #tpu.memory_space<smem>>) -> (i32, i32, i32) {
    %c0_i32 = arith.constant 0 : i32
    %c0_i32_0 = arith.constant 0 : i32
    %c0_i32_1 = arith.constant 0 : i32
    return %arg0, %c0_i32, %c0_i32_0 : i32, i32, i32
  }
  func.func @transform_8(%arg0: i32, %arg1: memref<2xi32, #tpu.memory_space<smem>>) -> (i32, i32, i32) {
    %c0_i32 = arith.constant 0 : i32
    %c0_i32_0 = arith.constant 0 : i32
    %c0_i32_1 = arith.constant 0 : i32
    return %arg0, %c0_i32, %c0_i32_0 : i32, i32, i32
  }
  func.func @transform_9(%arg0: i32, %arg1: memref<2xi32, #tpu.memory_space<smem>>) -> (i32, i32, i32) {
    %c0_i32 = arith.constant 0 : i32
    %c0_i32_0 = arith.constant 0 : i32
    %c0_i32_1 = arith.constant 0 : i32
    return %arg0, %c0_i32, %c0_i32_0 : i32, i32, i32
  }
  func.func @transform_10(%arg0: i32, %arg1: memref<2xi32, #tpu.memory_space<smem>>) -> (i32, i32, i32) {
    %c0_i32 = arith.constant 0 : i32
    %c0_i32_0 = arith.constant 0 : i32
    %c0_i32_1 = arith.constant 0 : i32
    return %arg0, %c0_i32, %c0_i32_0 : i32, i32, i32
  }
  func.func @transform_11(%arg0: i32, %arg1: memref<2xi32, #tpu.memory_space<smem>>) -> (i32, i32, i32) {
    %c0_i32 = arith.constant 0 : i32
    %c0_i32_0 = arith.constant 0 : i32
    %c0_i32_1 = arith.constant 0 : i32
    return %arg0, %c0_i32, %c0_i32_0 : i32, i32, i32
  }
  func.func @transform_12(%arg0: i32, %arg1: memref<2xi32, #tpu.memory_space<smem>>) -> (i32, i32, i32) {
    %c0_i32 = arith.constant 0 : i32
    %c0_i32_0 = arith.constant 0 : i32
    %c0_i32_1 = arith.constant 0 : i32
    return %arg0, %c0_i32, %c0_i32_0 : i32, i32, i32
  }
  func.func @transform_13(%arg0: i32, %arg1: memref<2xi32, #tpu.memory_space<smem>>) -> (i32, i32, i32) {
    %c0_i32 = arith.constant 0 : i32
    %c0_i32_0 = arith.constant 0 : i32
    %c0_i32_1 = arith.constant 0 : i32
    return %arg0, %c0_i32, %c0_i32_0 : i32, i32, i32
  }
  func.func @transform_14(%arg0: i32, %arg1: memref<2xi32, #tpu.memory_space<smem>>) -> (i32, i32, i32) {
    %c0_i32 = arith.constant 0 : i32
    %c0_i32_0 = arith.constant 0 : i32
    %c0_i32_1 = arith.constant 0 : i32
    return %arg0, %c0_i32, %c0_i32_0 : i32, i32, i32
  }
  func.func @transform_15(%arg0: i32, %arg1: memref<2xi32, #tpu.memory_space<smem>>) -> (i32, i32, i32) {
    %c0_i32 = arith.constant 0 : i32
    %c0_i32_0 = arith.constant 0 : i32
    %c0_i32_1 = arith.constant 0 : i32
    return %arg0, %c0_i32, %c0_i32_0 : i32, i32, i32
  }
  func.func @transform_16(%arg0: i32, %arg1: memref<2xi32, #tpu.memory_space<smem>>) -> (i32, i32, i32) {
    %c0_i32 = arith.constant 0 : i32
    %c0_i32_0 = arith.constant 0 : i32
    %c0_i32_1 = arith.constant 0 : i32
    %c0_i32_2 = arith.constant 0 : i32
    return %c0_i32, %c0_i32_0, %c0_i32_1 : i32, i32, i32
  }
}

</mosaic_0001>

<llo_original>
// kernel: tpu_custom_call.1
$region0: #{tpu_custom_call.1}
  #allocation0 [shape = 'u32[]', space=smem, size = 0x4, offset = 0x4, fixed_abs, tag = 'smem constant byte address 0x4 - core index']
  #allocation1 [shape = 'u32[72,128]{1,0:T(1,128)}', space=vmem, size = 0x9000, scoped, tag = 'internal scratch']
  #allocation2 [shape = 'f32[2,32,256]{2,1,0:T(8,128)}', space=vmem, size = 0x10000, scoped, tag = 'scratch operand']
  #allocation3 [shape = 'f32[32,256]{1,0:T(8,128)}', space=vmem, size = 0x8000, scoped, tag = 'scratch operand']
  #allocation4 [shape = 's32[1]{0}', space=sflag, size = 0x4, scoped, tag = 'scoped memory for tpu_custom_call.1']
  #allocation5 [shape = 'u8[512]{0}', space=smem, size = 0x200, scoped, tag = 'prefetched SMEM operand 0']
  %s0 = inlined_call_operand.vmem [shape: s32[2], index: 0, kind: input, shape index: {}]
  %s1 = inlined_call_operand.vmem [shape: f32[2,32,256], index: 1, kind: input, shape index: {}]
  %s2 = inlined_call_operand.vmem [shape: f32[1,256], index: 2, kind: input, shape index: {}]
  %s3 = inlined_call_operand.vmem [shape: f32[1,128], index: 3, kind: input, shape index: {}]
  %s4 = inlined_call_operand.vmem [shape: bf16[2,32,32], index: 4, kind: input, shape index: {}]
  %s5 = inlined_call_operand.vmem [shape: f32[2,32,1], index: 5, kind: input, shape index: {}]
  %s6 = inlined_call_operand.vmem [shape: bf16[2,64,32], index: 6, kind: input, shape index: {}]
  %s7 = inlined_call_operand.vmem [shape: f32[2,64,1], index: 7, kind: input, shape index: {}]
  %s8 = inlined_call_operand.vmem [shape: bf16[2,32,32], index: 8, kind: input, shape index: {}]
  %s9 = inlined_call_operand.vmem [shape: f32[2,32,1], index: 9, kind: input, shape index: {}]
  %s10 = inlined_call_operand.vmem [shape: bf16[2,64,32], index: 10, kind: input, shape index: {}]
  %s11 = inlined_call_operand.vmem [shape: bf16[2,64,32], index: 11, kind: input, shape index: {}]
  %s12 = inlined_call_operand.vmem [shape: f32[2,64,1], index: 12, kind: input, shape index: {}]
  %s13 = inlined_call_operand.vmem [shape: f32[2,64,1], index: 13, kind: input, shape index: {}]
  %s14 = inlined_call_operand.vmem [shape: f32[2,64,1], index: 14, kind: input, shape index: {}]
  %s15 = inlined_call_operand.vmem [shape: bf16[2,32,64], index: 15, kind: input, shape index: {}]
  %s16 = inlined_call_operand.vmem [shape: f32[2,32,1], index: 16, kind: input, shape index: {}]
  %s17 = inlined_call_operand.hbm [shape: f32[2,32,256], index: 17, kind: output, shape index: {}]
  %s18 = sld [smem:[#allocation0]]
  $region105: #{tpu_custom_call.1} parent=0
    _
  %s20 = ssub.s32 1, %s18
  %s21 = scalar_select 0, %s20, %s18
  %s23 = sshll.u32 %s0, 4
  %s24 = int_to_ptr.vmem [resolvable:$true] %s23
  %26 = dma.vmem_to_smem %s24, 16, [#allocation5], [#allocation4]
  %28 = dma.done [#allocation4], 16
  %29 = sfence
  $region1: #{tpu_custom_call.1} parent=0
    #allocation6 [shape = 'u8[65536]{0}', space=vmem, size = 0x10000, scoped, tag = 'output window, operand 0, single buffered']
    #allocation7 [shape = 's32[2]{0}', space=sflag, size = 0x8, scoped, tag = 'scoped memory for tpu_custom_call.1']
    %30 = vsyncpa [#allocation7], 0
    loop: start=0, step=1, limit=4
    $region2: #{tpu_custom_call.1} parent=1 // loop_pre_header
      _
    $region3: #{tpu_custom_call.1} parent=1 // loop_header
      %s32 = sphi 0, %s36
      %p33 = scmp.ge.s32.totalorder %s32, 4
      %s40 = sphi 0, %s40
      %s42 = sphi 0, %s40
      %s43 = sphi 0, %s42
      %s57 = sphi 0, %s43
      %s61 = sphi 0, %s61
      %s63 = sphi 0, %s61
      %s64 = sphi 0, %s63
      %s78 = sphi 0, %s64
      %s82 = sphi 0, %s82
      %s84 = sphi 0, %s82
      %s85 = sphi 0, %s84
      %s99 = sphi 0, %s85
      %s105 = sphi 0, %s107
      %s108 = sphi 0, %s105
      %s109 = sphi 0, %s108
      %s125 = sphi 0, %s109
      %s131 = sphi 0, %s133
      %s134 = sphi 0, %s131
      %s135 = sphi 0, %s134
      %s151 = sphi 0, %s135
      %s157 = sphi 0, %s159
      %s160 = sphi 0, %s157
      %s161 = sphi 0, %s160
      %s177 = sphi 0, %s161
      %s183 = sphi 0, %s185
      %s186 = sphi 0, %s183
      %s187 = sphi 0, %s186
      %s203 = sphi 0, %s187
      %s209 = sphi 0, %s211
      %s212 = sphi 0, %s209
      %s213 = sphi 0, %s212
      %s229 = sphi 0, %s213
      %s235 = sphi 0, %s237
      %s238 = sphi 0, %s235
      %s239 = sphi 0, %s238
      %s255 = sphi 0, %s239
      %s261 = sphi 0, %s263
      %s264 = sphi 0, %s261
      %s265 = sphi 0, %s264
      %s281 = sphi 0, %s265
      %s287 = sphi 0, %s289
      %s290 = sphi 0, %s287
      %s291 = sphi 0, %s290
      %s307 = sphi 0, %s291
      %s313 = sphi 0, %s315
      %s316 = sphi 0, %s313
      %s317 = sphi 0, %s316
      %s333 = sphi 0, %s317
      %s339 = sphi 0, %s341
      %s342 = sphi 0, %s339
      %s343 = sphi 0, %s342
      %s359 = sphi 0, %s343
      %s365 = sphi 0, %s367
      %s368 = sphi 0, %s365
      %s369 = sphi 0, %s368
      %s385 = sphi 0, %s369
      %s391 = sphi 0, %s393
      %s394 = sphi 0, %s391
      %s395 = sphi 0, %s394
      %s411 = sphi 0, %s395
      %s417 = sphi 0, %s419
      %s420 = sphi 0, %s417
      %s421 = sphi 0, %s420
      %s437 = sphi 0, %s421
      %s441 = sphi 0, %s441
      %s443 = sphi 0, %s441
      %s444 = sphi 0, %s443
      %s458 = sphi 0, %s444
    $region4: #{tpu_custom_call.1} parent=1 // loop_header_branch
      %35 = sbr.rel (%p33) target = $region8
    $region5: #{tpu_custom_call.1} parent=1 // loop_body
      %s37 = ssub.s32 %s32, 1
      %s38 = ssub.s32 %s32, 2
      %s39 = sadd.s32 %s32, 1
      %s41 = sadd.s32 %s40, 1
      %p44 = scmp.eq.s32.totalorder %s32, 1
      %p45 = scmp.ne.s32.totalorder %s40, %s42
      %p46 = scmp.eq.s32.totalorder %s32, 0
      %p47 = por %p45, %p46
      %p48 = scmp.ne.s32.totalorder %s40, %s42
      %p49 = scmp.eq.s32.totalorder %s37, 1
      %p50 = por %p48, %p49
      %p51 = scmp.ne.s32.totalorder %s42, %s43
      %p52 = scmp.eq.s32.totalorder %s37, 0
      %p53 = por %p51, %p52
      %p54 = scmp.ne.s32.totalorder %s42, %s43
      %p55 = scmp.eq.s32.totalorder %s38, 1
      %p56 = por %p54, %p55
      %p58 = scmp.ne.s32.totalorder %s43, %s57
      %p59 = scmp.eq.s32.totalorder %s38, 0
      %p60 = por %p58, %p59
      %s62 = sadd.s32 %s61, 1
      %p65 = scmp.eq.s32.totalorder %s32, 1
      %p66 = scmp.ne.s32.totalorder %s61, %s63
      %p67 = scmp.eq.s32.totalorder %s32, 0
      %p68 = por %p66, %p67
      %p69 = scmp.ne.s32.totalorder %s61, %s63
      %p70 = scmp.eq.s32.totalorder %s37, 1
      %p71 = por %p69, %p70
      %p72 = scmp.ne.s32.totalorder %s63, %s64
      %p73 = scmp.eq.s32.totalorder %s37, 0
      %p74 = por %p72, %p73
      %p75 = scmp.ne.s32.totalorder %s63, %s64
      %p76 = scmp.eq.s32.totalorder %s38, 1
      %p77 = por %p75, %p76
      %p79 = scmp.ne.s32.totalorder %s64, %s78
      %p80 = scmp.eq.s32.totalorder %s38, 0
      %p81 = por %p79, %p80
      %s83 = sadd.s32 %s82, 1
      %p86 = scmp.eq.s32.totalorder %s32, 1
      %p87 = scmp.ne.s32.totalorder %s82, %s84
      %p88 = scmp.eq.s32.totalorder %s32, 0
      %p89 = por %p87, %p88
      %p90 = scmp.ne.s32.totalorder %s82, %s84
      %p91 = scmp.eq.s32.totalorder %s37, 1
      %p92 = por %p90, %p91
      %p93 = scmp.ne.s32.totalorder %s84, %s85
      %p94 = scmp.eq.s32.totalorder %s37, 0
      %p95 = por %p93, %p94
      %p96 = scmp.ne.s32.totalorder %s84, %s85
      %p97 = scmp.eq.s32.totalorder %s38, 1
      %p98 = por %p96, %p97
      %p100 = scmp.ne.s32.totalorder %s85, %s99
      %p101 = scmp.eq.s32.totalorder %s38, 0
      %p102 = por %p100, %p101
      %s103 = ssub.s32 %s32, %s39
      %p104 = scmp.eq.s32.totalorder %s103, 0
      %s106 = sadd.s32 %s105, 1
      %s107 = scalar_select %p104, %s105, %s106
      %p110 = pneg %p104
      %p111 = scmp.eq.s32.totalorder %s32, 1
      %p112 = por %p110, %p111
      %p113 = scmp.ne.s32.totalorder %s105, %s108
      %p114 = scmp.eq.s32.totalorder %s32, 0
      %p115 = por %p113, %p114
      %p116 = scmp.ne.s32.totalorder %s105, %s108
      %p117 = scmp.eq.s32.totalorder %s37, 1
      %p118 = por %p116, %p117
      %p119 = scmp.ne.s32.totalorder %s108, %s109
      %p120 = scmp.eq.s32.totalorder %s37, 0
      %p121 = por %p119, %p120
      %p122 = scmp.ne.s32.totalorder %s108, %s109
      %p123 = scmp.eq.s32.totalorder %s38, 1
      %p124 = por %p122, %p123
      %p126 = scmp.ne.s32.totalorder %s109, %s125
      %p127 = scmp.eq.s32.totalorder %s38, 0
      %p128 = por %p126, %p127
      %s129 = ssub.s32 %s32, %s39
      %p130 = scmp.eq.s32.totalorder %s129, 0
      %s132 = sadd.s32 %s131, 1
      %s133 = scalar_select %p130, %s131, %s132
      %p136 = pneg %p130
      %p137 = scmp.eq.s32.totalorder %s32, 1
      %p138 = por %p136, %p137
      %p139 = scmp.ne.s32.totalorder %s131, %s134
      %p140 = scmp.eq.s32.totalorder %s32, 0
      %p141 = por %p139, %p140
      %p142 = scmp.ne.s32.totalorder %s131, %s134
      %p143 = scmp.eq.s32.totalorder %s37, 1
      %p144 = por %p142, %p143
      %p145 = scmp.ne.s32.totalorder %s134, %s135
      %p146 = scmp.eq.s32.totalorder %s37, 0
      %p147 = por %p145, %p146
      %p148 = scmp.ne.s32.totalorder %s134, %s135
      %p149 = scmp.eq.s32.totalorder %s38, 1
      %p150 = por %p148, %p149
      %p152 = scmp.ne.s32.totalorder %s135, %s151
      %p153 = scmp.eq.s32.totalorder %s38, 0
      %p154 = por %p152, %p153
      %s155 = ssub.s32 %s32, %s39
      %p156 = scmp.eq.s32.totalorder %s155, 0
      %s158 = sadd.s32 %s157, 1
      %s159 = scalar_select %p156, %s157, %s158
      %p162 = pneg %p156
      %p163 = scmp.eq.s32.totalorder %s32, 1
      %p164 = por %p162, %p163
      %p165 = scmp.ne.s32.totalorder %s157, %s160
      %p166 = scmp.eq.s32.totalorder %s32, 0
      %p167 = por %p165, %p166
      %p168 = scmp.ne.s32.totalorder %s157, %s160
      %p169 = scmp.eq.s32.totalorder %s37, 1
      %p170 = por %p168, %p169
      %p171 = scmp.ne.s32.totalorder %s160, %s161
      %p172 = scmp.eq.s32.totalorder %s37, 0
      %p173 = por %p171, %p172
      %p174 = scmp.ne.s32.totalorder %s160, %s161
      %p175 = scmp.eq.s32.totalorder %s38, 1
      %p176 = por %p174, %p175
      %p178 = scmp.ne.s32.totalorder %s161, %s177
      %p179 = scmp.eq.s32.totalorder %s38, 0
      %p180 = por %p178, %p179
      %s181 = ssub.s32 %s32, %s39
      %p182 = scmp.eq.s32.totalorder %s181, 0
      %s184 = sadd.s32 %s183, 1
      %s185 = scalar_select %p182, %s183, %s184
      %p188 = pneg %p182
      %p189 = scmp.eq.s32.totalorder %s32, 1
      %p190 = por %p188, %p189
      %p191 = scmp.ne.s32.totalorder %s183, %s186
      %p192 = scmp.eq.s32.totalorder %s32, 0
      %p193 = por %p191, %p192
      %p194 = scmp.ne.s32.totalorder %s183, %s186
      %p195 = scmp.eq.s32.totalorder %s37, 1
      %p196 = por %p194, %p195
      %p197 = scmp.ne.s32.totalorder %s186, %s187
      %p198 = scmp.eq.s32.totalorder %s37, 0
      %p199 = por %p197, %p198
      %p200 = scmp.ne.s32.totalorder %s186, %s187
      %p201 = scmp.eq.s32.totalorder %s38, 1
      %p202 = por %p200, %p201
      %p204 = scmp.ne.s32.totalorder %s187, %s203
      %p205 = scmp.eq.s32.totalorder %s38, 0
      %p206 = por %p204, %p205
      %s207 = ssub.s32 %s32, %s39
      %p208 = scmp.eq.s32.totalorder %s207, 0
      %s210 = sadd.s32 %s209, 1
      %s211 = scalar_select %p208, %s209, %s210
      %p214 = pneg %p208
      %p215 = scmp.eq.s32.totalorder %s32, 1
      %p216 = por %p214, %p215
      %p217 = scmp.ne.s32.totalorder %s209, %s212
      %p218 = scmp.eq.s32.totalorder %s32, 0
      %p219 = por %p217, %p218
      %p220 = scmp.ne.s32.totalorder %s209, %s212
      %p221 = scmp.eq.s32.totalorder %s37, 1
      %p222 = por %p220, %p221
      %p223 = scmp.ne.s32.totalorder %s212, %s213
      %p224 = scmp.eq.s32.totalorder %s37, 0
      %p225 = por %p223, %p224
      %p226 = scmp.ne.s32.totalorder %s212, %s213
      %p227 = scmp.eq.s32.totalorder %s38, 1
      %p228 = por %p226, %p227
      %p230 = scmp.ne.s32.totalorder %s213, %s229
      %p231 = scmp.eq.s32.totalorder %s38, 0
      %p232 = por %p230, %p231
      %s233 = ssub.s32 %s32, %s39
      %p234 = scmp.eq.s32.totalorder %s233, 0
      %s236 = sadd.s32 %s235, 1
      %s237 = scalar_select %p234, %s235, %s236
      %p240 = pneg %p234
      %p241 = scmp.eq.s32.totalorder %s32, 1
      %p242 = por %p240, %p241
      %p243 = scmp.ne.s32.totalorder %s235, %s238
      %p244 = scmp.eq.s32.totalorder %s32, 0
      %p245 = por %p243, %p244
      %p246 = scmp.ne.s32.totalorder %s235, %s238
      %p247 = scmp.eq.s32.totalorder %s37, 1
      %p248 = por %p246, %p247
      %p249 = scmp.ne.s32.totalorder %s238, %s239
      %p250 = scmp.eq.s32.totalorder %s37, 0
      %p251 = por %p249, %p250
      %p252 = scmp.ne.s32.totalorder %s238, %s239
      %p253 = scmp.eq.s32.totalorder %s38, 1
      %p254 = por %p252, %p253
      %p256 = scmp.ne.s32.totalorder %s239, %s255
      %p257 = scmp.eq.s32.totalorder %s38, 0
      %p258 = por %p256, %p257
      %s259 = ssub.s32 %s32, %s39
      %p260 = scmp.eq.s32.totalorder %s259, 0
      %s262 = sadd.s32 %s261, 1
      %s263 = scalar_select %p260, %s261, %s262
      %p266 = pneg %p260
      %p267 = scmp.eq.s32.totalorder %s32, 1
      %p268 = por %p266, %p267
      %p269 = scmp.ne.s32.totalorder %s261, %s264
      %p270 = scmp.eq.s32.totalorder %s32, 0
      %p271 = por %p269, %p270
      %p272 = scmp.ne.s32.totalorder %s261, %s264
      %p273 = scmp.eq.s32.totalorder %s37, 1
      %p274 = por %p272, %p273
      %p275 = scmp.ne.s32.totalorder %s264, %s265
      %p276 = scmp.eq.s32.totalorder %s37, 0
      %p277 = por %p275, %p276
      %p278 = scmp.ne.s32.totalorder %s264, %s265
      %p279 = scmp.eq.s32.totalorder %s38, 1
      %p280 = por %p278, %p279
      %p282 = scmp.ne.s32.totalorder %s265, %s281
      %p283 = scmp.eq.s32.totalorder %s38, 0
      %p284 = por %p282, %p283
      %s285 = ssub.s32 %s32, %s39
      %p286 = scmp.eq.s32.totalorder %s285, 0
      %s288 = sadd.s32 %s287, 1
      %s289 = scalar_select %p286, %s287, %s288
      %p292 = pneg %p286
      %p293 = scmp.eq.s32.totalorder %s32, 1
      %p294 = por %p292, %p293
      %p295 = scmp.ne.s32.totalorder %s287, %s290
      %p296 = scmp.eq.s32.totalorder %s32, 0
      %p297 = por %p295, %p296
      %p298 = scmp.ne.s32.totalorder %s287, %s290
      %p299 = scmp.eq.s32.totalorder %s37, 1
      %p300 = por %p298, %p299
      %p301 = scmp.ne.s32.totalorder %s290, %s291
      %p302 = scmp.eq.s32.totalorder %s37, 0
      %p303 = por %p301, %p302
      %p304 = scmp.ne.s32.totalorder %s290, %s291
      %p305 = scmp.eq.s32.totalorder %s38, 1
      %p306 = por %p304, %p305
      %p308 = scmp.ne.s32.totalorder %s291, %s307
      %p309 = scmp.eq.s32.totalorder %s38, 0
      %p310 = por %p308, %p309
      %s311 = ssub.s32 %s32, %s39
      %p312 = scmp.eq.s32.totalorder %s311, 0
      %s314 = sadd.s32 %s313, 1
      %s315 = scalar_select %p312, %s313, %s314
      %p318 = pneg %p312
      %p319 = scmp.eq.s32.totalorder %s32, 1
      %p320 = por %p318, %p319
      %p321 = scmp.ne.s32.totalorder %s313, %s316
      %p322 = scmp.eq.s32.totalorder %s32, 0
      %p323 = por %p321, %p322
      %p324 = scmp.ne.s32.totalorder %s313, %s316
      %p325 = scmp.eq.s32.totalorder %s37, 1
      %p326 = por %p324, %p325
      %p327 = scmp.ne.s32.totalorder %s316, %s317
      %p328 = scmp.eq.s32.totalorder %s37, 0
      %p329 = por %p327, %p328
      %p330 = scmp.ne.s32.totalorder %s316, %s317
      %p331 = scmp.eq.s32.totalorder %s38, 1
      %p332 = por %p330, %p331
      %p334 = scmp.ne.s32.totalorder %s317, %s333
      %p335 = scmp.eq.s32.totalorder %s38, 0
      %p336 = por %p334, %p335
      %s337 = ssub.s32 %s32, %s39
      %p338 = scmp.eq.s32.totalorder %s337, 0
      %s340 = sadd.s32 %s339, 1
      %s341 = scalar_select %p338, %s339, %s340
      %p344 = pneg %p338
      %p345 = scmp.eq.s32.totalorder %s32, 1
      %p346 = por %p344, %p345
      %p347 = scmp.ne.s32.totalorder %s339, %s342
      %p348 = scmp.eq.s32.totalorder %s32, 0
      %p349 = por %p347, %p348
      %p350 = scmp.ne.s32.totalorder %s339, %s342
      %p351 = scmp.eq.s32.totalorder %s37, 1
      %p352 = por %p350, %p351
      %p353 = scmp.ne.s32.totalorder %s342, %s343
      %p354 = scmp.eq.s32.totalorder %s37, 0
      %p355 = por %p353, %p354
      %p356 = scmp.ne.s32.totalorder %s342, %s343
      %p357 = scmp.eq.s32.totalorder %s38, 1
      %p358 = por %p356, %p357
      %p360 = scmp.ne.s32.totalorder %s343, %s359
      %p361 = scmp.eq.s32.totalorder %s38, 0
      %p362 = por %p360, %p361
      %s363 = ssub.s32 %s32, %s39
      %p364 = scmp.eq.s32.totalorder %s363, 0
      %s366 = sadd.s32 %s365, 1
      %s367 = scalar_select %p364, %s365, %s366
      %p370 = pneg %p364
      %p371 = scmp.eq.s32.totalorder %s32, 1
      %p372 = por %p370, %p371
      %p373 = scmp.ne.s32.totalorder %s365, %s368
      %p374 = scmp.eq.s32.totalorder %s32, 0
      %p375 = por %p373, %p374
      %p376 = scmp.ne.s32.totalorder %s365, %s368
      %p377 = scmp.eq.s32.totalorder %s37, 1
      %p378 = por %p376, %p377
      %p379 = scmp.ne.s32.totalorder %s368, %s369
      %p380 = scmp.eq.s32.totalorder %s37, 0
      %p381 = por %p379, %p380
      %p382 = scmp.ne.s32.totalorder %s368, %s369
      %p383 = scmp.eq.s32.totalorder %s38, 1
      %p384 = por %p382, %p383
      %p386 = scmp.ne.s32.totalorder %s369, %s385
      %p387 = scmp.eq.s32.totalorder %s38, 0
      %p388 = por %p386, %p387
      %s389 = ssub.s32 %s32, %s39
      %p390 = scmp.eq.s32.totalorder %s389, 0
      %s392 = sadd.s32 %s391, 1
      %s393 = scalar_select %p390, %s391, %s392
      %p396 = pneg %p390
      %p397 = scmp.eq.s32.totalorder %s32, 1
      %p398 = por %p396, %p397
      %p399 = scmp.ne.s32.totalorder %s391, %s394
      %p400 = scmp.eq.s32.totalorder %s32, 0
      %p401 = por %p399, %p400
      %p402 = scmp.ne.s32.totalorder %s391, %s394
      %p403 = scmp.eq.s32.totalorder %s37, 1
      %p404 = por %p402, %p403
      %p405 = scmp.ne.s32.totalorder %s394, %s395
      %p406 = scmp.eq.s32.totalorder %s37, 0
      %p407 = por %p405, %p406
      %p408 = scmp.ne.s32.totalorder %s394, %s395
      %p409 = scmp.eq.s32.totalorder %s38, 1
      %p410 = por %p408, %p409
      %p412 = scmp.ne.s32.totalorder %s395, %s411
      %p413 = scmp.eq.s32.totalorder %s38, 0
      %p414 = por %p412, %p413
      %s415 = ssub.s32 %s32, %s39
      %p416 = scmp.eq.s32.totalorder %s415, 0
      %s418 = sadd.s32 %s417, 1
      %s419 = scalar_select %p416, %s417, %s418
      %p422 = pneg %p416
      %p423 = scmp.eq.s32.totalorder %s32, 1
      %p424 = por %p422, %p423
      %p425 = scmp.ne.s32.totalorder %s417, %s420
      %p426 = scmp.eq.s32.totalorder %s32, 0
      %p427 = por %p425, %p426
      %p428 = scmp.ne.s32.totalorder %s417, %s420
      %p429 = scmp.eq.s32.totalorder %s37, 1
      %p430 = por %p428, %p429
      %p431 = scmp.ne.s32.totalorder %s420, %s421
      %p432 = scmp.eq.s32.totalorder %s37, 0
      %p433 = por %p431, %p432
      %p434 = scmp.ne.s32.totalorder %s420, %s421
      %p435 = scmp.eq.s32.totalorder %s38, 1
      %p436 = por %p434, %p435
      %p438 = scmp.ne.s32.totalorder %s421, %s437
      %p439 = scmp.eq.s32.totalorder %s38, 0
      %p440 = por %p438, %p439
      %s442 = sadd.s32 %s441, 1
      %p445 = scmp.eq.s32.totalorder %s32, 1
      %p446 = scmp.ne.s32.totalorder %s441, %s443
      %p447 = scmp.eq.s32.totalorder %s32, 0
      %p448 = por %p446, %p447
      %p449 = scmp.ne.s32.totalorder %s441, %s443
      %p450 = scmp.eq.s32.totalorder %s37, 1
      %p451 = por %p449, %p450
      %p452 = scmp.ne.s32.totalorder %s443, %s444
      %p453 = scmp.eq.s32.totalorder %s37, 0
      %p454 = por %p452, %p453
      %p455 = scmp.ne.s32.totalorder %s443, %s444
      %p456 = scmp.eq.s32.totalorder %s38, 1
      %p457 = por %p455, %p456
      %p459 = scmp.ne.s32.totalorder %s444, %s458
      %p460 = scmp.eq.s32.totalorder %s38, 0
      %p461 = por %p459, %p460
      %p462 = scmp.le.s32.totalorder 1, %s32
      %p463 = scmp.lt.s32.totalorder %s32, 3
      %p464 = pnand %p462, %p463
      %p465 = pneg %p464
      // Predicated region
      $region9: #{tpu_custom_call.1} parent=5 // pred_check
        _
      $region10: #{tpu_custom_call.1} parent=5 // pred_check_branch
        %467 = sbr.rel (%p464) target = $region12
      $region11: #{tpu_custom_call.1} parent=5 // pred_region
        %s468 = ssub.s32 %s32, 1
        // Predicated region
        $region13: #{tpu_custom_call.1} parent=11 // pred_check
          %p469 = pneg %p53
        $region14: #{tpu_custom_call.1} parent=11 // pred_check_branch
          %471 = sbr.rel (%p469) target = $region16
        $region15: #{tpu_custom_call.1} parent=11 // pred_region
          _
        $region16: #{tpu_custom_call.1} parent=11 // pred_fallthru
          _
        // Predicated region
        $region17: #{tpu_custom_call.1} parent=11 // pred_check
          %p472 = pneg %p74
        $region18: #{tpu_custom_call.1} parent=11 // pred_check_branch
          %474 = sbr.rel (%p472) target = $region20
        $region19: #{tpu_custom_call.1} parent=11 // pred_region
          _
        $region20: #{tpu_custom_call.1} parent=11 // pred_fallthru
          _
        // Predicated region
        $region21: #{tpu_custom_call.1} parent=11 // pred_check
          %p475 = pneg %p95
        $region22: #{tpu_custom_call.1} parent=11 // pred_check_branch
          %477 = sbr.rel (%p475) target = $region24
        $region23: #{tpu_custom_call.1} parent=11 // pred_region
          _
        $region24: #{tpu_custom_call.1} parent=11 // pred_fallthru
          _
      $region12: #{tpu_custom_call.1} parent=5 // pred_fallthru
        _
      %p478 = scmp.lt.s32.totalorder %s32, 2
      // Predicated region
      $region25: #{tpu_custom_call.1} parent=5 // pred_check
        %p479 = pneg %p478
      $region26: #{tpu_custom_call.1} parent=5 // pred_check_branch
        %481 = sbr.rel (%p479) target = $region28
      $region27: #{tpu_custom_call.1} parent=5 // pred_region
        // Predicated region
        $region29: #{tpu_custom_call.1} parent=27 // pred_check
          %p482 = pneg %p115
        $region30: #{tpu_custom_call.1} parent=27 // pred_check_branch
          %484 = sbr.rel (%p482) target = $region32
        $region31: #{tpu_custom_call.1} parent=27 // pred_region
          %p485 = scmp.lt.s32.totalorder %s32, 1
          %s486 = scalar_select %p485, %s32, 1
          %s487 = smul.addr %s486, 4
          %s488 = smul.addr %s487, 4
          %s489 = scalar_lea.vmem %s4, %s488
        $region32: #{tpu_custom_call.1} parent=27 // pred_fallthru
          _
        // Predicated region
        $region33: #{tpu_custom_call.1} parent=27 // pred_check
          %p490 = pneg %p141
        $region34: #{tpu_custom_call.1} parent=27 // pred_check_branch
          %492 = sbr.rel (%p490) target = $region36
        $region35: #{tpu_custom_call.1} parent=27 // pred_region
          %p493 = scmp.lt.s32.totalorder %s32, 1
          %s494 = scalar_select %p493, %s32, 1
          %s495 = smul.addr %s494, 4
          %s496 = smul.addr %s495, 8
          %s497 = scalar_lea.vmem %s5, %s496
        $region36: #{tpu_custom_call.1} parent=27 // pred_fallthru
          _
        // Predicated region
        $region37: #{tpu_custom_call.1} parent=27 // pred_check
          %p498 = pneg %p167
        $region38: #{tpu_custom_call.1} parent=27 // pred_check_branch
          %500 = sbr.rel (%p498) target = $region40
        $region39: #{tpu_custom_call.1} parent=27 // pred_region
          %p501 = scmp.lt.s32.totalorder %s32, 1
          %s502 = scalar_select %p501, %s32, 1
          %s503 = smul.addr %s502, 8
          %s504 = smul.addr %s503, 4
          %s505 = scalar_lea.vmem %s6, %s504
        $region40: #{tpu_custom_call.1} parent=27 // pred_fallthru
          _
        // Predicated region
        $region41: #{tpu_custom_call.1} parent=27 // pred_check
          %p506 = pneg %p193
        $region42: #{tpu_custom_call.1} parent=27 // pred_check_branch
          %508 = sbr.rel (%p506) target = $region44
        $region43: #{tpu_custom_call.1} parent=27 // pred_region
          %p509 = scmp.lt.s32.totalorder %s32, 1
          %s510 = scalar_select %p509, %s32, 1
          %s511 = smul.addr %s510, 8
          %s512 = smul.addr %s511, 8
          %s513 = scalar_lea.vmem %s7, %s512
        $region44: #{tpu_custom_call.1} parent=27 // pred_fallthru
          _
        // Predicated region
        $region45: #{tpu_custom_call.1} parent=27 // pred_check
          %p514 = pneg %p219
        $region46: #{tpu_custom_call.1} parent=27 // pred_check_branch
          %516 = sbr.rel (%p514) target = $region48
        $region47: #{tpu_custom_call.1} parent=27 // pred_region
          %p517 = scmp.lt.s32.totalorder %s32, 1
          %s518 = scalar_select %p517, %s32, 1
          %s519 = smul.addr %s518, 4
          %s520 = smul.addr %s519, 4
          %s521 = scalar_lea.vmem %s8, %s520
        $region48: #{tpu_custom_call.1} parent=27 // pred_fallthru
          _
        // Predicated region
        $region49: #{tpu_custom_call.1} parent=27 // pred_check
          %p522 = pneg %p245
        $region50: #{tpu_custom_call.1} parent=27 // pred_check_branch
          %524 = sbr.rel (%p522) target = $region52
        $region51: #{tpu_custom_call.1} parent=27 // pred_region
          %p525 = scmp.lt.s32.totalorder %s32, 1
          %s526 = scalar_select %p525, %s32, 1
          %s527 = smul.addr %s526, 4
          %s528 = smul.addr %s527, 8
          %s529 = scalar_lea.vmem %s9, %s528
        $region52: #{tpu_custom_call.1} parent=27 // pred_fallthru
          _
        // Predicated region
        $region53: #{tpu_custom_call.1} parent=27 // pred_check
          %p530 = pneg %p271
        $region54: #{tpu_custom_call.1} parent=27 // pred_check_branch
          %532 = sbr.rel (%p530) target = $region56
        $region55: #{tpu_custom_call.1} parent=27 // pred_region
          %p533 = scmp.lt.s32.totalorder %s32, 1
          %s534 = scalar_select %p533, %s32, 1
          %s535 = smul.addr %s534, 8
          %s536 = smul.addr %s535, 4
          %s537 = scalar_lea.vmem %s10, %s536
        $region56: #{tpu_custom_call.1} parent=27 // pred_fallthru
          _
        // Predicated region
        $region57: #{tpu_custom_call.1} parent=27 // pred_check
          %p538 = pneg %p297
        $region58: #{tpu_custom_call.1} parent=27 // pred_check_branch
          %540 = sbr.rel (%p538) target = $region60
        $region59: #{tpu_custom_call.1} parent=27 // pred_region
          %p541 = scmp.lt.s32.totalorder %s32, 1
          %s542 = scalar_select %p541, %s32, 1
          %s543 = smul.addr %s542, 8
          %s544 = smul.addr %s543, 4
          %s545 = scalar_lea.vmem %s11, %s544
        $region60: #{tpu_custom_call.1} parent=27 // pred_fallthru
          _
        // Predicated region
        $region61: #{tpu_custom_call.1} parent=27 // pred_check
          %p546 = pneg %p323
        $region62: #{tpu_custom_call.1} parent=27 // pred_check_branch
          %548 = sbr.rel (%p546) target = $region64
        $region63: #{tpu_custom_call.1} parent=27 // pred_region
          %p549 = scmp.lt.s32.totalorder %s32, 1
          %s550 = scalar_select %p549, %s32, 1
          %s551 = smul.addr %s550, 8
          %s552 = smul.addr %s551, 8
          %s553 = scalar_lea.vmem %s12, %s552
        $region64: #{tpu_custom_call.1} parent=27 // pred_fallthru
          _
        // Predicated region
        $region65: #{tpu_custom_call.1} parent=27 // pred_check
          %p554 = pneg %p349
        $region66: #{tpu_custom_call.1} parent=27 // pred_check_branch
          %556 = sbr.rel (%p554) target = $region68
        $region67: #{tpu_custom_call.1} parent=27 // pred_region
          %p557 = scmp.lt.s32.totalorder %s32, 1
          %s558 = scalar_select %p557, %s32, 1
          %s559 = smul.addr %s558, 8
          %s560 = smul.addr %s559, 8
          %s561 = scalar_lea.vmem %s13, %s560
        $region68: #{tpu_custom_call.1} parent=27 // pred_fallthru
          _
        // Predicated region
        $region69: #{tpu_custom_call.1} parent=27 // pred_check
          %p562 = pneg %p375
        $region70: #{tpu_custom_call.1} parent=27 // pred_check_branch
          %564 = sbr.rel (%p562) target = $region72
        $region71: #{tpu_custom_call.1} parent=27 // pred_region
          %p565 = scmp.lt.s32.totalorder %s32, 1
          %s566 = scalar_select %p565, %s32, 1
          %s567 = smul.addr %s566, 8
          %s568 = smul.addr %s567, 8
          %s569 = scalar_lea.vmem %s14, %s568
        $region72: #{tpu_custom_call.1} parent=27 // pred_fallthru
          _
        // Predicated region
        $region73: #{tpu_custom_call.1} parent=27 // pred_check
          %p570 = pneg %p401
        $region74: #{tpu_custom_call.1} parent=27 // pred_check_branch
          %572 = sbr.rel (%p570) target = $region76
        $region75: #{tpu_custom_call.1} parent=27 // pred_region
          %p573 = scmp.lt.s32.totalorder %s32, 1
          %s574 = scalar_select %p573, %s32, 1
          %s575 = smul.addr %s574, 4
          %s576 = smul.addr %s575, 4
          %s577 = scalar_lea.vmem %s15, %s576
        $region76: #{tpu_custom_call.1} parent=27 // pred_fallthru
          _
        // Predicated region
        $region77: #{tpu_custom_call.1} parent=27 // pred_check
          %p578 = pneg %p427
        $region78: #{tpu_custom_call.1} parent=27 // pred_check_branch
          %580 = sbr.rel (%p578) target = $region80
        $region79: #{tpu_custom_call.1} parent=27 // pred_region
          %p581 = scmp.lt.s32.totalorder %s32, 1
          %s582 = scalar_select %p581, %s32, 1
          %s583 = smul.addr %s582, 4
          %s584 = smul.addr %s583, 8
          %s585 = scalar_lea.vmem %s16, %s584
        $region80: #{tpu_custom_call.1} parent=27 // pred_fallthru
          _
      $region28: #{tpu_custom_call.1} parent=5 // pred_fallthru
        _
      %p586 = scmp.le.s32.totalorder 1, %s32
      %p587 = scmp.lt.s32.totalorder %s32, 3
      %p588 = pnand %p586, %p587
      %p589 = pneg %p588
      // Predicated region
      $region81: #{tpu_custom_call.1} parent=5 // pred_check
        _
      $region82: #{tpu_custom_call.1} parent=5 // pred_check_branch
        %591 = sbr.rel (%p588) target = $region84
      $region83: #{tpu_custom_call.1} parent=5 // pred_region
        %s592 = ssub.s32 %s32, 1
        %p593 = pneg %p53
        %p594 = pneg %p50
        %p595 = pneg %p74
        %p596 = pneg %p71
        %p597 = pneg %p95
        %p598 = pneg %p92
        %p599 = scmp.lt.s32.totalorder %s37, 1
        %s600 = scalar_select %p599, %s37, 1
        %s601 = smul.addr %s600, 4
        %s602 = smul.addr %s601, 4
        %s603 = scalar_lea.vmem %s4, %s602
        %p604 = pneg %p121
        %p605 = pneg %p118
        %p606 = scmp.lt.s32.totalorder %s37, 1
        %s607 = scalar_select %p606, %s37, 1
        %s608 = smul.addr %s607, 4
        %s609 = smul.addr %s608, 8
        %s610 = scalar_lea.vmem %s5, %s609
        %p611 = pneg %p147
        %p612 = pneg %p144
        %p613 = scmp.lt.s32.totalorder %s37, 1
        %s614 = scalar_select %p613, %s37, 1
        %s615 = smul.addr %s614, 8
        %s616 = smul.addr %s615, 4
        %s617 = scalar_lea.vmem %s6, %s616
        %p618 = pneg %p173
        %p619 = pneg %p170
        %p620 = scmp.lt.s32.totalorder %s37, 1
        %s621 = scalar_select %p620, %s37, 1
        %s622 = smul.addr %s621, 8
        %s623 = smul.addr %s622, 8
        %s624 = scalar_lea.vmem %s7, %s623
        %p625 = pneg %p199
        %p626 = pneg %p196
        %p627 = scmp.lt.s32.totalorder %s37, 1
        %s628 = scalar_select %p627, %s37, 1
        %s629 = smul.addr %s628, 4
        %s630 = smul.addr %s629, 4
        %s631 = scalar_lea.vmem %s8, %s630
        %p632 = pneg %p225
        %p633 = pneg %p222
        %p634 = scmp.lt.s32.totalorder %s37, 1
        %s635 = scalar_select %p634, %s37, 1
        %s636 = smul.addr %s635, 4
        %s637 = smul.addr %s636, 8
        %s638 = scalar_lea.vmem %s9, %s637
        %p639 = pneg %p251
        %p640 = pneg %p248
        %p641 = scmp.lt.s32.totalorder %s37, 1
        %s642 = scalar_select %p641, %s37, 1
        %s643 = smul.addr %s642, 8
        %s644 = smul.addr %s643, 4
        %s645 = scalar_lea.vmem %s10, %s644
        %p646 = pneg %p277
        %p647 = pneg %p274
        %p648 = scmp.lt.s32.totalorder %s37, 1
        %s649 = scalar_select %p648, %s37, 1
        %s650 = smul.addr %s649, 8
        %s651 = smul.addr %s650, 4
        %s652 = scalar_lea.vmem %s11, %s651
        %p653 = pneg %p303
        %p654 = pneg %p300
        %p655 = scmp.lt.s32.totalorder %s37, 1
        %s656 = scalar_select %p655, %s37, 1
        %s657 = smul.addr %s656, 8
        %s658 = smul.addr %s657, 8
        %s659 = scalar_lea.vmem %s12, %s658
        %p660 = pneg %p329
        %p661 = pneg %p326
        %p662 = scmp.lt.s32.totalorder %s37, 1
        %s663 = scalar_select %p662, %s37, 1
        %s664 = smul.addr %s663, 8
        %s665 = smul.addr %s664, 8
        %s666 = scalar_lea.vmem %s13, %s665
        %p667 = pneg %p355
        %p668 = pneg %p352
        %p669 = scmp.lt.s32.totalorder %s37, 1
        %s670 = scalar_select %p669, %s37, 1
        %s671 = smul.addr %s670, 8
        %s672 = smul.addr %s671, 8
        %s673 = scalar_lea.vmem %s14, %s672
        %p674 = pneg %p381
        %p675 = pneg %p378
        %p676 = scmp.lt.s32.totalorder %s37, 1
        %s677 = scalar_select %p676, %s37, 1
        %s678 = smul.addr %s677, 4
        %s679 = smul.addr %s678, 4
        %s680 = scalar_lea.vmem %s15, %s679
        %p681 = pneg %p407
        %p682 = pneg %p404
        %p683 = scmp.lt.s32.totalorder %s37, 1
        %s684 = scalar_select %p683, %s37, 1
        %s685 = smul.addr %s684, 4
        %s686 = smul.addr %s685, 8
        %s687 = scalar_lea.vmem %s16, %s686
        %p688 = pneg %p433
        %p689 = pneg %p430
        %p690 = pneg %p454
        %p691 = pneg %p451
        %p692 = scmp.lt.s32.totalorder %s37, 1
        %s693 = scalar_select %p692, %s37, 1
        %s694 = smul.addr %s693, 4
        %s695 = smul.addr %s694, 4
        %s696 = scalar_lea.vmem %s4, %s695
        %p697 = scmp.lt.s32.totalorder %s37, 1
        %s698 = scalar_select %p697, %s37, 1
        %s699 = smul.addr %s698, 4
        %s700 = smul.addr %s699, 8
        %s701 = scalar_lea.vmem %s5, %s700
        %p702 = scmp.lt.s32.totalorder %s37, 1
        %s703 = scalar_select %p702, %s37, 1
        %s704 = smul.addr %s703, 8
        %s705 = smul.addr %s704, 4
        %s706 = scalar_lea.vmem %s6, %s705
        %p707 = scmp.lt.s32.totalorder %s37, 1
        %s708 = scalar_select %p707, %s37, 1
        %s709 = smul.addr %s708, 8
        %s710 = smul.addr %s709, 8
        %s711 = scalar_lea.vmem %s7, %s710
        %p712 = scmp.lt.s32.totalorder %s37, 1
        %s713 = scalar_select %p712, %s37, 1
        %s714 = smul.addr %s713, 4
        %s715 = smul.addr %s714, 4
        %s716 = scalar_lea.vmem %s8, %s715
        %p717 = scmp.lt.s32.totalorder %s37, 1
        %s718 = scalar_select %p717, %s37, 1
        %s719 = smul.addr %s718, 4
        %s720 = smul.addr %s719, 8
        %s721 = scalar_lea.vmem %s9, %s720
        %p722 = scmp.lt.s32.totalorder %s37, 1
        %s723 = scalar_select %p722, %s37, 1
        %s724 = smul.addr %s723, 8
        %s725 = smul.addr %s724, 4
        %s726 = scalar_lea.vmem %s10, %s725
        %p727 = scmp.lt.s32.totalorder %s37, 1
        %s728 = scalar_select %p727, %s37, 1
        %s729 = smul.addr %s728, 8
        %s730 = smul.addr %s729, 4
        %s731 = scalar_lea.vmem %s11, %s730
        %p732 = scmp.lt.s32.totalorder %s37, 1
        %s733 = scalar_select %p732, %s37, 1
        %s734 = smul.addr %s733, 8
        %s735 = smul.addr %s734, 8
        %s736 = scalar_lea.vmem %s12, %s735
        %p737 = scmp.lt.s32.totalorder %s37, 1
        %s738 = scalar_select %p737, %s37, 1
        %s739 = smul.addr %s738, 8
        %s740 = smul.addr %s739, 8
        %s741 = scalar_lea.vmem %s13, %s740
        %p742 = scmp.lt.s32.totalorder %s37, 1
        %s743 = scalar_select %p742, %s37, 1
        %s744 = smul.addr %s743, 8
        %s745 = smul.addr %s744, 8
        %s746 = scalar_lea.vmem %s14, %s745
        %p747 = scmp.lt.s32.totalorder %s37, 1
        %s748 = scalar_select %p747, %s37, 1
        %s749 = smul.addr %s748, 4
        %s750 = smul.addr %s749, 4
        %s751 = scalar_lea.vmem %s15, %s750
        %p752 = scmp.lt.s32.totalorder %s37, 1
        %s753 = scalar_select %p752, %s37, 1
        %s754 = smul.addr %s753, 4
        %s755 = smul.addr %s754, 8
        %s756 = scalar_lea.vmem %s16, %s755
        %p758 = scmp.eq.s32.totalorder %s37, 0
        // Predicated region
        $region85: #{tpu_custom_call.1} parent=83 // pred_check
          %p759 = pneg %p758
        $region86: #{tpu_custom_call.1} parent=83 // pred_check_branch
          %761 = sbr.rel (%p759) target = $region88
        $region87: #{tpu_custom_call.1} parent=83 // pred_region
          %v762 = vld [vmem:[%s1] sm:$0xff]
          %v763 = vld [vmem:[%s1 + $0x8] sm:$0xff]
          %v764 = vld [vmem:[%s1 + $0x10] sm:$0xff]
          %v765 = vld [vmem:[%s1 + $0x18] sm:$0xff]
          %v766 = vld [vmem:[%s1 + $0x20] sm:$0xff]
          %v767 = vld [vmem:[%s1 + $0x28] sm:$0xff]
          %v768 = vld [vmem:[%s1 + $0x30] sm:$0xff]
          %v769 = vld [vmem:[%s1 + $0x38] sm:$0xff]
          %v770 = vld [vmem:[%s1 + $0x40] sm:$0xff]
          %v771 = vld [vmem:[%s1 + $0x48] sm:$0xff]
          %v772 = vld [vmem:[%s1 + $0x50] sm:$0xff]
          %v773 = vld [vmem:[%s1 + $0x58] sm:$0xff]
          %v774 = vld [vmem:[%s1 + $0x60] sm:$0xff]
          %v775 = vld [vmem:[%s1 + $0x68] sm:$0xff]
          %v776 = vld [vmem:[%s1 + $0x70] sm:$0xff]
          %v777 = vld [vmem:[%s1 + $0x78] sm:$0xff]
          %778 = vst [vmem:[#allocation2] sm:$0xff] %v762
          %779 = vst [vmem:[#allocation2 + $0x8] sm:$0xff] %v763
          %780 = vst [vmem:[#allocation2 + $0x10] sm:$0xff] %v764
          %781 = vst [vmem:[#allocation2 + $0x18] sm:$0xff] %v765
          %782 = vst [vmem:[#allocation2 + $0x20] sm:$0xff] %v766
          %783 = vst [vmem:[#allocation2 + $0x28] sm:$0xff] %v767
          %784 = vst [vmem:[#allocation2 + $0x30] sm:$0xff] %v768
          %785 = vst [vmem:[#allocation2 + $0x38] sm:$0xff] %v769
          %786 = vst [vmem:[#allocation2 + $0x40] sm:$0xff] %v770
          %787 = vst [vmem:[#allocation2 + $0x48] sm:$0xff] %v771
          %788 = vst [vmem:[#allocation2 + $0x50] sm:$0xff] %v772
          %789 = vst [vmem:[#allocation2 + $0x58] sm:$0xff] %v773
          %790 = vst [vmem:[#allocation2 + $0x60] sm:$0xff] %v774
          %791 = vst [vmem:[#allocation2 + $0x68] sm:$0xff] %v775
          %792 = vst [vmem:[#allocation2 + $0x70] sm:$0xff] %v776
          %793 = vst [vmem:[#allocation2 + $0x78] sm:$0xff] %v777
        $region88: #{tpu_custom_call.1} parent=83 // pred_fallthru
          _
        %v794 = vld [vmem:[%s2] sm:$0x3]
        %v795 = vld [vmem:[%s3] sm:$0x1]
        %v796 = vld [vmem:[%s696] sm:$0xf]
        %v797 = vld [vmem:[%s696 + $0x4] sm:$0xf]
        %v798 = vld [vmem:[%s696 + $0x8] sm:$0xf]
        %v799 = vld [vmem:[%s696 + $0xc] sm:$0xf]
        %v800 = vld [vmem:[%s701] sm:$0xff]
        %v801 = vld [vmem:[%s701 + $0x8] sm:$0xff]
        %v802 = vld [vmem:[%s701 + $0x10] sm:$0xff]
        %v803 = vld [vmem:[%s701 + $0x18] sm:$0xff]
        %v804 = vld [vmem:[%s706] sm:$0xf]
        %v805 = vld [vmem:[%s706 + $0x4] sm:$0xf]
        %v806 = vld [vmem:[%s706 + $0x8] sm:$0xf]
        %v807 = vld [vmem:[%s706 + $0xc] sm:$0xf]
        %v808 = vld [vmem:[%s706 + $0x10] sm:$0xf]
        %v809 = vld [vmem:[%s706 + $0x14] sm:$0xf]
        %v810 = vld [vmem:[%s706 + $0x18] sm:$0xf]
        %v811 = vld [vmem:[%s706 + $0x1c] sm:$0xf]
        %v812 = vld [vmem:[%s711] sm:$0xff]
        %v813 = vld [vmem:[%s711 + $0x8] sm:$0xff]
        %v814 = vld [vmem:[%s711 + $0x10] sm:$0xff]
        %v815 = vld [vmem:[%s711 + $0x18] sm:$0xff]
        %v816 = vld [vmem:[%s711 + $0x20] sm:$0xff]
        %v817 = vld [vmem:[%s711 + $0x28] sm:$0xff]
        %v818 = vld [vmem:[%s711 + $0x30] sm:$0xff]
        %v819 = vld [vmem:[%s711 + $0x38] sm:$0xff]
        %v820 = vld [vmem:[%s716] sm:$0xf]
        %v821 = vld [vmem:[%s716 + $0x4] sm:$0xf]
        %v822 = vld [vmem:[%s716 + $0x8] sm:$0xf]
        %v823 = vld [vmem:[%s716 + $0xc] sm:$0xf]
        %v824 = vld [vmem:[%s721] sm:$0xff]
        %v825 = vld [vmem:[%s721 + $0x8] sm:$0xff]
        %v826 = vld [vmem:[%s721 + $0x10] sm:$0xff]
        %v827 = vld [vmem:[%s721 + $0x18] sm:$0xff]
        %v828 = vld [vmem:[%s726] sm:$0xf]
        %v829 = vld [vmem:[%s726 + $0x4] sm:$0xf]
        %v830 = vld [vmem:[%s726 + $0x8] sm:$0xf]
        %v831 = vld [vmem:[%s726 + $0xc] sm:$0xf]
        %v832 = vld [vmem:[%s726 + $0x10] sm:$0xf]
        %v833 = vld [vmem:[%s726 + $0x14] sm:$0xf]
        %v834 = vld [vmem:[%s726 + $0x18] sm:$0xf]
        %v835 = vld [vmem:[%s726 + $0x1c] sm:$0xf]
        %v836 = vld [vmem:[%s731] sm:$0xf]
        %v837 = vld [vmem:[%s731 + $0x4] sm:$0xf]
        %v838 = vld [vmem:[%s731 + $0x8] sm:$0xf]
        %v839 = vld [vmem:[%s731 + $0xc] sm:$0xf]
        %v840 = vld [vmem:[%s731 + $0x10] sm:$0xf]
        %v841 = vld [vmem:[%s731 + $0x14] sm:$0xf]
        %v842 = vld [vmem:[%s731 + $0x18] sm:$0xf]
        %v843 = vld [vmem:[%s731 + $0x1c] sm:$0xf]
        %v844 = vld [vmem:[%s736] sm:$0xff]
        %v845 = vld [vmem:[%s736 + $0x8] sm:$0xff]
        %v846 = vld [vmem:[%s736 + $0x10] sm:$0xff]
        %v847 = vld [vmem:[%s736 + $0x18] sm:$0xff]
        %v848 = vld [vmem:[%s736 + $0x20] sm:$0xff]
        %v849 = vld [vmem:[%s736 + $0x28] sm:$0xff]
        %v850 = vld [vmem:[%s736 + $0x30] sm:$0xff]
        %v851 = vld [vmem:[%s736 + $0x38] sm:$0xff]
        %v852 = vld [vmem:[%s741] sm:$0xff]
        %v853 = vld [vmem:[%s741 + $0x8] sm:$0xff]
        %v854 = vld [vmem:[%s741 + $0x10] sm:$0xff]
        %v855 = vld [vmem:[%s741 + $0x18] sm:$0xff]
        %v856 = vld [vmem:[%s741 + $0x20] sm:$0xff]
        %v857 = vld [vmem:[%s741 + $0x28] sm:$0xff]
        %v858 = vld [vmem:[%s741 + $0x30] sm:$0xff]
        %v859 = vld [vmem:[%s741 + $0x38] sm:$0xff]
        %v860 = vld [vmem:[%s746] sm:$0xff]
        %v861 = vld [vmem:[%s746 + $0x8] sm:$0xff]
        %v862 = vld [vmem:[%s746 + $0x10] sm:$0xff]
        %v863 = vld [vmem:[%s746 + $0x18] sm:$0xff]
        %v864 = vld [vmem:[%s746 + $0x20] sm:$0xff]
        %v865 = vld [vmem:[%s746 + $0x28] sm:$0xff]
        %v866 = vld [vmem:[%s746 + $0x30] sm:$0xff]
        %v867 = vld [vmem:[%s746 + $0x38] sm:$0xff]
        %v868 = vld [vmem:[%s751] sm:$0xf]
        %v869 = vld [vmem:[%s751 + $0x4] sm:$0xf]
        %v870 = vld [vmem:[%s751 + $0x8] sm:$0xf]
        %v871 = vld [vmem:[%s751 + $0xc] sm:$0xf]
        %v872 = vld [vmem:[%s756] sm:$0xff]
        %v873 = vld [vmem:[%s756 + $0x8] sm:$0xff]
        %v874 = vld [vmem:[%s756 + $0x10] sm:$0xff]
        %v875 = vld [vmem:[%s756 + $0x18] sm:$0xff]
        %s876 = sld [smem:[#allocation5 + %s37]]
        %p877 = scmp.ne.s32.totalorder %s876, 0
        %v878 = vld [vmem:[#allocation2] sm:$0xff]
        %v879 = vld [vmem:[#allocation2 + $0x8] sm:$0xff]
        %v880 = vld [vmem:[#allocation2 + $0x10] sm:$0xff]
        %v881 = vld [vmem:[#allocation2 + $0x18] sm:$0xff]
        %v882 = vld [vmem:[#allocation2 + $0x20] sm:$0xff]
        %v883 = vld [vmem:[#allocation2 + $0x28] sm:$0xff]
        %v884 = vld [vmem:[#allocation2 + $0x30] sm:$0xff]
        %v885 = vld [vmem:[#allocation2 + $0x38] sm:$0xff]
        %s886 = scalar_lea.vmem [#allocation2], 64
        %v887 = vld [vmem:[%s886] sm:$0xff]
        %v888 = vld [vmem:[%s886 + $0x8] sm:$0xff]
        %v889 = vld [vmem:[%s886 + $0x10] sm:$0xff]
        %v890 = vld [vmem:[%s886 + $0x18] sm:$0xff]
        %v891 = vld [vmem:[%s886 + $0x20] sm:$0xff]
        %v892 = vld [vmem:[%s886 + $0x28] sm:$0xff]
        %v893 = vld [vmem:[%s886 + $0x30] sm:$0xff]
        %v894 = vld [vmem:[%s886 + $0x38] sm:$0xff]
        %s895 = scalar_select %p877, 1, 0
        %v896 = vstv %s895
        %vm897 = vcmp.eq.s32.totalorder %v896, 1
        %v898 = vsel %vm897, %v887, %v878
        %v899 = vsel %vm897, %v888, %v879
        %v900 = vsel %vm897, %v889, %v880
        %v901 = vsel %vm897, %v890, %v881
        %v902 = vsel %vm897, %v891, %v882
        %v903 = vsel %vm897, %v892, %v883
        %v904 = vsel %vm897, %v893, %v884
        %v905 = vsel %vm897, %v894, %v885
        %v906 = vpack.c.bf16 %v880, %v878
        %v907 = vpack.c.bf16 %v881, %v879
        %v908 = vpack.c.bf16 %v884, %v882
        %v909 = vpack.c.bf16 %v885, %v883
        %v910 = vpack.c.bf16 %v900, %v898
        %v911 = vpack.c.bf16 %v901, %v899
        %v912 = vpack.c.bf16 %v904, %v902
        %v913 = vpack.c.bf16 %v905, %v903
        %915 = vset.pattern.permute.xlu0 0
        %916 = vperm.xlu0 %915, %v800
        %v917 = vpop.permute.xlu0 %916
        %920 = vset.pattern.permute.xlu0 0
        %921 = vperm.xlu0 %920, %v801
        %v922 = vpop.permute.xlu0 %921
        %925 = vset.pattern.permute.xlu0 0
        %926 = vperm.xlu0 %925, %v802
        %v927 = vpop.permute.xlu0 %926
        %930 = vset.pattern.permute.xlu0 0
        %931 = vperm.xlu0 %930, %v803
        %v932 = vpop.permute.xlu0 %931
        %v938 = vunpack.c.l.b16 %v796
        %v939 = vunpack.c.l.b16 %v797
        %v940 = vunpack.c.l.b16 %v798
        %v941 = vunpack.c.l.b16 %v799
        %v942 = vpack.c.b16 %v939, %v938
        %v943 = vpack.c.b16 %v941, %v940
        %vm944 = vcmask 261120
        %v946 = vsel %vm944, %v942, 0
        %v949 = vsel %vm944, %v943, 0
        %951 = vmatpush.bf16.msra.mxu0 0
        %952 = vmatpush.bf16.msra.mxu0 0
        %953 = vmatpush.bf16.msra.mxu0 0
        %954 = vmatpush.bf16.msra.mxu0 0
        %955 = vmatpush.bf16.msra.mxu0 0
        %956 = vmatpush.bf16.msra.mxu0 0
        %957 = vmatpush.bf16.msra.mxu0 %v908
        %958 = vmatpush.bf16.msra.mxu0 %v906
        %959 = vmatmul.bf16.gmra.mxu0 %v946
        %v960 = vpop.f32.mrf.mxu0
        %v961 = vadd.f32 %v917, %v960
        %v962 = vpop.f32.mrf.mxu0
        %v963 = vadd.f32 %v922, %v962
        %964 = vmatmul.bf16.gmra.mxu0 %v949
        %v965 = vpop.f32.mrf.mxu0
        %v966 = vadd.f32 %v927, %v965
        %v967 = vpop.f32.mrf.mxu0
        %v968 = vadd.f32 %v932, %v967
        %969 = vdwg.mxu0
        %970 = vmatpush.bf16.msra.mxu0 0
        %971 = vmatpush.bf16.msra.mxu0 0
        %972 = vmatpush.bf16.msra.mxu0 0
        %973 = vmatpush.bf16.msra.mxu0 0
        %974 = vmatpush.bf16.msra.mxu0 0
        %975 = vmatpush.bf16.msra.mxu0 0
        %976 = vmatpush.bf16.msra.mxu0 %v909
        %977 = vmatpush.bf16.msra.mxu0 %v907
        %978 = vmatmul.bf16.gmra.mxu0 %v946
        %v979 = vpop.f32.mrf.mxu0
        %v980 = vadd.f32 %v917, %v979
        %v981 = vpop.f32.mrf.mxu0
        %v982 = vadd.f32 %v922, %v981
        %983 = vmatmul.bf16.gmra.mxu0 %v949
        %v984 = vpop.f32.mrf.mxu0
        %v985 = vadd.f32 %v927, %v984
        %v986 = vpop.f32.mrf.mxu0
        %v987 = vadd.f32 %v932, %v986
        %988 = vdwg.mxu0
        %990 = vset.pattern.permute.xlu0 0
        %991 = vperm.xlu0 %990, %v812
        %v992 = vpop.permute.xlu0 %991
        %995 = vset.pattern.permute.xlu0 0
        %996 = vperm.xlu0 %995, %v813
        %v997 = vpop.permute.xlu0 %996
        %1000 = vset.pattern.permute.xlu0 0
        %1001 = vperm.xlu0 %1000, %v814
        %v1002 = vpop.permute.xlu0 %1001
        %1005 = vset.pattern.permute.xlu0 0
        %1006 = vperm.xlu0 %1005, %v815
        %v1007 = vpop.permute.xlu0 %1006
        %1010 = vset.pattern.permute.xlu0 0
        %1011 = vperm.xlu0 %1010, %v816
        %v1012 = vpop.permute.xlu0 %1011
        %1015 = vset.pattern.permute.xlu0 0
        %1016 = vperm.xlu0 %1015, %v817
        %v1017 = vpop.permute.xlu0 %1016
        %1020 = vset.pattern.permute.xlu0 0
        %1021 = vperm.xlu0 %1020, %v818
        %v1022 = vpop.permute.xlu0 %1021
        %1025 = vset.pattern.permute.xlu0 0
        %1026 = vperm.xlu0 %1025, %v819
        %v1027 = vpop.permute.xlu0 %1026
        %v1037 = vunpack.c.l.b16 %v804
        %v1038 = vunpack.c.l.b16 %v805
        %v1039 = vunpack.c.l.b16 %v806
        %v1040 = vunpack.c.l.b16 %v807
        %v1041 = vunpack.c.l.b16 %v808
        %v1042 = vunpack.c.l.b16 %v809
        %v1043 = vunpack.c.l.b16 %v810
        %v1044 = vunpack.c.l.b16 %v811
        %v1045 = vpack.c.b16 %v1038, %v1037
        %v1046 = vpack.c.b16 %v1040, %v1039
        %v1047 = vpack.c.b16 %v1042, %v1041
        %v1048 = vpack.c.b16 %v1044, %v1043
        %v1050 = vsel %vm944, %v1045, 0
        %v1053 = vsel %vm944, %v1046, 0
        %v1056 = vsel %vm944, %v1047, 0
        %v1059 = vsel %vm944, %v1048, 0
        %1061 = vmatpush.bf16.msra.mxu0 0
        %1062 = vmatpush.bf16.msra.mxu0 0
        %1063 = vmatpush.bf16.msra.mxu0 0
        %1064 = vmatpush.bf16.msra.mxu0 0
        %1065 = vmatpush.bf16.msra.mxu0 0
        %1066 = vmatpush.bf16.msra.mxu0 0
        %1067 = vmatpush.bf16.msra.mxu0 %v912
        %1068 = vmatpush.bf16.msra.mxu0 %v910
        %1069 = vmatmul.bf16.gmra.mxu0 %v1050
        %v1070 = vpop.f32.mrf.mxu0
        %v1071 = vadd.f32 %v992, %v1070
        %v1072 = vpop.f32.mrf.mxu0
        %v1073 = vadd.f32 %v997, %v1072
        %1074 = vmatmul.bf16.gmra.mxu0 %v1053
        %v1075 = vpop.f32.mrf.mxu0
        %v1076 = vadd.f32 %v1002, %v1075
        %v1077 = vpop.f32.mrf.mxu0
        %v1078 = vadd.f32 %v1007, %v1077
        %1079 = vmatmul.bf16.gmra.mxu0 %v1056
        %v1080 = vpop.f32.mrf.mxu0
        %v1081 = vadd.f32 %v1012, %v1080
        %v1082 = vpop.f32.mrf.mxu0
        %v1083 = vadd.f32 %v1017, %v1082
        %1084 = vmatmul.bf16.gmra.mxu0 %v1059
        %v1085 = vpop.f32.mrf.mxu0
        %v1086 = vadd.f32 %v1022, %v1085
        %v1087 = vpop.f32.mrf.mxu0
        %v1088 = vadd.f32 %v1027, %v1087
        %1089 = vdwg.mxu0
        %1090 = vmatpush.bf16.msra.mxu0 0
        %1091 = vmatpush.bf16.msra.mxu0 0
        %1092 = vmatpush.bf16.msra.mxu0 0
        %1093 = vmatpush.bf16.msra.mxu0 0
        %1094 = vmatpush.bf16.msra.mxu0 0
        %1095 = vmatpush.bf16.msra.mxu0 0
        %1096 = vmatpush.bf16.msra.mxu0 %v913
        %1097 = vmatpush.bf16.msra.mxu0 %v911
        %1098 = vmatmul.bf16.gmra.mxu0 %v1050
        %v1099 = vpop.f32.mrf.mxu0
        %v1100 = vadd.f32 %v992, %v1099
        %v1101 = vpop.f32.mrf.mxu0
        %v1102 = vadd.f32 %v997, %v1101
        %1103 = vmatmul.bf16.gmra.mxu0 %v1053
        %v1104 = vpop.f32.mrf.mxu0
        %v1105 = vadd.f32 %v1002, %v1104
        %v1106 = vpop.f32.mrf.mxu0
        %v1107 = vadd.f32 %v1007, %v1106
        %1108 = vmatmul.bf16.gmra.mxu0 %v1056
        %v1109 = vpop.f32.mrf.mxu0
        %v1110 = vadd.f32 %v1012, %v1109
        %v1111 = vpop.f32.mrf.mxu0
        %v1112 = vadd.f32 %v1017, %v1111
        %1113 = vmatmul.bf16.gmra.mxu0 %v1059
        %v1114 = vpop.f32.mrf.mxu0
        %v1115 = vadd.f32 %v1022, %v1114
        %v1116 = vpop.f32.mrf.mxu0
        %v1117 = vadd.f32 %v1027, %v1116
        %1118 = vdwg.mxu0
        %v1119 = vmul.f32 %v961, 0.35355338
        %v1120 = vmul.f32 %v980, 0.35355338
        %v1121 = vmul.f32 %v963, 0.35355338
        %v1122 = vmul.f32 %v982, 0.35355338
        %v1123 = vmul.f32 %v966, 0.35355338
        %v1124 = vmul.f32 %v985, 0.35355338
        %v1125 = vmul.f32 %v968, 0.35355338
        %v1126 = vmul.f32 %v987, 0.35355338
        %v1127 = vpack.c.bf16 %v1120, %v1119
        %v1128 = vpack.c.bf16 %v1122, %v1121
        %v1129 = vpack.c.bf16 %v1124, %v1123
        %v1130 = vpack.c.bf16 %v1126, %v1125
        %v1131 = vpack.c.bf16 %v1100, %v1071
        %v1132 = vpack.c.bf16 %v1102, %v1073
        %v1133 = vpack.c.bf16 %v1105, %v1076
        %v1134 = vpack.c.bf16 %v1107, %v1078
        %v1135 = vpack.c.bf16 %v1110, %v1081
        %v1136 = vpack.c.bf16 %v1112, %v1083
        %v1137 = vpack.c.bf16 %v1115, %v1086
        %v1138 = vpack.c.bf16 %v1117, %v1088
        %v1140 = vperm.slane %v795, 0
        %1142 = vxpose.xlu0.c.b16.start [1/8] %v1127, 128
        %1143 = vxpose.xlu0.c.b16.cont [2/8] 0, 128
        %1144 = vxpose.xlu0.c.b16.cont [3/8] 0, 128
        %1145 = vxpose.xlu0.c.b16.cont [4/8] 0, 128
        %1146 = vxpose.xlu0.c.b16.cont [5/8] 0, 128
        %1147 = vxpose.xlu0.c.b16.cont [6/8] 0, 128
        %1148 = vxpose.xlu0.c.b16.cont [7/8] 0, 128
        %1149 = vxpose.xlu0.c.b16.end [8/8] 0, 128
        %v1150 = vpop.trf.xlu0
        %v1151 = vpop.trf.xlu0
        %v1152 = vpop.trf.xlu0
        %v1153 = vpop.trf.xlu0
        %v1154 = vpop.trf.xlu0
        %v1155 = vpop.trf.xlu0
        %v1156 = vpop.trf.xlu0
        %v1157 = vpop.trf.xlu0
        %vm1158 = vcmask 64512
        %v1160 = vsel %vm1158, %v1150, 0
        %v1163 = vsel %vm1158, %v1151, 0
        %v1166 = vsel %vm1158, %v1152, 0
        %v1169 = vsel %vm1158, %v1153, 0
        %v1172 = vsel %vm1158, %v1154, 0
        %v1175 = vsel %vm1158, %v1155, 0
        %v1178 = vsel %vm1158, %v1156, 0
        %v1181 = vsel %vm1158, %v1157, 0
        %vm1183 = vcmask 1043456
        %v1185 = vsel %vm1183, %v1131, 0
        %1187 = vmatpush.bf16.msra.mxu0 0
        %1188 = vmatpush.bf16.msra.mxu0 0
        %1189 = vmatpush.bf16.msra.mxu0 0
        %1190 = vmatpush.bf16.msra.mxu0 0
        %1191 = vmatpush.bf16.msra.mxu0 0
        %1192 = vmatpush.bf16.msra.mxu0 0
        %1193 = vmatpush.bf16.msra.mxu0 0
        %1194 = vmatpush.bf16.msra.mxu0 %v1185
        %1195 = vmatmul.bf16.gmra.mxu0 %v1160
        %v1196 = vpop.f32.mrf.mxu0
        %v1197 = vadd.f32 %v1140, %v1196
        %v1198 = vpop.f32.mrf.mxu0
        %v1199 = vadd.f32 %v1140, %v1198
        %1200 = vmatmul.bf16.gmra.mxu0 %v1163
        %v1201 = vpop.f32.mrf.mxu0
        %v1202 = vadd.f32 %v1140, %v1201
        %v1203 = vpop.f32.mrf.mxu0
        %v1204 = vadd.f32 %v1140, %v1203
        %1205 = vmatmul.bf16.gmra.mxu0 %v1166
        %v1206 = vpop.f32.mrf.mxu0
        %v1207 = vadd.f32 %v1140, %v1206
        %v1208 = vpop.f32.mrf.mxu0
        %v1209 = vadd.f32 %v1140, %v1208
        %1210 = vmatmul.bf16.gmra.mxu0 %v1169
        %v1211 = vpop.f32.mrf.mxu0
        %v1212 = vadd.f32 %v1140, %v1211
        %v1213 = vpop.f32.mrf.mxu0
        %v1214 = vadd.f32 %v1140, %v1213
        %1215 = vmatmul.bf16.gmra.mxu0 %v1172
        %v1216 = vpop.f32.mrf.mxu0
        %v1217 = vadd.f32 %v1140, %v1216
        %v1218 = vpop.f32.mrf.mxu0
        %v1219 = vadd.f32 %v1140, %v1218
        %1220 = vmatmul.bf16.gmra.mxu0 %v1175
        %v1221 = vpop.f32.mrf.mxu0
        %v1222 = vadd.f32 %v1140, %v1221
        %v1223 = vpop.f32.mrf.mxu0
        %v1224 = vadd.f32 %v1140, %v1223
        %1225 = vmatmul.bf16.gmra.mxu0 %v1178
        %v1226 = vpop.f32.mrf.mxu0
        %v1227 = vadd.f32 %v1140, %v1226
        %v1228 = vpop.f32.mrf.mxu0
        %v1229 = vadd.f32 %v1140, %v1228
        %1230 = vmatmul.bf16.gmra.mxu0 %v1181
        %v1231 = vpop.f32.mrf.mxu0
        %v1232 = vadd.f32 %v1140, %v1231
        %v1233 = vpop.f32.mrf.mxu0
        %v1234 = vadd.f32 %v1140, %v1233
        %1235 = vdwg.mxu0
        %1236 = vmax.xlane.f32.xlu0 %v1197
        %v1237 = vpop.xlane.xlu0 %1236
        %1238 = vmax.xlane.f32.xlu0 %v1199
        %v1239 = vpop.xlane.xlu0 %1238
        %1240 = vmax.xlane.f32.xlu0 %v1202
        %v1241 = vpop.xlane.xlu0 %1240
        %1242 = vmax.xlane.f32.xlu0 %v1204
        %v1243 = vpop.xlane.xlu0 %1242
        %1244 = vmax.xlane.f32.xlu0 %v1207
        %v1245 = vpop.xlane.xlu0 %1244
        %1246 = vmax.xlane.f32.xlu0 %v1209
        %v1247 = vpop.xlane.xlu0 %1246
        %1248 = vmax.xlane.f32.xlu0 %v1212
        %v1249 = vpop.xlane.xlu0 %1248
        %1250 = vmax.xlane.f32.xlu0 %v1214
        %v1251 = vpop.xlane.xlu0 %1250
        %1252 = vmax.xlane.f32.xlu0 %v1217
        %v1253 = vpop.xlane.xlu0 %1252
        %1254 = vmax.xlane.f32.xlu0 %v1219
        %v1255 = vpop.xlane.xlu0 %1254
        %1256 = vmax.xlane.f32.xlu0 %v1222
        %v1257 = vpop.xlane.xlu0 %1256
        %1258 = vmax.xlane.f32.xlu0 %v1224
        %v1259 = vpop.xlane.xlu0 %1258
        %1260 = vmax.xlane.f32.xlu0 %v1227
        %v1261 = vpop.xlane.xlu0 %1260
        %1262 = vmax.xlane.f32.xlu0 %v1229
        %v1263 = vpop.xlane.xlu0 %1262
        %1264 = vmax.xlane.f32.xlu0 %v1232
        %v1265 = vpop.xlane.xlu0 %1264
        %1266 = vmax.xlane.f32.xlu0 %v1234
        %v1267 = vpop.xlane.xlu0 %1266
        %v1268 = vsub.f32 %v1197, %v1237
        %v1269 = vsub.f32 %v1199, %v1239
        %v1270 = vsub.f32 %v1202, %v1241
        %v1271 = vsub.f32 %v1204, %v1243
        %v1272 = vsub.f32 %v1207, %v1245
        %v1273 = vsub.f32 %v1209, %v1247
        %v1274 = vsub.f32 %v1212, %v1249
        %v1275 = vsub.f32 %v1214, %v1251
        %v1276 = vsub.f32 %v1217, %v1253
        %v1277 = vsub.f32 %v1219, %v1255
        %v1278 = vsub.f32 %v1222, %v1257
        %v1279 = vsub.f32 %v1224, %v1259
        %v1280 = vsub.f32 %v1227, %v1261
        %v1281 = vsub.f32 %v1229, %v1263
        %v1282 = vsub.f32 %v1232, %v1265
        %v1283 = vsub.f32 %v1234, %v1267
        %v1284 = vmul.f32 %v1268, 1.442695
        %v1285 = vpow.pop %v1284
        %v1286 = vmul.f32 %v1269, 1.442695
        %v1287 = vpow.pop %v1286
        %v1288 = vmul.f32 %v1270, 1.442695
        %v1289 = vpow.pop %v1288
        %v1290 = vmul.f32 %v1271, 1.442695
        %v1291 = vpow.pop %v1290
        %v1292 = vmul.f32 %v1272, 1.442695
        %v1293 = vpow.pop %v1292
        %v1294 = vmul.f32 %v1273, 1.442695
        %v1295 = vpow.pop %v1294
        %v1296 = vmul.f32 %v1274, 1.442695
        %v1297 = vpow.pop %v1296
        %v1298 = vmul.f32 %v1275, 1.442695
        %v1299 = vpow.pop %v1298
        %v1300 = vmul.f32 %v1276, 1.442695
        %v1301 = vpow.pop %v1300
        %v1302 = vmul.f32 %v1277, 1.442695
        %v1303 = vpow.pop %v1302
        %v1304 = vmul.f32 %v1278, 1.442695
        %v1305 = vpow.pop %v1304
        %v1306 = vmul.f32 %v1279, 1.442695
        %v1307 = vpow.pop %v1306
        %v1308 = vmul.f32 %v1280, 1.442695
        %v1309 = vpow.pop %v1308
        %v1310 = vmul.f32 %v1281, 1.442695
        %v1311 = vpow.pop %v1310
        %v1312 = vmul.f32 %v1282, 1.442695
        %v1313 = vpow.pop %v1312
        %v1314 = vmul.f32 %v1283, 1.442695
        %v1315 = vpow.pop %v1314
        %1316 = vadd.xlane.f32.xlu0 %v1285
        %v1317 = vpop.xlane.xlu0 %1316
        %1318 = vadd.xlane.f32.xlu0 %v1287
        %v1319 = vpop.xlane.xlu0 %1318
        %1320 = vadd.xlane.f32.xlu0 %v1289
        %v1321 = vpop.xlane.xlu0 %1320
        %1322 = vadd.xlane.f32.xlu0 %v1291
        %v1323 = vpop.xlane.xlu0 %1322
        %1324 = vadd.xlane.f32.xlu0 %v1293
        %v1325 = vpop.xlane.xlu0 %1324
        %1326 = vadd.xlane.f32.xlu0 %v1295
        %v1327 = vpop.xlane.xlu0 %1326
        %1328 = vadd.xlane.f32.xlu0 %v1297
        %v1329 = vpop.xlane.xlu0 %1328
        %1330 = vadd.xlane.f32.xlu0 %v1299
        %v1331 = vpop.xlane.xlu0 %1330
        %1332 = vadd.xlane.f32.xlu0 %v1301
        %v1333 = vpop.xlane.xlu0 %1332
        %1334 = vadd.xlane.f32.xlu0 %v1303
        %v1335 = vpop.xlane.xlu0 %1334
        %1336 = vadd.xlane.f32.xlu0 %v1305
        %v1337 = vpop.xlane.xlu0 %1336
        %1338 = vadd.xlane.f32.xlu0 %v1307
        %v1339 = vpop.xlane.xlu0 %1338
        %1340 = vadd.xlane.f32.xlu0 %v1309
        %v1341 = vpop.xlane.xlu0 %1340
        %1342 = vadd.xlane.f32.xlu0 %v1311
        %v1343 = vpop.xlane.xlu0 %1342
        %1344 = vadd.xlane.f32.xlu0 %v1313
        %v1345 = vpop.xlane.xlu0 %1344
        %1346 = vadd.xlane.f32.xlu0 %v1315
        %v1347 = vpop.xlane.xlu0 %1346
        %v1348 = vrcp.pop %v1317
        %v1349 = vrcp.pop %v1319
        %v1350 = vrcp.pop %v1321
        %v1351 = vrcp.pop %v1323
        %v1352 = vrcp.pop %v1325
        %v1353 = vrcp.pop %v1327
        %v1354 = vrcp.pop %v1329
        %v1355 = vrcp.pop %v1331
        %v1356 = vrcp.pop %v1333
        %v1357 = vrcp.pop %v1335
        %v1358 = vrcp.pop %v1337
        %v1359 = vrcp.pop %v1339
        %v1360 = vrcp.pop %v1341
        %v1361 = vrcp.pop %v1343
        %v1362 = vrcp.pop %v1345
        %v1363 = vrcp.pop %v1347
        %v1364 = vmul.f32 %v1285, %v1348
        %v1365 = vmul.f32 %v1287, %v1349
        %v1366 = vmul.f32 %v1289, %v1350
        %v1367 = vmul.f32 %v1291, %v1351
        %v1368 = vmul.f32 %v1293, %v1352
        %v1369 = vmul.f32 %v1295, %v1353
        %v1370 = vmul.f32 %v1297, %v1354
        %v1371 = vmul.f32 %v1299, %v1355
        %v1372 = vmul.f32 %v1301, %v1356
        %v1373 = vmul.f32 %v1303, %v1357
        %v1374 = vmul.f32 %v1305, %v1358
        %v1375 = vmul.f32 %v1307, %v1359
        %v1376 = vmul.f32 %v1309, %v1360
        %v1377 = vmul.f32 %v1311, %v1361
        %v1378 = vmul.f32 %v1313, %v1362
        %v1379 = vmul.f32 %v1315, %v1363
        %v1380 = vpack.c.bf16 %v1365, %v1364
        %v1381 = vpack.c.bf16 %v1367, %v1366
        %v1382 = vpack.c.bf16 %v1369, %v1368
        %v1383 = vpack.c.bf16 %v1371, %v1370
        %v1384 = vpack.c.bf16 %v1373, %v1372
        %v1385 = vpack.c.bf16 %v1375, %v1374
        %v1386 = vpack.c.bf16 %v1377, %v1376
        %v1387 = vpack.c.bf16 %v1379, %v1378
        %1388 = vmatpush.bf16.xpose.msra.mxu0 %v1387
        %1389 = vmatpush.bf16.xpose.msra.mxu0 %v1386
        %1390 = vmatpush.bf16.xpose.msra.mxu0 %v1385
        %1391 = vmatpush.bf16.xpose.msra.mxu0 %v1384
        %1392 = vmatpush.bf16.xpose.msra.mxu0 %v1383
        %1393 = vmatpush.bf16.xpose.msra.mxu0 %v1382
        %1394 = vmatpush.bf16.xpose.msra.mxu0 %v1381
        %1395 = vmatpush.bf16.xpose.msra.mxu0 %v1380
        %1396 = vmatmul.bf16.gmra.mxu0 %v1135
        %v1397 = vpop.f32.mrf.mxu0
        %v1398 = vadd.f32 0.0, %v1397
        %v1399 = vpop.f32.mrf.mxu0
        %1400 = vdwg.mxu0
        %1401 = vst [vmem:[#allocation3] sm:$0xff] %v1398
        %1402 = vxpose.xlu0.c.b16.start [1/8] %v1128, 128
        %1403 = vxpose.xlu0.c.b16.cont [2/8] 0, 128
        %1404 = vxpose.xlu0.c.b16.cont [3/8] 0, 128
        %1405 = vxpose.xlu0.c.b16.cont [4/8] 0, 128
        %1406 = vxpose.xlu0.c.b16.cont [5/8] 0, 128
        %1407 = vxpose.xlu0.c.b16.cont [6/8] 0, 128
        %1408 = vxpose.xlu0.c.b16.cont [7/8] 0, 128
        %1409 = vxpose.xlu0.c.b16.end [8/8] 0, 128
        %v1410 = vpop.trf.xlu0
        %v1411 = vpop.trf.xlu0
        %v1412 = vpop.trf.xlu0
        %v1413 = vpop.trf.xlu0
        %v1414 = vpop.trf.xlu0
        %v1415 = vpop.trf.xlu0
        %v1416 = vpop.trf.xlu0
        %v1417 = vpop.trf.xlu0
        %v1419 = vsel %vm1158, %v1410, 0
        %v1422 = vsel %vm1158, %v1411, 0
        %v1425 = vsel %vm1158, %v1412, 0
        %v1428 = vsel %vm1158, %v1413, 0
        %v1431 = vsel %vm1158, %v1414, 0
        %v1434 = vsel %vm1158, %v1415, 0
        %v1437 = vsel %vm1158, %v1416, 0
        %v1440 = vsel %vm1158, %v1417, 0
        %v1443 = vsel %vm1183, %v1132, 0
        %1445 = vmatpush.bf16.msra.mxu0 0
        %1446 = vmatpush.bf16.msra.mxu0 0
        %1447 = vmatpush.bf16.msra.mxu0 0
        %1448 = vmatpush.bf16.msra.mxu0 0
        %1449 = vmatpush.bf16.msra.mxu0 0
        %1450 = vmatpush.bf16.msra.mxu0 0
        %1451 = vmatpush.bf16.msra.mxu0 0
        %1452 = vmatpush.bf16.msra.mxu0 %v1443
        %1453 = vmatmul.bf16.gmra.mxu0 %v1419
        %v1454 = vpop.f32.mrf.mxu0
        %v1455 = vadd.f32 %v1140, %v1454
        %v1456 = vpop.f32.mrf.mxu0
        %v1457 = vadd.f32 %v1140, %v1456
        %1458 = vmatmul.bf16.gmra.mxu0 %v1422
        %v1459 = vpop.f32.mrf.mxu0
        %v1460 = vadd.f32 %v1140, %v1459
        %v1461 = vpop.f32.mrf.mxu0
        %v1462 = vadd.f32 %v1140, %v1461
        %1463 = vmatmul.bf16.gmra.mxu0 %v1425
        %v1464 = vpop.f32.mrf.mxu0
        %v1465 = vadd.f32 %v1140, %v1464
        %v1466 = vpop.f32.mrf.mxu0
        %v1467 = vadd.f32 %v1140, %v1466
        %1468 = vmatmul.bf16.gmra.mxu0 %v1428
        %v1469 = vpop.f32.mrf.mxu0
        %v1470 = vadd.f32 %v1140, %v1469
        %v1471 = vpop.f32.mrf.mxu0
        %v1472 = vadd.f32 %v1140, %v1471
        %1473 = vmatmul.bf16.gmra.mxu0 %v1431
        %v1474 = vpop.f32.mrf.mxu0
        %v1475 = vadd.f32 %v1140, %v1474
        %v1476 = vpop.f32.mrf.mxu0
        %v1477 = vadd.f32 %v1140, %v1476
        %1478 = vmatmul.bf16.gmra.mxu0 %v1434
        %v1479 = vpop.f32.mrf.mxu0
        %v1480 = vadd.f32 %v1140, %v1479
        %v1481 = vpop.f32.mrf.mxu0
        %v1482 = vadd.f32 %v1140, %v1481
        %1483 = vmatmul.bf16.gmra.mxu0 %v1437
        %v1484 = vpop.f32.mrf.mxu0
        %v1485 = vadd.f32 %v1140, %v1484
        %v1486 = vpop.f32.mrf.mxu0
        %v1487 = vadd.f32 %v1140, %v1486
        %1488 = vmatmul.bf16.gmra.mxu0 %v1440
        %v1489 = vpop.f32.mrf.mxu0
        %v1490 = vadd.f32 %v1140, %v1489
        %v1491 = vpop.f32.mrf.mxu0
        %v1492 = vadd.f32 %v1140, %v1491
        %1493 = vdwg.mxu0
        %1494 = vmax.xlane.f32.xlu0 %v1455
        %v1495 = vpop.xlane.xlu0 %1494
        %1496 = vmax.xlane.f32.xlu0 %v1457
        %v1497 = vpop.xlane.xlu0 %1496
        %1498 = vmax.xlane.f32.xlu0 %v1460
        %v1499 = vpop.xlane.xlu0 %1498
        %1500 = vmax.xlane.f32.xlu0 %v1462
        %v1501 = vpop.xlane.xlu0 %1500
        %1502 = vmax.xlane.f32.xlu0 %v1465
        %v1503 = vpop.xlane.xlu0 %1502
        %1504 = vmax.xlane.f32.xlu0 %v1467
        %v1505 = vpop.xlane.xlu0 %1504
        %1506 = vmax.xlane.f32.xlu0 %v1470
        %v1507 = vpop.xlane.xlu0 %1506
        %1508 = vmax.xlane.f32.xlu0 %v1472
        %v1509 = vpop.xlane.xlu0 %1508
        %1510 = vmax.xlane.f32.xlu0 %v1475
        %v1511 = vpop.xlane.xlu0 %1510
        %1512 = vmax.xlane.f32.xlu0 %v1477
        %v1513 = vpop.xlane.xlu0 %1512
        %1514 = vmax.xlane.f32.xlu0 %v1480
        %v1515 = vpop.xlane.xlu0 %1514
        %1516 = vmax.xlane.f32.xlu0 %v1482
        %v1517 = vpop.xlane.xlu0 %1516
        %1518 = vmax.xlane.f32.xlu0 %v1485
        %v1519 = vpop.xlane.xlu0 %1518
        %1520 = vmax.xlane.f32.xlu0 %v1487
        %v1521 = vpop.xlane.xlu0 %1520
        %1522 = vmax.xlane.f32.xlu0 %v1490
        %v1523 = vpop.xlane.xlu0 %1522
        %1524 = vmax.xlane.f32.xlu0 %v1492
        %v1525 = vpop.xlane.xlu0 %1524
        %v1526 = vsub.f32 %v1455, %v1495
        %v1527 = vsub.f32 %v1457, %v1497
        %v1528 = vsub.f32 %v1460, %v1499
        %v1529 = vsub.f32 %v1462, %v1501
        %v1530 = vsub.f32 %v1465, %v1503
        %v1531 = vsub.f32 %v1467, %v1505
        %v1532 = vsub.f32 %v1470, %v1507
        %v1533 = vsub.f32 %v1472, %v1509
        %v1534 = vsub.f32 %v1475, %v1511
        %v1535 = vsub.f32 %v1477, %v1513
        %v1536 = vsub.f32 %v1480, %v1515
        %v1537 = vsub.f32 %v1482, %v1517
        %v1538 = vsub.f32 %v1485, %v1519
        %v1539 = vsub.f32 %v1487, %v1521
        %v1540 = vsub.f32 %v1490, %v1523
        %v1541 = vsub.f32 %v1492, %v1525
        %v1542 = vmul.f32 %v1526, 1.442695
        %v1543 = vpow.pop %v1542
        %v1544 = vmul.f32 %v1527, 1.442695
        %v1545 = vpow.pop %v1544
        %v1546 = vmul.f32 %v1528, 1.442695
        %v1547 = vpow.pop %v1546
        %v1548 = vmul.f32 %v1529, 1.442695
        %v1549 = vpow.pop %v1548
        %v1550 = vmul.f32 %v1530, 1.442695
        %v1551 = vpow.pop %v1550
        %v1552 = vmul.f32 %v1531, 1.442695
        %v1553 = vpow.pop %v1552
        %v1554 = vmul.f32 %v1532, 1.442695
        %v1555 = vpow.pop %v1554
        %v1556 = vmul.f32 %v1533, 1.442695
        %v1557 = vpow.pop %v1556
        %v1558 = vmul.f32 %v1534, 1.442695
        %v1559 = vpow.pop %v1558
        %v1560 = vmul.f32 %v1535, 1.442695
        %v1561 = vpow.pop %v1560
        %v1562 = vmul.f32 %v1536, 1.442695
        %v1563 = vpow.pop %v1562
        %v1564 = vmul.f32 %v1537, 1.442695
        %v1565 = vpow.pop %v1564
        %v1566 = vmul.f32 %v1538, 1.442695
        %v1567 = vpow.pop %v1566
        %v1568 = vmul.f32 %v1539, 1.442695
        %v1569 = vpow.pop %v1568
        %v1570 = vmul.f32 %v1540, 1.442695
        %v1571 = vpow.pop %v1570
        %v1572 = vmul.f32 %v1541, 1.442695
        %v1573 = vpow.pop %v1572
        %1574 = vadd.xlane.f32.xlu0 %v1543
        %v1575 = vpop.xlane.xlu0 %1574
        %1576 = vadd.xlane.f32.xlu0 %v1545
        %v1577 = vpop.xlane.xlu0 %1576
        %1578 = vadd.xlane.f32.xlu0 %v1547
        %v1579 = vpop.xlane.xlu0 %1578
        %1580 = vadd.xlane.f32.xlu0 %v1549
        %v1581 = vpop.xlane.xlu0 %1580
        %1582 = vadd.xlane.f32.xlu0 %v1551
        %v1583 = vpop.xlane.xlu0 %1582
        %1584 = vadd.xlane.f32.xlu0 %v1553
        %v1585 = vpop.xlane.xlu0 %1584
        %1586 = vadd.xlane.f32.xlu0 %v1555
        %v1587 = vpop.xlane.xlu0 %1586
        %1588 = vadd.xlane.f32.xlu0 %v1557
        %v1589 = vpop.xlane.xlu0 %1588
        %1590 = vadd.xlane.f32.xlu0 %v1559
        %v1591 = vpop.xlane.xlu0 %1590
        %1592 = vadd.xlane.f32.xlu0 %v1561
        %v1593 = vpop.xlane.xlu0 %1592
        %1594 = vadd.xlane.f32.xlu0 %v1563
        %v1595 = vpop.xlane.xlu0 %1594
        %1596 = vadd.xlane.f32.xlu0 %v1565
        %v1597 = vpop.xlane.xlu0 %1596
        %1598 = vadd.xlane.f32.xlu0 %v1567
        %v1599 = vpop.xlane.xlu0 %1598
        %1600 = vadd.xlane.f32.xlu0 %v1569
        %v1601 = vpop.xlane.xlu0 %1600
        %1602 = vadd.xlane.f32.xlu0 %v1571
        %v1603 = vpop.xlane.xlu0 %1602
        %1604 = vadd.xlane.f32.xlu0 %v1573
        %v1605 = vpop.xlane.xlu0 %1604
        %v1606 = vrcp.pop %v1575
        %v1607 = vrcp.pop %v1577
        %v1608 = vrcp.pop %v1579
        %v1609 = vrcp.pop %v1581
        %v1610 = vrcp.pop %v1583
        %v1611 = vrcp.pop %v1585
        %v1612 = vrcp.pop %v1587
        %v1613 = vrcp.pop %v1589
        %v1614 = vrcp.pop %v1591
        %v1615 = vrcp.pop %v1593
        %v1616 = vrcp.pop %v1595
        %v1617 = vrcp.pop %v1597
        %v1618 = vrcp.pop %v1599
        %v1619 = vrcp.pop %v1601
        %v1620 = vrcp.pop %v1603
        %v1621 = vrcp.pop %v1605
        %v1622 = vmul.f32 %v1543, %v1606
        %v1623 = vmul.f32 %v1545, %v1607
        %v1624 = vmul.f32 %v1547, %v1608
        %v1625 = vmul.f32 %v1549, %v1609
        %v1626 = vmul.f32 %v1551, %v1610
        %v1627 = vmul.f32 %v1553, %v1611
        %v1628 = vmul.f32 %v1555, %v1612
        %v1629 = vmul.f32 %v1557, %v1613
        %v1630 = vmul.f32 %v1559, %v1614
        %v1631 = vmul.f32 %v1561, %v1615
        %v1632 = vmul.f32 %v1563, %v1616
        %v1633 = vmul.f32 %v1565, %v1617
        %v1634 = vmul.f32 %v1567, %v1618
        %v1635 = vmul.f32 %v1569, %v1619
        %v1636 = vmul.f32 %v1571, %v1620
        %v1637 = vmul.f32 %v1573, %v1621
        %v1638 = vpack.c.bf16 %v1623, %v1622
        %v1639 = vpack.c.bf16 %v1625, %v1624
        %v1640 = vpack.c.bf16 %v1627, %v1626
        %v1641 = vpack.c.bf16 %v1629, %v1628
        %v1642 = vpack.c.bf16 %v1631, %v1630
        %v1643 = vpack.c.bf16 %v1633, %v1632
        %v1644 = vpack.c.bf16 %v1635, %v1634
        %v1645 = vpack.c.bf16 %v1637, %v1636
        %1646 = vmatpush.bf16.xpose.msra.mxu0 %v1645
        %1647 = vmatpush.bf16.xpose.msra.mxu0 %v1644
        %1648 = vmatpush.bf16.xpose.msra.mxu0 %v1643
        %1649 = vmatpush.bf16.xpose.msra.mxu0 %v1642
        %1650 = vmatpush.bf16.xpose.msra.mxu0 %v1641
        %1651 = vmatpush.bf16.xpose.msra.mxu0 %v1640
        %1652 = vmatpush.bf16.xpose.msra.mxu0 %v1639
        %1653 = vmatpush.bf16.xpose.msra.mxu0 %v1638
        %1654 = vmatmul.bf16.gmra.mxu0 %v1136
        %v1655 = vpop.f32.mrf.mxu0
        %v1656 = vadd.f32 0.0, %v1655
        %v1657 = vpop.f32.mrf.mxu0
        %1658 = vdwg.mxu0
        %1659 = vst [vmem:[#allocation3 + $0x10] sm:$0xff] %v1656
        %1660 = vxpose.xlu0.c.b16.start [1/8] %v1129, 128
        %1661 = vxpose.xlu0.c.b16.cont [2/8] 0, 128
        %1662 = vxpose.xlu0.c.b16.cont [3/8] 0, 128
        %1663 = vxpose.xlu0.c.b16.cont [4/8] 0, 128
        %1664 = vxpose.xlu0.c.b16.cont [5/8] 0, 128
        %1665 = vxpose.xlu0.c.b16.cont [6/8] 0, 128
        %1666 = vxpose.xlu0.c.b16.cont [7/8] 0, 128
        %1667 = vxpose.xlu0.c.b16.end [8/8] 0, 128
        %v1668 = vpop.trf.xlu0
        %v1669 = vpop.trf.xlu0
        %v1670 = vpop.trf.xlu0
        %v1671 = vpop.trf.xlu0
        %v1672 = vpop.trf.xlu0
        %v1673 = vpop.trf.xlu0
        %v1674 = vpop.trf.xlu0
        %v1675 = vpop.trf.xlu0
        %v1677 = vsel %vm1158, %v1668, 0
        %v1680 = vsel %vm1158, %v1669, 0
        %v1683 = vsel %vm1158, %v1670, 0
        %v1686 = vsel %vm1158, %v1671, 0
        %v1689 = vsel %vm1158, %v1672, 0
        %v1692 = vsel %vm1158, %v1673, 0
        %v1695 = vsel %vm1158, %v1674, 0
        %v1698 = vsel %vm1158, %v1675, 0
        %v1701 = vsel %vm1183, %v1133, 0
        %1703 = vmatpush.bf16.msra.mxu0 0
        %1704 = vmatpush.bf16.msra.mxu0 0
        %1705 = vmatpush.bf16.msra.mxu0 0
        %1706 = vmatpush.bf16.msra.mxu0 0
        %1707 = vmatpush.bf16.msra.mxu0 0
        %1708 = vmatpush.bf16.msra.mxu0 0
        %1709 = vmatpush.bf16.msra.mxu0 0
        %1710 = vmatpush.bf16.msra.mxu0 %v1701
        %1711 = vmatmul.bf16.gmra.mxu0 %v1677
        %v1712 = vpop.f32.mrf.mxu0
        %v1713 = vadd.f32 %v1140, %v1712
        %v1714 = vpop.f32.mrf.mxu0
        %v1715 = vadd.f32 %v1140, %v1714
        %1716 = vmatmul.bf16.gmra.mxu0 %v1680
        %v1717 = vpop.f32.mrf.mxu0
        %v1718 = vadd.f32 %v1140, %v1717
        %v1719 = vpop.f32.mrf.mxu0
        %v1720 = vadd.f32 %v1140, %v1719
        %1721 = vmatmul.bf16.gmra.mxu0 %v1683
        %v1722 = vpop.f32.mrf.mxu0
        %v1723 = vadd.f32 %v1140, %v1722
        %v1724 = vpop.f32.mrf.mxu0
        %v1725 = vadd.f32 %v1140, %v1724
        %1726 = vmatmul.bf16.gmra.mxu0 %v1686
        %v1727 = vpop.f32.mrf.mxu0
        %v1728 = vadd.f32 %v1140, %v1727
        %v1729 = vpop.f32.mrf.mxu0
        %v1730 = vadd.f32 %v1140, %v1729
        %1731 = vmatmul.bf16.gmra.mxu0 %v1689
        %v1732 = vpop.f32.mrf.mxu0
        %v1733 = vadd.f32 %v1140, %v1732
        %v1734 = vpop.f32.mrf.mxu0
        %v1735 = vadd.f32 %v1140, %v1734
        %1736 = vmatmul.bf16.gmra.mxu0 %v1692
        %v1737 = vpop.f32.mrf.mxu0
        %v1738 = vadd.f32 %v1140, %v1737
        %v1739 = vpop.f32.mrf.mxu0
        %v1740 = vadd.f32 %v1140, %v1739
        %1741 = vmatmul.bf16.gmra.mxu0 %v1695
        %v1742 = vpop.f32.mrf.mxu0
        %v1743 = vadd.f32 %v1140, %v1742
        %v1744 = vpop.f32.mrf.mxu0
        %v1745 = vadd.f32 %v1140, %v1744
        %1746 = vmatmul.bf16.gmra.mxu0 %v1698
        %v1747 = vpop.f32.mrf.mxu0
        %v1748 = vadd.f32 %v1140, %v1747
        %v1749 = vpop.f32.mrf.mxu0
        %v1750 = vadd.f32 %v1140, %v1749
        %1751 = vdwg.mxu0
        %1752 = vmax.xlane.f32.xlu0 %v1713
        %v1753 = vpop.xlane.xlu0 %1752
        %1754 = vmax.xlane.f32.xlu0 %v1715
        %v1755 = vpop.xlane.xlu0 %1754
        %1756 = vmax.xlane.f32.xlu0 %v1718
        %v1757 = vpop.xlane.xlu0 %1756
        %1758 = vmax.xlane.f32.xlu0 %v1720
        %v1759 = vpop.xlane.xlu0 %1758
        %1760 = vmax.xlane.f32.xlu0 %v1723
        %v1761 = vpop.xlane.xlu0 %1760
        %1762 = vmax.xlane.f32.xlu0 %v1725
        %v1763 = vpop.xlane.xlu0 %1762
        %1764 = vmax.xlane.f32.xlu0 %v1728
        %v1765 = vpop.xlane.xlu0 %1764
        %1766 = vmax.xlane.f32.xlu0 %v1730
        %v1767 = vpop.xlane.xlu0 %1766
        %1768 = vmax.xlane.f32.xlu0 %v1733
        %v1769 = vpop.xlane.xlu0 %1768
        %1770 = vmax.xlane.f32.xlu0 %v1735
        %v1771 = vpop.xlane.xlu0 %1770
        %1772 = vmax.xlane.f32.xlu0 %v1738
        %v1773 = vpop.xlane.xlu0 %1772
        %1774 = vmax.xlane.f32.xlu0 %v1740
        %v1775 = vpop.xlane.xlu0 %1774
        %1776 = vmax.xlane.f32.xlu0 %v1743
        %v1777 = vpop.xlane.xlu0 %1776
        %1778 = vmax.xlane.f32.xlu0 %v1745
        %v1779 = vpop.xlane.xlu0 %1778
        %1780 = vmax.xlane.f32.xlu0 %v1748
        %v1781 = vpop.xlane.xlu0 %1780
        %1782 = vmax.xlane.f32.xlu0 %v1750
        %v1783 = vpop.xlane.xlu0 %1782
        %v1784 = vsub.f32 %v1713, %v1753
        %v1785 = vsub.f32 %v1715, %v1755
        %v1786 = vsub.f32 %v1718, %v1757
        %v1787 = vsub.f32 %v1720, %v1759
        %v1788 = vsub.f32 %v1723, %v1761
        %v1789 = vsub.f32 %v1725, %v1763
        %v1790 = vsub.f32 %v1728, %v1765
        %v1791 = vsub.f32 %v1730, %v1767
        %v1792 = vsub.f32 %v1733, %v1769
        %v1793 = vsub.f32 %v1735, %v1771
        %v1794 = vsub.f32 %v1738, %v1773
        %v1795 = vsub.f32 %v1740, %v1775
        %v1796 = vsub.f32 %v1743, %v1777
        %v1797 = vsub.f32 %v1745, %v1779
        %v1798 = vsub.f32 %v1748, %v1781
        %v1799 = vsub.f32 %v1750, %v1783
        %v1800 = vmul.f32 %v1784, 1.442695
        %v1801 = vpow.pop %v1800
        %v1802 = vmul.f32 %v1785, 1.442695
        %v1803 = vpow.pop %v1802
        %v1804 = vmul.f32 %v1786, 1.442695
        %v1805 = vpow.pop %v1804
        %v1806 = vmul.f32 %v1787, 1.442695
        %v1807 = vpow.pop %v1806
        %v1808 = vmul.f32 %v1788, 1.442695
        %v1809 = vpow.pop %v1808
        %v1810 = vmul.f32 %v1789, 1.442695
        %v1811 = vpow.pop %v1810
        %v1812 = vmul.f32 %v1790, 1.442695
        %v1813 = vpow.pop %v1812
        %v1814 = vmul.f32 %v1791, 1.442695
        %v1815 = vpow.pop %v1814
        %v1816 = vmul.f32 %v1792, 1.442695
        %v1817 = vpow.pop %v1816
        %v1818 = vmul.f32 %v1793, 1.442695
        %v1819 = vpow.pop %v1818
        %v1820 = vmul.f32 %v1794, 1.442695
        %v1821 = vpow.pop %v1820
        %v1822 = vmul.f32 %v1795, 1.442695
        %v1823 = vpow.pop %v1822
        %v1824 = vmul.f32 %v1796, 1.442695
        %v1825 = vpow.pop %v1824
        %v1826 = vmul.f32 %v1797, 1.442695
        %v1827 = vpow.pop %v1826
        %v1828 = vmul.f32 %v1798, 1.442695
        %v1829 = vpow.pop %v1828
        %v1830 = vmul.f32 %v1799, 1.442695
        %v1831 = vpow.pop %v1830
        %1832 = vadd.xlane.f32.xlu0 %v1801
        %v1833 = vpop.xlane.xlu0 %1832
        %1834 = vadd.xlane.f32.xlu0 %v1803
        %v1835 = vpop.xlane.xlu0 %1834
        %1836 = vadd.xlane.f32.xlu0 %v1805
        %v1837 = vpop.xlane.xlu0 %1836
        %1838 = vadd.xlane.f32.xlu0 %v1807
        %v1839 = vpop.xlane.xlu0 %1838
        %1840 = vadd.xlane.f32.xlu0 %v1809
        %v1841 = vpop.xlane.xlu0 %1840
        %1842 = vadd.xlane.f32.xlu0 %v1811
        %v1843 = vpop.xlane.xlu0 %1842
        %1844 = vadd.xlane.f32.xlu0 %v1813
        %v1845 = vpop.xlane.xlu0 %1844
        %1846 = vadd.xlane.f32.xlu0 %v1815
        %v1847 = vpop.xlane.xlu0 %1846
        %1848 = vadd.xlane.f32.xlu0 %v1817
        %v1849 = vpop.xlane.xlu0 %1848
        %1850 = vadd.xlane.f32.xlu0 %v1819
        %v1851 = vpop.xlane.xlu0 %1850
        %1852 = vadd.xlane.f32.xlu0 %v1821
        %v1853 = vpop.xlane.xlu0 %1852
        %1854 = vadd.xlane.f32.xlu0 %v1823
        %v1855 = vpop.xlane.xlu0 %1854
        %1856 = vadd.xlane.f32.xlu0 %v1825
        %v1857 = vpop.xlane.xlu0 %1856
        %1858 = vadd.xlane.f32.xlu0 %v1827
        %v1859 = vpop.xlane.xlu0 %1858
        %1860 = vadd.xlane.f32.xlu0 %v1829
        %v1861 = vpop.xlane.xlu0 %1860
        %1862 = vadd.xlane.f32.xlu0 %v1831
        %v1863 = vpop.xlane.xlu0 %1862
        %v1864 = vrcp.pop %v1833
        %v1865 = vrcp.pop %v1835
        %v1866 = vrcp.pop %v1837
        %v1867 = vrcp.pop %v1839
        %v1868 = vrcp.pop %v1841
        %v1869 = vrcp.pop %v1843
        %v1870 = vrcp.pop %v1845
        %v1871 = vrcp.pop %v1847
        %v1872 = vrcp.pop %v1849
        %v1873 = vrcp.pop %v1851
        %v1874 = vrcp.pop %v1853
        %v1875 = vrcp.pop %v1855
        %v1876 = vrcp.pop %v1857
        %v1877 = vrcp.pop %v1859
        %v1878 = vrcp.pop %v1861
        %v1879 = vrcp.pop %v1863
        %v1880 = vmul.f32 %v1801, %v1864
        %v1881 = vmul.f32 %v1803, %v1865
        %v1882 = vmul.f32 %v1805, %v1866
        %v1883 = vmul.f32 %v1807, %v1867
        %v1884 = vmul.f32 %v1809, %v1868
        %v1885 = vmul.f32 %v1811, %v1869
        %v1886 = vmul.f32 %v1813, %v1870
        %v1887 = vmul.f32 %v1815, %v1871
        %v1888 = vmul.f32 %v1817, %v1872
        %v1889 = vmul.f32 %v1819, %v1873
        %v1890 = vmul.f32 %v1821, %v1874
        %v1891 = vmul.f32 %v1823, %v1875
        %v1892 = vmul.f32 %v1825, %v1876
        %v1893 = vmul.f32 %v1827, %v1877
        %v1894 = vmul.f32 %v1829, %v1878
        %v1895 = vmul.f32 %v1831, %v1879
        %v1896 = vpack.c.bf16 %v1881, %v1880
        %v1897 = vpack.c.bf16 %v1883, %v1882
        %v1898 = vpack.c.bf16 %v1885, %v1884
        %v1899 = vpack.c.bf16 %v1887, %v1886
        %v1900 = vpack.c.bf16 %v1889, %v1888
        %v1901 = vpack.c.bf16 %v1891, %v1890
        %v1902 = vpack.c.bf16 %v1893, %v1892
        %v1903 = vpack.c.bf16 %v1895, %v1894
        %1904 = vmatpush.bf16.xpose.msra.mxu0 %v1903
        %1905 = vmatpush.bf16.xpose.msra.mxu0 %v1902
        %1906 = vmatpush.bf16.xpose.msra.mxu0 %v1901
        %1907 = vmatpush.bf16.xpose.msra.mxu0 %v1900
        %1908 = vmatpush.bf16.xpose.msra.mxu0 %v1899
        %1909 = vmatpush.bf16.xpose.msra.mxu0 %v1898
        %1910 = vmatpush.bf16.xpose.msra.mxu0 %v1897
        %1911 = vmatpush.bf16.xpose.msra.mxu0 %v1896
        %1912 = vmatmul.bf16.gmra.mxu0 %v1137
        %v1913 = vpop.f32.mrf.mxu0
        %v1914 = vadd.f32 0.0, %v1913
        %v1915 = vpop.f32.mrf.mxu0
        %1916 = vdwg.mxu0
        %1917 = vst [vmem:[#allocation3 + $0x20] sm:$0xff] %v1914
        %1918 = vxpose.xlu0.c.b16.start [1/8] %v1130, 128
        %1919 = vxpose.xlu0.c.b16.cont [2/8] 0, 128
        %1920 = vxpose.xlu0.c.b16.cont [3/8] 0, 128
        %1921 = vxpose.xlu0.c.b16.cont [4/8] 0, 128
        %1922 = vxpose.xlu0.c.b16.cont [5/8] 0, 128
        %1923 = vxpose.xlu0.c.b16.cont [6/8] 0, 128
        %1924 = vxpose.xlu0.c.b16.cont [7/8] 0, 128
        %1925 = vxpose.xlu0.c.b16.end [8/8] 0, 128
        %v1926 = vpop.trf.xlu0
        %v1927 = vpop.trf.xlu0
        %v1928 = vpop.trf.xlu0
        %v1929 = vpop.trf.xlu0
        %v1930 = vpop.trf.xlu0
        %v1931 = vpop.trf.xlu0
        %v1932 = vpop.trf.xlu0
        %v1933 = vpop.trf.xlu0
        %v1935 = vsel %vm1158, %v1926, 0
        %v1938 = vsel %vm1158, %v1927, 0
        %v1941 = vsel %vm1158, %v1928, 0
        %v1944 = vsel %vm1158, %v1929, 0
        %v1947 = vsel %vm1158, %v1930, 0
        %v1950 = vsel %vm1158, %v1931, 0
        %v1953 = vsel %vm1158, %v1932, 0
        %v1956 = vsel %vm1158, %v1933, 0
        %v1959 = vsel %vm1183, %v1134, 0
        %1961 = vmatpush.bf16.msra.mxu0 0
        %1962 = vmatpush.bf16.msra.mxu0 0
        %1963 = vmatpush.bf16.msra.mxu0 0
        %1964 = vmatpush.bf16.msra.mxu0 0
        %1965 = vmatpush.bf16.msra.mxu0 0
        %1966 = vmatpush.bf16.msra.mxu0 0
        %1967 = vmatpush.bf16.msra.mxu0 0
        %1968 = vmatpush.bf16.msra.mxu0 %v1959
        %1969 = vmatmul.bf16.gmra.mxu0 %v1935
        %v1970 = vpop.f32.mrf.mxu0
        %v1971 = vadd.f32 %v1140, %v1970
        %v1972 = vpop.f32.mrf.mxu0
        %v1973 = vadd.f32 %v1140, %v1972
        %1974 = vmatmul.bf16.gmra.mxu0 %v1938
        %v1975 = vpop.f32.mrf.mxu0
        %v1976 = vadd.f32 %v1140, %v1975
        %v1977 = vpop.f32.mrf.mxu0
        %v1978 = vadd.f32 %v1140, %v1977
        %1979 = vmatmul.bf16.gmra.mxu0 %v1941
        %v1980 = vpop.f32.mrf.mxu0
        %v1981 = vadd.f32 %v1140, %v1980
        %v1982 = vpop.f32.mrf.mxu0
        %v1983 = vadd.f32 %v1140, %v1982
        %1984 = vmatmul.bf16.gmra.mxu0 %v1944
        %v1985 = vpop.f32.mrf.mxu0
        %v1986 = vadd.f32 %v1140, %v1985
        %v1987 = vpop.f32.mrf.mxu0
        %v1988 = vadd.f32 %v1140, %v1987
        %1989 = vmatmul.bf16.gmra.mxu0 %v1947
        %v1990 = vpop.f32.mrf.mxu0
        %v1991 = vadd.f32 %v1140, %v1990
        %v1992 = vpop.f32.mrf.mxu0
        %v1993 = vadd.f32 %v1140, %v1992
        %1994 = vmatmul.bf16.gmra.mxu0 %v1950
        %v1995 = vpop.f32.mrf.mxu0
        %v1996 = vadd.f32 %v1140, %v1995
        %v1997 = vpop.f32.mrf.mxu0
        %v1998 = vadd.f32 %v1140, %v1997
        %1999 = vmatmul.bf16.gmra.mxu0 %v1953
        %v2000 = vpop.f32.mrf.mxu0
        %v2001 = vadd.f32 %v1140, %v2000
        %v2002 = vpop.f32.mrf.mxu0
        %v2003 = vadd.f32 %v1140, %v2002
        %2004 = vmatmul.bf16.gmra.mxu0 %v1956
        %v2005 = vpop.f32.mrf.mxu0
        %v2006 = vadd.f32 %v1140, %v2005
        %v2007 = vpop.f32.mrf.mxu0
        %v2008 = vadd.f32 %v1140, %v2007
        %2009 = vdwg.mxu0
        %2010 = vmax.xlane.f32.xlu0 %v1971
        %v2011 = vpop.xlane.xlu0 %2010
        %2012 = vmax.xlane.f32.xlu0 %v1973
        %v2013 = vpop.xlane.xlu0 %2012
        %2014 = vmax.xlane.f32.xlu0 %v1976
        %v2015 = vpop.xlane.xlu0 %2014
        %2016 = vmax.xlane.f32.xlu0 %v1978
        %v2017 = vpop.xlane.xlu0 %2016
        %2018 = vmax.xlane.f32.xlu0 %v1981
        %v2019 = vpop.xlane.xlu0 %2018
        %2020 = vmax.xlane.f32.xlu0 %v1983
        %v2021 = vpop.xlane.xlu0 %2020
        %2022 = vmax.xlane.f32.xlu0 %v1986
        %v2023 = vpop.xlane.xlu0 %2022
        %2024 = vmax.xlane.f32.xlu0 %v1988
        %v2025 = vpop.xlane.xlu0 %2024
        %2026 = vmax.xlane.f32.xlu0 %v1991
        %v2027 = vpop.xlane.xlu0 %2026
        %2028 = vmax.xlane.f32.xlu0 %v1993
        %v2029 = vpop.xlane.xlu0 %2028
        %2030 = vmax.xlane.f32.xlu0 %v1996
        %v2031 = vpop.xlane.xlu0 %2030
        %2032 = vmax.xlane.f32.xlu0 %v1998
        %v2033 = vpop.xlane.xlu0 %2032
        %2034 = vmax.xlane.f32.xlu0 %v2001
        %v2035 = vpop.xlane.xlu0 %2034
        %2036 = vmax.xlane.f32.xlu0 %v2003
        %v2037 = vpop.xlane.xlu0 %2036
        %2038 = vmax.xlane.f32.xlu0 %v2006
        %v2039 = vpop.xlane.xlu0 %2038
        %2040 = vmax.xlane.f32.xlu0 %v2008
        %v2041 = vpop.xlane.xlu0 %2040
        %v2042 = vsub.f32 %v1971, %v2011
        %v2043 = vsub.f32 %v1973, %v2013
        %v2044 = vsub.f32 %v1976, %v2015
        %v2045 = vsub.f32 %v1978, %v2017
        %v2046 = vsub.f32 %v1981, %v2019
        %v2047 = vsub.f32 %v1983, %v2021
        %v2048 = vsub.f32 %v1986, %v2023
        %v2049 = vsub.f32 %v1988, %v2025
        %v2050 = vsub.f32 %v1991, %v2027
        %v2051 = vsub.f32 %v1993, %v2029
        %v2052 = vsub.f32 %v1996, %v2031
        %v2053 = vsub.f32 %v1998, %v2033
        %v2054 = vsub.f32 %v2001, %v2035
        %v2055 = vsub.f32 %v2003, %v2037
        %v2056 = vsub.f32 %v2006, %v2039
        %v2057 = vsub.f32 %v2008, %v2041
        %v2058 = vmul.f32 %v2042, 1.442695
        %v2059 = vpow.pop %v2058
        %v2060 = vmul.f32 %v2043, 1.442695
        %v2061 = vpow.pop %v2060
        %v2062 = vmul.f32 %v2044, 1.442695
        %v2063 = vpow.pop %v2062
        %v2064 = vmul.f32 %v2045, 1.442695
        %v2065 = vpow.pop %v2064
        %v2066 = vmul.f32 %v2046, 1.442695
        %v2067 = vpow.pop %v2066
        %v2068 = vmul.f32 %v2047, 1.442695
        %v2069 = vpow.pop %v2068
        %v2070 = vmul.f32 %v2048, 1.442695
        %v2071 = vpow.pop %v2070
        %v2072 = vmul.f32 %v2049, 1.442695
        %v2073 = vpow.pop %v2072
        %v2074 = vmul.f32 %v2050, 1.442695
        %v2075 = vpow.pop %v2074
        %v2076 = vmul.f32 %v2051, 1.442695
        %v2077 = vpow.pop %v2076
        %v2078 = vmul.f32 %v2052, 1.442695
        %v2079 = vpow.pop %v2078
        %v2080 = vmul.f32 %v2053, 1.442695
        %v2081 = vpow.pop %v2080
        %v2082 = vmul.f32 %v2054, 1.442695
        %v2083 = vpow.pop %v2082
        %v2084 = vmul.f32 %v2055, 1.442695
        %v2085 = vpow.pop %v2084
        %v2086 = vmul.f32 %v2056, 1.442695
        %v2087 = vpow.pop %v2086
        %v2088 = vmul.f32 %v2057, 1.442695
        %v2089 = vpow.pop %v2088
        %2090 = vadd.xlane.f32.xlu0 %v2059
        %v2091 = vpop.xlane.xlu0 %2090
        %2092 = vadd.xlane.f32.xlu0 %v2061
        %v2093 = vpop.xlane.xlu0 %2092
        %2094 = vadd.xlane.f32.xlu0 %v2063
        %v2095 = vpop.xlane.xlu0 %2094
        %2096 = vadd.xlane.f32.xlu0 %v2065
        %v2097 = vpop.xlane.xlu0 %2096
        %2098 = vadd.xlane.f32.xlu0 %v2067
        %v2099 = vpop.xlane.xlu0 %2098
        %2100 = vadd.xlane.f32.xlu0 %v2069
        %v2101 = vpop.xlane.xlu0 %2100
        %2102 = vadd.xlane.f32.xlu0 %v2071
        %v2103 = vpop.xlane.xlu0 %2102
        %2104 = vadd.xlane.f32.xlu0 %v2073
        %v2105 = vpop.xlane.xlu0 %2104
        %2106 = vadd.xlane.f32.xlu0 %v2075
        %v2107 = vpop.xlane.xlu0 %2106
        %2108 = vadd.xlane.f32.xlu0 %v2077
        %v2109 = vpop.xlane.xlu0 %2108
        %2110 = vadd.xlane.f32.xlu0 %v2079
        %v2111 = vpop.xlane.xlu0 %2110
        %2112 = vadd.xlane.f32.xlu0 %v2081
        %v2113 = vpop.xlane.xlu0 %2112
        %2114 = vadd.xlane.f32.xlu0 %v2083
        %v2115 = vpop.xlane.xlu0 %2114
        %2116 = vadd.xlane.f32.xlu0 %v2085
        %v2117 = vpop.xlane.xlu0 %2116
        %2118 = vadd.xlane.f32.xlu0 %v2087
        %v2119 = vpop.xlane.xlu0 %2118
        %2120 = vadd.xlane.f32.xlu0 %v2089
        %v2121 = vpop.xlane.xlu0 %2120
        %v2122 = vrcp.pop %v2091
        %v2123 = vrcp.pop %v2093
        %v2124 = vrcp.pop %v2095
        %v2125 = vrcp.pop %v2097
        %v2126 = vrcp.pop %v2099
        %v2127 = vrcp.pop %v2101
        %v2128 = vrcp.pop %v2103
        %v2129 = vrcp.pop %v2105
        %v2130 = vrcp.pop %v2107
        %v2131 = vrcp.pop %v2109
        %v2132 = vrcp.pop %v2111
        %v2133 = vrcp.pop %v2113
        %v2134 = vrcp.pop %v2115
        %v2135 = vrcp.pop %v2117
        %v2136 = vrcp.pop %v2119
        %v2137 = vrcp.pop %v2121
        %v2138 = vmul.f32 %v2059, %v2122
        %v2139 = vmul.f32 %v2061, %v2123
        %v2140 = vmul.f32 %v2063, %v2124
        %v2141 = vmul.f32 %v2065, %v2125
        %v2142 = vmul.f32 %v2067, %v2126
        %v2143 = vmul.f32 %v2069, %v2127
        %v2144 = vmul.f32 %v2071, %v2128
        %v2145 = vmul.f32 %v2073, %v2129
        %v2146 = vmul.f32 %v2075, %v2130
        %v2147 = vmul.f32 %v2077, %v2131
        %v2148 = vmul.f32 %v2079, %v2132
        %v2149 = vmul.f32 %v2081, %v2133
        %v2150 = vmul.f32 %v2083, %v2134
        %v2151 = vmul.f32 %v2085, %v2135
        %v2152 = vmul.f32 %v2087, %v2136
        %v2153 = vmul.f32 %v2089, %v2137
        %v2154 = vpack.c.bf16 %v2139, %v2138
        %v2155 = vpack.c.bf16 %v2141, %v2140
        %v2156 = vpack.c.bf16 %v2143, %v2142
        %v2157 = vpack.c.bf16 %v2145, %v2144
        %v2158 = vpack.c.bf16 %v2147, %v2146
        %v2159 = vpack.c.bf16 %v2149, %v2148
        %v2160 = vpack.c.bf16 %v2151, %v2150
        %v2161 = vpack.c.bf16 %v2153, %v2152
        %2162 = vmatpush.bf16.xpose.msra.mxu0 %v2161
        %2163 = vmatpush.bf16.xpose.msra.mxu0 %v2160
        %2164 = vmatpush.bf16.xpose.msra.mxu0 %v2159
        %2165 = vmatpush.bf16.xpose.msra.mxu0 %v2158
        %2166 = vmatpush.bf16.xpose.msra.mxu0 %v2157
        %2167 = vmatpush.bf16.xpose.msra.mxu0 %v2156
        %2168 = vmatpush.bf16.xpose.msra.mxu0 %v2155
        %2169 = vmatpush.bf16.xpose.msra.mxu0 %v2154
        %2170 = vmatmul.bf16.gmra.mxu0 %v1138
        %v2171 = vpop.f32.mrf.mxu0
        %v2172 = vadd.f32 0.0, %v2171
        %v2173 = vpop.f32.mrf.mxu0
        %2174 = vdwg.mxu0
        %2175 = vst [vmem:[#allocation3 + $0x30] sm:$0xff] %v2172
        %v2177 = vunpack.c.h.b16 %v1127
        %v2178 = vpack.c.b16 %v2177, %v2177
        %2180 = vxpose.xlu0.c.b16.start [1/8] %v2178, 128
        %2181 = vxpose.xlu0.c.b16.cont [2/8] 0, 128
        %2182 = vxpose.xlu0.c.b16.cont [3/8] 0, 128
        %2183 = vxpose.xlu0.c.b16.cont [4/8] 0, 128
        %2184 = vxpose.xlu0.c.b16.cont [5/8] 0, 128
        %2185 = vxpose.xlu0.c.b16.cont [6/8] 0, 128
        %2186 = vxpose.xlu0.c.b16.cont [7/8] 0, 128
        %2187 = vxpose.xlu0.c.b16.end [8/8] 0, 128
        %v2188 = vpop.trf.xlu0
        %v2189 = vpop.trf.xlu0
        %v2190 = vpop.trf.xlu0
        %v2191 = vpop.trf.xlu0
        %v2192 = vpop.trf.xlu0
        %v2193 = vpop.trf.xlu0
        %v2194 = vpop.trf.xlu0
        %v2195 = vpop.trf.xlu0
        %v2197 = vunpack.c.h.b16 %v1131
        %v2198 = vpack.c.b16 %v2197, %v2197
        %v2200 = vsel %vm1158, %v2188, 0
        %v2203 = vsel %vm1158, %v2189, 0
        %v2206 = vsel %vm1158, %v2190, 0
        %v2209 = vsel %vm1158, %v2191, 0
        %v2212 = vsel %vm1158, %v2192, 0
        %v2215 = vsel %vm1158, %v2193, 0
        %v2218 = vsel %vm1158, %v2194, 0
        %v2221 = vsel %vm1158, %v2195, 0
        %v2224 = vsel %vm1183, %v2198, 0
        %2226 = vmatpush.bf16.msra.mxu0 0
        %2227 = vmatpush.bf16.msra.mxu0 0
        %2228 = vmatpush.bf16.msra.mxu0 0
        %2229 = vmatpush.bf16.msra.mxu0 0
        %2230 = vmatpush.bf16.msra.mxu0 0
        %2231 = vmatpush.bf16.msra.mxu0 0
        %2232 = vmatpush.bf16.msra.mxu0 0
        %2233 = vmatpush.bf16.msra.mxu0 %v2224
        %2234 = vmatmul.bf16.gmra.mxu0 %v2200
        %v2235 = vpop.f32.mrf.mxu0
        %v2236 = vadd.f32 %v1140, %v2235
        %v2237 = vpop.f32.mrf.mxu0
        %v2238 = vadd.f32 %v1140, %v2237
        %2239 = vmatmul.bf16.gmra.mxu0 %v2203
        %v2240 = vpop.f32.mrf.mxu0
        %v2241 = vadd.f32 %v1140, %v2240
        %v2242 = vpop.f32.mrf.mxu0
        %v2243 = vadd.f32 %v1140, %v2242
        %2244 = vmatmul.bf16.gmra.mxu0 %v2206
        %v2245 = vpop.f32.mrf.mxu0
        %v2246 = vadd.f32 %v1140, %v2245
        %v2247 = vpop.f32.mrf.mxu0
        %v2248 = vadd.f32 %v1140, %v2247
        %2249 = vmatmul.bf16.gmra.mxu0 %v2209
        %v2250 = vpop.f32.mrf.mxu0
        %v2251 = vadd.f32 %v1140, %v2250
        %v2252 = vpop.f32.mrf.mxu0
        %v2253 = vadd.f32 %v1140, %v2252
        %2254 = vmatmul.bf16.gmra.mxu0 %v2212
        %v2255 = vpop.f32.mrf.mxu0
        %v2256 = vadd.f32 %v1140, %v2255
        %v2257 = vpop.f32.mrf.mxu0
        %v2258 = vadd.f32 %v1140, %v2257
        %2259 = vmatmul.bf16.gmra.mxu0 %v2215
        %v2260 = vpop.f32.mrf.mxu0
        %v2261 = vadd.f32 %v1140, %v2260
        %v2262 = vpop.f32.mrf.mxu0
        %v2263 = vadd.f32 %v1140, %v2262
        %2264 = vmatmul.bf16.gmra.mxu0 %v2218
        %v2265 = vpop.f32.mrf.mxu0
        %v2266 = vadd.f32 %v1140, %v2265
        %v2267 = vpop.f32.mrf.mxu0
        %v2268 = vadd.f32 %v1140, %v2267
        %2269 = vmatmul.bf16.gmra.mxu0 %v2221
        %v2270 = vpop.f32.mrf.mxu0
        %v2271 = vadd.f32 %v1140, %v2270
        %v2272 = vpop.f32.mrf.mxu0
        %v2273 = vadd.f32 %v1140, %v2272
        %2274 = vdwg.mxu0
        %2275 = vmax.xlane.f32.xlu0 %v2236
        %v2276 = vpop.xlane.xlu0 %2275
        %2277 = vmax.xlane.f32.xlu0 %v2238
        %v2278 = vpop.xlane.xlu0 %2277
        %2279 = vmax.xlane.f32.xlu0 %v2241
        %v2280 = vpop.xlane.xlu0 %2279
        %2281 = vmax.xlane.f32.xlu0 %v2243
        %v2282 = vpop.xlane.xlu0 %2281
        %2283 = vmax.xlane.f32.xlu0 %v2246
        %v2284 = vpop.xlane.xlu0 %2283
        %2285 = vmax.xlane.f32.xlu0 %v2248
        %v2286 = vpop.xlane.xlu0 %2285
        %2287 = vmax.xlane.f32.xlu0 %v2251
        %v2288 = vpop.xlane.xlu0 %2287
        %2289 = vmax.xlane.f32.xlu0 %v2253
        %v2290 = vpop.xlane.xlu0 %2289
        %2291 = vmax.xlane.f32.xlu0 %v2256
        %v2292 = vpop.xlane.xlu0 %2291
        %2293 = vmax.xlane.f32.xlu0 %v2258
        %v2294 = vpop.xlane.xlu0 %2293
        %2295 = vmax.xlane.f32.xlu0 %v2261
        %v2296 = vpop.xlane.xlu0 %2295
        %2297 = vmax.xlane.f32.xlu0 %v2263
        %v2298 = vpop.xlane.xlu0 %2297
        %2299 = vmax.xlane.f32.xlu0 %v2266
        %v2300 = vpop.xlane.xlu0 %2299
        %2301 = vmax.xlane.f32.xlu0 %v2268
        %v2302 = vpop.xlane.xlu0 %2301
        %2303 = vmax.xlane.f32.xlu0 %v2271
        %v2304 = vpop.xlane.xlu0 %2303
        %2305 = vmax.xlane.f32.xlu0 %v2273
        %v2306 = vpop.xlane.xlu0 %2305
        %v2307 = vsub.f32 %v2236, %v2276
        %v2308 = vsub.f32 %v2238, %v2278
        %v2309 = vsub.f32 %v2241, %v2280
        %v2310 = vsub.f32 %v2243, %v2282
        %v2311 = vsub.f32 %v2246, %v2284
        %v2312 = vsub.f32 %v2248, %v2286
        %v2313 = vsub.f32 %v2251, %v2288
        %v2314 = vsub.f32 %v2253, %v2290
        %v2315 = vsub.f32 %v2256, %v2292
        %v2316 = vsub.f32 %v2258, %v2294
        %v2317 = vsub.f32 %v2261, %v2296
        %v2318 = vsub.f32 %v2263, %v2298
        %v2319 = vsub.f32 %v2266, %v2300
        %v2320 = vsub.f32 %v2268, %v2302
        %v2321 = vsub.f32 %v2271, %v2304
        %v2322 = vsub.f32 %v2273, %v2306
        %v2323 = vmul.f32 %v2307, 1.442695
        %v2324 = vpow.pop %v2323
        %v2325 = vmul.f32 %v2308, 1.442695
        %v2326 = vpow.pop %v2325
        %v2327 = vmul.f32 %v2309, 1.442695
        %v2328 = vpow.pop %v2327
        %v2329 = vmul.f32 %v2310, 1.442695
        %v2330 = vpow.pop %v2329
        %v2331 = vmul.f32 %v2311, 1.442695
        %v2332 = vpow.pop %v2331
        %v2333 = vmul.f32 %v2312, 1.442695
        %v2334 = vpow.pop %v2333
        %v2335 = vmul.f32 %v2313, 1.442695
        %v2336 = vpow.pop %v2335
        %v2337 = vmul.f32 %v2314, 1.442695
        %v2338 = vpow.pop %v2337
        %v2339 = vmul.f32 %v2315, 1.442695
        %v2340 = vpow.pop %v2339
        %v2341 = vmul.f32 %v2316, 1.442695
        %v2342 = vpow.pop %v2341
        %v2343 = vmul.f32 %v2317, 1.442695
        %v2344 = vpow.pop %v2343
        %v2345 = vmul.f32 %v2318, 1.442695
        %v2346 = vpow.pop %v2345
        %v2347 = vmul.f32 %v2319, 1.442695
        %v2348 = vpow.pop %v2347
        %v2349 = vmul.f32 %v2320, 1.442695
        %v2350 = vpow.pop %v2349
        %v2351 = vmul.f32 %v2321, 1.442695
        %v2352 = vpow.pop %v2351
        %v2353 = vmul.f32 %v2322, 1.442695
        %v2354 = vpow.pop %v2353
        %2355 = vadd.xlane.f32.xlu0 %v2324
        %v2356 = vpop.xlane.xlu0 %2355
        %2357 = vadd.xlane.f32.xlu0 %v2326
        %v2358 = vpop.xlane.xlu0 %2357
        %2359 = vadd.xlane.f32.xlu0 %v2328
        %v2360 = vpop.xlane.xlu0 %2359
        %2361 = vadd.xlane.f32.xlu0 %v2330
        %v2362 = vpop.xlane.xlu0 %2361
        %2363 = vadd.xlane.f32.xlu0 %v2332
        %v2364 = vpop.xlane.xlu0 %2363
        %2365 = vadd.xlane.f32.xlu0 %v2334
        %v2366 = vpop.xlane.xlu0 %2365
        %2367 = vadd.xlane.f32.xlu0 %v2336
        %v2368 = vpop.xlane.xlu0 %2367
        %2369 = vadd.xlane.f32.xlu0 %v2338
        %v2370 = vpop.xlane.xlu0 %2369
        %2371 = vadd.xlane.f32.xlu0 %v2340
        %v2372 = vpop.xlane.xlu0 %2371
        %2373 = vadd.xlane.f32.xlu0 %v2342
        %v2374 = vpop.xlane.xlu0 %2373
        %2375 = vadd.xlane.f32.xlu0 %v2344
        %v2376 = vpop.xlane.xlu0 %2375
        %2377 = vadd.xlane.f32.xlu0 %v2346
        %v2378 = vpop.xlane.xlu0 %2377
        %2379 = vadd.xlane.f32.xlu0 %v2348
        %v2380 = vpop.xlane.xlu0 %2379
        %2381 = vadd.xlane.f32.xlu0 %v2350
        %v2382 = vpop.xlane.xlu0 %2381
        %2383 = vadd.xlane.f32.xlu0 %v2352
        %v2384 = vpop.xlane.xlu0 %2383
        %2385 = vadd.xlane.f32.xlu0 %v2354
        %v2386 = vpop.xlane.xlu0 %2385
        %v2387 = vrcp.pop %v2356
        %v2388 = vrcp.pop %v2358
        %v2389 = vrcp.pop %v2360
        %v2390 = vrcp.pop %v2362
        %v2391 = vrcp.pop %v2364
        %v2392 = vrcp.pop %v2366
        %v2393 = vrcp.pop %v2368
        %v2394 = vrcp.pop %v2370
        %v2395 = vrcp.pop %v2372
        %v2396 = vrcp.pop %v2374
        %v2397 = vrcp.pop %v2376
        %v2398 = vrcp.pop %v2378
        %v2399 = vrcp.pop %v2380
        %v2400 = vrcp.pop %v2382
        %v2401 = vrcp.pop %v2384
        %v2402 = vrcp.pop %v2386
        %v2403 = vmul.f32 %v2324, %v2387
        %v2404 = vmul.f32 %v2326, %v2388
        %v2405 = vmul.f32 %v2328, %v2389
        %v2406 = vmul.f32 %v2330, %v2390
        %v2407 = vmul.f32 %v2332, %v2391
        %v2408 = vmul.f32 %v2334, %v2392
        %v2409 = vmul.f32 %v2336, %v2393
        %v2410 = vmul.f32 %v2338, %v2394
        %v2411 = vmul.f32 %v2340, %v2395
        %v2412 = vmul.f32 %v2342, %v2396
        %v2413 = vmul.f32 %v2344, %v2397
        %v2414 = vmul.f32 %v2346, %v2398
        %v2415 = vmul.f32 %v2348, %v2399
        %v2416 = vmul.f32 %v2350, %v2400
        %v2417 = vmul.f32 %v2352, %v2401
        %v2418 = vmul.f32 %v2354, %v2402
        %v2419 = vpack.c.bf16 %v2404, %v2403
        %v2420 = vpack.c.bf16 %v2406, %v2405
        %v2421 = vpack.c.bf16 %v2408, %v2407
        %v2422 = vpack.c.bf16 %v2410, %v2409
        %v2423 = vpack.c.bf16 %v2412, %v2411
        %v2424 = vpack.c.bf16 %v2414, %v2413
        %v2425 = vpack.c.bf16 %v2416, %v2415
        %v2426 = vpack.c.bf16 %v2418, %v2417
        %v2428 = vunpack.c.h.b16 %v1135
        %v2429 = vpack.c.b16 %v2428, %v2428
        %2431 = vmatpush.bf16.xpose.msra.mxu0 %v2426
        %2432 = vmatpush.bf16.xpose.msra.mxu0 %v2425
        %2433 = vmatpush.bf16.xpose.msra.mxu0 %v2424
        %2434 = vmatpush.bf16.xpose.msra.mxu0 %v2423
        %2435 = vmatpush.bf16.xpose.msra.mxu0 %v2422
        %2436 = vmatpush.bf16.xpose.msra.mxu0 %v2421
        %2437 = vmatpush.bf16.xpose.msra.mxu0 %v2420
        %2438 = vmatpush.bf16.xpose.msra.mxu0 %v2419
        %2439 = vmatmul.bf16.gmra.mxu0 %v2429
        %v2440 = vpop.f32.mrf.mxu0
        %v2441 = vadd.f32 0.0, %v2440
        %v2442 = vpop.f32.mrf.mxu0
        %2443 = vdwg.mxu0
        %2444 = vst [vmem:[#allocation3 + $0x8] sm:$0xff] %v2441
        %v2446 = vunpack.c.h.b16 %v1128
        %v2447 = vpack.c.b16 %v2446, %v2446
        %2449 = vxpose.xlu0.c.b16.start [1/8] %v2447, 128
        %2450 = vxpose.xlu0.c.b16.cont [2/8] 0, 128
        %2451 = vxpose.xlu0.c.b16.cont [3/8] 0, 128
        %2452 = vxpose.xlu0.c.b16.cont [4/8] 0, 128
        %2453 = vxpose.xlu0.c.b16.cont [5/8] 0, 128
        %2454 = vxpose.xlu0.c.b16.cont [6/8] 0, 128
        %2455 = vxpose.xlu0.c.b16.cont [7/8] 0, 128
        %2456 = vxpose.xlu0.c.b16.end [8/8] 0, 128
        %v2457 = vpop.trf.xlu0
        %v2458 = vpop.trf.xlu0
        %v2459 = vpop.trf.xlu0
        %v2460 = vpop.trf.xlu0
        %v2461 = vpop.trf.xlu0
        %v2462 = vpop.trf.xlu0
        %v2463 = vpop.trf.xlu0
        %v2464 = vpop.trf.xlu0
        %v2466 = vunpack.c.h.b16 %v1132
        %v2467 = vpack.c.b16 %v2466, %v2466
        %v2469 = vsel %vm1158, %v2457, 0
        %v2472 = vsel %vm1158, %v2458, 0
        %v2475 = vsel %vm1158, %v2459, 0
        %v2478 = vsel %vm1158, %v2460, 0
        %v2481 = vsel %vm1158, %v2461, 0
        %v2484 = vsel %vm1158, %v2462, 0
        %v2487 = vsel %vm1158, %v2463, 0
        %v2490 = vsel %vm1158, %v2464, 0
        %v2493 = vsel %vm1183, %v2467, 0
        %2495 = vmatpush.bf16.msra.mxu0 0
        %2496 = vmatpush.bf16.msra.mxu0 0
        %2497 = vmatpush.bf16.msra.mxu0 0
        %2498 = vmatpush.bf16.msra.mxu0 0
        %2499 = vmatpush.bf16.msra.mxu0 0
        %2500 = vmatpush.bf16.msra.mxu0 0
        %2501 = vmatpush.bf16.msra.mxu0 0
        %2502 = vmatpush.bf16.msra.mxu0 %v2493
        %2503 = vmatmul.bf16.gmra.mxu0 %v2469
        %v2504 = vpop.f32.mrf.mxu0
        %v2505 = vadd.f32 %v1140, %v2504
        %v2506 = vpop.f32.mrf.mxu0
        %v2507 = vadd.f32 %v1140, %v2506
        %2508 = vmatmul.bf16.gmra.mxu0 %v2472
        %v2509 = vpop.f32.mrf.mxu0
        %v2510 = vadd.f32 %v1140, %v2509
        %v2511 = vpop.f32.mrf.mxu0
        %v2512 = vadd.f32 %v1140, %v2511
        %2513 = vmatmul.bf16.gmra.mxu0 %v2475
        %v2514 = vpop.f32.mrf.mxu0
        %v2515 = vadd.f32 %v1140, %v2514
        %v2516 = vpop.f32.mrf.mxu0
        %v2517 = vadd.f32 %v1140, %v2516
        %2518 = vmatmul.bf16.gmra.mxu0 %v2478
        %v2519 = vpop.f32.mrf.mxu0
        %v2520 = vadd.f32 %v1140, %v2519
        %v2521 = vpop.f32.mrf.mxu0
        %v2522 = vadd.f32 %v1140, %v2521
        %2523 = vmatmul.bf16.gmra.mxu0 %v2481
        %v2524 = vpop.f32.mrf.mxu0
        %v2525 = vadd.f32 %v1140, %v2524
        %v2526 = vpop.f32.mrf.mxu0
        %v2527 = vadd.f32 %v1140, %v2526
        %2528 = vmatmul.bf16.gmra.mxu0 %v2484
        %v2529 = vpop.f32.mrf.mxu0
        %v2530 = vadd.f32 %v1140, %v2529
        %v2531 = vpop.f32.mrf.mxu0
        %v2532 = vadd.f32 %v1140, %v2531
        %2533 = vmatmul.bf16.gmra.mxu0 %v2487
        %v2534 = vpop.f32.mrf.mxu0
        %v2535 = vadd.f32 %v1140, %v2534
        %v2536 = vpop.f32.mrf.mxu0
        %v2537 = vadd.f32 %v1140, %v2536
        %2538 = vmatmul.bf16.gmra.mxu0 %v2490
        %v2539 = vpop.f32.mrf.mxu0
        %v2540 = vadd.f32 %v1140, %v2539
        %v2541 = vpop.f32.mrf.mxu0
        %v2542 = vadd.f32 %v1140, %v2541
        %2543 = vdwg.mxu0
        %2544 = vmax.xlane.f32.xlu0 %v2505
        %v2545 = vpop.xlane.xlu0 %2544
        %2546 = vmax.xlane.f32.xlu0 %v2507
        %v2547 = vpop.xlane.xlu0 %2546
        %2548 = vmax.xlane.f32.xlu0 %v2510
        %v2549 = vpop.xlane.xlu0 %2548
        %2550 = vmax.xlane.f32.xlu0 %v2512
        %v2551 = vpop.xlane.xlu0 %2550
        %2552 = vmax.xlane.f32.xlu0 %v2515
        %v2553 = vpop.xlane.xlu0 %2552
        %2554 = vmax.xlane.f32.xlu0 %v2517
        %v2555 = vpop.xlane.xlu0 %2554
        %2556 = vmax.xlane.f32.xlu0 %v2520
        %v2557 = vpop.xlane.xlu0 %2556
        %2558 = vmax.xlane.f32.xlu0 %v2522
        %v2559 = vpop.xlane.xlu0 %2558
        %2560 = vmax.xlane.f32.xlu0 %v2525
        %v2561 = vpop.xlane.xlu0 %2560
        %2562 = vmax.xlane.f32.xlu0 %v2527
        %v2563 = vpop.xlane.xlu0 %2562
        %2564 = vmax.xlane.f32.xlu0 %v2530
        %v2565 = vpop.xlane.xlu0 %2564
        %2566 = vmax.xlane.f32.xlu0 %v2532
        %v2567 = vpop.xlane.xlu0 %2566
        %2568 = vmax.xlane.f32.xlu0 %v2535
        %v2569 = vpop.xlane.xlu0 %2568
        %2570 = vmax.xlane.f32.xlu0 %v2537
        %v2571 = vpop.xlane.xlu0 %2570
        %2572 = vmax.xlane.f32.xlu0 %v2540
        %v2573 = vpop.xlane.xlu0 %2572
        %2574 = vmax.xlane.f32.xlu0 %v2542
        %v2575 = vpop.xlane.xlu0 %2574
        %v2576 = vsub.f32 %v2505, %v2545
        %v2577 = vsub.f32 %v2507, %v2547
        %v2578 = vsub.f32 %v2510, %v2549
        %v2579 = vsub.f32 %v2512, %v2551
        %v2580 = vsub.f32 %v2515, %v2553
        %v2581 = vsub.f32 %v2517, %v2555
        %v2582 = vsub.f32 %v2520, %v2557
        %v2583 = vsub.f32 %v2522, %v2559
        %v2584 = vsub.f32 %v2525, %v2561
        %v2585 = vsub.f32 %v2527, %v2563
        %v2586 = vsub.f32 %v2530, %v2565
        %v2587 = vsub.f32 %v2532, %v2567
        %v2588 = vsub.f32 %v2535, %v2569
        %v2589 = vsub.f32 %v2537, %v2571
        %v2590 = vsub.f32 %v2540, %v2573
        %v2591 = vsub.f32 %v2542, %v2575
        %v2592 = vmul.f32 %v2576, 1.442695
        %v2593 = vpow.pop %v2592
        %v2594 = vmul.f32 %v2577, 1.442695
        %v2595 = vpow.pop %v2594
        %v2596 = vmul.f32 %v2578, 1.442695
        %v2597 = vpow.pop %v2596
        %v2598 = vmul.f32 %v2579, 1.442695
        %v2599 = vpow.pop %v2598
        %v2600 = vmul.f32 %v2580, 1.442695
        %v2601 = vpow.pop %v2600
        %v2602 = vmul.f32 %v2581, 1.442695
        %v2603 = vpow.pop %v2602
        %v2604 = vmul.f32 %v2582, 1.442695
        %v2605 = vpow.pop %v2604
        %v2606 = vmul.f32 %v2583, 1.442695
        %v2607 = vpow.pop %v2606
        %v2608 = vmul.f32 %v2584, 1.442695
        %v2609 = vpow.pop %v2608
        %v2610 = vmul.f32 %v2585, 1.442695
        %v2611 = vpow.pop %v2610
        %v2612 = vmul.f32 %v2586, 1.442695
        %v2613 = vpow.pop %v2612
        %v2614 = vmul.f32 %v2587, 1.442695
        %v2615 = vpow.pop %v2614
        %v2616 = vmul.f32 %v2588, 1.442695
        %v2617 = vpow.pop %v2616
        %v2618 = vmul.f32 %v2589, 1.442695
        %v2619 = vpow.pop %v2618
        %v2620 = vmul.f32 %v2590, 1.442695
        %v2621 = vpow.pop %v2620
        %v2622 = vmul.f32 %v2591, 1.442695
        %v2623 = vpow.pop %v2622
        %2624 = vadd.xlane.f32.xlu0 %v2593
        %v2625 = vpop.xlane.xlu0 %2624
        %2626 = vadd.xlane.f32.xlu0 %v2595
        %v2627 = vpop.xlane.xlu0 %2626
        %2628 = vadd.xlane.f32.xlu0 %v2597
        %v2629 = vpop.xlane.xlu0 %2628
        %2630 = vadd.xlane.f32.xlu0 %v2599
        %v2631 = vpop.xlane.xlu0 %2630
        %2632 = vadd.xlane.f32.xlu0 %v2601
        %v2633 = vpop.xlane.xlu0 %2632
        %2634 = vadd.xlane.f32.xlu0 %v2603
        %v2635 = vpop.xlane.xlu0 %2634
        %2636 = vadd.xlane.f32.xlu0 %v2605
        %v2637 = vpop.xlane.xlu0 %2636
        %2638 = vadd.xlane.f32.xlu0 %v2607
        %v2639 = vpop.xlane.xlu0 %2638
        %2640 = vadd.xlane.f32.xlu0 %v2609
        %v2641 = vpop.xlane.xlu0 %2640
        %2642 = vadd.xlane.f32.xlu0 %v2611
        %v2643 = vpop.xlane.xlu0 %2642
        %2644 = vadd.xlane.f32.xlu0 %v2613
        %v2645 = vpop.xlane.xlu0 %2644
        %2646 = vadd.xlane.f32.xlu0 %v2615
        %v2647 = vpop.xlane.xlu0 %2646
        %2648 = vadd.xlane.f32.xlu0 %v2617
        %v2649 = vpop.xlane.xlu0 %2648
        %2650 = vadd.xlane.f32.xlu0 %v2619
        %v2651 = vpop.xlane.xlu0 %2650
        %2652 = vadd.xlane.f32.xlu0 %v2621
        %v2653 = vpop.xlane.xlu0 %2652
        %2654 = vadd.xlane.f32.xlu0 %v2623
        %v2655 = vpop.xlane.xlu0 %2654
        %v2656 = vrcp.pop %v2625
        %v2657 = vrcp.pop %v2627
        %v2658 = vrcp.pop %v2629
        %v2659 = vrcp.pop %v2631
        %v2660 = vrcp.pop %v2633
        %v2661 = vrcp.pop %v2635
        %v2662 = vrcp.pop %v2637
        %v2663 = vrcp.pop %v2639
        %v2664 = vrcp.pop %v2641
        %v2665 = vrcp.pop %v2643
        %v2666 = vrcp.pop %v2645
        %v2667 = vrcp.pop %v2647
        %v2668 = vrcp.pop %v2649
        %v2669 = vrcp.pop %v2651
        %v2670 = vrcp.pop %v2653
        %v2671 = vrcp.pop %v2655
        %v2672 = vmul.f32 %v2593, %v2656
        %v2673 = vmul.f32 %v2595, %v2657
        %v2674 = vmul.f32 %v2597, %v2658
        %v2675 = vmul.f32 %v2599, %v2659
        %v2676 = vmul.f32 %v2601, %v2660
        %v2677 = vmul.f32 %v2603, %v2661
        %v2678 = vmul.f32 %v2605, %v2662
        %v2679 = vmul.f32 %v2607, %v2663
        %v2680 = vmul.f32 %v2609, %v2664
        %v2681 = vmul.f32 %v2611, %v2665
        %v2682 = vmul.f32 %v2613, %v2666
        %v2683 = vmul.f32 %v2615, %v2667
        %v2684 = vmul.f32 %v2617, %v2668
        %v2685 = vmul.f32 %v2619, %v2669
        %v2686 = vmul.f32 %v2621, %v2670
        %v2687 = vmul.f32 %v2623, %v2671
        %v2688 = vpack.c.bf16 %v2673, %v2672
        %v2689 = vpack.c.bf16 %v2675, %v2674
        %v2690 = vpack.c.bf16 %v2677, %v2676
        %v2691 = vpack.c.bf16 %v2679, %v2678
        %v2692 = vpack.c.bf16 %v2681, %v2680
        %v2693 = vpack.c.bf16 %v2683, %v2682
        %v2694 = vpack.c.bf16 %v2685, %v2684
        %v2695 = vpack.c.bf16 %v2687, %v2686
        %v2697 = vunpack.c.h.b16 %v1136
        %v2698 = vpack.c.b16 %v2697, %v2697
        %2700 = vmatpush.bf16.xpose.msra.mxu0 %v2695
        %2701 = vmatpush.bf16.xpose.msra.mxu0 %v2694
        %2702 = vmatpush.bf16.xpose.msra.mxu0 %v2693
        %2703 = vmatpush.bf16.xpose.msra.mxu0 %v2692
        %2704 = vmatpush.bf16.xpose.msra.mxu0 %v2691
        %2705 = vmatpush.bf16.xpose.msra.mxu0 %v2690
        %2706 = vmatpush.bf16.xpose.msra.mxu0 %v2689
        %2707 = vmatpush.bf16.xpose.msra.mxu0 %v2688
        %2708 = vmatmul.bf16.gmra.mxu0 %v2698
        %v2709 = vpop.f32.mrf.mxu0
        %v2710 = vadd.f32 0.0, %v2709
        %v2711 = vpop.f32.mrf.mxu0
        %2712 = vdwg.mxu0
        %2713 = vst [vmem:[#allocation3 + $0x18] sm:$0xff] %v2710
        %v2715 = vunpack.c.h.b16 %v1129
        %v2716 = vpack.c.b16 %v2715, %v2715
        %2718 = vxpose.xlu0.c.b16.start [1/8] %v2716, 128
        %2719 = vxpose.xlu0.c.b16.cont [2/8] 0, 128
        %2720 = vxpose.xlu0.c.b16.cont [3/8] 0, 128
        %2721 = vxpose.xlu0.c.b16.cont [4/8] 0, 128
        %2722 = vxpose.xlu0.c.b16.cont [5/8] 0, 128
        %2723 = vxpose.xlu0.c.b16.cont [6/8] 0, 128
        %2724 = vxpose.xlu0.c.b16.cont [7/8] 0, 128
        %2725 = vxpose.xlu0.c.b16.end [8/8] 0, 128
        %v2726 = vpop.trf.xlu0
        %v2727 = vpop.trf.xlu0
        %v2728 = vpop.trf.xlu0
        %v2729 = vpop.trf.xlu0
        %v2730 = vpop.trf.xlu0
        %v2731 = vpop.trf.xlu0
        %v2732 = vpop.trf.xlu0
        %v2733 = vpop.trf.xlu0
        %v2735 = vunpack.c.h.b16 %v1133
        %v2736 = vpack.c.b16 %v2735, %v2735
        %v2738 = vsel %vm1158, %v2726, 0
        %v2741 = vsel %vm1158, %v2727, 0
        %v2744 = vsel %vm1158, %v2728, 0
        %v2747 = vsel %vm1158, %v2729, 0
        %v2750 = vsel %vm1158, %v2730, 0
        %v2753 = vsel %vm1158, %v2731, 0
        %v2756 = vsel %vm1158, %v2732, 0
        %v2759 = vsel %vm1158, %v2733, 0
        %v2762 = vsel %vm1183, %v2736, 0
        %2764 = vmatpush.bf16.msra.mxu0 0
        %2765 = vmatpush.bf16.msra.mxu0 0
        %2766 = vmatpush.bf16.msra.mxu0 0
        %2767 = vmatpush.bf16.msra.mxu0 0
        %2768 = vmatpush.bf16.msra.mxu0 0
        %2769 = vmatpush.bf16.msra.mxu0 0
        %2770 = vmatpush.bf16.msra.mxu0 0
        %2771 = vmatpush.bf16.msra.mxu0 %v2762
        %2772 = vmatmul.bf16.gmra.mxu0 %v2738
        %v2773 = vpop.f32.mrf.mxu0
        %v2774 = vadd.f32 %v1140, %v2773
        %v2775 = vpop.f32.mrf.mxu0
        %v2776 = vadd.f32 %v1140, %v2775
        %2777 = vmatmul.bf16.gmra.mxu0 %v2741
        %v2778 = vpop.f32.mrf.mxu0
        %v2779 = vadd.f32 %v1140, %v2778
        %v2780 = vpop.f32.mrf.mxu0
        %v2781 = vadd.f32 %v1140, %v2780
        %2782 = vmatmul.bf16.gmra.mxu0 %v2744
        %v2783 = vpop.f32.mrf.mxu0
        %v2784 = vadd.f32 %v1140, %v2783
        %v2785 = vpop.f32.mrf.mxu0
        %v2786 = vadd.f32 %v1140, %v2785
        %2787 = vmatmul.bf16.gmra.mxu0 %v2747
        %v2788 = vpop.f32.mrf.mxu0
        %v2789 = vadd.f32 %v1140, %v2788
        %v2790 = vpop.f32.mrf.mxu0
        %v2791 = vadd.f32 %v1140, %v2790
        %2792 = vmatmul.bf16.gmra.mxu0 %v2750
        %v2793 = vpop.f32.mrf.mxu0
        %v2794 = vadd.f32 %v1140, %v2793
        %v2795 = vpop.f32.mrf.mxu0
        %v2796 = vadd.f32 %v1140, %v2795
        %2797 = vmatmul.bf16.gmra.mxu0 %v2753
        %v2798 = vpop.f32.mrf.mxu0
        %v2799 = vadd.f32 %v1140, %v2798
        %v2800 = vpop.f32.mrf.mxu0
        %v2801 = vadd.f32 %v1140, %v2800
        %2802 = vmatmul.bf16.gmra.mxu0 %v2756
        %v2803 = vpop.f32.mrf.mxu0
        %v2804 = vadd.f32 %v1140, %v2803
        %v2805 = vpop.f32.mrf.mxu0
        %v2806 = vadd.f32 %v1140, %v2805
        %2807 = vmatmul.bf16.gmra.mxu0 %v2759
        %v2808 = vpop.f32.mrf.mxu0
        %v2809 = vadd.f32 %v1140, %v2808
        %v2810 = vpop.f32.mrf.mxu0
        %v2811 = vadd.f32 %v1140, %v2810
        %2812 = vdwg.mxu0
        %2813 = vmax.xlane.f32.xlu0 %v2774
        %v2814 = vpop.xlane.xlu0 %2813
        %2815 = vmax.xlane.f32.xlu0 %v2776
        %v2816 = vpop.xlane.xlu0 %2815
        %2817 = vmax.xlane.f32.xlu0 %v2779
        %v2818 = vpop.xlane.xlu0 %2817
        %2819 = vmax.xlane.f32.xlu0 %v2781
        %v2820 = vpop.xlane.xlu0 %2819
        %2821 = vmax.xlane.f32.xlu0 %v2784
        %v2822 = vpop.xlane.xlu0 %2821
        %2823 = vmax.xlane.f32.xlu0 %v2786
        %v2824 = vpop.xlane.xlu0 %2823
        %2825 = vmax.xlane.f32.xlu0 %v2789
        %v2826 = vpop.xlane.xlu0 %2825
        %2827 = vmax.xlane.f32.xlu0 %v2791
        %v2828 = vpop.xlane.xlu0 %2827
        %2829 = vmax.xlane.f32.xlu0 %v2794
        %v2830 = vpop.xlane.xlu0 %2829
        %2831 = vmax.xlane.f32.xlu0 %v2796
        %v2832 = vpop.xlane.xlu0 %2831
        %2833 = vmax.xlane.f32.xlu0 %v2799
        %v2834 = vpop.xlane.xlu0 %2833
        %2835 = vmax.xlane.f32.xlu0 %v2801
        %v2836 = vpop.xlane.xlu0 %2835
        %2837 = vmax.xlane.f32.xlu0 %v2804
        %v2838 = vpop.xlane.xlu0 %2837
        %2839 = vmax.xlane.f32.xlu0 %v2806
        %v2840 = vpop.xlane.xlu0 %2839
        %2841 = vmax.xlane.f32.xlu0 %v2809
        %v2842 = vpop.xlane.xlu0 %2841
        %2843 = vmax.xlane.f32.xlu0 %v2811
        %v2844 = vpop.xlane.xlu0 %2843
        %v2845 = vsub.f32 %v2774, %v2814
        %v2846 = vsub.f32 %v2776, %v2816
        %v2847 = vsub.f32 %v2779, %v2818
        %v2848 = vsub.f32 %v2781, %v2820
        %v2849 = vsub.f32 %v2784, %v2822
        %v2850 = vsub.f32 %v2786, %v2824
        %v2851 = vsub.f32 %v2789, %v2826
        %v2852 = vsub.f32 %v2791, %v2828
        %v2853 = vsub.f32 %v2794, %v2830
        %v2854 = vsub.f32 %v2796, %v2832
        %v2855 = vsub.f32 %v2799, %v2834
        %v2856 = vsub.f32 %v2801, %v2836
        %v2857 = vsub.f32 %v2804, %v2838
        %v2858 = vsub.f32 %v2806, %v2840
        %v2859 = vsub.f32 %v2809, %v2842
        %v2860 = vsub.f32 %v2811, %v2844
        %v2861 = vmul.f32 %v2845, 1.442695
        %v2862 = vpow.pop %v2861
        %v2863 = vmul.f32 %v2846, 1.442695
        %v2864 = vpow.pop %v2863
        %v2865 = vmul.f32 %v2847, 1.442695
        %v2866 = vpow.pop %v2865
        %v2867 = vmul.f32 %v2848, 1.442695
        %v2868 = vpow.pop %v2867
        %v2869 = vmul.f32 %v2849, 1.442695
        %v2870 = vpow.pop %v2869
        %v2871 = vmul.f32 %v2850, 1.442695
        %v2872 = vpow.pop %v2871
        %v2873 = vmul.f32 %v2851, 1.442695
        %v2874 = vpow.pop %v2873
        %v2875 = vmul.f32 %v2852, 1.442695
        %v2876 = vpow.pop %v2875
        %v2877 = vmul.f32 %v2853, 1.442695
        %v2878 = vpow.pop %v2877
        %v2879 = vmul.f32 %v2854, 1.442695
        %v2880 = vpow.pop %v2879
        %v2881 = vmul.f32 %v2855, 1.442695
        %v2882 = vpow.pop %v2881
        %v2883 = vmul.f32 %v2856, 1.442695
        %v2884 = vpow.pop %v2883
        %v2885 = vmul.f32 %v2857, 1.442695
        %v2886 = vpow.pop %v2885
        %v2887 = vmul.f32 %v2858, 1.442695
        %v2888 = vpow.pop %v2887
        %v2889 = vmul.f32 %v2859, 1.442695
        %v2890 = vpow.pop %v2889
        %v2891 = vmul.f32 %v2860, 1.442695
        %v2892 = vpow.pop %v2891
        %2893 = vadd.xlane.f32.xlu0 %v2862
        %v2894 = vpop.xlane.xlu0 %2893
        %2895 = vadd.xlane.f32.xlu0 %v2864
        %v2896 = vpop.xlane.xlu0 %2895
        %2897 = vadd.xlane.f32.xlu0 %v2866
        %v2898 = vpop.xlane.xlu0 %2897
        %2899 = vadd.xlane.f32.xlu0 %v2868
        %v2900 = vpop.xlane.xlu0 %2899
        %2901 = vadd.xlane.f32.xlu0 %v2870
        %v2902 = vpop.xlane.xlu0 %2901
        %2903 = vadd.xlane.f32.xlu0 %v2872
        %v2904 = vpop.xlane.xlu0 %2903
        %2905 = vadd.xlane.f32.xlu0 %v2874
        %v2906 = vpop.xlane.xlu0 %2905
        %2907 = vadd.xlane.f32.xlu0 %v2876
        %v2908 = vpop.xlane.xlu0 %2907
        %2909 = vadd.xlane.f32.xlu0 %v2878
        %v2910 = vpop.xlane.xlu0 %2909
        %2911 = vadd.xlane.f32.xlu0 %v2880
        %v2912 = vpop.xlane.xlu0 %2911
        %2913 = vadd.xlane.f32.xlu0 %v2882
        %v2914 = vpop.xlane.xlu0 %2913
        %2915 = vadd.xlane.f32.xlu0 %v2884
        %v2916 = vpop.xlane.xlu0 %2915
        %2917 = vadd.xlane.f32.xlu0 %v2886
        %v2918 = vpop.xlane.xlu0 %2917
        %2919 = vadd.xlane.f32.xlu0 %v2888
        %v2920 = vpop.xlane.xlu0 %2919
        %2921 = vadd.xlane.f32.xlu0 %v2890
        %v2922 = vpop.xlane.xlu0 %2921
        %2923 = vadd.xlane.f32.xlu0 %v2892
        %v2924 = vpop.xlane.xlu0 %2923
        %v2925 = vrcp.pop %v2894
        %v2926 = vrcp.pop %v2896
        %v2927 = vrcp.pop %v2898
        %v2928 = vrcp.pop %v2900
        %v2929 = vrcp.pop %v2902
        %v2930 = vrcp.pop %v2904
        %v2931 = vrcp.pop %v2906
        %v2932 = vrcp.pop %v2908
        %v2933 = vrcp.pop %v2910
        %v2934 = vrcp.pop %v2912
        %v2935 = vrcp.pop %v2914
        %v2936 = vrcp.pop %v2916
        %v2937 = vrcp.pop %v2918
        %v2938 = vrcp.pop %v2920
        %v2939 = vrcp.pop %v2922
        %v2940 = vrcp.pop %v2924
        %v2941 = vmul.f32 %v2862, %v2925
        %v2942 = vmul.f32 %v2864, %v2926
        %v2943 = vmul.f32 %v2866, %v2927
        %v2944 = vmul.f32 %v2868, %v2928
        %v2945 = vmul.f32 %v2870, %v2929
        %v2946 = vmul.f32 %v2872, %v2930
        %v2947 = vmul.f32 %v2874, %v2931
        %v2948 = vmul.f32 %v2876, %v2932
        %v2949 = vmul.f32 %v2878, %v2933
        %v2950 = vmul.f32 %v2880, %v2934
        %v2951 = vmul.f32 %v2882, %v2935
        %v2952 = vmul.f32 %v2884, %v2936
        %v2953 = vmul.f32 %v2886, %v2937
        %v2954 = vmul.f32 %v2888, %v2938
        %v2955 = vmul.f32 %v2890, %v2939
        %v2956 = vmul.f32 %v2892, %v2940
        %v2957 = vpack.c.bf16 %v2942, %v2941
        %v2958 = vpack.c.bf16 %v2944, %v2943
        %v2959 = vpack.c.bf16 %v2946, %v2945
        %v2960 = vpack.c.bf16 %v2948, %v2947
        %v2961 = vpack.c.bf16 %v2950, %v2949
        %v2962 = vpack.c.bf16 %v2952, %v2951
        %v2963 = vpack.c.bf16 %v2954, %v2953
        %v2964 = vpack.c.bf16 %v2956, %v2955
        %v2966 = vunpack.c.h.b16 %v1137
        %v2967 = vpack.c.b16 %v2966, %v2966
        %2969 = vmatpush.bf16.xpose.msra.mxu0 %v2964
        %2970 = vmatpush.bf16.xpose.msra.mxu0 %v2963
        %2971 = vmatpush.bf16.xpose.msra.mxu0 %v2962
        %2972 = vmatpush.bf16.xpose.msra.mxu0 %v2961
        %2973 = vmatpush.bf16.xpose.msra.mxu0 %v2960
        %2974 = vmatpush.bf16.xpose.msra.mxu0 %v2959
        %2975 = vmatpush.bf16.xpose.msra.mxu0 %v2958
        %2976 = vmatpush.bf16.xpose.msra.mxu0 %v2957
        %2977 = vmatmul.bf16.gmra.mxu0 %v2967
        %v2978 = vpop.f32.mrf.mxu0
        %v2979 = vadd.f32 0.0, %v2978
        %v2980 = vpop.f32.mrf.mxu0
        %2981 = vdwg.mxu0
        %2982 = vst [vmem:[#allocation3 + $0x28] sm:$0xff] %v2979
        %v2984 = vunpack.c.h.b16 %v1130
        %v2985 = vpack.c.b16 %v2984, %v2984
        %2987 = vxpose.xlu0.c.b16.start [1/8] %v2985, 128
        %2988 = vxpose.xlu0.c.b16.cont [2/8] 0, 128
        %2989 = vxpose.xlu0.c.b16.cont [3/8] 0, 128
        %2990 = vxpose.xlu0.c.b16.cont [4/8] 0, 128
        %2991 = vxpose.xlu0.c.b16.cont [5/8] 0, 128
        %2992 = vxpose.xlu0.c.b16.cont [6/8] 0, 128
        %2993 = vxpose.xlu0.c.b16.cont [7/8] 0, 128
        %2994 = vxpose.xlu0.c.b16.end [8/8] 0, 128
        %v2995 = vpop.trf.xlu0
        %v2996 = vpop.trf.xlu0
        %v2997 = vpop.trf.xlu0
        %v2998 = vpop.trf.xlu0
        %v2999 = vpop.trf.xlu0
        %v3000 = vpop.trf.xlu0
        %v3001 = vpop.trf.xlu0
        %v3002 = vpop.trf.xlu0
        %v3004 = vunpack.c.h.b16 %v1134
        %v3005 = vpack.c.b16 %v3004, %v3004
        %v3007 = vsel %vm1158, %v2995, 0
        %v3010 = vsel %vm1158, %v2996, 0
        %v3013 = vsel %vm1158, %v2997, 0
        %v3016 = vsel %vm1158, %v2998, 0
        %v3019 = vsel %vm1158, %v2999, 0
        %v3022 = vsel %vm1158, %v3000, 0
        %v3025 = vsel %vm1158, %v3001, 0
        %v3028 = vsel %vm1158, %v3002, 0
        %v3031 = vsel %vm1183, %v3005, 0
        %3033 = vmatpush.bf16.msra.mxu0 0
        %3034 = vmatpush.bf16.msra.mxu0 0
        %3035 = vmatpush.bf16.msra.mxu0 0
        %3036 = vmatpush.bf16.msra.mxu0 0
        %3037 = vmatpush.bf16.msra.mxu0 0
        %3038 = vmatpush.bf16.msra.mxu0 0
        %3039 = vmatpush.bf16.msra.mxu0 0
        %3040 = vmatpush.bf16.msra.mxu0 %v3031
        %3041 = vmatmul.bf16.gmra.mxu0 %v3007
        %v3042 = vpop.f32.mrf.mxu0
        %v3043 = vadd.f32 %v1140, %v3042
        %v3044 = vpop.f32.mrf.mxu0
        %v3045 = vadd.f32 %v1140, %v3044
        %3046 = vmatmul.bf16.gmra.mxu0 %v3010
        %v3047 = vpop.f32.mrf.mxu0
        %v3048 = vadd.f32 %v1140, %v3047
        %v3049 = vpop.f32.mrf.mxu0
        %v3050 = vadd.f32 %v1140, %v3049
        %3051 = vmatmul.bf16.gmra.mxu0 %v3013
        %v3052 = vpop.f32.mrf.mxu0
        %v3053 = vadd.f32 %v1140, %v3052
        %v3054 = vpop.f32.mrf.mxu0
        %v3055 = vadd.f32 %v1140, %v3054
        %3056 = vmatmul.bf16.gmra.mxu0 %v3016
        %v3057 = vpop.f32.mrf.mxu0
        %v3058 = vadd.f32 %v1140, %v3057
        %v3059 = vpop.f32.mrf.mxu0
        %v3060 = vadd.f32 %v1140, %v3059
        %3061 = vmatmul.bf16.gmra.mxu0 %v3019
        %v3062 = vpop.f32.mrf.mxu0
        %v3063 = vadd.f32 %v1140, %v3062
        %v3064 = vpop.f32.mrf.mxu0
        %v3065 = vadd.f32 %v1140, %v3064
        %3066 = vmatmul.bf16.gmra.mxu0 %v3022
        %v3067 = vpop.f32.mrf.mxu0
        %v3068 = vadd.f32 %v1140, %v3067
        %v3069 = vpop.f32.mrf.mxu0
        %v3070 = vadd.f32 %v1140, %v3069
        %3071 = vmatmul.bf16.gmra.mxu0 %v3025
        %v3072 = vpop.f32.mrf.mxu0
        %v3073 = vadd.f32 %v1140, %v3072
        %v3074 = vpop.f32.mrf.mxu0
        %v3075 = vadd.f32 %v1140, %v3074
        %3076 = vmatmul.bf16.gmra.mxu0 %v3028
        %v3077 = vpop.f32.mrf.mxu0
        %v3078 = vadd.f32 %v1140, %v3077
        %v3079 = vpop.f32.mrf.mxu0
        %v3080 = vadd.f32 %v1140, %v3079
        %3081 = vdwg.mxu0
        %3082 = vmax.xlane.f32.xlu0 %v3043
        %v3083 = vpop.xlane.xlu0 %3082
        %3084 = vmax.xlane.f32.xlu0 %v3045
        %v3085 = vpop.xlane.xlu0 %3084
        %3086 = vmax.xlane.f32.xlu0 %v3048
        %v3087 = vpop.xlane.xlu0 %3086
        %3088 = vmax.xlane.f32.xlu0 %v3050
        %v3089 = vpop.xlane.xlu0 %3088
        %3090 = vmax.xlane.f32.xlu0 %v3053
        %v3091 = vpop.xlane.xlu0 %3090
        %3092 = vmax.xlane.f32.xlu0 %v3055
        %v3093 = vpop.xlane.xlu0 %3092
        %3094 = vmax.xlane.f32.xlu0 %v3058
        %v3095 = vpop.xlane.xlu0 %3094
        %3096 = vmax.xlane.f32.xlu0 %v3060
        %v3097 = vpop.xlane.xlu0 %3096
        %3098 = vmax.xlane.f32.xlu0 %v3063
        %v3099 = vpop.xlane.xlu0 %3098
        %3100 = vmax.xlane.f32.xlu0 %v3065
        %v3101 = vpop.xlane.xlu0 %3100
        %3102 = vmax.xlane.f32.xlu0 %v3068
        %v3103 = vpop.xlane.xlu0 %3102
        %3104 = vmax.xlane.f32.xlu0 %v3070
        %v3105 = vpop.xlane.xlu0 %3104
        %3106 = vmax.xlane.f32.xlu0 %v3073
        %v3107 = vpop.xlane.xlu0 %3106
        %3108 = vmax.xlane.f32.xlu0 %v3075
        %v3109 = vpop.xlane.xlu0 %3108
        %3110 = vmax.xlane.f32.xlu0 %v3078
        %v3111 = vpop.xlane.xlu0 %3110
        %3112 = vmax.xlane.f32.xlu0 %v3080
        %v3113 = vpop.xlane.xlu0 %3112
        %v3114 = vsub.f32 %v3043, %v3083
        %v3115 = vsub.f32 %v3045, %v3085
        %v3116 = vsub.f32 %v3048, %v3087
        %v3117 = vsub.f32 %v3050, %v3089
        %v3118 = vsub.f32 %v3053, %v3091
        %v3119 = vsub.f32 %v3055, %v3093
        %v3120 = vsub.f32 %v3058, %v3095
        %v3121 = vsub.f32 %v3060, %v3097
        %v3122 = vsub.f32 %v3063, %v3099
        %v3123 = vsub.f32 %v3065, %v3101
        %v3124 = vsub.f32 %v3068, %v3103
        %v3125 = vsub.f32 %v3070, %v3105
        %v3126 = vsub.f32 %v3073, %v3107
        %v3127 = vsub.f32 %v3075, %v3109
        %v3128 = vsub.f32 %v3078, %v3111
        %v3129 = vsub.f32 %v3080, %v3113
        %v3130 = vmul.f32 %v3114, 1.442695
        %v3131 = vpow.pop %v3130
        %v3132 = vmul.f32 %v3115, 1.442695
        %v3133 = vpow.pop %v3132
        %v3134 = vmul.f32 %v3116, 1.442695
        %v3135 = vpow.pop %v3134
        %v3136 = vmul.f32 %v3117, 1.442695
        %v3137 = vpow.pop %v3136
        %v3138 = vmul.f32 %v3118, 1.442695
        %v3139 = vpow.pop %v3138
        %v3140 = vmul.f32 %v3119, 1.442695
        %v3141 = vpow.pop %v3140
        %v3142 = vmul.f32 %v3120, 1.442695
        %v3143 = vpow.pop %v3142
        %v3144 = vmul.f32 %v3121, 1.442695
        %v3145 = vpow.pop %v3144
        %v3146 = vmul.f32 %v3122, 1.442695
        %v3147 = vpow.pop %v3146
        %v3148 = vmul.f32 %v3123, 1.442695
        %v3149 = vpow.pop %v3148
        %v3150 = vmul.f32 %v3124, 1.442695
        %v3151 = vpow.pop %v3150
        %v3152 = vmul.f32 %v3125, 1.442695
        %v3153 = vpow.pop %v3152
        %v3154 = vmul.f32 %v3126, 1.442695
        %v3155 = vpow.pop %v3154
        %v3156 = vmul.f32 %v3127, 1.442695
        %v3157 = vpow.pop %v3156
        %v3158 = vmul.f32 %v3128, 1.442695
        %v3159 = vpow.pop %v3158
        %v3160 = vmul.f32 %v3129, 1.442695
        %v3161 = vpow.pop %v3160
        %3162 = vadd.xlane.f32.xlu0 %v3131
        %v3163 = vpop.xlane.xlu0 %3162
        %3164 = vadd.xlane.f32.xlu0 %v3133
        %v3165 = vpop.xlane.xlu0 %3164
        %3166 = vadd.xlane.f32.xlu0 %v3135
        %v3167 = vpop.xlane.xlu0 %3166
        %3168 = vadd.xlane.f32.xlu0 %v3137
        %v3169 = vpop.xlane.xlu0 %3168
        %3170 = vadd.xlane.f32.xlu0 %v3139
        %v3171 = vpop.xlane.xlu0 %3170
        %3172 = vadd.xlane.f32.xlu0 %v3141
        %v3173 = vpop.xlane.xlu0 %3172
        %3174 = vadd.xlane.f32.xlu0 %v3143
        %v3175 = vpop.xlane.xlu0 %3174
        %3176 = vadd.xlane.f32.xlu0 %v3145
        %v3177 = vpop.xlane.xlu0 %3176
        %3178 = vadd.xlane.f32.xlu0 %v3147
        %v3179 = vpop.xlane.xlu0 %3178
        %3180 = vadd.xlane.f32.xlu0 %v3149
        %v3181 = vpop.xlane.xlu0 %3180
        %3182 = vadd.xlane.f32.xlu0 %v3151
        %v3183 = vpop.xlane.xlu0 %3182
        %3184 = vadd.xlane.f32.xlu0 %v3153
        %v3185 = vpop.xlane.xlu0 %3184
        %3186 = vadd.xlane.f32.xlu0 %v3155
        %v3187 = vpop.xlane.xlu0 %3186
        %3188 = vadd.xlane.f32.xlu0 %v3157
        %v3189 = vpop.xlane.xlu0 %3188
        %3190 = vadd.xlane.f32.xlu0 %v3159
        %v3191 = vpop.xlane.xlu0 %3190
        %3192 = vadd.xlane.f32.xlu0 %v3161
        %v3193 = vpop.xlane.xlu0 %3192
        %v3194 = vrcp.pop %v3163
        %v3195 = vrcp.pop %v3165
        %v3196 = vrcp.pop %v3167
        %v3197 = vrcp.pop %v3169
        %v3198 = vrcp.pop %v3171
        %v3199 = vrcp.pop %v3173
        %v3200 = vrcp.pop %v3175
        %v3201 = vrcp.pop %v3177
        %v3202 = vrcp.pop %v3179
        %v3203 = vrcp.pop %v3181
        %v3204 = vrcp.pop %v3183
        %v3205 = vrcp.pop %v3185
        %v3206 = vrcp.pop %v3187
        %v3207 = vrcp.pop %v3189
        %v3208 = vrcp.pop %v3191
        %v3209 = vrcp.pop %v3193
        %v3210 = vmul.f32 %v3131, %v3194
        %v3211 = vmul.f32 %v3133, %v3195
        %v3212 = vmul.f32 %v3135, %v3196
        %v3213 = vmul.f32 %v3137, %v3197
        %v3214 = vmul.f32 %v3139, %v3198
        %v3215 = vmul.f32 %v3141, %v3199
        %v3216 = vmul.f32 %v3143, %v3200
        %v3217 = vmul.f32 %v3145, %v3201
        %v3218 = vmul.f32 %v3147, %v3202
        %v3219 = vmul.f32 %v3149, %v3203
        %v3220 = vmul.f32 %v3151, %v3204
        %v3221 = vmul.f32 %v3153, %v3205
        %v3222 = vmul.f32 %v3155, %v3206
        %v3223 = vmul.f32 %v3157, %v3207
        %v3224 = vmul.f32 %v3159, %v3208
        %v3225 = vmul.f32 %v3161, %v3209
        %v3226 = vpack.c.bf16 %v3211, %v3210
        %v3227 = vpack.c.bf16 %v3213, %v3212
        %v3228 = vpack.c.bf16 %v3215, %v3214
        %v3229 = vpack.c.bf16 %v3217, %v3216
        %v3230 = vpack.c.bf16 %v3219, %v3218
        %v3231 = vpack.c.bf16 %v3221, %v3220
        %v3232 = vpack.c.bf16 %v3223, %v3222
        %v3233 = vpack.c.bf16 %v3225, %v3224
        %v3235 = vunpack.c.h.b16 %v1138
        %v3236 = vpack.c.b16 %v3235, %v3235
        %3238 = vmatpush.bf16.xpose.msra.mxu0 %v3233
        %3239 = vmatpush.bf16.xpose.msra.mxu0 %v3232
        %3240 = vmatpush.bf16.xpose.msra.mxu0 %v3231
        %3241 = vmatpush.bf16.xpose.msra.mxu0 %v3230
        %3242 = vmatpush.bf16.xpose.msra.mxu0 %v3229
        %3243 = vmatpush.bf16.xpose.msra.mxu0 %v3228
        %3244 = vmatpush.bf16.xpose.msra.mxu0 %v3227
        %3245 = vmatpush.bf16.xpose.msra.mxu0 %v3226
        %3246 = vmatmul.bf16.gmra.mxu0 %v3236
        %v3247 = vpop.f32.mrf.mxu0
        %v3248 = vadd.f32 0.0, %v3247
        %v3249 = vpop.f32.mrf.mxu0
        %3250 = vdwg.mxu0
        %3251 = vst [vmem:[#allocation3 + $0x38] sm:$0xff] %v3248
        %v3252 = vld [vmem:[#allocation3] sm:$0xff]
        %v3253 = vld [vmem:[#allocation3 + $0x8] sm:$0xff]
        %v3254 = vld [vmem:[#allocation3 + $0x10] sm:$0xff]
        %v3255 = vld [vmem:[#allocation3 + $0x18] sm:$0xff]
        %v3256 = vld [vmem:[#allocation3 + $0x20] sm:$0xff]
        %v3257 = vld [vmem:[#allocation3 + $0x28] sm:$0xff]
        %v3258 = vld [vmem:[#allocation3 + $0x30] sm:$0xff]
        %v3259 = vld [vmem:[#allocation3 + $0x38] sm:$0xff]
        %v3260 = vpack.c.bf16 %v3254, %v3252
        %v3261 = vpack.c.bf16 %v3255, %v3253
        %v3262 = vpack.c.bf16 %v3258, %v3256
        %v3263 = vpack.c.bf16 %v3259, %v3257
        %3265 = vset.pattern.permute.xlu0 0
        %3266 = vperm.xlu0 %3265, %v824
        %v3267 = vpop.permute.xlu0 %3266
        %3270 = vset.pattern.permute.xlu0 0
        %3271 = vperm.xlu0 %3270, %v825
        %v3272 = vpop.permute.xlu0 %3271
        %3275 = vset.pattern.permute.xlu0 0
        %3276 = vperm.xlu0 %3275, %v826
        %v3277 = vpop.permute.xlu0 %3276
        %3280 = vset.pattern.permute.xlu0 0
        %3281 = vperm.xlu0 %3280, %v827
        %v3282 = vpop.permute.xlu0 %3281
        %v3288 = vunpack.c.l.b16 %v820
        %v3289 = vunpack.c.l.b16 %v821
        %v3290 = vunpack.c.l.b16 %v822
        %v3291 = vunpack.c.l.b16 %v823
        %v3292 = vpack.c.b16 %v3289, %v3288
        %v3293 = vpack.c.b16 %v3291, %v3290
        %v3295 = vsel %vm944, %v3292, 0
        %v3298 = vsel %vm944, %v3293, 0
        %3300 = vmatpush.bf16.msra.mxu0 0
        %3301 = vmatpush.bf16.msra.mxu0 0
        %3302 = vmatpush.bf16.msra.mxu0 0
        %3303 = vmatpush.bf16.msra.mxu0 0
        %3304 = vmatpush.bf16.msra.mxu0 0
        %3305 = vmatpush.bf16.msra.mxu0 0
        %3306 = vmatpush.bf16.msra.mxu0 %v3262
        %3307 = vmatpush.bf16.msra.mxu0 %v3260
        %3308 = vmatmul.bf16.gmra.mxu0 %v3295
        %v3309 = vpop.f32.mrf.mxu0
        %v3310 = vadd.f32 %v3267, %v3309
        %v3311 = vpop.f32.mrf.mxu0
        %v3312 = vadd.f32 %v3272, %v3311
        %3313 = vmatmul.bf16.gmra.mxu0 %v3298
        %v3314 = vpop.f32.mrf.mxu0
        %v3315 = vadd.f32 %v3277, %v3314
        %v3316 = vpop.f32.mrf.mxu0
        %v3317 = vadd.f32 %v3282, %v3316
        %3318 = vdwg.mxu0
        %3319 = vmatpush.bf16.msra.mxu0 0
        %3320 = vmatpush.bf16.msra.mxu0 0
        %3321 = vmatpush.bf16.msra.mxu0 0
        %3322 = vmatpush.bf16.msra.mxu0 0
        %3323 = vmatpush.bf16.msra.mxu0 0
        %3324 = vmatpush.bf16.msra.mxu0 0
        %3325 = vmatpush.bf16.msra.mxu0 %v3263
        %3326 = vmatpush.bf16.msra.mxu0 %v3261
        %3327 = vmatmul.bf16.gmra.mxu0 %v3295
        %v3328 = vpop.f32.mrf.mxu0
        %v3329 = vadd.f32 %v3267, %v3328
        %v3330 = vpop.f32.mrf.mxu0
        %v3331 = vadd.f32 %v3272, %v3330
        %3332 = vmatmul.bf16.gmra.mxu0 %v3298
        %v3333 = vpop.f32.mrf.mxu0
        %v3334 = vadd.f32 %v3277, %v3333
        %v3335 = vpop.f32.mrf.mxu0
        %v3336 = vadd.f32 %v3282, %v3335
        %3337 = vdwg.mxu0
        %v3338 = vpack.c.bf16 %v3312, %v3310
        %v3339 = vpack.c.bf16 %v3331, %v3329
        %v3340 = vpack.c.bf16 %v3317, %v3315
        %v3341 = vpack.c.bf16 %v3336, %v3334
        %v3350 = vunpack.c.l.b16 %v836
        %v3351 = vunpack.c.l.b16 %v837
        %v3352 = vunpack.c.l.b16 %v838
        %v3353 = vunpack.c.l.b16 %v839
        %v3354 = vunpack.c.l.b16 %v840
        %v3355 = vunpack.c.l.b16 %v841
        %v3356 = vunpack.c.l.b16 %v842
        %v3357 = vunpack.c.l.b16 %v843
        %v3358 = vpack.c.b16 %v3351, %v3350
        %v3359 = vpack.c.b16 %v3353, %v3352
        %v3360 = vpack.c.b16 %v3355, %v3354
        %v3361 = vpack.c.b16 %v3357, %v3356
        %v3363 = vsel %vm944, %v3358, 0
        %v3366 = vsel %vm944, %v3359, 0
        %v3369 = vsel %vm944, %v3360, 0
        %v3372 = vsel %vm944, %v3361, 0
        %3374 = vmatpush.bf16.msra.mxu0 0
        %3375 = vmatpush.bf16.msra.mxu0 0
        %3376 = vmatpush.bf16.msra.mxu0 0
        %3377 = vmatpush.bf16.msra.mxu0 0
        %3378 = vmatpush.bf16.msra.mxu0 0
        %3379 = vmatpush.bf16.msra.mxu0 0
        %3380 = vmatpush.bf16.msra.mxu0 %v3340
        %3381 = vmatpush.bf16.msra.mxu0 %v3338
        %3382 = vmatmul.bf16.gmra.mxu0 %v3363
        %v3383 = vpop.f32.mrf.mxu0
        %v3384 = vadd.f32 0.0, %v3383
        %v3385 = vpop.f32.mrf.mxu0
        %v3386 = vadd.f32 0.0, %v3385
        %3387 = vmatmul.bf16.gmra.mxu0 %v3366
        %v3388 = vpop.f32.mrf.mxu0
        %v3389 = vadd.f32 0.0, %v3388
        %v3390 = vpop.f32.mrf.mxu0
        %v3391 = vadd.f32 0.0, %v3390
        %3392 = vmatmul.bf16.gmra.mxu0 %v3369
        %v3393 = vpop.f32.mrf.mxu0
        %v3394 = vadd.f32 0.0, %v3393
        %v3395 = vpop.f32.mrf.mxu0
        %v3396 = vadd.f32 0.0, %v3395
        %3397 = vmatmul.bf16.gmra.mxu0 %v3372
        %v3398 = vpop.f32.mrf.mxu0
        %v3399 = vadd.f32 0.0, %v3398
        %v3400 = vpop.f32.mrf.mxu0
        %v3401 = vadd.f32 0.0, %v3400
        %3402 = vdwg.mxu0
        %3403 = vmatpush.bf16.msra.mxu0 0
        %3404 = vmatpush.bf16.msra.mxu0 0
        %3405 = vmatpush.bf16.msra.mxu0 0
        %3406 = vmatpush.bf16.msra.mxu0 0
        %3407 = vmatpush.bf16.msra.mxu0 0
        %3408 = vmatpush.bf16.msra.mxu0 0
        %3409 = vmatpush.bf16.msra.mxu0 %v3341
        %3410 = vmatpush.bf16.msra.mxu0 %v3339
        %3411 = vmatmul.bf16.gmra.mxu0 %v3363
        %v3412 = vpop.f32.mrf.mxu0
        %v3413 = vadd.f32 0.0, %v3412
        %v3414 = vpop.f32.mrf.mxu0
        %v3415 = vadd.f32 0.0, %v3414
        %3416 = vmatmul.bf16.gmra.mxu0 %v3366
        %v3417 = vpop.f32.mrf.mxu0
        %v3418 = vadd.f32 0.0, %v3417
        %v3419 = vpop.f32.mrf.mxu0
        %v3420 = vadd.f32 0.0, %v3419
        %3421 = vmatmul.bf16.gmra.mxu0 %v3369
        %v3422 = vpop.f32.mrf.mxu0
        %v3423 = vadd.f32 0.0, %v3422
        %v3424 = vpop.f32.mrf.mxu0
        %v3425 = vadd.f32 0.0, %v3424
        %3426 = vmatmul.bf16.gmra.mxu0 %v3372
        %v3427 = vpop.f32.mrf.mxu0
        %v3428 = vadd.f32 0.0, %v3427
        %v3429 = vpop.f32.mrf.mxu0
        %v3430 = vadd.f32 0.0, %v3429
        %3431 = vdwg.mxu0
        %v3440 = vunpack.c.l.b16 %v828
        %v3441 = vunpack.c.l.b16 %v829
        %v3442 = vunpack.c.l.b16 %v830
        %v3443 = vunpack.c.l.b16 %v831
        %v3444 = vunpack.c.l.b16 %v832
        %v3445 = vunpack.c.l.b16 %v833
        %v3446 = vunpack.c.l.b16 %v834
        %v3447 = vunpack.c.l.b16 %v835
        %v3448 = vpack.c.b16 %v3441, %v3440
        %v3449 = vpack.c.b16 %v3443, %v3442
        %v3450 = vpack.c.b16 %v3445, %v3444
        %v3451 = vpack.c.b16 %v3447, %v3446
        %v3453 = vsel %vm944, %v3448, 0
        %v3456 = vsel %vm944, %v3449, 0
        %v3459 = vsel %vm944, %v3450, 0
        %v3462 = vsel %vm944, %v3451, 0
        %3464 = vmatpush.bf16.msra.mxu0 0
        %3465 = vmatpush.bf16.msra.mxu0 0
        %3466 = vmatpush.bf16.msra.mxu0 0
        %3467 = vmatpush.bf16.msra.mxu0 0
        %3468 = vmatpush.bf16.msra.mxu0 0
        %3469 = vmatpush.bf16.msra.mxu0 0
        %3470 = vmatpush.bf16.msra.mxu0 %v908
        %3471 = vmatpush.bf16.msra.mxu0 %v906
        %3472 = vmatmul.bf16.gmra.mxu0 %v3453
        %v3473 = vpop.f32.mrf.mxu0
        %v3474 = vadd.f32 %v3384, %v3473
        %v3475 = vpop.f32.mrf.mxu0
        %v3476 = vadd.f32 %v3386, %v3475
        %3477 = vmatmul.bf16.gmra.mxu0 %v3456
        %v3478 = vpop.f32.mrf.mxu0
        %v3479 = vadd.f32 %v3389, %v3478
        %v3480 = vpop.f32.mrf.mxu0
        %v3481 = vadd.f32 %v3391, %v3480
        %3482 = vmatmul.bf16.gmra.mxu0 %v3459
        %v3483 = vpop.f32.mrf.mxu0
        %v3484 = vadd.f32 %v3394, %v3483
        %v3485 = vpop.f32.mrf.mxu0
        %v3486 = vadd.f32 %v3396, %v3485
        %3487 = vmatmul.bf16.gmra.mxu0 %v3462
        %v3488 = vpop.f32.mrf.mxu0
        %v3489 = vadd.f32 %v3399, %v3488
        %v3490 = vpop.f32.mrf.mxu0
        %v3491 = vadd.f32 %v3401, %v3490
        %3492 = vdwg.mxu0
        %3493 = vmatpush.bf16.msra.mxu0 0
        %3494 = vmatpush.bf16.msra.mxu0 0
        %3495 = vmatpush.bf16.msra.mxu0 0
        %3496 = vmatpush.bf16.msra.mxu0 0
        %3497 = vmatpush.bf16.msra.mxu0 0
        %3498 = vmatpush.bf16.msra.mxu0 0
        %3499 = vmatpush.bf16.msra.mxu0 %v909
        %3500 = vmatpush.bf16.msra.mxu0 %v907
        %3501 = vmatmul.bf16.gmra.mxu0 %v3453
        %v3502 = vpop.f32.mrf.mxu0
        %v3503 = vadd.f32 %v3413, %v3502
        %v3504 = vpop.f32.mrf.mxu0
        %v3505 = vadd.f32 %v3415, %v3504
        %3506 = vmatmul.bf16.gmra.mxu0 %v3456
        %v3507 = vpop.f32.mrf.mxu0
        %v3508 = vadd.f32 %v3418, %v3507
        %v3509 = vpop.f32.mrf.mxu0
        %v3510 = vadd.f32 %v3420, %v3509
        %3511 = vmatmul.bf16.gmra.mxu0 %v3459
        %v3512 = vpop.f32.mrf.mxu0
        %v3513 = vadd.f32 %v3423, %v3512
        %v3514 = vpop.f32.mrf.mxu0
        %v3515 = vadd.f32 %v3425, %v3514
        %3516 = vmatmul.bf16.gmra.mxu0 %v3462
        %v3517 = vpop.f32.mrf.mxu0
        %v3518 = vadd.f32 %v3428, %v3517
        %v3519 = vpop.f32.mrf.mxu0
        %v3520 = vadd.f32 %v3430, %v3519
        %3521 = vdwg.mxu0
        %3523 = vset.pattern.permute.xlu0 0
        %3524 = vperm.xlu0 %3523, %v844
        %v3525 = vpop.permute.xlu0 %3524
        %3528 = vset.pattern.permute.xlu0 0
        %3529 = vperm.xlu0 %3528, %v845
        %v3530 = vpop.permute.xlu0 %3529
        %3533 = vset.pattern.permute.xlu0 0
        %3534 = vperm.xlu0 %3533, %v846
        %v3535 = vpop.permute.xlu0 %3534
        %3538 = vset.pattern.permute.xlu0 0
        %3539 = vperm.xlu0 %3538, %v847
        %v3540 = vpop.permute.xlu0 %3539
        %3543 = vset.pattern.permute.xlu0 0
        %3544 = vperm.xlu0 %3543, %v848
        %v3545 = vpop.permute.xlu0 %3544
        %3548 = vset.pattern.permute.xlu0 0
        %3549 = vperm.xlu0 %3548, %v849
        %v3550 = vpop.permute.xlu0 %3549
        %3553 = vset.pattern.permute.xlu0 0
        %3554 = vperm.xlu0 %3553, %v850
        %v3555 = vpop.permute.xlu0 %3554
        %3558 = vset.pattern.permute.xlu0 0
        %3559 = vperm.xlu0 %3558, %v851
        %v3560 = vpop.permute.xlu0 %3559
        %v3562 = vadd.f32 %v3474, %v3525
        %v3563 = vadd.f32 %v3503, %v3525
        %v3564 = vadd.f32 %v3476, %v3530
        %v3565 = vadd.f32 %v3505, %v3530
        %v3566 = vadd.f32 %v3479, %v3535
        %v3567 = vadd.f32 %v3508, %v3535
        %v3568 = vadd.f32 %v3481, %v3540
        %v3569 = vadd.f32 %v3510, %v3540
        %v3570 = vadd.f32 %v3484, %v3545
        %v3571 = vadd.f32 %v3513, %v3545
        %v3572 = vadd.f32 %v3486, %v3550
        %v3573 = vadd.f32 %v3515, %v3550
        %v3574 = vadd.f32 %v3489, %v3555
        %v3575 = vadd.f32 %v3518, %v3555
        %v3576 = vadd.f32 %v3491, %v3560
        %v3577 = vadd.f32 %v3520, %v3560
        %v3579 = vperm.slane %v794, 0
        %v3580 = vperm.slane %v794, 1
        %v3583 = vmul.f32 %v3562, %v3579
        %v3584 = vmul.f32 %v3563, %v3580
        %v3585 = vmul.f32 %v3564, %v3579
        %v3586 = vmul.f32 %v3565, %v3580
        %v3587 = vmul.f32 %v3566, %v3579
        %v3588 = vmul.f32 %v3567, %v3580
        %v3589 = vmul.f32 %v3568, %v3579
        %v3590 = vmul.f32 %v3569, %v3580
        %v3591 = vmul.f32 %v3570, %v3579
        %v3592 = vmul.f32 %v3571, %v3580
        %v3593 = vmul.f32 %v3572, %v3579
        %v3594 = vmul.f32 %v3573, %v3580
        %v3595 = vmul.f32 %v3574, %v3579
        %v3596 = vmul.f32 %v3575, %v3580
        %v3597 = vmul.f32 %v3576, %v3579
        %v3598 = vmul.f32 %v3577, %v3580
        %v3599 = vadd.f32 %v3583, %v3584
        %3600 = vadd.xlane.f32.xlu0 %v3599
        %v3601 = vpop.xlane.xlu0 %3600
        %v3602 = vadd.f32 %v3585, %v3586
        %3603 = vadd.xlane.f32.xlu0 %v3602
        %v3604 = vpop.xlane.xlu0 %3603
        %v3605 = vadd.f32 %v3587, %v3588
        %3606 = vadd.xlane.f32.xlu0 %v3605
        %v3607 = vpop.xlane.xlu0 %3606
        %v3608 = vadd.f32 %v3589, %v3590
        %3609 = vadd.xlane.f32.xlu0 %v3608
        %v3610 = vpop.xlane.xlu0 %3609
        %v3611 = vadd.f32 %v3591, %v3592
        %3612 = vadd.xlane.f32.xlu0 %v3611
        %v3613 = vpop.xlane.xlu0 %3612
        %v3614 = vadd.f32 %v3593, %v3594
        %3615 = vadd.xlane.f32.xlu0 %v3614
        %v3616 = vpop.xlane.xlu0 %3615
        %v3617 = vadd.f32 %v3595, %v3596
        %3618 = vadd.xlane.f32.xlu0 %v3617
        %v3619 = vpop.xlane.xlu0 %3618
        %v3620 = vadd.f32 %v3597, %v3598
        %3621 = vadd.xlane.f32.xlu0 %v3620
        %v3622 = vpop.xlane.xlu0 %3621
        %v3623 = vmul.f32 %v3583, %v3562
        %v3624 = vmul.f32 %v3584, %v3563
        %v3625 = vmul.f32 %v3585, %v3564
        %v3626 = vmul.f32 %v3586, %v3565
        %v3627 = vmul.f32 %v3587, %v3566
        %v3628 = vmul.f32 %v3588, %v3567
        %v3629 = vmul.f32 %v3589, %v3568
        %v3630 = vmul.f32 %v3590, %v3569
        %v3631 = vmul.f32 %v3591, %v3570
        %v3632 = vmul.f32 %v3592, %v3571
        %v3633 = vmul.f32 %v3593, %v3572
        %v3634 = vmul.f32 %v3594, %v3573
        %v3635 = vmul.f32 %v3595, %v3574
        %v3636 = vmul.f32 %v3596, %v3575
        %v3637 = vmul.f32 %v3597, %v3576
        %v3638 = vmul.f32 %v3598, %v3577
        %v3639 = vadd.f32 %v3623, %v3624
        %3640 = vadd.xlane.f32.xlu0 %v3639
        %v3641 = vpop.xlane.xlu0 %3640
        %v3642 = vadd.f32 %v3625, %v3626
        %3643 = vadd.xlane.f32.xlu0 %v3642
        %v3644 = vpop.xlane.xlu0 %3643
        %v3645 = vadd.f32 %v3627, %v3628
        %3646 = vadd.xlane.f32.xlu0 %v3645
        %v3647 = vpop.xlane.xlu0 %3646
        %v3648 = vadd.f32 %v3629, %v3630
        %3649 = vadd.xlane.f32.xlu0 %v3648
        %v3650 = vpop.xlane.xlu0 %3649
        %v3651 = vadd.f32 %v3631, %v3632
        %3652 = vadd.xlane.f32.xlu0 %v3651
        %v3653 = vpop.xlane.xlu0 %3652
        %v3654 = vadd.f32 %v3633, %v3634
        %3655 = vadd.xlane.f32.xlu0 %v3654
        %v3656 = vpop.xlane.xlu0 %3655
        %v3657 = vadd.f32 %v3635, %v3636
        %3658 = vadd.xlane.f32.xlu0 %v3657
        %v3659 = vpop.xlane.xlu0 %3658
        %v3660 = vadd.f32 %v3637, %v3638
        %3661 = vadd.xlane.f32.xlu0 %v3660
        %v3662 = vpop.xlane.xlu0 %3661
        %v3663 = vmul.f32 %v3601, 0.0625
        %v3664 = vmul.f32 %v3604, 0.0625
        %v3665 = vmul.f32 %v3607, 0.0625
        %v3666 = vmul.f32 %v3610, 0.0625
        %v3667 = vmul.f32 %v3613, 0.0625
        %v3668 = vmul.f32 %v3616, 0.0625
        %v3669 = vmul.f32 %v3619, 0.0625
        %v3670 = vmul.f32 %v3622, 0.0625
        %v3671 = vmul.f32 %v3641, 0.0625
        %v3672 = vmul.f32 %v3644, 0.0625
        %v3673 = vmul.f32 %v3647, 0.0625
        %v3674 = vmul.f32 %v3650, 0.0625
        %v3675 = vmul.f32 %v3653, 0.0625
        %v3676 = vmul.f32 %v3656, 0.0625
        %v3677 = vmul.f32 %v3659, 0.0625
        %v3678 = vmul.f32 %v3662, 0.0625
        %v3679 = vmul.f32 %v3663, %v3663
        %v3680 = vmul.f32 %v3664, %v3664
        %v3681 = vmul.f32 %v3665, %v3665
        %v3682 = vmul.f32 %v3666, %v3666
        %v3683 = vmul.f32 %v3667, %v3667
        %v3684 = vmul.f32 %v3668, %v3668
        %v3685 = vmul.f32 %v3669, %v3669
        %v3686 = vmul.f32 %v3670, %v3670
        %v3687 = vsub.f32 %v3671, %v3679
        %v3688 = vsub.f32 %v3672, %v3680
        %v3689 = vsub.f32 %v3673, %v3681
        %v3690 = vsub.f32 %v3674, %v3682
        %v3691 = vsub.f32 %v3675, %v3683
        %v3692 = vsub.f32 %v3676, %v3684
        %v3693 = vsub.f32 %v3677, %v3685
        %v3694 = vsub.f32 %v3678, %v3686
        %v3695 = vmax.f32 %v3687, 0.0
        %v3696 = vmax.f32 %v3688, 0.0
        %v3697 = vmax.f32 %v3689, 0.0
        %v3698 = vmax.f32 %v3690, 0.0
        %v3699 = vmax.f32 %v3691, 0.0
        %v3700 = vmax.f32 %v3692, 0.0
        %v3701 = vmax.f32 %v3693, 0.0
        %v3702 = vmax.f32 %v3694, 0.0
        %v3703 = vsub.f32 %v3562, %v3663
        %v3704 = vsub.f32 %v3563, %v3663
        %v3705 = vsub.f32 %v3564, %v3664
        %v3706 = vsub.f32 %v3565, %v3664
        %v3707 = vsub.f32 %v3566, %v3665
        %v3708 = vsub.f32 %v3567, %v3665
        %v3709 = vsub.f32 %v3568, %v3666
        %v3710 = vsub.f32 %v3569, %v3666
        %v3711 = vsub.f32 %v3570, %v3667
        %v3712 = vsub.f32 %v3571, %v3667
        %v3713 = vsub.f32 %v3572, %v3668
        %v3714 = vsub.f32 %v3573, %v3668
        %v3715 = vsub.f32 %v3574, %v3669
        %v3716 = vsub.f32 %v3575, %v3669
        %v3717 = vsub.f32 %v3576, %v3670
        %v3718 = vsub.f32 %v3577, %v3670
        %v3719 = vadd.f32 %v3695, 1e-05
        %v3720 = vadd.f32 %v3696, 1e-05
        %v3721 = vadd.f32 %v3697, 1e-05
        %v3722 = vadd.f32 %v3698, 1e-05
        %v3723 = vadd.f32 %v3699, 1e-05
        %v3724 = vadd.f32 %v3700, 1e-05
        %v3725 = vadd.f32 %v3701, 1e-05
        %v3726 = vadd.f32 %v3702, 1e-05
        %v3727 = vrsqrt.pop %v3719
        %v3728 = vmul.f32 %v3727, %v3719
        %v3729 = vmul.f32 %v3728, %v3727
        %v3730 = vmul.f32 0.5, %v3729
        %v3731 = vsub.f32 1.5, %v3730
        %v3732 = vmul.f32 %v3727, %v3731
        %vm3733 = vweird.f32 %v3719
        %vm3734 = vweird.f32 %v3727
        %vm3735 = vmor %vm3733, %vm3734
        %v3736 = vsel %vm3735, %v3727, %v3732
        %v3737 = vrsqrt.pop %v3720
        %v3738 = vmul.f32 %v3737, %v3720
        %v3739 = vmul.f32 %v3738, %v3737
        %v3740 = vmul.f32 0.5, %v3739
        %v3741 = vsub.f32 1.5, %v3740
        %v3742 = vmul.f32 %v3737, %v3741
        %vm3743 = vweird.f32 %v3720
        %vm3744 = vweird.f32 %v3737
        %vm3745 = vmor %vm3743, %vm3744
        %v3746 = vsel %vm3745, %v3737, %v3742
        %v3747 = vrsqrt.pop %v3721
        %v3748 = vmul.f32 %v3747, %v3721
        %v3749 = vmul.f32 %v3748, %v3747
        %v3750 = vmul.f32 0.5, %v3749
        %v3751 = vsub.f32 1.5, %v3750
        %v3752 = vmul.f32 %v3747, %v3751
        %vm3753 = vweird.f32 %v3721
        %vm3754 = vweird.f32 %v3747
        %vm3755 = vmor %vm3753, %vm3754
        %v3756 = vsel %vm3755, %v3747, %v3752
        %v3757 = vrsqrt.pop %v3722
        %v3758 = vmul.f32 %v3757, %v3722
        %v3759 = vmul.f32 %v3758, %v3757
        %v3760 = vmul.f32 0.5, %v3759
        %v3761 = vsub.f32 1.5, %v3760
        %v3762 = vmul.f32 %v3757, %v3761
        %vm3763 = vweird.f32 %v3722
        %vm3764 = vweird.f32 %v3757
        %vm3765 = vmor %vm3763, %vm3764
        %v3766 = vsel %vm3765, %v3757, %v3762
        %v3767 = vrsqrt.pop %v3723
        %v3768 = vmul.f32 %v3767, %v3723
        %v3769 = vmul.f32 %v3768, %v3767
        %v3770 = vmul.f32 0.5, %v3769
        %v3771 = vsub.f32 1.5, %v3770
        %v3772 = vmul.f32 %v3767, %v3771
        %vm3773 = vweird.f32 %v3723
        %vm3774 = vweird.f32 %v3767
        %vm3775 = vmor %vm3773, %vm3774
        %v3776 = vsel %vm3775, %v3767, %v3772
        %v3777 = vrsqrt.pop %v3724
        %v3778 = vmul.f32 %v3777, %v3724
        %v3779 = vmul.f32 %v3778, %v3777
        %v3780 = vmul.f32 0.5, %v3779
        %v3781 = vsub.f32 1.5, %v3780
        %v3782 = vmul.f32 %v3777, %v3781
        %vm3783 = vweird.f32 %v3724
        %vm3784 = vweird.f32 %v3777
        %vm3785 = vmor %vm3783, %vm3784
        %v3786 = vsel %vm3785, %v3777, %v3782
        %v3787 = vrsqrt.pop %v3725
        %v3788 = vmul.f32 %v3787, %v3725
        %v3789 = vmul.f32 %v3788, %v3787
        %v3790 = vmul.f32 0.5, %v3789
        %v3791 = vsub.f32 1.5, %v3790
        %v3792 = vmul.f32 %v3787, %v3791
        %vm3793 = vweird.f32 %v3725
        %vm3794 = vweird.f32 %v3787
        %vm3795 = vmor %vm3793, %vm3794
        %v3796 = vsel %vm3795, %v3787, %v3792
        %v3797 = vrsqrt.pop %v3726
        %v3798 = vmul.f32 %v3797, %v3726
        %v3799 = vmul.f32 %v3798, %v3797
        %v3800 = vmul.f32 0.5, %v3799
        %v3801 = vsub.f32 1.5, %v3800
        %v3802 = vmul.f32 %v3797, %v3801
        %vm3803 = vweird.f32 %v3726
        %vm3804 = vweird.f32 %v3797
        %vm3805 = vmor %vm3803, %vm3804
        %v3806 = vsel %vm3805, %v3797, %v3802
        %v3807 = vmul.f32 %v3703, %v3736
        %v3808 = vmul.f32 %v3704, %v3736
        %v3809 = vmul.f32 %v3705, %v3746
        %v3810 = vmul.f32 %v3706, %v3746
        %v3811 = vmul.f32 %v3707, %v3756
        %v3812 = vmul.f32 %v3708, %v3756
        %v3813 = vmul.f32 %v3709, %v3766
        %v3814 = vmul.f32 %v3710, %v3766
        %v3815 = vmul.f32 %v3711, %v3776
        %v3816 = vmul.f32 %v3712, %v3776
        %v3817 = vmul.f32 %v3713, %v3786
        %v3818 = vmul.f32 %v3714, %v3786
        %v3819 = vmul.f32 %v3715, %v3796
        %v3820 = vmul.f32 %v3716, %v3796
        %v3821 = vmul.f32 %v3717, %v3806
        %v3822 = vmul.f32 %v3718, %v3806
        %3824 = vset.pattern.permute.xlu0 0
        %3825 = vperm.xlu0 %3824, %v852
        %v3826 = vpop.permute.xlu0 %3825
        %3829 = vset.pattern.permute.xlu0 0
        %3830 = vperm.xlu0 %3829, %v853
        %v3831 = vpop.permute.xlu0 %3830
        %3834 = vset.pattern.permute.xlu0 0
        %3835 = vperm.xlu0 %3834, %v854
        %v3836 = vpop.permute.xlu0 %3835
        %3839 = vset.pattern.permute.xlu0 0
        %3840 = vperm.xlu0 %3839, %v855
        %v3841 = vpop.permute.xlu0 %3840
        %3844 = vset.pattern.permute.xlu0 0
        %3845 = vperm.xlu0 %3844, %v856
        %v3846 = vpop.permute.xlu0 %3845
        %3849 = vset.pattern.permute.xlu0 0
        %3850 = vperm.xlu0 %3849, %v857
        %v3851 = vpop.permute.xlu0 %3850
        %3854 = vset.pattern.permute.xlu0 0
        %3855 = vperm.xlu0 %3854, %v858
        %v3856 = vpop.permute.xlu0 %3855
        %3859 = vset.pattern.permute.xlu0 0
        %3860 = vperm.xlu0 %3859, %v859
        %v3861 = vpop.permute.xlu0 %3860
        %v3863 = vmul.f32 %v3807, %v3826
        %v3864 = vmul.f32 %v3808, %v3826
        %v3865 = vmul.f32 %v3809, %v3831
        %v3866 = vmul.f32 %v3810, %v3831
        %v3867 = vmul.f32 %v3811, %v3836
        %v3868 = vmul.f32 %v3812, %v3836
        %v3869 = vmul.f32 %v3813, %v3841
        %v3870 = vmul.f32 %v3814, %v3841
        %v3871 = vmul.f32 %v3815, %v3846
        %v3872 = vmul.f32 %v3816, %v3846
        %v3873 = vmul.f32 %v3817, %v3851
        %v3874 = vmul.f32 %v3818, %v3851
        %v3875 = vmul.f32 %v3819, %v3856
        %v3876 = vmul.f32 %v3820, %v3856
        %v3877 = vmul.f32 %v3821, %v3861
        %v3878 = vmul.f32 %v3822, %v3861
        %3880 = vset.pattern.permute.xlu0 0
        %3881 = vperm.xlu0 %3880, %v860
        %v3882 = vpop.permute.xlu0 %3881
        %3885 = vset.pattern.permute.xlu0 0
        %3886 = vperm.xlu0 %3885, %v861
        %v3887 = vpop.permute.xlu0 %3886
        %3890 = vset.pattern.permute.xlu0 0
        %3891 = vperm.xlu0 %3890, %v862
        %v3892 = vpop.permute.xlu0 %3891
        %3895 = vset.pattern.permute.xlu0 0
        %3896 = vperm.xlu0 %3895, %v863
        %v3897 = vpop.permute.xlu0 %3896
        %3900 = vset.pattern.permute.xlu0 0
        %3901 = vperm.xlu0 %3900, %v864
        %v3902 = vpop.permute.xlu0 %3901
        %3905 = vset.pattern.permute.xlu0 0
        %3906 = vperm.xlu0 %3905, %v865
        %v3907 = vpop.permute.xlu0 %3906
        %3910 = vset.pattern.permute.xlu0 0
        %3911 = vperm.xlu0 %3910, %v866
        %v3912 = vpop.permute.xlu0 %3911
        %3915 = vset.pattern.permute.xlu0 0
        %3916 = vperm.xlu0 %3915, %v867
        %v3917 = vpop.permute.xlu0 %3916
        %v3919 = vadd.f32 %v3863, %v3882
        %v3920 = vadd.f32 %v3864, %v3882
        %v3921 = vadd.f32 %v3865, %v3887
        %v3922 = vadd.f32 %v3866, %v3887
        %v3923 = vadd.f32 %v3867, %v3892
        %v3924 = vadd.f32 %v3868, %v3892
        %v3925 = vadd.f32 %v3869, %v3897
        %v3926 = vadd.f32 %v3870, %v3897
        %v3927 = vadd.f32 %v3871, %v3902
        %v3928 = vadd.f32 %v3872, %v3902
        %v3929 = vadd.f32 %v3873, %v3907
        %v3930 = vadd.f32 %v3874, %v3907
        %v3931 = vadd.f32 %v3875, %v3912
        %v3932 = vadd.f32 %v3876, %v3912
        %v3933 = vadd.f32 %v3877, %v3917
        %v3934 = vadd.f32 %v3878, %v3917
        %v3935 = vmax.f32 %v3919, 0.0
        %v3936 = vmax.f32 %v3920, 0.0
        %v3937 = vmax.f32 %v3921, 0.0
        %v3938 = vmax.f32 %v3922, 0.0
        %v3939 = vmax.f32 %v3923, 0.0
        %v3940 = vmax.f32 %v3924, 0.0
        %v3941 = vmax.f32 %v3925, 0.0
        %v3942 = vmax.f32 %v3926, 0.0
        %v3943 = vmax.f32 %v3927, 0.0
        %v3944 = vmax.f32 %v3928, 0.0
        %v3945 = vmax.f32 %v3929, 0.0
        %v3946 = vmax.f32 %v3930, 0.0
        %v3947 = vmax.f32 %v3931, 0.0
        %v3948 = vmax.f32 %v3932, 0.0
        %v3949 = vmax.f32 %v3933, 0.0
        %v3950 = vmax.f32 %v3934, 0.0
        %v3951 = vpack.c.bf16 %v3937, %v3935
        %v3952 = vpack.c.bf16 %v3938, %v3936
        %v3953 = vpack.c.bf16 %v3941, %v3939
        %v3954 = vpack.c.bf16 %v3942, %v3940
        %v3955 = vpack.c.bf16 %v3945, %v3943
        %v3956 = vpack.c.bf16 %v3946, %v3944
        %v3957 = vpack.c.bf16 %v3949, %v3947
        %v3958 = vpack.c.bf16 %v3950, %v3948
        %3960 = vset.pattern.permute.xlu0 0
        %3961 = vperm.xlu0 %3960, %v872
        %v3962 = vpop.permute.xlu0 %3961
        %3965 = vset.pattern.permute.xlu0 0
        %3966 = vperm.xlu0 %3965, %v873
        %v3967 = vpop.permute.xlu0 %3966
        %3970 = vset.pattern.permute.xlu0 0
        %3971 = vperm.xlu0 %3970, %v874
        %v3972 = vpop.permute.xlu0 %3971
        %3975 = vset.pattern.permute.xlu0 0
        %3976 = vperm.xlu0 %3975, %v875
        %v3977 = vpop.permute.xlu0 %3976
        %v3983 = vunpack.c.l.b16 %v868
        %v3984 = vunpack.c.l.b16 %v869
        %v3985 = vunpack.c.l.b16 %v870
        %v3986 = vunpack.c.l.b16 %v871
        %v3987 = vpack.c.b16 %v3984, %v3983
        %v3988 = vpack.c.b16 %v3986, %v3985
        %vm3989 = vcmask 523264
        %v3991 = vsel %vm3989, %v3987, 0
        %v3994 = vsel %vm3989, %v3988, 0
        %3996 = vmatpush.bf16.msra.mxu0 0
        %3997 = vmatpush.bf16.msra.mxu0 0
        %3998 = vmatpush.bf16.msra.mxu0 0
        %3999 = vmatpush.bf16.msra.mxu0 0
        %4000 = vmatpush.bf16.msra.mxu0 %v3957
        %4001 = vmatpush.bf16.msra.mxu0 %v3955
        %4002 = vmatpush.bf16.msra.mxu0 %v3953
        %4003 = vmatpush.bf16.msra.mxu0 %v3951
        %4004 = vmatmul.bf16.gmra.mxu0 %v3991
        %v4005 = vpop.f32.mrf.mxu0
        %v4006 = vadd.f32 %v3962, %v4005
        %v4007 = vpop.f32.mrf.mxu0
        %v4008 = vadd.f32 %v3967, %v4007
        %4009 = vmatmul.bf16.gmra.mxu0 %v3994
        %v4010 = vpop.f32.mrf.mxu0
        %v4011 = vadd.f32 %v3972, %v4010
        %v4012 = vpop.f32.mrf.mxu0
        %v4013 = vadd.f32 %v3977, %v4012
        %4014 = vdwg.mxu0
        %4015 = vmatpush.bf16.msra.mxu0 0
        %4016 = vmatpush.bf16.msra.mxu0 0
        %4017 = vmatpush.bf16.msra.mxu0 0
        %4018 = vmatpush.bf16.msra.mxu0 0
        %4019 = vmatpush.bf16.msra.mxu0 %v3958
        %4020 = vmatpush.bf16.msra.mxu0 %v3956
        %4021 = vmatpush.bf16.msra.mxu0 %v3954
        %4022 = vmatpush.bf16.msra.mxu0 %v3952
        %4023 = vmatmul.bf16.gmra.mxu0 %v3991
        %v4024 = vpop.f32.mrf.mxu0
        %v4025 = vadd.f32 %v3962, %v4024
        %v4026 = vpop.f32.mrf.mxu0
        %v4027 = vadd.f32 %v3967, %v4026
        %4028 = vmatmul.bf16.gmra.mxu0 %v3994
        %v4029 = vpop.f32.mrf.mxu0
        %v4030 = vadd.f32 %v3972, %v4029
        %v4031 = vpop.f32.mrf.mxu0
        %v4032 = vadd.f32 %v3977, %v4031
        %4033 = vdwg.mxu0
        %v4034 = vsel %vm897, %v878, %v887
        %v4035 = vsel %vm897, %v879, %v888
        %v4036 = vsel %vm897, %v880, %v889
        %v4037 = vsel %vm897, %v881, %v890
        %v4038 = vsel %vm897, %v882, %v891
        %v4039 = vsel %vm897, %v883, %v892
        %v4040 = vsel %vm897, %v884, %v893
        %v4041 = vsel %vm897, %v885, %v894
        %v4042 = vpack.c.bf16 %v889, %v887
        %v4043 = vpack.c.bf16 %v890, %v888
        %v4044 = vpack.c.bf16 %v893, %v891
        %v4045 = vpack.c.bf16 %v894, %v892
        %v4046 = vpack.c.bf16 %v4036, %v4034
        %v4047 = vpack.c.bf16 %v4037, %v4035
        %v4048 = vpack.c.bf16 %v4040, %v4038
        %v4049 = vpack.c.bf16 %v4041, %v4039
        %4050 = vmatpush.bf16.msra.mxu0 0
        %4051 = vmatpush.bf16.msra.mxu0 0
        %4052 = vmatpush.bf16.msra.mxu0 0
        %4053 = vmatpush.bf16.msra.mxu0 0
        %4054 = vmatpush.bf16.msra.mxu0 0
        %4055 = vmatpush.bf16.msra.mxu0 0
        %4056 = vmatpush.bf16.msra.mxu0 %v4044
        %4057 = vmatpush.bf16.msra.mxu0 %v4042
        %4058 = vmatmul.bf16.gmra.mxu0 %v946
        %v4059 = vpop.f32.mrf.mxu0
        %v4060 = vadd.f32 %v917, %v4059
        %v4061 = vpop.f32.mrf.mxu0
        %v4062 = vadd.f32 %v922, %v4061
        %4063 = vmatmul.bf16.gmra.mxu0 %v949
        %v4064 = vpop.f32.mrf.mxu0
        %v4065 = vadd.f32 %v927, %v4064
        %v4066 = vpop.f32.mrf.mxu0
        %v4067 = vadd.f32 %v932, %v4066
        %4068 = vdwg.mxu0
        %4069 = vmatpush.bf16.msra.mxu0 0
        %4070 = vmatpush.bf16.msra.mxu0 0
        %4071 = vmatpush.bf16.msra.mxu0 0
        %4072 = vmatpush.bf16.msra.mxu0 0
        %4073 = vmatpush.bf16.msra.mxu0 0
        %4074 = vmatpush.bf16.msra.mxu0 0
        %4075 = vmatpush.bf16.msra.mxu0 %v4045
        %4076 = vmatpush.bf16.msra.mxu0 %v4043
        %4077 = vmatmul.bf16.gmra.mxu0 %v946
        %v4078 = vpop.f32.mrf.mxu0
        %v4079 = vadd.f32 %v917, %v4078
        %v4080 = vpop.f32.mrf.mxu0
        %v4081 = vadd.f32 %v922, %v4080
        %4082 = vmatmul.bf16.gmra.mxu0 %v949
        %v4083 = vpop.f32.mrf.mxu0
        %v4084 = vadd.f32 %v927, %v4083
        %v4085 = vpop.f32.mrf.mxu0
        %v4086 = vadd.f32 %v932, %v4085
        %4087 = vdwg.mxu0
        %4088 = vmatpush.bf16.msra.mxu0 0
        %4089 = vmatpush.bf16.msra.mxu0 0
        %4090 = vmatpush.bf16.msra.mxu0 0
        %4091 = vmatpush.bf16.msra.mxu0 0
        %4092 = vmatpush.bf16.msra.mxu0 0
        %4093 = vmatpush.bf16.msra.mxu0 0
        %4094 = vmatpush.bf16.msra.mxu0 %v4048
        %4095 = vmatpush.bf16.msra.mxu0 %v4046
        %4096 = vmatmul.bf16.gmra.mxu0 %v1050
        %v4097 = vpop.f32.mrf.mxu0
        %v4098 = vadd.f32 %v992, %v4097
        %v4099 = vpop.f32.mrf.mxu0
        %v4100 = vadd.f32 %v997, %v4099
        %4101 = vmatmul.bf16.gmra.mxu0 %v1053
        %v4102 = vpop.f32.mrf.mxu0
        %v4103 = vadd.f32 %v1002, %v4102
        %v4104 = vpop.f32.mrf.mxu0
        %v4105 = vadd.f32 %v1007, %v4104
        %4106 = vmatmul.bf16.gmra.mxu0 %v1056
        %v4107 = vpop.f32.mrf.mxu0
        %v4108 = vadd.f32 %v1012, %v4107
        %v4109 = vpop.f32.mrf.mxu0
        %v4110 = vadd.f32 %v1017, %v4109
        %4111 = vmatmul.bf16.gmra.mxu0 %v1059
        %v4112 = vpop.f32.mrf.mxu0
        %v4113 = vadd.f32 %v1022, %v4112
        %v4114 = vpop.f32.mrf.mxu0
        %v4115 = vadd.f32 %v1027, %v4114
        %4116 = vdwg.mxu0
        %4117 = vmatpush.bf16.msra.mxu0 0
        %4118 = vmatpush.bf16.msra.mxu0 0
        %4119 = vmatpush.bf16.msra.mxu0 0
        %4120 = vmatpush.bf16.msra.mxu0 0
        %4121 = vmatpush.bf16.msra.mxu0 0
        %4122 = vmatpush.bf16.msra.mxu0 0
        %4123 = vmatpush.bf16.msra.mxu0 %v4049
        %4124 = vmatpush.bf16.msra.mxu0 %v4047
        %4125 = vmatmul.bf16.gmra.mxu0 %v1050
        %v4126 = vpop.f32.mrf.mxu0
        %v4127 = vadd.f32 %v992, %v4126
        %v4128 = vpop.f32.mrf.mxu0
        %v4129 = vadd.f32 %v997, %v4128
        %4130 = vmatmul.bf16.gmra.mxu0 %v1053
        %v4131 = vpop.f32.mrf.mxu0
        %v4132 = vadd.f32 %v1002, %v4131
        %v4133 = vpop.f32.mrf.mxu0
        %v4134 = vadd.f32 %v1007, %v4133
        %4135 = vmatmul.bf16.gmra.mxu0 %v1056
        %v4136 = vpop.f32.mrf.mxu0
        %v4137 = vadd.f32 %v1012, %v4136
        %v4138 = vpop.f32.mrf.mxu0
        %v4139 = vadd.f32 %v1017, %v4138
        %4140 = vmatmul.bf16.gmra.mxu0 %v1059
        %v4141 = vpop.f32.mrf.mxu0
        %v4142 = vadd.f32 %v1022, %v4141
        %v4143 = vpop.f32.mrf.mxu0
        %v4144 = vadd.f32 %v1027, %v4143
        %4145 = vdwg.mxu0
        %v4146 = vmul.f32 %v4060, 0.35355338
        %v4147 = vmul.f32 %v4079, 0.35355338
        %v4148 = vmul.f32 %v4062, 0.35355338
        %v4149 = vmul.f32 %v4081, 0.35355338
        %v4150 = vmul.f32 %v4065, 0.35355338
        %v4151 = vmul.f32 %v4084, 0.35355338
        %v4152 = vmul.f32 %v4067, 0.35355338
        %v4153 = vmul.f32 %v4086, 0.35355338
        %v4154 = vpack.c.bf16 %v4147, %v4146
        %v4155 = vpack.c.bf16 %v4149, %v4148
        %v4156 = vpack.c.bf16 %v4151, %v4150
        %v4157 = vpack.c.bf16 %v4153, %v4152
        %v4158 = vpack.c.bf16 %v4127, %v4098
        %v4159 = vpack.c.bf16 %v4129, %v4100
        %v4160 = vpack.c.bf16 %v4132, %v4103
        %v4161 = vpack.c.bf16 %v4134, %v4105
        %v4162 = vpack.c.bf16 %v4137, %v4108
        %v4163 = vpack.c.bf16 %v4139, %v4110
        %v4164 = vpack.c.bf16 %v4142, %v4113
        %v4165 = vpack.c.bf16 %v4144, %v4115
        %4166 = vxpose.xlu0.c.b16.start [1/8] %v4154, 128
        %4167 = vxpose.xlu0.c.b16.cont [2/8] 0, 128
        %4168 = vxpose.xlu0.c.b16.cont [3/8] 0, 128
        %4169 = vxpose.xlu0.c.b16.cont [4/8] 0, 128
        %4170 = vxpose.xlu0.c.b16.cont [5/8] 0, 128
        %4171 = vxpose.xlu0.c.b16.cont [6/8] 0, 128
        %4172 = vxpose.xlu0.c.b16.cont [7/8] 0, 128
        %4173 = vxpose.xlu0.c.b16.end [8/8] 0, 128
        %v4174 = vpop.trf.xlu0
        %v4175 = vpop.trf.xlu0
        %v4176 = vpop.trf.xlu0
        %v4177 = vpop.trf.xlu0
        %v4178 = vpop.trf.xlu0
        %v4179 = vpop.trf.xlu0
        %v4180 = vpop.trf.xlu0
        %v4181 = vpop.trf.xlu0
        %v4183 = vsel %vm1158, %v4174, 0
        %v4186 = vsel %vm1158, %v4175, 0
        %v4189 = vsel %vm1158, %v4176, 0
        %v4192 = vsel %vm1158, %v4177, 0
        %v4195 = vsel %vm1158, %v4178, 0
        %v4198 = vsel %vm1158, %v4179, 0
        %v4201 = vsel %vm1158, %v4180, 0
        %v4204 = vsel %vm1158, %v4181, 0
        %v4207 = vsel %vm1183, %v4158, 0
        %4209 = vmatpush.bf16.msra.mxu0 0
        %4210 = vmatpush.bf16.msra.mxu0 0
        %4211 = vmatpush.bf16.msra.mxu0 0
        %4212 = vmatpush.bf16.msra.mxu0 0
        %4213 = vmatpush.bf16.msra.mxu0 0
        %4214 = vmatpush.bf16.msra.mxu0 0
        %4215 = vmatpush.bf16.msra.mxu0 0
        %4216 = vmatpush.bf16.msra.mxu0 %v4207
        %4217 = vmatmul.bf16.gmra.mxu0 %v4183
        %v4218 = vpop.f32.mrf.mxu0
        %v4219 = vadd.f32 %v1140, %v4218
        %v4220 = vpop.f32.mrf.mxu0
        %v4221 = vadd.f32 %v1140, %v4220
        %4222 = vmatmul.bf16.gmra.mxu0 %v4186
        %v4223 = vpop.f32.mrf.mxu0
        %v4224 = vadd.f32 %v1140, %v4223
        %v4225 = vpop.f32.mrf.mxu0
        %v4226 = vadd.f32 %v1140, %v4225
        %4227 = vmatmul.bf16.gmra.mxu0 %v4189
        %v4228 = vpop.f32.mrf.mxu0
        %v4229 = vadd.f32 %v1140, %v4228
        %v4230 = vpop.f32.mrf.mxu0
        %v4231 = vadd.f32 %v1140, %v4230
        %4232 = vmatmul.bf16.gmra.mxu0 %v4192
        %v4233 = vpop.f32.mrf.mxu0
        %v4234 = vadd.f32 %v1140, %v4233
        %v4235 = vpop.f32.mrf.mxu0
        %v4236 = vadd.f32 %v1140, %v4235
        %4237 = vmatmul.bf16.gmra.mxu0 %v4195
        %v4238 = vpop.f32.mrf.mxu0
        %v4239 = vadd.f32 %v1140, %v4238
        %v4240 = vpop.f32.mrf.mxu0
        %v4241 = vadd.f32 %v1140, %v4240
        %4242 = vmatmul.bf16.gmra.mxu0 %v4198
        %v4243 = vpop.f32.mrf.mxu0
        %v4244 = vadd.f32 %v1140, %v4243
        %v4245 = vpop.f32.mrf.mxu0
        %v4246 = vadd.f32 %v1140, %v4245
        %4247 = vmatmul.bf16.gmra.mxu0 %v4201
        %v4248 = vpop.f32.mrf.mxu0
        %v4249 = vadd.f32 %v1140, %v4248
        %v4250 = vpop.f32.mrf.mxu0
        %v4251 = vadd.f32 %v1140, %v4250
        %4252 = vmatmul.bf16.gmra.mxu0 %v4204
        %v4253 = vpop.f32.mrf.mxu0
        %v4254 = vadd.f32 %v1140, %v4253
        %v4255 = vpop.f32.mrf.mxu0
        %v4256 = vadd.f32 %v1140, %v4255
        %4257 = vdwg.mxu0
        %4258 = vmax.xlane.f32.xlu0 %v4219
        %v4259 = vpop.xlane.xlu0 %4258
        %4260 = vmax.xlane.f32.xlu0 %v4221
        %v4261 = vpop.xlane.xlu0 %4260
        %4262 = vmax.xlane.f32.xlu0 %v4224
        %v4263 = vpop.xlane.xlu0 %4262
        %4264 = vmax.xlane.f32.xlu0 %v4226
        %v4265 = vpop.xlane.xlu0 %4264
        %4266 = vmax.xlane.f32.xlu0 %v4229
        %v4267 = vpop.xlane.xlu0 %4266
        %4268 = vmax.xlane.f32.xlu0 %v4231
        %v4269 = vpop.xlane.xlu0 %4268
        %4270 = vmax.xlane.f32.xlu0 %v4234
        %v4271 = vpop.xlane.xlu0 %4270
        %4272 = vmax.xlane.f32.xlu0 %v4236
        %v4273 = vpop.xlane.xlu0 %4272
        %4274 = vmax.xlane.f32.xlu0 %v4239
        %v4275 = vpop.xlane.xlu0 %4274
        %4276 = vmax.xlane.f32.xlu0 %v4241
        %v4277 = vpop.xlane.xlu0 %4276
        %4278 = vmax.xlane.f32.xlu0 %v4244
        %v4279 = vpop.xlane.xlu0 %4278
        %4280 = vmax.xlane.f32.xlu0 %v4246
        %v4281 = vpop.xlane.xlu0 %4280
        %4282 = vmax.xlane.f32.xlu0 %v4249
        %v4283 = vpop.xlane.xlu0 %4282
        %4284 = vmax.xlane.f32.xlu0 %v4251
        %v4285 = vpop.xlane.xlu0 %4284
        %4286 = vmax.xlane.f32.xlu0 %v4254
        %v4287 = vpop.xlane.xlu0 %4286
        %4288 = vmax.xlane.f32.xlu0 %v4256
        %v4289 = vpop.xlane.xlu0 %4288
        %v4290 = vsub.f32 %v4219, %v4259
        %v4291 = vsub.f32 %v4221, %v4261
        %v4292 = vsub.f32 %v4224, %v4263
        %v4293 = vsub.f32 %v4226, %v4265
        %v4294 = vsub.f32 %v4229, %v4267
        %v4295 = vsub.f32 %v4231, %v4269
        %v4296 = vsub.f32 %v4234, %v4271
        %v4297 = vsub.f32 %v4236, %v4273
        %v4298 = vsub.f32 %v4239, %v4275
        %v4299 = vsub.f32 %v4241, %v4277
        %v4300 = vsub.f32 %v4244, %v4279
        %v4301 = vsub.f32 %v4246, %v4281
        %v4302 = vsub.f32 %v4249, %v4283
        %v4303 = vsub.f32 %v4251, %v4285
        %v4304 = vsub.f32 %v4254, %v4287
        %v4305 = vsub.f32 %v4256, %v4289
        %v4306 = vmul.f32 %v4290, 1.442695
        %v4307 = vpow.pop %v4306
        %v4308 = vmul.f32 %v4291, 1.442695
        %v4309 = vpow.pop %v4308
        %v4310 = vmul.f32 %v4292, 1.442695
        %v4311 = vpow.pop %v4310
        %v4312 = vmul.f32 %v4293, 1.442695
        %v4313 = vpow.pop %v4312
        %v4314 = vmul.f32 %v4294, 1.442695
        %v4315 = vpow.pop %v4314
        %v4316 = vmul.f32 %v4295, 1.442695
        %v4317 = vpow.pop %v4316
        %v4318 = vmul.f32 %v4296, 1.442695
        %v4319 = vpow.pop %v4318
        %v4320 = vmul.f32 %v4297, 1.442695
        %v4321 = vpow.pop %v4320
        %v4322 = vmul.f32 %v4298, 1.442695
        %v4323 = vpow.pop %v4322
        %v4324 = vmul.f32 %v4299, 1.442695
        %v4325 = vpow.pop %v4324
        %v4326 = vmul.f32 %v4300, 1.442695
        %v4327 = vpow.pop %v4326
        %v4328 = vmul.f32 %v4301, 1.442695
        %v4329 = vpow.pop %v4328
        %v4330 = vmul.f32 %v4302, 1.442695
        %v4331 = vpow.pop %v4330
        %v4332 = vmul.f32 %v4303, 1.442695
        %v4333 = vpow.pop %v4332
        %v4334 = vmul.f32 %v4304, 1.442695
        %v4335 = vpow.pop %v4334
        %v4336 = vmul.f32 %v4305, 1.442695
        %v4337 = vpow.pop %v4336
        %4338 = vadd.xlane.f32.xlu0 %v4307
        %v4339 = vpop.xlane.xlu0 %4338
        %4340 = vadd.xlane.f32.xlu0 %v4309
        %v4341 = vpop.xlane.xlu0 %4340
        %4342 = vadd.xlane.f32.xlu0 %v4311
        %v4343 = vpop.xlane.xlu0 %4342
        %4344 = vadd.xlane.f32.xlu0 %v4313
        %v4345 = vpop.xlane.xlu0 %4344
        %4346 = vadd.xlane.f32.xlu0 %v4315
        %v4347 = vpop.xlane.xlu0 %4346
        %4348 = vadd.xlane.f32.xlu0 %v4317
        %v4349 = vpop.xlane.xlu0 %4348
        %4350 = vadd.xlane.f32.xlu0 %v4319
        %v4351 = vpop.xlane.xlu0 %4350
        %4352 = vadd.xlane.f32.xlu0 %v4321
        %v4353 = vpop.xlane.xlu0 %4352
        %4354 = vadd.xlane.f32.xlu0 %v4323
        %v4355 = vpop.xlane.xlu0 %4354
        %4356 = vadd.xlane.f32.xlu0 %v4325
        %v4357 = vpop.xlane.xlu0 %4356
        %4358 = vadd.xlane.f32.xlu0 %v4327
        %v4359 = vpop.xlane.xlu0 %4358
        %4360 = vadd.xlane.f32.xlu0 %v4329
        %v4361 = vpop.xlane.xlu0 %4360
        %4362 = vadd.xlane.f32.xlu0 %v4331
        %v4363 = vpop.xlane.xlu0 %4362
        %4364 = vadd.xlane.f32.xlu0 %v4333
        %v4365 = vpop.xlane.xlu0 %4364
        %4366 = vadd.xlane.f32.xlu0 %v4335
        %v4367 = vpop.xlane.xlu0 %4366
        %4368 = vadd.xlane.f32.xlu0 %v4337
        %v4369 = vpop.xlane.xlu0 %4368
        %v4370 = vrcp.pop %v4339
        %v4371 = vrcp.pop %v4341
        %v4372 = vrcp.pop %v4343
        %v4373 = vrcp.pop %v4345
        %v4374 = vrcp.pop %v4347
        %v4375 = vrcp.pop %v4349
        %v4376 = vrcp.pop %v4351
        %v4377 = vrcp.pop %v4353
        %v4378 = vrcp.pop %v4355
        %v4379 = vrcp.pop %v4357
        %v4380 = vrcp.pop %v4359
        %v4381 = vrcp.pop %v4361
        %v4382 = vrcp.pop %v4363
        %v4383 = vrcp.pop %v4365
        %v4384 = vrcp.pop %v4367
        %v4385 = vrcp.pop %v4369
        %v4386 = vmul.f32 %v4307, %v4370
        %v4387 = vmul.f32 %v4309, %v4371
        %v4388 = vmul.f32 %v4311, %v4372
        %v4389 = vmul.f32 %v4313, %v4373
        %v4390 = vmul.f32 %v4315, %v4374
        %v4391 = vmul.f32 %v4317, %v4375
        %v4392 = vmul.f32 %v4319, %v4376
        %v4393 = vmul.f32 %v4321, %v4377
        %v4394 = vmul.f32 %v4323, %v4378
        %v4395 = vmul.f32 %v4325, %v4379
        %v4396 = vmul.f32 %v4327, %v4380
        %v4397 = vmul.f32 %v4329, %v4381
        %v4398 = vmul.f32 %v4331, %v4382
        %v4399 = vmul.f32 %v4333, %v4383
        %v4400 = vmul.f32 %v4335, %v4384
        %v4401 = vmul.f32 %v4337, %v4385
        %v4402 = vpack.c.bf16 %v4387, %v4386
        %v4403 = vpack.c.bf16 %v4389, %v4388
        %v4404 = vpack.c.bf16 %v4391, %v4390
        %v4405 = vpack.c.bf16 %v4393, %v4392
        %v4406 = vpack.c.bf16 %v4395, %v4394
        %v4407 = vpack.c.bf16 %v4397, %v4396
        %v4408 = vpack.c.bf16 %v4399, %v4398
        %v4409 = vpack.c.bf16 %v4401, %v4400
        %4410 = vmatpush.bf16.xpose.msra.mxu0 %v4409
        %4411 = vmatpush.bf16.xpose.msra.mxu0 %v4408
        %4412 = vmatpush.bf16.xpose.msra.mxu0 %v4407
        %4413 = vmatpush.bf16.xpose.msra.mxu0 %v4406
        %4414 = vmatpush.bf16.xpose.msra.mxu0 %v4405
        %4415 = vmatpush.bf16.xpose.msra.mxu0 %v4404
        %4416 = vmatpush.bf16.xpose.msra.mxu0 %v4403
        %4417 = vmatpush.bf16.xpose.msra.mxu0 %v4402
        %4418 = vmatmul.bf16.gmra.mxu0 %v4162
        %v4419 = vpop.f32.mrf.mxu0
        %v4420 = vadd.f32 0.0, %v4419
        %v4421 = vpop.f32.mrf.mxu0
        %4422 = vdwg.mxu0
        %4423 = vst [vmem:[#allocation3] sm:$0xff] %v4420
        %4424 = vxpose.xlu0.c.b16.start [1/8] %v4155, 128
        %4425 = vxpose.xlu0.c.b16.cont [2/8] 0, 128
        %4426 = vxpose.xlu0.c.b16.cont [3/8] 0, 128
        %4427 = vxpose.xlu0.c.b16.cont [4/8] 0, 128
        %4428 = vxpose.xlu0.c.b16.cont [5/8] 0, 128
        %4429 = vxpose.xlu0.c.b16.cont [6/8] 0, 128
        %4430 = vxpose.xlu0.c.b16.cont [7/8] 0, 128
        %4431 = vxpose.xlu0.c.b16.end [8/8] 0, 128
        %v4432 = vpop.trf.xlu0
        %v4433 = vpop.trf.xlu0
        %v4434 = vpop.trf.xlu0
        %v4435 = vpop.trf.xlu0
        %v4436 = vpop.trf.xlu0
        %v4437 = vpop.trf.xlu0
        %v4438 = vpop.trf.xlu0
        %v4439 = vpop.trf.xlu0
        %v4441 = vsel %vm1158, %v4432, 0
        %v4444 = vsel %vm1158, %v4433, 0
        %v4447 = vsel %vm1158, %v4434, 0
        %v4450 = vsel %vm1158, %v4435, 0
        %v4453 = vsel %vm1158, %v4436, 0
        %v4456 = vsel %vm1158, %v4437, 0
        %v4459 = vsel %vm1158, %v4438, 0
        %v4462 = vsel %vm1158, %v4439, 0
        %v4465 = vsel %vm1183, %v4159, 0
        %4467 = vmatpush.bf16.msra.mxu0 0
        %4468 = vmatpush.bf16.msra.mxu0 0
        %4469 = vmatpush.bf16.msra.mxu0 0
        %4470 = vmatpush.bf16.msra.mxu0 0
        %4471 = vmatpush.bf16.msra.mxu0 0
        %4472 = vmatpush.bf16.msra.mxu0 0
        %4473 = vmatpush.bf16.msra.mxu0 0
        %4474 = vmatpush.bf16.msra.mxu0 %v4465
        %4475 = vmatmul.bf16.gmra.mxu0 %v4441
        %v4476 = vpop.f32.mrf.mxu0
        %v4477 = vadd.f32 %v1140, %v4476
        %v4478 = vpop.f32.mrf.mxu0
        %v4479 = vadd.f32 %v1140, %v4478
        %4480 = vmatmul.bf16.gmra.mxu0 %v4444
        %v4481 = vpop.f32.mrf.mxu0
        %v4482 = vadd.f32 %v1140, %v4481
        %v4483 = vpop.f32.mrf.mxu0
        %v4484 = vadd.f32 %v1140, %v4483
        %4485 = vmatmul.bf16.gmra.mxu0 %v4447
        %v4486 = vpop.f32.mrf.mxu0
        %v4487 = vadd.f32 %v1140, %v4486
        %v4488 = vpop.f32.mrf.mxu0
        %v4489 = vadd.f32 %v1140, %v4488
        %4490 = vmatmul.bf16.gmra.mxu0 %v4450
        %v4491 = vpop.f32.mrf.mxu0
        %v4492 = vadd.f32 %v1140, %v4491
        %v4493 = vpop.f32.mrf.mxu0
        %v4494 = vadd.f32 %v1140, %v4493
        %4495 = vmatmul.bf16.gmra.mxu0 %v4453
        %v4496 = vpop.f32.mrf.mxu0
        %v4497 = vadd.f32 %v1140, %v4496
        %v4498 = vpop.f32.mrf.mxu0
        %v4499 = vadd.f32 %v1140, %v4498
        %4500 = vmatmul.bf16.gmra.mxu0 %v4456
        %v4501 = vpop.f32.mrf.mxu0
        %v4502 = vadd.f32 %v1140, %v4501
        %v4503 = vpop.f32.mrf.mxu0
        %v4504 = vadd.f32 %v1140, %v4503
        %4505 = vmatmul.bf16.gmra.mxu0 %v4459
        %v4506 = vpop.f32.mrf.mxu0
        %v4507 = vadd.f32 %v1140, %v4506
        %v4508 = vpop.f32.mrf.mxu0
        %v4509 = vadd.f32 %v1140, %v4508
        %4510 = vmatmul.bf16.gmra.mxu0 %v4462
        %v4511 = vpop.f32.mrf.mxu0
        %v4512 = vadd.f32 %v1140, %v4511
        %v4513 = vpop.f32.mrf.mxu0
        %v4514 = vadd.f32 %v1140, %v4513
        %4515 = vdwg.mxu0
        %4516 = vmax.xlane.f32.xlu0 %v4477
        %v4517 = vpop.xlane.xlu0 %4516
        %4518 = vmax.xlane.f32.xlu0 %v4479
        %v4519 = vpop.xlane.xlu0 %4518
        %4520 = vmax.xlane.f32.xlu0 %v4482
        %v4521 = vpop.xlane.xlu0 %4520
        %4522 = vmax.xlane.f32.xlu0 %v4484
        %v4523 = vpop.xlane.xlu0 %4522
        %4524 = vmax.xlane.f32.xlu0 %v4487
        %v4525 = vpop.xlane.xlu0 %4524
        %4526 = vmax.xlane.f32.xlu0 %v4489
        %v4527 = vpop.xlane.xlu0 %4526
        %4528 = vmax.xlane.f32.xlu0 %v4492
        %v4529 = vpop.xlane.xlu0 %4528
        %4530 = vmax.xlane.f32.xlu0 %v4494
        %v4531 = vpop.xlane.xlu0 %4530
        %4532 = vmax.xlane.f32.xlu0 %v4497
        %v4533 = vpop.xlane.xlu0 %4532
        %4534 = vmax.xlane.f32.xlu0 %v4499
        %v4535 = vpop.xlane.xlu0 %4534
        %4536 = vmax.xlane.f32.xlu0 %v4502
        %v4537 = vpop.xlane.xlu0 %4536
        %4538 = vmax.xlane.f32.xlu0 %v4504
        %v4539 = vpop.xlane.xlu0 %4538
        %4540 = vmax.xlane.f32.xlu0 %v4507
        %v4541 = vpop.xlane.xlu0 %4540
        %4542 = vmax.xlane.f32.xlu0 %v4509
        %v4543 = vpop.xlane.xlu0 %4542
        %4544 = vmax.xlane.f32.xlu0 %v4512
        %v4545 = vpop.xlane.xlu0 %4544
        %4546 = vmax.xlane.f32.xlu0 %v4514
        %v4547 = vpop.xlane.xlu0 %4546
        %v4548 = vsub.f32 %v4477, %v4517
        %v4549 = vsub.f32 %v4479, %v4519
        %v4550 = vsub.f32 %v4482, %v4521
        %v4551 = vsub.f32 %v4484, %v4523
        %v4552 = vsub.f32 %v4487, %v4525
        %v4553 = vsub.f32 %v4489, %v4527
        %v4554 = vsub.f32 %v4492, %v4529
        %v4555 = vsub.f32 %v4494, %v4531
        %v4556 = vsub.f32 %v4497, %v4533
        %v4557 = vsub.f32 %v4499, %v4535
        %v4558 = vsub.f32 %v4502, %v4537
        %v4559 = vsub.f32 %v4504, %v4539
        %v4560 = vsub.f32 %v4507, %v4541
        %v4561 = vsub.f32 %v4509, %v4543
        %v4562 = vsub.f32 %v4512, %v4545
        %v4563 = vsub.f32 %v4514, %v4547
        %v4564 = vmul.f32 %v4548, 1.442695
        %v4565 = vpow.pop %v4564
        %v4566 = vmul.f32 %v4549, 1.442695
        %v4567 = vpow.pop %v4566
        %v4568 = vmul.f32 %v4550, 1.442695
        %v4569 = vpow.pop %v4568
        %v4570 = vmul.f32 %v4551, 1.442695
        %v4571 = vpow.pop %v4570
        %v4572 = vmul.f32 %v4552, 1.442695
        %v4573 = vpow.pop %v4572
        %v4574 = vmul.f32 %v4553, 1.442695
        %v4575 = vpow.pop %v4574
        %v4576 = vmul.f32 %v4554, 1.442695
        %v4577 = vpow.pop %v4576
        %v4578 = vmul.f32 %v4555, 1.442695
        %v4579 = vpow.pop %v4578
        %v4580 = vmul.f32 %v4556, 1.442695
        %v4581 = vpow.pop %v4580
        %v4582 = vmul.f32 %v4557, 1.442695
        %v4583 = vpow.pop %v4582
        %v4584 = vmul.f32 %v4558, 1.442695
        %v4585 = vpow.pop %v4584
        %v4586 = vmul.f32 %v4559, 1.442695
        %v4587 = vpow.pop %v4586
        %v4588 = vmul.f32 %v4560, 1.442695
        %v4589 = vpow.pop %v4588
        %v4590 = vmul.f32 %v4561, 1.442695
        %v4591 = vpow.pop %v4590
        %v4592 = vmul.f32 %v4562, 1.442695
        %v4593 = vpow.pop %v4592
        %v4594 = vmul.f32 %v4563, 1.442695
        %v4595 = vpow.pop %v4594
        %4596 = vadd.xlane.f32.xlu0 %v4565
        %v4597 = vpop.xlane.xlu0 %4596
        %4598 = vadd.xlane.f32.xlu0 %v4567
        %v4599 = vpop.xlane.xlu0 %4598
        %4600 = vadd.xlane.f32.xlu0 %v4569
        %v4601 = vpop.xlane.xlu0 %4600
        %4602 = vadd.xlane.f32.xlu0 %v4571
        %v4603 = vpop.xlane.xlu0 %4602
        %4604 = vadd.xlane.f32.xlu0 %v4573
        %v4605 = vpop.xlane.xlu0 %4604
        %4606 = vadd.xlane.f32.xlu0 %v4575
        %v4607 = vpop.xlane.xlu0 %4606
        %4608 = vadd.xlane.f32.xlu0 %v4577
        %v4609 = vpop.xlane.xlu0 %4608
        %4610 = vadd.xlane.f32.xlu0 %v4579
        %v4611 = vpop.xlane.xlu0 %4610
        %4612 = vadd.xlane.f32.xlu0 %v4581
        %v4613 = vpop.xlane.xlu0 %4612
        %4614 = vadd.xlane.f32.xlu0 %v4583
        %v4615 = vpop.xlane.xlu0 %4614
        %4616 = vadd.xlane.f32.xlu0 %v4585
        %v4617 = vpop.xlane.xlu0 %4616
        %4618 = vadd.xlane.f32.xlu0 %v4587
        %v4619 = vpop.xlane.xlu0 %4618
        %4620 = vadd.xlane.f32.xlu0 %v4589
        %v4621 = vpop.xlane.xlu0 %4620
        %4622 = vadd.xlane.f32.xlu0 %v4591
        %v4623 = vpop.xlane.xlu0 %4622
        %4624 = vadd.xlane.f32.xlu0 %v4593
        %v4625 = vpop.xlane.xlu0 %4624
        %4626 = vadd.xlane.f32.xlu0 %v4595
        %v4627 = vpop.xlane.xlu0 %4626
        %v4628 = vrcp.pop %v4597
        %v4629 = vrcp.pop %v4599
        %v4630 = vrcp.pop %v4601
        %v4631 = vrcp.pop %v4603
        %v4632 = vrcp.pop %v4605
        %v4633 = vrcp.pop %v4607
        %v4634 = vrcp.pop %v4609
        %v4635 = vrcp.pop %v4611
        %v4636 = vrcp.pop %v4613
        %v4637 = vrcp.pop %v4615
        %v4638 = vrcp.pop %v4617
        %v4639 = vrcp.pop %v4619
        %v4640 = vrcp.pop %v4621
        %v4641 = vrcp.pop %v4623
        %v4642 = vrcp.pop %v4625
        %v4643 = vrcp.pop %v4627
        %v4644 = vmul.f32 %v4565, %v4628
        %v4645 = vmul.f32 %v4567, %v4629
        %v4646 = vmul.f32 %v4569, %v4630
        %v4647 = vmul.f32 %v4571, %v4631
        %v4648 = vmul.f32 %v4573, %v4632
        %v4649 = vmul.f32 %v4575, %v4633
        %v4650 = vmul.f32 %v4577, %v4634
        %v4651 = vmul.f32 %v4579, %v4635
        %v4652 = vmul.f32 %v4581, %v4636
        %v4653 = vmul.f32 %v4583, %v4637
        %v4654 = vmul.f32 %v4585, %v4638
        %v4655 = vmul.f32 %v4587, %v4639
        %v4656 = vmul.f32 %v4589, %v4640
        %v4657 = vmul.f32 %v4591, %v4641
        %v4658 = vmul.f32 %v4593, %v4642
        %v4659 = vmul.f32 %v4595, %v4643
        %v4660 = vpack.c.bf16 %v4645, %v4644
        %v4661 = vpack.c.bf16 %v4647, %v4646
        %v4662 = vpack.c.bf16 %v4649, %v4648
        %v4663 = vpack.c.bf16 %v4651, %v4650
        %v4664 = vpack.c.bf16 %v4653, %v4652
        %v4665 = vpack.c.bf16 %v4655, %v4654
        %v4666 = vpack.c.bf16 %v4657, %v4656
        %v4667 = vpack.c.bf16 %v4659, %v4658
        %4668 = vmatpush.bf16.xpose.msra.mxu0 %v4667
        %4669 = vmatpush.bf16.xpose.msra.mxu0 %v4666
        %4670 = vmatpush.bf16.xpose.msra.mxu0 %v4665
        %4671 = vmatpush.bf16.xpose.msra.mxu0 %v4664
        %4672 = vmatpush.bf16.xpose.msra.mxu0 %v4663
        %4673 = vmatpush.bf16.xpose.msra.mxu0 %v4662
        %4674 = vmatpush.bf16.xpose.msra.mxu0 %v4661
        %4675 = vmatpush.bf16.xpose.msra.mxu0 %v4660
        %4676 = vmatmul.bf16.gmra.mxu0 %v4163
        %v4677 = vpop.f32.mrf.mxu0
        %v4678 = vadd.f32 0.0, %v4677
        %v4679 = vpop.f32.mrf.mxu0
        %4680 = vdwg.mxu0
        %4681 = vst [vmem:[#allocation3 + $0x10] sm:$0xff] %v4678
        %4682 = vxpose.xlu0.c.b16.start [1/8] %v4156, 128
        %4683 = vxpose.xlu0.c.b16.cont [2/8] 0, 128
        %4684 = vxpose.xlu0.c.b16.cont [3/8] 0, 128
        %4685 = vxpose.xlu0.c.b16.cont [4/8] 0, 128
        %4686 = vxpose.xlu0.c.b16.cont [5/8] 0, 128
        %4687 = vxpose.xlu0.c.b16.cont [6/8] 0, 128
        %4688 = vxpose.xlu0.c.b16.cont [7/8] 0, 128
        %4689 = vxpose.xlu0.c.b16.end [8/8] 0, 128
        %v4690 = vpop.trf.xlu0
        %v4691 = vpop.trf.xlu0
        %v4692 = vpop.trf.xlu0
        %v4693 = vpop.trf.xlu0
        %v4694 = vpop.trf.xlu0
        %v4695 = vpop.trf.xlu0
        %v4696 = vpop.trf.xlu0
        %v4697 = vpop.trf.xlu0
        %v4699 = vsel %vm1158, %v4690, 0
        %v4702 = vsel %vm1158, %v4691, 0
        %v4705 = vsel %vm1158, %v4692, 0
        %v4708 = vsel %vm1158, %v4693, 0
        %v4711 = vsel %vm1158, %v4694, 0
        %v4714 = vsel %vm1158, %v4695, 0
        %v4717 = vsel %vm1158, %v4696, 0
        %v4720 = vsel %vm1158, %v4697, 0
        %v4723 = vsel %vm1183, %v4160, 0
        %4725 = vmatpush.bf16.msra.mxu0 0
        %4726 = vmatpush.bf16.msra.mxu0 0
        %4727 = vmatpush.bf16.msra.mxu0 0
        %4728 = vmatpush.bf16.msra.mxu0 0
        %4729 = vmatpush.bf16.msra.mxu0 0
        %4730 = vmatpush.bf16.msra.mxu0 0
        %4731 = vmatpush.bf16.msra.mxu0 0
        %4732 = vmatpush.bf16.msra.mxu0 %v4723
        %4733 = vmatmul.bf16.gmra.mxu0 %v4699
        %v4734 = vpop.f32.mrf.mxu0
        %v4735 = vadd.f32 %v1140, %v4734
        %v4736 = vpop.f32.mrf.mxu0
        %v4737 = vadd.f32 %v1140, %v4736
        %4738 = vmatmul.bf16.gmra.mxu0 %v4702
        %v4739 = vpop.f32.mrf.mxu0
        %v4740 = vadd.f32 %v1140, %v4739
        %v4741 = vpop.f32.mrf.mxu0
        %v4742 = vadd.f32 %v1140, %v4741
        %4743 = vmatmul.bf16.gmra.mxu0 %v4705
        %v4744 = vpop.f32.mrf.mxu0
        %v4745 = vadd.f32 %v1140, %v4744
        %v4746 = vpop.f32.mrf.mxu0
        %v4747 = vadd.f32 %v1140, %v4746
        %4748 = vmatmul.bf16.gmra.mxu0 %v4708
        %v4749 = vpop.f32.mrf.mxu0
        %v4750 = vadd.f32 %v1140, %v4749
        %v4751 = vpop.f32.mrf.mxu0
        %v4752 = vadd.f32 %v1140, %v4751
        %4753 = vmatmul.bf16.gmra.mxu0 %v4711
        %v4754 = vpop.f32.mrf.mxu0
        %v4755 = vadd.f32 %v1140, %v4754
        %v4756 = vpop.f32.mrf.mxu0
        %v4757 = vadd.f32 %v1140, %v4756
        %4758 = vmatmul.bf16.gmra.mxu0 %v4714
        %v4759 = vpop.f32.mrf.mxu0
        %v4760 = vadd.f32 %v1140, %v4759
        %v4761 = vpop.f32.mrf.mxu0
        %v4762 = vadd.f32 %v1140, %v4761
        %4763 = vmatmul.bf16.gmra.mxu0 %v4717
        %v4764 = vpop.f32.mrf.mxu0
        %v4765 = vadd.f32 %v1140, %v4764
        %v4766 = vpop.f32.mrf.mxu0
        %v4767 = vadd.f32 %v1140, %v4766
        %4768 = vmatmul.bf16.gmra.mxu0 %v4720
        %v4769 = vpop.f32.mrf.mxu0
        %v4770 = vadd.f32 %v1140, %v4769
        %v4771 = vpop.f32.mrf.mxu0
        %v4772 = vadd.f32 %v1140, %v4771
        %4773 = vdwg.mxu0
        %4774 = vmax.xlane.f32.xlu0 %v4735
        %v4775 = vpop.xlane.xlu0 %4774
        %4776 = vmax.xlane.f32.xlu0 %v4737
        %v4777 = vpop.xlane.xlu0 %4776
        %4778 = vmax.xlane.f32.xlu0 %v4740
        %v4779 = vpop.xlane.xlu0 %4778
        %4780 = vmax.xlane.f32.xlu0 %v4742
        %v4781 = vpop.xlane.xlu0 %4780
        %4782 = vmax.xlane.f32.xlu0 %v4745
        %v4783 = vpop.xlane.xlu0 %4782
        %4784 = vmax.xlane.f32.xlu0 %v4747
        %v4785 = vpop.xlane.xlu0 %4784
        %4786 = vmax.xlane.f32.xlu0 %v4750
        %v4787 = vpop.xlane.xlu0 %4786
        %4788 = vmax.xlane.f32.xlu0 %v4752
        %v4789 = vpop.xlane.xlu0 %4788
        %4790 = vmax.xlane.f32.xlu0 %v4755
        %v4791 = vpop.xlane.xlu0 %4790
        %4792 = vmax.xlane.f32.xlu0 %v4757
        %v4793 = vpop.xlane.xlu0 %4792
        %4794 = vmax.xlane.f32.xlu0 %v4760
        %v4795 = vpop.xlane.xlu0 %4794
        %4796 = vmax.xlane.f32.xlu0 %v4762
        %v4797 = vpop.xlane.xlu0 %4796
        %4798 = vmax.xlane.f32.xlu0 %v4765
        %v4799 = vpop.xlane.xlu0 %4798
        %4800 = vmax.xlane.f32.xlu0 %v4767
        %v4801 = vpop.xlane.xlu0 %4800
        %4802 = vmax.xlane.f32.xlu0 %v4770
        %v4803 = vpop.xlane.xlu0 %4802
        %4804 = vmax.xlane.f32.xlu0 %v4772
        %v4805 = vpop.xlane.xlu0 %4804
        %v4806 = vsub.f32 %v4735, %v4775
        %v4807 = vsub.f32 %v4737, %v4777
        %v4808 = vsub.f32 %v4740, %v4779
        %v4809 = vsub.f32 %v4742, %v4781
        %v4810 = vsub.f32 %v4745, %v4783
        %v4811 = vsub.f32 %v4747, %v4785
        %v4812 = vsub.f32 %v4750, %v4787
        %v4813 = vsub.f32 %v4752, %v4789
        %v4814 = vsub.f32 %v4755, %v4791
        %v4815 = vsub.f32 %v4757, %v4793
        %v4816 = vsub.f32 %v4760, %v4795
        %v4817 = vsub.f32 %v4762, %v4797
        %v4818 = vsub.f32 %v4765, %v4799
        %v4819 = vsub.f32 %v4767, %v4801
        %v4820 = vsub.f32 %v4770, %v4803
        %v4821 = vsub.f32 %v4772, %v4805
        %v4822 = vmul.f32 %v4806, 1.442695
        %v4823 = vpow.pop %v4822
        %v4824 = vmul.f32 %v4807, 1.442695
        %v4825 = vpow.pop %v4824
        %v4826 = vmul.f32 %v4808, 1.442695
        %v4827 = vpow.pop %v4826
        %v4828 = vmul.f32 %v4809, 1.442695
        %v4829 = vpow.pop %v4828
        %v4830 = vmul.f32 %v4810, 1.442695
        %v4831 = vpow.pop %v4830
        %v4832 = vmul.f32 %v4811, 1.442695
        %v4833 = vpow.pop %v4832
        %v4834 = vmul.f32 %v4812, 1.442695
        %v4835 = vpow.pop %v4834
        %v4836 = vmul.f32 %v4813, 1.442695
        %v4837 = vpow.pop %v4836
        %v4838 = vmul.f32 %v4814, 1.442695
        %v4839 = vpow.pop %v4838
        %v4840 = vmul.f32 %v4815, 1.442695
        %v4841 = vpow.pop %v4840
        %v4842 = vmul.f32 %v4816, 1.442695
        %v4843 = vpow.pop %v4842
        %v4844 = vmul.f32 %v4817, 1.442695
        %v4845 = vpow.pop %v4844
        %v4846 = vmul.f32 %v4818, 1.442695
        %v4847 = vpow.pop %v4846
        %v4848 = vmul.f32 %v4819, 1.442695
        %v4849 = vpow.pop %v4848
        %v4850 = vmul.f32 %v4820, 1.442695
        %v4851 = vpow.pop %v4850
        %v4852 = vmul.f32 %v4821, 1.442695
        %v4853 = vpow.pop %v4852
        %4854 = vadd.xlane.f32.xlu0 %v4823
        %v4855 = vpop.xlane.xlu0 %4854
        %4856 = vadd.xlane.f32.xlu0 %v4825
        %v4857 = vpop.xlane.xlu0 %4856
        %4858 = vadd.xlane.f32.xlu0 %v4827
        %v4859 = vpop.xlane.xlu0 %4858
        %4860 = vadd.xlane.f32.xlu0 %v4829
        %v4861 = vpop.xlane.xlu0 %4860
        %4862 = vadd.xlane.f32.xlu0 %v4831
        %v4863 = vpop.xlane.xlu0 %4862
        %4864 = vadd.xlane.f32.xlu0 %v4833
        %v4865 = vpop.xlane.xlu0 %4864
        %4866 = vadd.xlane.f32.xlu0 %v4835
        %v4867 = vpop.xlane.xlu0 %4866
        %4868 = vadd.xlane.f32.xlu0 %v4837
        %v4869 = vpop.xlane.xlu0 %4868
        %4870 = vadd.xlane.f32.xlu0 %v4839
        %v4871 = vpop.xlane.xlu0 %4870
        %4872 = vadd.xlane.f32.xlu0 %v4841
        %v4873 = vpop.xlane.xlu0 %4872
        %4874 = vadd.xlane.f32.xlu0 %v4843
        %v4875 = vpop.xlane.xlu0 %4874
        %4876 = vadd.xlane.f32.xlu0 %v4845
        %v4877 = vpop.xlane.xlu0 %4876
        %4878 = vadd.xlane.f32.xlu0 %v4847
        %v4879 = vpop.xlane.xlu0 %4878
        %4880 = vadd.xlane.f32.xlu0 %v4849
        %v4881 = vpop.xlane.xlu0 %4880
        %4882 = vadd.xlane.f32.xlu0 %v4851
        %v4883 = vpop.xlane.xlu0 %4882
        %4884 = vadd.xlane.f32.xlu0 %v4853
        %v4885 = vpop.xlane.xlu0 %4884
        %v4886 = vrcp.pop %v4855
        %v4887 = vrcp.pop %v4857
        %v4888 = vrcp.pop %v4859
        %v4889 = vrcp.pop %v4861
        %v4890 = vrcp.pop %v4863
        %v4891 = vrcp.pop %v4865
        %v4892 = vrcp.pop %v4867
        %v4893 = vrcp.pop %v4869
        %v4894 = vrcp.pop %v4871
        %v4895 = vrcp.pop %v4873
        %v4896 = vrcp.pop %v4875
        %v4897 = vrcp.pop %v4877
        %v4898 = vrcp.pop %v4879
        %v4899 = vrcp.pop %v4881
        %v4900 = vrcp.pop %v4883
        %v4901 = vrcp.pop %v4885
        %v4902 = vmul.f32 %v4823, %v4886
        %v4903 = vmul.f32 %v4825, %v4887
        %v4904 = vmul.f32 %v4827, %v4888
        %v4905 = vmul.f32 %v4829, %v4889
        %v4906 = vmul.f32 %v4831, %v4890
        %v4907 = vmul.f32 %v4833, %v4891
        %v4908 = vmul.f32 %v4835, %v4892
        %v4909 = vmul.f32 %v4837, %v4893
        %v4910 = vmul.f32 %v4839, %v4894
        %v4911 = vmul.f32 %v4841, %v4895
        %v4912 = vmul.f32 %v4843, %v4896
        %v4913 = vmul.f32 %v4845, %v4897
        %v4914 = vmul.f32 %v4847, %v4898
        %v4915 = vmul.f32 %v4849, %v4899
        %v4916 = vmul.f32 %v4851, %v4900
        %v4917 = vmul.f32 %v4853, %v4901
        %v4918 = vpack.c.bf16 %v4903, %v4902
        %v4919 = vpack.c.bf16 %v4905, %v4904
        %v4920 = vpack.c.bf16 %v4907, %v4906
        %v4921 = vpack.c.bf16 %v4909, %v4908
        %v4922 = vpack.c.bf16 %v4911, %v4910
        %v4923 = vpack.c.bf16 %v4913, %v4912
        %v4924 = vpack.c.bf16 %v4915, %v4914
        %v4925 = vpack.c.bf16 %v4917, %v4916
        %4926 = vmatpush.bf16.xpose.msra.mxu0 %v4925
        %4927 = vmatpush.bf16.xpose.msra.mxu0 %v4924
        %4928 = vmatpush.bf16.xpose.msra.mxu0 %v4923
        %4929 = vmatpush.bf16.xpose.msra.mxu0 %v4922
        %4930 = vmatpush.bf16.xpose.msra.mxu0 %v4921
        %4931 = vmatpush.bf16.xpose.msra.mxu0 %v4920
        %4932 = vmatpush.bf16.xpose.msra.mxu0 %v4919
        %4933 = vmatpush.bf16.xpose.msra.mxu0 %v4918
        %4934 = vmatmul.bf16.gmra.mxu0 %v4164
        %v4935 = vpop.f32.mrf.mxu0
        %v4936 = vadd.f32 0.0, %v4935
        %v4937 = vpop.f32.mrf.mxu0
        %4938 = vdwg.mxu0
        %4939 = vst [vmem:[#allocation3 + $0x20] sm:$0xff] %v4936
        %4940 = vxpose.xlu0.c.b16.start [1/8] %v4157, 128
        %4941 = vxpose.xlu0.c.b16.cont [2/8] 0, 128
        %4942 = vxpose.xlu0.c.b16.cont [3/8] 0, 128
        %4943 = vxpose.xlu0.c.b16.cont [4/8] 0, 128
        %4944 = vxpose.xlu0.c.b16.cont [5/8] 0, 128
        %4945 = vxpose.xlu0.c.b16.cont [6/8] 0, 128
        %4946 = vxpose.xlu0.c.b16.cont [7/8] 0, 128
        %4947 = vxpose.xlu0.c.b16.end [8/8] 0, 128
        %v4948 = vpop.trf.xlu0
        %v4949 = vpop.trf.xlu0
        %v4950 = vpop.trf.xlu0
        %v4951 = vpop.trf.xlu0
        %v4952 = vpop.trf.xlu0
        %v4953 = vpop.trf.xlu0
        %v4954 = vpop.trf.xlu0
        %v4955 = vpop.trf.xlu0
        %v4957 = vsel %vm1158, %v4948, 0
        %v4960 = vsel %vm1158, %v4949, 0
        %v4963 = vsel %vm1158, %v4950, 0
        %v4966 = vsel %vm1158, %v4951, 0
        %v4969 = vsel %vm1158, %v4952, 0
        %v4972 = vsel %vm1158, %v4953, 0
        %v4975 = vsel %vm1158, %v4954, 0
        %v4978 = vsel %vm1158, %v4955, 0
        %v4981 = vsel %vm1183, %v4161, 0
        %4983 = vmatpush.bf16.msra.mxu0 0
        %4984 = vmatpush.bf16.msra.mxu0 0
        %4985 = vmatpush.bf16.msra.mxu0 0
        %4986 = vmatpush.bf16.msra.mxu0 0
        %4987 = vmatpush.bf16.msra.mxu0 0
        %4988 = vmatpush.bf16.msra.mxu0 0
        %4989 = vmatpush.bf16.msra.mxu0 0
        %4990 = vmatpush.bf16.msra.mxu0 %v4981
        %4991 = vmatmul.bf16.gmra.mxu0 %v4957
        %v4992 = vpop.f32.mrf.mxu0
        %v4993 = vadd.f32 %v1140, %v4992
        %v4994 = vpop.f32.mrf.mxu0
        %v4995 = vadd.f32 %v1140, %v4994
        %4996 = vmatmul.bf16.gmra.mxu0 %v4960
        %v4997 = vpop.f32.mrf.mxu0
        %v4998 = vadd.f32 %v1140, %v4997
        %v4999 = vpop.f32.mrf.mxu0
        %v5000 = vadd.f32 %v1140, %v4999
        %5001 = vmatmul.bf16.gmra.mxu0 %v4963
        %v5002 = vpop.f32.mrf.mxu0
        %v5003 = vadd.f32 %v1140, %v5002
        %v5004 = vpop.f32.mrf.mxu0
        %v5005 = vadd.f32 %v1140, %v5004
        %5006 = vmatmul.bf16.gmra.mxu0 %v4966
        %v5007 = vpop.f32.mrf.mxu0
        %v5008 = vadd.f32 %v1140, %v5007
        %v5009 = vpop.f32.mrf.mxu0
        %v5010 = vadd.f32 %v1140, %v5009
        %5011 = vmatmul.bf16.gmra.mxu0 %v4969
        %v5012 = vpop.f32.mrf.mxu0
        %v5013 = vadd.f32 %v1140, %v5012
        %v5014 = vpop.f32.mrf.mxu0
        %v5015 = vadd.f32 %v1140, %v5014
        %5016 = vmatmul.bf16.gmra.mxu0 %v4972
        %v5017 = vpop.f32.mrf.mxu0
        %v5018 = vadd.f32 %v1140, %v5017
        %v5019 = vpop.f32.mrf.mxu0
        %v5020 = vadd.f32 %v1140, %v5019
        %5021 = vmatmul.bf16.gmra.mxu0 %v4975
        %v5022 = vpop.f32.mrf.mxu0
        %v5023 = vadd.f32 %v1140, %v5022
        %v5024 = vpop.f32.mrf.mxu0
        %v5025 = vadd.f32 %v1140, %v5024
        %5026 = vmatmul.bf16.gmra.mxu0 %v4978
        %v5027 = vpop.f32.mrf.mxu0
        %v5028 = vadd.f32 %v1140, %v5027
        %v5029 = vpop.f32.mrf.mxu0
        %v5030 = vadd.f32 %v1140, %v5029
        %5031 = vdwg.mxu0
        %5032 = vmax.xlane.f32.xlu0 %v4993
        %v5033 = vpop.xlane.xlu0 %5032
        %5034 = vmax.xlane.f32.xlu0 %v4995
        %v5035 = vpop.xlane.xlu0 %5034
        %5036 = vmax.xlane.f32.xlu0 %v4998
        %v5037 = vpop.xlane.xlu0 %5036
        %5038 = vmax.xlane.f32.xlu0 %v5000
        %v5039 = vpop.xlane.xlu0 %5038
        %5040 = vmax.xlane.f32.xlu0 %v5003
        %v5041 = vpop.xlane.xlu0 %5040
        %5042 = vmax.xlane.f32.xlu0 %v5005
        %v5043 = vpop.xlane.xlu0 %5042
        %5044 = vmax.xlane.f32.xlu0 %v5008
        %v5045 = vpop.xlane.xlu0 %5044
        %5046 = vmax.xlane.f32.xlu0 %v5010
        %v5047 = vpop.xlane.xlu0 %5046
        %5048 = vmax.xlane.f32.xlu0 %v5013
        %v5049 = vpop.xlane.xlu0 %5048
        %5050 = vmax.xlane.f32.xlu0 %v5015
        %v5051 = vpop.xlane.xlu0 %5050
        %5052 = vmax.xlane.f32.xlu0 %v5018
        %v5053 = vpop.xlane.xlu0 %5052
        %5054 = vmax.xlane.f32.xlu0 %v5020
        %v5055 = vpop.xlane.xlu0 %5054
        %5056 = vmax.xlane.f32.xlu0 %v5023
        %v5057 = vpop.xlane.xlu0 %5056
        %5058 = vmax.xlane.f32.xlu0 %v5025
        %v5059 = vpop.xlane.xlu0 %5058
        %5060 = vmax.xlane.f32.xlu0 %v5028
        %v5061 = vpop.xlane.xlu0 %5060
        %5062 = vmax.xlane.f32.xlu0 %v5030
        %v5063 = vpop.xlane.xlu0 %5062
        %v5064 = vsub.f32 %v4993, %v5033
        %v5065 = vsub.f32 %v4995, %v5035
        %v5066 = vsub.f32 %v4998, %v5037
        %v5067 = vsub.f32 %v5000, %v5039
        %v5068 = vsub.f32 %v5003, %v5041
        %v5069 = vsub.f32 %v5005, %v5043
        %v5070 = vsub.f32 %v5008, %v5045
        %v5071 = vsub.f32 %v5010, %v5047
        %v5072 = vsub.f32 %v5013, %v5049
        %v5073 = vsub.f32 %v5015, %v5051
        %v5074 = vsub.f32 %v5018, %v5053
        %v5075 = vsub.f32 %v5020, %v5055
        %v5076 = vsub.f32 %v5023, %v5057
        %v5077 = vsub.f32 %v5025, %v5059
        %v5078 = vsub.f32 %v5028, %v5061
        %v5079 = vsub.f32 %v5030, %v5063
        %v5080 = vmul.f32 %v5064, 1.442695
        %v5081 = vpow.pop %v5080
        %v5082 = vmul.f32 %v5065, 1.442695
        %v5083 = vpow.pop %v5082
        %v5084 = vmul.f32 %v5066, 1.442695
        %v5085 = vpow.pop %v5084
        %v5086 = vmul.f32 %v5067, 1.442695
        %v5087 = vpow.pop %v5086
        %v5088 = vmul.f32 %v5068, 1.442695
        %v5089 = vpow.pop %v5088
        %v5090 = vmul.f32 %v5069, 1.442695
        %v5091 = vpow.pop %v5090
        %v5092 = vmul.f32 %v5070, 1.442695
        %v5093 = vpow.pop %v5092
        %v5094 = vmul.f32 %v5071, 1.442695
        %v5095 = vpow.pop %v5094
        %v5096 = vmul.f32 %v5072, 1.442695
        %v5097 = vpow.pop %v5096
        %v5098 = vmul.f32 %v5073, 1.442695
        %v5099 = vpow.pop %v5098
        %v5100 = vmul.f32 %v5074, 1.442695
        %v5101 = vpow.pop %v5100
        %v5102 = vmul.f32 %v5075, 1.442695
        %v5103 = vpow.pop %v5102
        %v5104 = vmul.f32 %v5076, 1.442695
        %v5105 = vpow.pop %v5104
        %v5106 = vmul.f32 %v5077, 1.442695
        %v5107 = vpow.pop %v5106
        %v5108 = vmul.f32 %v5078, 1.442695
        %v5109 = vpow.pop %v5108
        %v5110 = vmul.f32 %v5079, 1.442695
        %v5111 = vpow.pop %v5110
        %5112 = vadd.xlane.f32.xlu0 %v5081
        %v5113 = vpop.xlane.xlu0 %5112
        %5114 = vadd.xlane.f32.xlu0 %v5083
        %v5115 = vpop.xlane.xlu0 %5114
        %5116 = vadd.xlane.f32.xlu0 %v5085
        %v5117 = vpop.xlane.xlu0 %5116
        %5118 = vadd.xlane.f32.xlu0 %v5087
        %v5119 = vpop.xlane.xlu0 %5118
        %5120 = vadd.xlane.f32.xlu0 %v5089
        %v5121 = vpop.xlane.xlu0 %5120
        %5122 = vadd.xlane.f32.xlu0 %v5091
        %v5123 = vpop.xlane.xlu0 %5122
        %5124 = vadd.xlane.f32.xlu0 %v5093
        %v5125 = vpop.xlane.xlu0 %5124
        %5126 = vadd.xlane.f32.xlu0 %v5095
        %v5127 = vpop.xlane.xlu0 %5126
        %5128 = vadd.xlane.f32.xlu0 %v5097
        %v5129 = vpop.xlane.xlu0 %5128
        %5130 = vadd.xlane.f32.xlu0 %v5099
        %v5131 = vpop.xlane.xlu0 %5130
        %5132 = vadd.xlane.f32.xlu0 %v5101
        %v5133 = vpop.xlane.xlu0 %5132
        %5134 = vadd.xlane.f32.xlu0 %v5103
        %v5135 = vpop.xlane.xlu0 %5134
        %5136 = vadd.xlane.f32.xlu0 %v5105
        %v5137 = vpop.xlane.xlu0 %5136
        %5138 = vadd.xlane.f32.xlu0 %v5107
        %v5139 = vpop.xlane.xlu0 %5138
        %5140 = vadd.xlane.f32.xlu0 %v5109
        %v5141 = vpop.xlane.xlu0 %5140
        %5142 = vadd.xlane.f32.xlu0 %v5111
        %v5143 = vpop.xlane.xlu0 %5142
        %v5144 = vrcp.pop %v5113
        %v5145 = vrcp.pop %v5115
        %v5146 = vrcp.pop %v5117
        %v5147 = vrcp.pop %v5119
        %v5148 = vrcp.pop %v5121
        %v5149 = vrcp.pop %v5123
        %v5150 = vrcp.pop %v5125
        %v5151 = vrcp.pop %v5127
        %v5152 = vrcp.pop %v5129
        %v5153 = vrcp.pop %v5131
        %v5154 = vrcp.pop %v5133
        %v5155 = vrcp.pop %v5135
        %v5156 = vrcp.pop %v5137
        %v5157 = vrcp.pop %v5139
        %v5158 = vrcp.pop %v5141
        %v5159 = vrcp.pop %v5143
        %v5160 = vmul.f32 %v5081, %v5144
        %v5161 = vmul.f32 %v5083, %v5145
        %v5162 = vmul.f32 %v5085, %v5146
        %v5163 = vmul.f32 %v5087, %v5147
        %v5164 = vmul.f32 %v5089, %v5148
        %v5165 = vmul.f32 %v5091, %v5149
        %v5166 = vmul.f32 %v5093, %v5150
        %v5167 = vmul.f32 %v5095, %v5151
        %v5168 = vmul.f32 %v5097, %v5152
        %v5169 = vmul.f32 %v5099, %v5153
        %v5170 = vmul.f32 %v5101, %v5154
        %v5171 = vmul.f32 %v5103, %v5155
        %v5172 = vmul.f32 %v5105, %v5156
        %v5173 = vmul.f32 %v5107, %v5157
        %v5174 = vmul.f32 %v5109, %v5158
        %v5175 = vmul.f32 %v5111, %v5159
        %v5176 = vpack.c.bf16 %v5161, %v5160
        %v5177 = vpack.c.bf16 %v5163, %v5162
        %v5178 = vpack.c.bf16 %v5165, %v5164
        %v5179 = vpack.c.bf16 %v5167, %v5166
        %v5180 = vpack.c.bf16 %v5169, %v5168
        %v5181 = vpack.c.bf16 %v5171, %v5170
        %v5182 = vpack.c.bf16 %v5173, %v5172
        %v5183 = vpack.c.bf16 %v5175, %v5174
        %5184 = vmatpush.bf16.xpose.msra.mxu0 %v5183
        %5185 = vmatpush.bf16.xpose.msra.mxu0 %v5182
        %5186 = vmatpush.bf16.xpose.msra.mxu0 %v5181
        %5187 = vmatpush.bf16.xpose.msra.mxu0 %v5180
        %5188 = vmatpush.bf16.xpose.msra.mxu0 %v5179
        %5189 = vmatpush.bf16.xpose.msra.mxu0 %v5178
        %5190 = vmatpush.bf16.xpose.msra.mxu0 %v5177
        %5191 = vmatpush.bf16.xpose.msra.mxu0 %v5176
        %5192 = vmatmul.bf16.gmra.mxu0 %v4165
        %v5193 = vpop.f32.mrf.mxu0
        %v5194 = vadd.f32 0.0, %v5193
        %v5195 = vpop.f32.mrf.mxu0
        %5196 = vdwg.mxu0
        %5197 = vst [vmem:[#allocation3 + $0x30] sm:$0xff] %v5194
        %v5199 = vunpack.c.h.b16 %v4154
        %v5200 = vpack.c.b16 %v5199, %v5199
        %5202 = vxpose.xlu0.c.b16.start [1/8] %v5200, 128
        %5203 = vxpose.xlu0.c.b16.cont [2/8] 0, 128
        %5204 = vxpose.xlu0.c.b16.cont [3/8] 0, 128
        %5205 = vxpose.xlu0.c.b16.cont [4/8] 0, 128
        %5206 = vxpose.xlu0.c.b16.cont [5/8] 0, 128
        %5207 = vxpose.xlu0.c.b16.cont [6/8] 0, 128
        %5208 = vxpose.xlu0.c.b16.cont [7/8] 0, 128
        %5209 = vxpose.xlu0.c.b16.end [8/8] 0, 128
        %v5210 = vpop.trf.xlu0
        %v5211 = vpop.trf.xlu0
        %v5212 = vpop.trf.xlu0
        %v5213 = vpop.trf.xlu0
        %v5214 = vpop.trf.xlu0
        %v5215 = vpop.trf.xlu0
        %v5216 = vpop.trf.xlu0
        %v5217 = vpop.trf.xlu0
        %v5219 = vunpack.c.h.b16 %v4158
        %v5220 = vpack.c.b16 %v5219, %v5219
        %v5222 = vsel %vm1158, %v5210, 0
        %v5225 = vsel %vm1158, %v5211, 0
        %v5228 = vsel %vm1158, %v5212, 0
        %v5231 = vsel %vm1158, %v5213, 0
        %v5234 = vsel %vm1158, %v5214, 0
        %v5237 = vsel %vm1158, %v5215, 0
        %v5240 = vsel %vm1158, %v5216, 0
        %v5243 = vsel %vm1158, %v5217, 0
        %v5246 = vsel %vm1183, %v5220, 0
        %5248 = vmatpush.bf16.msra.mxu0 0
        %5249 = vmatpush.bf16.msra.mxu0 0
        %5250 = vmatpush.bf16.msra.mxu0 0
        %5251 = vmatpush.bf16.msra.mxu0 0
        %5252 = vmatpush.bf16.msra.mxu0 0
        %5253 = vmatpush.bf16.msra.mxu0 0
        %5254 = vmatpush.bf16.msra.mxu0 0
        %5255 = vmatpush.bf16.msra.mxu0 %v5246
        %5256 = vmatmul.bf16.gmra.mxu0 %v5222
        %v5257 = vpop.f32.mrf.mxu0
        %v5258 = vadd.f32 %v1140, %v5257
        %v5259 = vpop.f32.mrf.mxu0
        %v5260 = vadd.f32 %v1140, %v5259
        %5261 = vmatmul.bf16.gmra.mxu0 %v5225
        %v5262 = vpop.f32.mrf.mxu0
        %v5263 = vadd.f32 %v1140, %v5262
        %v5264 = vpop.f32.mrf.mxu0
        %v5265 = vadd.f32 %v1140, %v5264
        %5266 = vmatmul.bf16.gmra.mxu0 %v5228
        %v5267 = vpop.f32.mrf.mxu0
        %v5268 = vadd.f32 %v1140, %v5267
        %v5269 = vpop.f32.mrf.mxu0
        %v5270 = vadd.f32 %v1140, %v5269
        %5271 = vmatmul.bf16.gmra.mxu0 %v5231
        %v5272 = vpop.f32.mrf.mxu0
        %v5273 = vadd.f32 %v1140, %v5272
        %v5274 = vpop.f32.mrf.mxu0
        %v5275 = vadd.f32 %v1140, %v5274
        %5276 = vmatmul.bf16.gmra.mxu0 %v5234
        %v5277 = vpop.f32.mrf.mxu0
        %v5278 = vadd.f32 %v1140, %v5277
        %v5279 = vpop.f32.mrf.mxu0
        %v5280 = vadd.f32 %v1140, %v5279
        %5281 = vmatmul.bf16.gmra.mxu0 %v5237
        %v5282 = vpop.f32.mrf.mxu0
        %v5283 = vadd.f32 %v1140, %v5282
        %v5284 = vpop.f32.mrf.mxu0
        %v5285 = vadd.f32 %v1140, %v5284
        %5286 = vmatmul.bf16.gmra.mxu0 %v5240
        %v5287 = vpop.f32.mrf.mxu0
        %v5288 = vadd.f32 %v1140, %v5287
        %v5289 = vpop.f32.mrf.mxu0
        %v5290 = vadd.f32 %v1140, %v5289
        %5291 = vmatmul.bf16.gmra.mxu0 %v5243
        %v5292 = vpop.f32.mrf.mxu0
        %v5293 = vadd.f32 %v1140, %v5292
        %v5294 = vpop.f32.mrf.mxu0
        %v5295 = vadd.f32 %v1140, %v5294
        %5296 = vdwg.mxu0
        %5297 = vmax.xlane.f32.xlu0 %v5258
        %v5298 = vpop.xlane.xlu0 %5297
        %5299 = vmax.xlane.f32.xlu0 %v5260
        %v5300 = vpop.xlane.xlu0 %5299
        %5301 = vmax.xlane.f32.xlu0 %v5263
        %v5302 = vpop.xlane.xlu0 %5301
        %5303 = vmax.xlane.f32.xlu0 %v5265
        %v5304 = vpop.xlane.xlu0 %5303
        %5305 = vmax.xlane.f32.xlu0 %v5268
        %v5306 = vpop.xlane.xlu0 %5305
        %5307 = vmax.xlane.f32.xlu0 %v5270
        %v5308 = vpop.xlane.xlu0 %5307
        %5309 = vmax.xlane.f32.xlu0 %v5273
        %v5310 = vpop.xlane.xlu0 %5309
        %5311 = vmax.xlane.f32.xlu0 %v5275
        %v5312 = vpop.xlane.xlu0 %5311
        %5313 = vmax.xlane.f32.xlu0 %v5278
        %v5314 = vpop.xlane.xlu0 %5313
        %5315 = vmax.xlane.f32.xlu0 %v5280
        %v5316 = vpop.xlane.xlu0 %5315
        %5317 = vmax.xlane.f32.xlu0 %v5283
        %v5318 = vpop.xlane.xlu0 %5317
        %5319 = vmax.xlane.f32.xlu0 %v5285
        %v5320 = vpop.xlane.xlu0 %5319
        %5321 = vmax.xlane.f32.xlu0 %v5288
        %v5322 = vpop.xlane.xlu0 %5321
        %5323 = vmax.xlane.f32.xlu0 %v5290
        %v5324 = vpop.xlane.xlu0 %5323
        %5325 = vmax.xlane.f32.xlu0 %v5293
        %v5326 = vpop.xlane.xlu0 %5325
        %5327 = vmax.xlane.f32.xlu0 %v5295
        %v5328 = vpop.xlane.xlu0 %5327
        %v5329 = vsub.f32 %v5258, %v5298
        %v5330 = vsub.f32 %v5260, %v5300
        %v5331 = vsub.f32 %v5263, %v5302
        %v5332 = vsub.f32 %v5265, %v5304
        %v5333 = vsub.f32 %v5268, %v5306
        %v5334 = vsub.f32 %v5270, %v5308
        %v5335 = vsub.f32 %v5273, %v5310
        %v5336 = vsub.f32 %v5275, %v5312
        %v5337 = vsub.f32 %v5278, %v5314
        %v5338 = vsub.f32 %v5280, %v5316
        %v5339 = vsub.f32 %v5283, %v5318
        %v5340 = vsub.f32 %v5285, %v5320
        %v5341 = vsub.f32 %v5288, %v5322
        %v5342 = vsub.f32 %v5290, %v5324
        %v5343 = vsub.f32 %v5293, %v5326
        %v5344 = vsub.f32 %v5295, %v5328
        %v5345 = vmul.f32 %v5329, 1.442695
        %v5346 = vpow.pop %v5345
        %v5347 = vmul.f32 %v5330, 1.442695
        %v5348 = vpow.pop %v5347
        %v5349 = vmul.f32 %v5331, 1.442695
        %v5350 = vpow.pop %v5349
        %v5351 = vmul.f32 %v5332, 1.442695
        %v5352 = vpow.pop %v5351
        %v5353 = vmul.f32 %v5333, 1.442695
        %v5354 = vpow.pop %v5353
        %v5355 = vmul.f32 %v5334, 1.442695
        %v5356 = vpow.pop %v5355
        %v5357 = vmul.f32 %v5335, 1.442695
        %v5358 = vpow.pop %v5357
        %v5359 = vmul.f32 %v5336, 1.442695
        %v5360 = vpow.pop %v5359
        %v5361 = vmul.f32 %v5337, 1.442695
        %v5362 = vpow.pop %v5361
        %v5363 = vmul.f32 %v5338, 1.442695
        %v5364 = vpow.pop %v5363
        %v5365 = vmul.f32 %v5339, 1.442695
        %v5366 = vpow.pop %v5365
        %v5367 = vmul.f32 %v5340, 1.442695
        %v5368 = vpow.pop %v5367
        %v5369 = vmul.f32 %v5341, 1.442695
        %v5370 = vpow.pop %v5369
        %v5371 = vmul.f32 %v5342, 1.442695
        %v5372 = vpow.pop %v5371
        %v5373 = vmul.f32 %v5343, 1.442695
        %v5374 = vpow.pop %v5373
        %v5375 = vmul.f32 %v5344, 1.442695
        %v5376 = vpow.pop %v5375
        %5377 = vadd.xlane.f32.xlu0 %v5346
        %v5378 = vpop.xlane.xlu0 %5377
        %5379 = vadd.xlane.f32.xlu0 %v5348
        %v5380 = vpop.xlane.xlu0 %5379
        %5381 = vadd.xlane.f32.xlu0 %v5350
        %v5382 = vpop.xlane.xlu0 %5381
        %5383 = vadd.xlane.f32.xlu0 %v5352
        %v5384 = vpop.xlane.xlu0 %5383
        %5385 = vadd.xlane.f32.xlu0 %v5354
        %v5386 = vpop.xlane.xlu0 %5385
        %5387 = vadd.xlane.f32.xlu0 %v5356
        %v5388 = vpop.xlane.xlu0 %5387
        %5389 = vadd.xlane.f32.xlu0 %v5358
        %v5390 = vpop.xlane.xlu0 %5389
        %5391 = vadd.xlane.f32.xlu0 %v5360
        %v5392 = vpop.xlane.xlu0 %5391
        %5393 = vadd.xlane.f32.xlu0 %v5362
        %v5394 = vpop.xlane.xlu0 %5393
        %5395 = vadd.xlane.f32.xlu0 %v5364
        %v5396 = vpop.xlane.xlu0 %5395
        %5397 = vadd.xlane.f32.xlu0 %v5366
        %v5398 = vpop.xlane.xlu0 %5397
        %5399 = vadd.xlane.f32.xlu0 %v5368
        %v5400 = vpop.xlane.xlu0 %5399
        %5401 = vadd.xlane.f32.xlu0 %v5370
        %v5402 = vpop.xlane.xlu0 %5401
        %5403 = vadd.xlane.f32.xlu0 %v5372
        %v5404 = vpop.xlane.xlu0 %5403
        %5405 = vadd.xlane.f32.xlu0 %v5374
        %v5406 = vpop.xlane.xlu0 %5405
        %5407 = vadd.xlane.f32.xlu0 %v5376
        %v5408 = vpop.xlane.xlu0 %5407
        %v5409 = vrcp.pop %v5378
        %v5410 = vrcp.pop %v5380
        %v5411 = vrcp.pop %v5382
        %v5412 = vrcp.pop %v5384
        %v5413 = vrcp.pop %v5386
        %v5414 = vrcp.pop %v5388
        %v5415 = vrcp.pop %v5390
        %v5416 = vrcp.pop %v5392
        %v5417 = vrcp.pop %v5394
        %v5418 = vrcp.pop %v5396
        %v5419 = vrcp.pop %v5398
        %v5420 = vrcp.pop %v5400
        %v5421 = vrcp.pop %v5402
        %v5422 = vrcp.pop %v5404
        %v5423 = vrcp.pop %v5406
        %v5424 = vrcp.pop %v5408
        %v5425 = vmul.f32 %v5346, %v5409
        %v5426 = vmul.f32 %v5348, %v5410
        %v5427 = vmul.f32 %v5350, %v5411
        %v5428 = vmul.f32 %v5352, %v5412
        %v5429 = vmul.f32 %v5354, %v5413
        %v5430 = vmul.f32 %v5356, %v5414
        %v5431 = vmul.f32 %v5358, %v5415
        %v5432 = vmul.f32 %v5360, %v5416
        %v5433 = vmul.f32 %v5362, %v5417
        %v5434 = vmul.f32 %v5364, %v5418
        %v5435 = vmul.f32 %v5366, %v5419
        %v5436 = vmul.f32 %v5368, %v5420
        %v5437 = vmul.f32 %v5370, %v5421
        %v5438 = vmul.f32 %v5372, %v5422
        %v5439 = vmul.f32 %v5374, %v5423
        %v5440 = vmul.f32 %v5376, %v5424
        %v5441 = vpack.c.bf16 %v5426, %v5425
        %v5442 = vpack.c.bf16 %v5428, %v5427
        %v5443 = vpack.c.bf16 %v5430, %v5429
        %v5444 = vpack.c.bf16 %v5432, %v5431
        %v5445 = vpack.c.bf16 %v5434, %v5433
        %v5446 = vpack.c.bf16 %v5436, %v5435
        %v5447 = vpack.c.bf16 %v5438, %v5437
        %v5448 = vpack.c.bf16 %v5440, %v5439
        %v5450 = vunpack.c.h.b16 %v4162
        %v5451 = vpack.c.b16 %v5450, %v5450
        %5453 = vmatpush.bf16.xpose.msra.mxu0 %v5448
        %5454 = vmatpush.bf16.xpose.msra.mxu0 %v5447
        %5455 = vmatpush.bf16.xpose.msra.mxu0 %v5446
        %5456 = vmatpush.bf16.xpose.msra.mxu0 %v5445
        %5457 = vmatpush.bf16.xpose.msra.mxu0 %v5444
        %5458 = vmatpush.bf16.xpose.msra.mxu0 %v5443
        %5459 = vmatpush.bf16.xpose.msra.mxu0 %v5442
        %5460 = vmatpush.bf16.xpose.msra.mxu0 %v5441
        %5461 = vmatmul.bf16.gmra.mxu0 %v5451
        %v5462 = vpop.f32.mrf.mxu0
        %v5463 = vadd.f32 0.0, %v5462
        %v5464 = vpop.f32.mrf.mxu0
        %5465 = vdwg.mxu0
        %5466 = vst [vmem:[#allocation3 + $0x8] sm:$0xff] %v5463
        %v5468 = vunpack.c.h.b16 %v4155
        %v5469 = vpack.c.b16 %v5468, %v5468
        %5471 = vxpose.xlu0.c.b16.start [1/8] %v5469, 128
        %5472 = vxpose.xlu0.c.b16.cont [2/8] 0, 128
        %5473 = vxpose.xlu0.c.b16.cont [3/8] 0, 128
        %5474 = vxpose.xlu0.c.b16.cont [4/8] 0, 128
        %5475 = vxpose.xlu0.c.b16.cont [5/8] 0, 128
        %5476 = vxpose.xlu0.c.b16.cont [6/8] 0, 128
        %5477 = vxpose.xlu0.c.b16.cont [7/8] 0, 128
        %5478 = vxpose.xlu0.c.b16.end [8/8] 0, 128
        %v5479 = vpop.trf.xlu0
        %v5480 = vpop.trf.xlu0
        %v5481 = vpop.trf.xlu0
        %v5482 = vpop.trf.xlu0
        %v5483 = vpop.trf.xlu0
        %v5484 = vpop.trf.xlu0
        %v5485 = vpop.trf.xlu0
        %v5486 = vpop.trf.xlu0
        %v5488 = vunpack.c.h.b16 %v4159
        %v5489 = vpack.c.b16 %v5488, %v5488
        %v5491 = vsel %vm1158, %v5479, 0
        %v5494 = vsel %vm1158, %v5480, 0
        %v5497 = vsel %vm1158, %v5481, 0
        %v5500 = vsel %vm1158, %v5482, 0
        %v5503 = vsel %vm1158, %v5483, 0
        %v5506 = vsel %vm1158, %v5484, 0
        %v5509 = vsel %vm1158, %v5485, 0
        %v5512 = vsel %vm1158, %v5486, 0
        %v5515 = vsel %vm1183, %v5489, 0
        %5517 = vmatpush.bf16.msra.mxu0 0
        %5518 = vmatpush.bf16.msra.mxu0 0
        %5519 = vmatpush.bf16.msra.mxu0 0
        %5520 = vmatpush.bf16.msra.mxu0 0
        %5521 = vmatpush.bf16.msra.mxu0 0
        %5522 = vmatpush.bf16.msra.mxu0 0
        %5523 = vmatpush.bf16.msra.mxu0 0
        %5524 = vmatpush.bf16.msra.mxu0 %v5515
        %5525 = vmatmul.bf16.gmra.mxu0 %v5491
        %v5526 = vpop.f32.mrf.mxu0
        %v5527 = vadd.f32 %v1140, %v5526
        %v5528 = vpop.f32.mrf.mxu0
        %v5529 = vadd.f32 %v1140, %v5528
        %5530 = vmatmul.bf16.gmra.mxu0 %v5494
        %v5531 = vpop.f32.mrf.mxu0
        %v5532 = vadd.f32 %v1140, %v5531
        %v5533 = vpop.f32.mrf.mxu0
        %v5534 = vadd.f32 %v1140, %v5533
        %5535 = vmatmul.bf16.gmra.mxu0 %v5497
        %v5536 = vpop.f32.mrf.mxu0
        %v5537 = vadd.f32 %v1140, %v5536
        %v5538 = vpop.f32.mrf.mxu0
        %v5539 = vadd.f32 %v1140, %v5538
        %5540 = vmatmul.bf16.gmra.mxu0 %v5500
        %v5541 = vpop.f32.mrf.mxu0
        %v5542 = vadd.f32 %v1140, %v5541
        %v5543 = vpop.f32.mrf.mxu0
        %v5544 = vadd.f32 %v1140, %v5543
        %5545 = vmatmul.bf16.gmra.mxu0 %v5503
        %v5546 = vpop.f32.mrf.mxu0
        %v5547 = vadd.f32 %v1140, %v5546
        %v5548 = vpop.f32.mrf.mxu0
        %v5549 = vadd.f32 %v1140, %v5548
        %5550 = vmatmul.bf16.gmra.mxu0 %v5506
        %v5551 = vpop.f32.mrf.mxu0
        %v5552 = vadd.f32 %v1140, %v5551
        %v5553 = vpop.f32.mrf.mxu0
        %v5554 = vadd.f32 %v1140, %v5553
        %5555 = vmatmul.bf16.gmra.mxu0 %v5509
        %v5556 = vpop.f32.mrf.mxu0
        %v5557 = vadd.f32 %v1140, %v5556
        %v5558 = vpop.f32.mrf.mxu0
        %v5559 = vadd.f32 %v1140, %v5558
        %5560 = vmatmul.bf16.gmra.mxu0 %v5512
        %v5561 = vpop.f32.mrf.mxu0
        %v5562 = vadd.f32 %v1140, %v5561
        %v5563 = vpop.f32.mrf.mxu0
        %v5564 = vadd.f32 %v1140, %v5563
        %5565 = vdwg.mxu0
        %5566 = vmax.xlane.f32.xlu0 %v5527
        %v5567 = vpop.xlane.xlu0 %5566
        %5568 = vmax.xlane.f32.xlu0 %v5529
        %v5569 = vpop.xlane.xlu0 %5568
        %5570 = vmax.xlane.f32.xlu0 %v5532
        %v5571 = vpop.xlane.xlu0 %5570
        %5572 = vmax.xlane.f32.xlu0 %v5534
        %v5573 = vpop.xlane.xlu0 %5572
        %5574 = vmax.xlane.f32.xlu0 %v5537
        %v5575 = vpop.xlane.xlu0 %5574
        %5576 = vmax.xlane.f32.xlu0 %v5539
        %v5577 = vpop.xlane.xlu0 %5576
        %5578 = vmax.xlane.f32.xlu0 %v5542
        %v5579 = vpop.xlane.xlu0 %5578
        %5580 = vmax.xlane.f32.xlu0 %v5544
        %v5581 = vpop.xlane.xlu0 %5580
        %5582 = vmax.xlane.f32.xlu0 %v5547
        %v5583 = vpop.xlane.xlu0 %5582
        %5584 = vmax.xlane.f32.xlu0 %v5549
        %v5585 = vpop.xlane.xlu0 %5584
        %5586 = vmax.xlane.f32.xlu0 %v5552
        %v5587 = vpop.xlane.xlu0 %5586
        %5588 = vmax.xlane.f32.xlu0 %v5554
        %v5589 = vpop.xlane.xlu0 %5588
        %5590 = vmax.xlane.f32.xlu0 %v5557
        %v5591 = vpop.xlane.xlu0 %5590
        %5592 = vmax.xlane.f32.xlu0 %v5559
        %v5593 = vpop.xlane.xlu0 %5592
        %5594 = vmax.xlane.f32.xlu0 %v5562
        %v5595 = vpop.xlane.xlu0 %5594
        %5596 = vmax.xlane.f32.xlu0 %v5564
        %v5597 = vpop.xlane.xlu0 %5596
        %v5598 = vsub.f32 %v5527, %v5567
        %v5599 = vsub.f32 %v5529, %v5569
        %v5600 = vsub.f32 %v5532, %v5571
        %v5601 = vsub.f32 %v5534, %v5573
        %v5602 = vsub.f32 %v5537, %v5575
        %v5603 = vsub.f32 %v5539, %v5577
        %v5604 = vsub.f32 %v5542, %v5579
        %v5605 = vsub.f32 %v5544, %v5581
        %v5606 = vsub.f32 %v5547, %v5583
        %v5607 = vsub.f32 %v5549, %v5585
        %v5608 = vsub.f32 %v5552, %v5587
        %v5609 = vsub.f32 %v5554, %v5589
        %v5610 = vsub.f32 %v5557, %v5591
        %v5611 = vsub.f32 %v5559, %v5593
        %v5612 = vsub.f32 %v5562, %v5595
        %v5613 = vsub.f32 %v5564, %v5597
        %v5614 = vmul.f32 %v5598, 1.442695
        %v5615 = vpow.pop %v5614
        %v5616 = vmul.f32 %v5599, 1.442695
        %v5617 = vpow.pop %v5616
        %v5618 = vmul.f32 %v5600, 1.442695
        %v5619 = vpow.pop %v5618
        %v5620 = vmul.f32 %v5601, 1.442695
        %v5621 = vpow.pop %v5620
        %v5622 = vmul.f32 %v5602, 1.442695
        %v5623 = vpow.pop %v5622
        %v5624 = vmul.f32 %v5603, 1.442695
        %v5625 = vpow.pop %v5624
        %v5626 = vmul.f32 %v5604, 1.442695
        %v5627 = vpow.pop %v5626
        %v5628 = vmul.f32 %v5605, 1.442695
        %v5629 = vpow.pop %v5628
        %v5630 = vmul.f32 %v5606, 1.442695
        %v5631 = vpow.pop %v5630
        %v5632 = vmul.f32 %v5607, 1.442695
        %v5633 = vpow.pop %v5632
        %v5634 = vmul.f32 %v5608, 1.442695
        %v5635 = vpow.pop %v5634
        %v5636 = vmul.f32 %v5609, 1.442695
        %v5637 = vpow.pop %v5636
        %v5638 = vmul.f32 %v5610, 1.442695
        %v5639 = vpow.pop %v5638
        %v5640 = vmul.f32 %v5611, 1.442695
        %v5641 = vpow.pop %v5640
        %v5642 = vmul.f32 %v5612, 1.442695
        %v5643 = vpow.pop %v5642
        %v5644 = vmul.f32 %v5613, 1.442695
        %v5645 = vpow.pop %v5644
        %5646 = vadd.xlane.f32.xlu0 %v5615
        %v5647 = vpop.xlane.xlu0 %5646
        %5648 = vadd.xlane.f32.xlu0 %v5617
        %v5649 = vpop.xlane.xlu0 %5648
        %5650 = vadd.xlane.f32.xlu0 %v5619
        %v5651 = vpop.xlane.xlu0 %5650
        %5652 = vadd.xlane.f32.xlu0 %v5621
        %v5653 = vpop.xlane.xlu0 %5652
        %5654 = vadd.xlane.f32.xlu0 %v5623
        %v5655 = vpop.xlane.xlu0 %5654
        %5656 = vadd.xlane.f32.xlu0 %v5625
        %v5657 = vpop.xlane.xlu0 %5656
        %5658 = vadd.xlane.f32.xlu0 %v5627
        %v5659 = vpop.xlane.xlu0 %5658
        %5660 = vadd.xlane.f32.xlu0 %v5629
        %v5661 = vpop.xlane.xlu0 %5660
        %5662 = vadd.xlane.f32.xlu0 %v5631
        %v5663 = vpop.xlane.xlu0 %5662
        %5664 = vadd.xlane.f32.xlu0 %v5633
        %v5665 = vpop.xlane.xlu0 %5664
        %5666 = vadd.xlane.f32.xlu0 %v5635
        %v5667 = vpop.xlane.xlu0 %5666
        %5668 = vadd.xlane.f32.xlu0 %v5637
        %v5669 = vpop.xlane.xlu0 %5668
        %5670 = vadd.xlane.f32.xlu0 %v5639
        %v5671 = vpop.xlane.xlu0 %5670
        %5672 = vadd.xlane.f32.xlu0 %v5641
        %v5673 = vpop.xlane.xlu0 %5672
        %5674 = vadd.xlane.f32.xlu0 %v5643
        %v5675 = vpop.xlane.xlu0 %5674
        %5676 = vadd.xlane.f32.xlu0 %v5645
        %v5677 = vpop.xlane.xlu0 %5676
        %v5678 = vrcp.pop %v5647
        %v5679 = vrcp.pop %v5649
        %v5680 = vrcp.pop %v5651
        %v5681 = vrcp.pop %v5653
        %v5682 = vrcp.pop %v5655
        %v5683 = vrcp.pop %v5657
        %v5684 = vrcp.pop %v5659
        %v5685 = vrcp.pop %v5661
        %v5686 = vrcp.pop %v5663
        %v5687 = vrcp.pop %v5665
        %v5688 = vrcp.pop %v5667
        %v5689 = vrcp.pop %v5669
        %v5690 = vrcp.pop %v5671
        %v5691 = vrcp.pop %v5673
        %v5692 = vrcp.pop %v5675
        %v5693 = vrcp.pop %v5677
        %v5694 = vmul.f32 %v5615, %v5678
        %v5695 = vmul.f32 %v5617, %v5679
        %v5696 = vmul.f32 %v5619, %v5680
        %v5697 = vmul.f32 %v5621, %v5681
        %v5698 = vmul.f32 %v5623, %v5682
        %v5699 = vmul.f32 %v5625, %v5683
        %v5700 = vmul.f32 %v5627, %v5684
        %v5701 = vmul.f32 %v5629, %v5685
        %v5702 = vmul.f32 %v5631, %v5686
        %v5703 = vmul.f32 %v5633, %v5687
        %v5704 = vmul.f32 %v5635, %v5688
        %v5705 = vmul.f32 %v5637, %v5689
        %v5706 = vmul.f32 %v5639, %v5690
        %v5707 = vmul.f32 %v5641, %v5691
        %v5708 = vmul.f32 %v5643, %v5692
        %v5709 = vmul.f32 %v5645, %v5693
        %v5710 = vpack.c.bf16 %v5695, %v5694
        %v5711 = vpack.c.bf16 %v5697, %v5696
        %v5712 = vpack.c.bf16 %v5699, %v5698
        %v5713 = vpack.c.bf16 %v5701, %v5700
        %v5714 = vpack.c.bf16 %v5703, %v5702
        %v5715 = vpack.c.bf16 %v5705, %v5704
        %v5716 = vpack.c.bf16 %v5707, %v5706
        %v5717 = vpack.c.bf16 %v5709, %v5708
        %v5719 = vunpack.c.h.b16 %v4163
        %v5720 = vpack.c.b16 %v5719, %v5719
        %5722 = vmatpush.bf16.xpose.msra.mxu0 %v5717
        %5723 = vmatpush.bf16.xpose.msra.mxu0 %v5716
        %5724 = vmatpush.bf16.xpose.msra.mxu0 %v5715
        %5725 = vmatpush.bf16.xpose.msra.mxu0 %v5714
        %5726 = vmatpush.bf16.xpose.msra.mxu0 %v5713
        %5727 = vmatpush.bf16.xpose.msra.mxu0 %v5712
        %5728 = vmatpush.bf16.xpose.msra.mxu0 %v5711
        %5729 = vmatpush.bf16.xpose.msra.mxu0 %v5710
        %5730 = vmatmul.bf16.gmra.mxu0 %v5720
        %v5731 = vpop.f32.mrf.mxu0
        %v5732 = vadd.f32 0.0, %v5731
        %v5733 = vpop.f32.mrf.mxu0
        %5734 = vdwg.mxu0
        %5735 = vst [vmem:[#allocation3 + $0x18] sm:$0xff] %v5732
        %v5737 = vunpack.c.h.b16 %v4156
        %v5738 = vpack.c.b16 %v5737, %v5737
        %5740 = vxpose.xlu0.c.b16.start [1/8] %v5738, 128
        %5741 = vxpose.xlu0.c.b16.cont [2/8] 0, 128
        %5742 = vxpose.xlu0.c.b16.cont [3/8] 0, 128
        %5743 = vxpose.xlu0.c.b16.cont [4/8] 0, 128
        %5744 = vxpose.xlu0.c.b16.cont [5/8] 0, 128
        %5745 = vxpose.xlu0.c.b16.cont [6/8] 0, 128
        %5746 = vxpose.xlu0.c.b16.cont [7/8] 0, 128
        %5747 = vxpose.xlu0.c.b16.end [8/8] 0, 128
        %v5748 = vpop.trf.xlu0
        %v5749 = vpop.trf.xlu0
        %v5750 = vpop.trf.xlu0
        %v5751 = vpop.trf.xlu0
        %v5752 = vpop.trf.xlu0
        %v5753 = vpop.trf.xlu0
        %v5754 = vpop.trf.xlu0
        %v5755 = vpop.trf.xlu0
        %v5757 = vunpack.c.h.b16 %v4160
        %v5758 = vpack.c.b16 %v5757, %v5757
        %v5760 = vsel %vm1158, %v5748, 0
        %v5763 = vsel %vm1158, %v5749, 0
        %v5766 = vsel %vm1158, %v5750, 0
        %v5769 = vsel %vm1158, %v5751, 0
        %v5772 = vsel %vm1158, %v5752, 0
        %v5775 = vsel %vm1158, %v5753, 0
        %v5778 = vsel %vm1158, %v5754, 0
        %v5781 = vsel %vm1158, %v5755, 0
        %v5784 = vsel %vm1183, %v5758, 0
        %5786 = vmatpush.bf16.msra.mxu0 0
        %5787 = vmatpush.bf16.msra.mxu0 0
        %5788 = vmatpush.bf16.msra.mxu0 0
        %5789 = vmatpush.bf16.msra.mxu0 0
        %5790 = vmatpush.bf16.msra.mxu0 0
        %5791 = vmatpush.bf16.msra.mxu0 0
        %5792 = vmatpush.bf16.msra.mxu0 0
        %5793 = vmatpush.bf16.msra.mxu0 %v5784
        %5794 = vmatmul.bf16.gmra.mxu0 %v5760
        %v5795 = vpop.f32.mrf.mxu0
        %v5796 = vadd.f32 %v1140, %v5795
        %v5797 = vpop.f32.mrf.mxu0
        %v5798 = vadd.f32 %v1140, %v5797
        %5799 = vmatmul.bf16.gmra.mxu0 %v5763
        %v5800 = vpop.f32.mrf.mxu0
        %v5801 = vadd.f32 %v1140, %v5800
        %v5802 = vpop.f32.mrf.mxu0
        %v5803 = vadd.f32 %v1140, %v5802
        %5804 = vmatmul.bf16.gmra.mxu0 %v5766
        %v5805 = vpop.f32.mrf.mxu0
        %v5806 = vadd.f32 %v1140, %v5805
        %v5807 = vpop.f32.mrf.mxu0
        %v5808 = vadd.f32 %v1140, %v5807
        %5809 = vmatmul.bf16.gmra.mxu0 %v5769
        %v5810 = vpop.f32.mrf.mxu0
        %v5811 = vadd.f32 %v1140, %v5810
        %v5812 = vpop.f32.mrf.mxu0
        %v5813 = vadd.f32 %v1140, %v5812
        %5814 = vmatmul.bf16.gmra.mxu0 %v5772
        %v5815 = vpop.f32.mrf.mxu0
        %v5816 = vadd.f32 %v1140, %v5815
        %v5817 = vpop.f32.mrf.mxu0
        %v5818 = vadd.f32 %v1140, %v5817
        %5819 = vmatmul.bf16.gmra.mxu0 %v5775
        %v5820 = vpop.f32.mrf.mxu0
        %v5821 = vadd.f32 %v1140, %v5820
        %v5822 = vpop.f32.mrf.mxu0
        %v5823 = vadd.f32 %v1140, %v5822
        %5824 = vmatmul.bf16.gmra.mxu0 %v5778
        %v5825 = vpop.f32.mrf.mxu0
        %v5826 = vadd.f32 %v1140, %v5825
        %v5827 = vpop.f32.mrf.mxu0
        %v5828 = vadd.f32 %v1140, %v5827
        %5829 = vmatmul.bf16.gmra.mxu0 %v5781
        %v5830 = vpop.f32.mrf.mxu0
        %v5831 = vadd.f32 %v1140, %v5830
        %v5832 = vpop.f32.mrf.mxu0
        %v5833 = vadd.f32 %v1140, %v5832
        %5834 = vdwg.mxu0
        %5835 = vmax.xlane.f32.xlu0 %v5796
        %v5836 = vpop.xlane.xlu0 %5835
        %5837 = vmax.xlane.f32.xlu0 %v5798
        %v5838 = vpop.xlane.xlu0 %5837
        %5839 = vmax.xlane.f32.xlu0 %v5801
        %v5840 = vpop.xlane.xlu0 %5839
        %5841 = vmax.xlane.f32.xlu0 %v5803
        %v5842 = vpop.xlane.xlu0 %5841
        %5843 = vmax.xlane.f32.xlu0 %v5806
        %v5844 = vpop.xlane.xlu0 %5843
        %5845 = vmax.xlane.f32.xlu0 %v5808
        %v5846 = vpop.xlane.xlu0 %5845
        %5847 = vmax.xlane.f32.xlu0 %v5811
        %v5848 = vpop.xlane.xlu0 %5847
        %5849 = vmax.xlane.f32.xlu0 %v5813
        %v5850 = vpop.xlane.xlu0 %5849
        %5851 = vmax.xlane.f32.xlu0 %v5816
        %v5852 = vpop.xlane.xlu0 %5851
        %5853 = vmax.xlane.f32.xlu0 %v5818
        %v5854 = vpop.xlane.xlu0 %5853
        %5855 = vmax.xlane.f32.xlu0 %v5821
        %v5856 = vpop.xlane.xlu0 %5855
        %5857 = vmax.xlane.f32.xlu0 %v5823
        %v5858 = vpop.xlane.xlu0 %5857
        %5859 = vmax.xlane.f32.xlu0 %v5826
        %v5860 = vpop.xlane.xlu0 %5859
        %5861 = vmax.xlane.f32.xlu0 %v5828
        %v5862 = vpop.xlane.xlu0 %5861
        %5863 = vmax.xlane.f32.xlu0 %v5831
        %v5864 = vpop.xlane.xlu0 %5863
        %5865 = vmax.xlane.f32.xlu0 %v5833
        %v5866 = vpop.xlane.xlu0 %5865
        %v5867 = vsub.f32 %v5796, %v5836
        %v5868 = vsub.f32 %v5798, %v5838
        %v5869 = vsub.f32 %v5801, %v5840
        %v5870 = vsub.f32 %v5803, %v5842
        %v5871 = vsub.f32 %v5806, %v5844
        %v5872 = vsub.f32 %v5808, %v5846
        %v5873 = vsub.f32 %v5811, %v5848
        %v5874 = vsub.f32 %v5813, %v5850
        %v5875 = vsub.f32 %v5816, %v5852
        %v5876 = vsub.f32 %v5818, %v5854
        %v5877 = vsub.f32 %v5821, %v5856
        %v5878 = vsub.f32 %v5823, %v5858
        %v5879 = vsub.f32 %v5826, %v5860
        %v5880 = vsub.f32 %v5828, %v5862
        %v5881 = vsub.f32 %v5831, %v5864
        %v5882 = vsub.f32 %v5833, %v5866
        %v5883 = vmul.f32 %v5867, 1.442695
        %v5884 = vpow.pop %v5883
        %v5885 = vmul.f32 %v5868, 1.442695
        %v5886 = vpow.pop %v5885
        %v5887 = vmul.f32 %v5869, 1.442695
        %v5888 = vpow.pop %v5887
        %v5889 = vmul.f32 %v5870, 1.442695
        %v5890 = vpow.pop %v5889
        %v5891 = vmul.f32 %v5871, 1.442695
        %v5892 = vpow.pop %v5891
        %v5893 = vmul.f32 %v5872, 1.442695
        %v5894 = vpow.pop %v5893
        %v5895 = vmul.f32 %v5873, 1.442695
        %v5896 = vpow.pop %v5895
        %v5897 = vmul.f32 %v5874, 1.442695
        %v5898 = vpow.pop %v5897
        %v5899 = vmul.f32 %v5875, 1.442695
        %v5900 = vpow.pop %v5899
        %v5901 = vmul.f32 %v5876, 1.442695
        %v5902 = vpow.pop %v5901
        %v5903 = vmul.f32 %v5877, 1.442695
        %v5904 = vpow.pop %v5903
        %v5905 = vmul.f32 %v5878, 1.442695
        %v5906 = vpow.pop %v5905
        %v5907 = vmul.f32 %v5879, 1.442695
        %v5908 = vpow.pop %v5907
        %v5909 = vmul.f32 %v5880, 1.442695
        %v5910 = vpow.pop %v5909
        %v5911 = vmul.f32 %v5881, 1.442695
        %v5912 = vpow.pop %v5911
        %v5913 = vmul.f32 %v5882, 1.442695
        %v5914 = vpow.pop %v5913
        %5915 = vadd.xlane.f32.xlu0 %v5884
        %v5916 = vpop.xlane.xlu0 %5915
        %5917 = vadd.xlane.f32.xlu0 %v5886
        %v5918 = vpop.xlane.xlu0 %5917
        %5919 = vadd.xlane.f32.xlu0 %v5888
        %v5920 = vpop.xlane.xlu0 %5919
        %5921 = vadd.xlane.f32.xlu0 %v5890
        %v5922 = vpop.xlane.xlu0 %5921
        %5923 = vadd.xlane.f32.xlu0 %v5892
        %v5924 = vpop.xlane.xlu0 %5923
        %5925 = vadd.xlane.f32.xlu0 %v5894
        %v5926 = vpop.xlane.xlu0 %5925
        %5927 = vadd.xlane.f32.xlu0 %v5896
        %v5928 = vpop.xlane.xlu0 %5927
        %5929 = vadd.xlane.f32.xlu0 %v5898
        %v5930 = vpop.xlane.xlu0 %5929
        %5931 = vadd.xlane.f32.xlu0 %v5900
        %v5932 = vpop.xlane.xlu0 %5931
        %5933 = vadd.xlane.f32.xlu0 %v5902
        %v5934 = vpop.xlane.xlu0 %5933
        %5935 = vadd.xlane.f32.xlu0 %v5904
        %v5936 = vpop.xlane.xlu0 %5935
        %5937 = vadd.xlane.f32.xlu0 %v5906
        %v5938 = vpop.xlane.xlu0 %5937
        %5939 = vadd.xlane.f32.xlu0 %v5908
        %v5940 = vpop.xlane.xlu0 %5939
        %5941 = vadd.xlane.f32.xlu0 %v5910
        %v5942 = vpop.xlane.xlu0 %5941
        %5943 = vadd.xlane.f32.xlu0 %v5912
        %v5944 = vpop.xlane.xlu0 %5943
        %5945 = vadd.xlane.f32.xlu0 %v5914
        %v5946 = vpop.xlane.xlu0 %5945
        %v5947 = vrcp.pop %v5916
        %v5948 = vrcp.pop %v5918
        %v5949 = vrcp.pop %v5920
        %v5950 = vrcp.pop %v5922
        %v5951 = vrcp.pop %v5924
        %v5952 = vrcp.pop %v5926
        %v5953 = vrcp.pop %v5928
        %v5954 = vrcp.pop %v5930
        %v5955 = vrcp.pop %v5932
        %v5956 = vrcp.pop %v5934
        %v5957 = vrcp.pop %v5936
        %v5958 = vrcp.pop %v5938
        %v5959 = vrcp.pop %v5940
        %v5960 = vrcp.pop %v5942
        %v5961 = vrcp.pop %v5944
        %v5962 = vrcp.pop %v5946
        %v5963 = vmul.f32 %v5884, %v5947
        %v5964 = vmul.f32 %v5886, %v5948
        %v5965 = vmul.f32 %v5888, %v5949
        %v5966 = vmul.f32 %v5890, %v5950
        %v5967 = vmul.f32 %v5892, %v5951
        %v5968 = vmul.f32 %v5894, %v5952
        %v5969 = vmul.f32 %v5896, %v5953
        %v5970 = vmul.f32 %v5898, %v5954
        %v5971 = vmul.f32 %v5900, %v5955
        %v5972 = vmul.f32 %v5902, %v5956
        %v5973 = vmul.f32 %v5904, %v5957
        %v5974 = vmul.f32 %v5906, %v5958
        %v5975 = vmul.f32 %v5908, %v5959
        %v5976 = vmul.f32 %v5910, %v5960
        %v5977 = vmul.f32 %v5912, %v5961
        %v5978 = vmul.f32 %v5914, %v5962
        %v5979 = vpack.c.bf16 %v5964, %v5963
        %v5980 = vpack.c.bf16 %v5966, %v5965
        %v5981 = vpack.c.bf16 %v5968, %v5967
        %v5982 = vpack.c.bf16 %v5970, %v5969
        %v5983 = vpack.c.bf16 %v5972, %v5971
        %v5984 = vpack.c.bf16 %v5974, %v5973
        %v5985 = vpack.c.bf16 %v5976, %v5975
        %v5986 = vpack.c.bf16 %v5978, %v5977
        %v5988 = vunpack.c.h.b16 %v4164
        %v5989 = vpack.c.b16 %v5988, %v5988
        %5991 = vmatpush.bf16.xpose.msra.mxu0 %v5986
        %5992 = vmatpush.bf16.xpose.msra.mxu0 %v5985
        %5993 = vmatpush.bf16.xpose.msra.mxu0 %v5984
        %5994 = vmatpush.bf16.xpose.msra.mxu0 %v5983
        %5995 = vmatpush.bf16.xpose.msra.mxu0 %v5982
        %5996 = vmatpush.bf16.xpose.msra.mxu0 %v5981
        %5997 = vmatpush.bf16.xpose.msra.mxu0 %v5980
        %5998 = vmatpush.bf16.xpose.msra.mxu0 %v5979
        %5999 = vmatmul.bf16.gmra.mxu0 %v5989
        %v6000 = vpop.f32.mrf.mxu0
        %v6001 = vadd.f32 0.0, %v6000
        %v6002 = vpop.f32.mrf.mxu0
        %6003 = vdwg.mxu0
        %6004 = vst [vmem:[#allocation3 + $0x28] sm:$0xff] %v6001
        %v6006 = vunpack.c.h.b16 %v4157
        %v6007 = vpack.c.b16 %v6006, %v6006
        %6009 = vxpose.xlu0.c.b16.start [1/8] %v6007, 128
        %6010 = vxpose.xlu0.c.b16.cont [2/8] 0, 128
        %6011 = vxpose.xlu0.c.b16.cont [3/8] 0, 128
        %6012 = vxpose.xlu0.c.b16.cont [4/8] 0, 128
        %6013 = vxpose.xlu0.c.b16.cont [5/8] 0, 128
        %6014 = vxpose.xlu0.c.b16.cont [6/8] 0, 128
        %6015 = vxpose.xlu0.c.b16.cont [7/8] 0, 128
        %6016 = vxpose.xlu0.c.b16.end [8/8] 0, 128
        %v6017 = vpop.trf.xlu0
        %v6018 = vpop.trf.xlu0
        %v6019 = vpop.trf.xlu0
        %v6020 = vpop.trf.xlu0
        %v6021 = vpop.trf.xlu0
        %v6022 = vpop.trf.xlu0
        %v6023 = vpop.trf.xlu0
        %v6024 = vpop.trf.xlu0
        %v6026 = vunpack.c.h.b16 %v4161
        %v6027 = vpack.c.b16 %v6026, %v6026
        %v6029 = vsel %vm1158, %v6017, 0
        %v6032 = vsel %vm1158, %v6018, 0
        %v6035 = vsel %vm1158, %v6019, 0
        %v6038 = vsel %vm1158, %v6020, 0
        %v6041 = vsel %vm1158, %v6021, 0
        %v6044 = vsel %vm1158, %v6022, 0
        %v6047 = vsel %vm1158, %v6023, 0
        %v6050 = vsel %vm1158, %v6024, 0
        %v6053 = vsel %vm1183, %v6027, 0
        %6055 = vmatpush.bf16.msra.mxu0 0
        %6056 = vmatpush.bf16.msra.mxu0 0
        %6057 = vmatpush.bf16.msra.mxu0 0
        %6058 = vmatpush.bf16.msra.mxu0 0
        %6059 = vmatpush.bf16.msra.mxu0 0
        %6060 = vmatpush.bf16.msra.mxu0 0
        %6061 = vmatpush.bf16.msra.mxu0 0
        %6062 = vmatpush.bf16.msra.mxu0 %v6053
        %6063 = vmatmul.bf16.gmra.mxu0 %v6029
        %v6064 = vpop.f32.mrf.mxu0
        %v6065 = vadd.f32 %v1140, %v6064
        %v6066 = vpop.f32.mrf.mxu0
        %v6067 = vadd.f32 %v1140, %v6066
        %6068 = vmatmul.bf16.gmra.mxu0 %v6032
        %v6069 = vpop.f32.mrf.mxu0
        %v6070 = vadd.f32 %v1140, %v6069
        %v6071 = vpop.f32.mrf.mxu0
        %v6072 = vadd.f32 %v1140, %v6071
        %6073 = vmatmul.bf16.gmra.mxu0 %v6035
        %v6074 = vpop.f32.mrf.mxu0
        %v6075 = vadd.f32 %v1140, %v6074
        %v6076 = vpop.f32.mrf.mxu0
        %v6077 = vadd.f32 %v1140, %v6076
        %6078 = vmatmul.bf16.gmra.mxu0 %v6038
        %v6079 = vpop.f32.mrf.mxu0
        %v6080 = vadd.f32 %v1140, %v6079
        %v6081 = vpop.f32.mrf.mxu0
        %v6082 = vadd.f32 %v1140, %v6081
        %6083 = vmatmul.bf16.gmra.mxu0 %v6041
        %v6084 = vpop.f32.mrf.mxu0
        %v6085 = vadd.f32 %v1140, %v6084
        %v6086 = vpop.f32.mrf.mxu0
        %v6087 = vadd.f32 %v1140, %v6086
        %6088 = vmatmul.bf16.gmra.mxu0 %v6044
        %v6089 = vpop.f32.mrf.mxu0
        %v6090 = vadd.f32 %v1140, %v6089
        %v6091 = vpop.f32.mrf.mxu0
        %v6092 = vadd.f32 %v1140, %v6091
        %6093 = vmatmul.bf16.gmra.mxu0 %v6047
        %v6094 = vpop.f32.mrf.mxu0
        %v6095 = vadd.f32 %v1140, %v6094
        %v6096 = vpop.f32.mrf.mxu0
        %v6097 = vadd.f32 %v1140, %v6096
        %6098 = vmatmul.bf16.gmra.mxu0 %v6050
        %v6099 = vpop.f32.mrf.mxu0
        %v6100 = vadd.f32 %v1140, %v6099
        %v6101 = vpop.f32.mrf.mxu0
        %v6102 = vadd.f32 %v1140, %v6101
        %6103 = vdwg.mxu0
        %6104 = vmax.xlane.f32.xlu0 %v6065
        %v6105 = vpop.xlane.xlu0 %6104
        %6106 = vmax.xlane.f32.xlu0 %v6067
        %v6107 = vpop.xlane.xlu0 %6106
        %6108 = vmax.xlane.f32.xlu0 %v6070
        %v6109 = vpop.xlane.xlu0 %6108
        %6110 = vmax.xlane.f32.xlu0 %v6072
        %v6111 = vpop.xlane.xlu0 %6110
        %6112 = vmax.xlane.f32.xlu0 %v6075
        %v6113 = vpop.xlane.xlu0 %6112
        %6114 = vmax.xlane.f32.xlu0 %v6077
        %v6115 = vpop.xlane.xlu0 %6114
        %6116 = vmax.xlane.f32.xlu0 %v6080
        %v6117 = vpop.xlane.xlu0 %6116
        %6118 = vmax.xlane.f32.xlu0 %v6082
        %v6119 = vpop.xlane.xlu0 %6118
        %6120 = vmax.xlane.f32.xlu0 %v6085
        %v6121 = vpop.xlane.xlu0 %6120
        %6122 = vmax.xlane.f32.xlu0 %v6087
        %v6123 = vpop.xlane.xlu0 %6122
        %6124 = vmax.xlane.f32.xlu0 %v6090
        %v6125 = vpop.xlane.xlu0 %6124
        %6126 = vmax.xlane.f32.xlu0 %v6092
        %v6127 = vpop.xlane.xlu0 %6126
        %6128 = vmax.xlane.f32.xlu0 %v6095
        %v6129 = vpop.xlane.xlu0 %6128
        %6130 = vmax.xlane.f32.xlu0 %v6097
        %v6131 = vpop.xlane.xlu0 %6130
        %6132 = vmax.xlane.f32.xlu0 %v6100
        %v6133 = vpop.xlane.xlu0 %6132
        %6134 = vmax.xlane.f32.xlu0 %v6102
        %v6135 = vpop.xlane.xlu0 %6134
        %v6136 = vsub.f32 %v6065, %v6105
        %v6137 = vsub.f32 %v6067, %v6107
        %v6138 = vsub.f32 %v6070, %v6109
        %v6139 = vsub.f32 %v6072, %v6111
        %v6140 = vsub.f32 %v6075, %v6113
        %v6141 = vsub.f32 %v6077, %v6115
        %v6142 = vsub.f32 %v6080, %v6117
        %v6143 = vsub.f32 %v6082, %v6119
        %v6144 = vsub.f32 %v6085, %v6121
        %v6145 = vsub.f32 %v6087, %v6123
        %v6146 = vsub.f32 %v6090, %v6125
        %v6147 = vsub.f32 %v6092, %v6127
        %v6148 = vsub.f32 %v6095, %v6129
        %v6149 = vsub.f32 %v6097, %v6131
        %v6150 = vsub.f32 %v6100, %v6133
        %v6151 = vsub.f32 %v6102, %v6135
        %v6152 = vmul.f32 %v6136, 1.442695
        %v6153 = vpow.pop %v6152
        %v6154 = vmul.f32 %v6137, 1.442695
        %v6155 = vpow.pop %v6154
        %v6156 = vmul.f32 %v6138, 1.442695
        %v6157 = vpow.pop %v6156
        %v6158 = vmul.f32 %v6139, 1.442695
        %v6159 = vpow.pop %v6158
        %v6160 = vmul.f32 %v6140, 1.442695
        %v6161 = vpow.pop %v6160
        %v6162 = vmul.f32 %v6141, 1.442695
        %v6163 = vpow.pop %v6162
        %v6164 = vmul.f32 %v6142, 1.442695
        %v6165 = vpow.pop %v6164
        %v6166 = vmul.f32 %v6143, 1.442695
        %v6167 = vpow.pop %v6166
        %v6168 = vmul.f32 %v6144, 1.442695
        %v6169 = vpow.pop %v6168
        %v6170 = vmul.f32 %v6145, 1.442695
        %v6171 = vpow.pop %v6170
        %v6172 = vmul.f32 %v6146, 1.442695
        %v6173 = vpow.pop %v6172
        %v6174 = vmul.f32 %v6147, 1.442695
        %v6175 = vpow.pop %v6174
        %v6176 = vmul.f32 %v6148, 1.442695
        %v6177 = vpow.pop %v6176
        %v6178 = vmul.f32 %v6149, 1.442695
        %v6179 = vpow.pop %v6178
        %v6180 = vmul.f32 %v6150, 1.442695
        %v6181 = vpow.pop %v6180
        %v6182 = vmul.f32 %v6151, 1.442695
        %v6183 = vpow.pop %v6182
        %6184 = vadd.xlane.f32.xlu0 %v6153
        %v6185 = vpop.xlane.xlu0 %6184
        %6186 = vadd.xlane.f32.xlu0 %v6155
        %v6187 = vpop.xlane.xlu0 %6186
        %6188 = vadd.xlane.f32.xlu0 %v6157
        %v6189 = vpop.xlane.xlu0 %6188
        %6190 = vadd.xlane.f32.xlu0 %v6159
        %v6191 = vpop.xlane.xlu0 %6190
        %6192 = vadd.xlane.f32.xlu0 %v6161
        %v6193 = vpop.xlane.xlu0 %6192
        %6194 = vadd.xlane.f32.xlu0 %v6163
        %v6195 = vpop.xlane.xlu0 %6194
        %6196 = vadd.xlane.f32.xlu0 %v6165
        %v6197 = vpop.xlane.xlu0 %6196
        %6198 = vadd.xlane.f32.xlu0 %v6167
        %v6199 = vpop.xlane.xlu0 %6198
        %6200 = vadd.xlane.f32.xlu0 %v6169
        %v6201 = vpop.xlane.xlu0 %6200
        %6202 = vadd.xlane.f32.xlu0 %v6171
        %v6203 = vpop.xlane.xlu0 %6202
        %6204 = vadd.xlane.f32.xlu0 %v6173
        %v6205 = vpop.xlane.xlu0 %6204
        %6206 = vadd.xlane.f32.xlu0 %v6175
        %v6207 = vpop.xlane.xlu0 %6206
        %6208 = vadd.xlane.f32.xlu0 %v6177
        %v6209 = vpop.xlane.xlu0 %6208
        %6210 = vadd.xlane.f32.xlu0 %v6179
        %v6211 = vpop.xlane.xlu0 %6210
        %6212 = vadd.xlane.f32.xlu0 %v6181
        %v6213 = vpop.xlane.xlu0 %6212
        %6214 = vadd.xlane.f32.xlu0 %v6183
        %v6215 = vpop.xlane.xlu0 %6214
        %v6216 = vrcp.pop %v6185
        %v6217 = vrcp.pop %v6187
        %v6218 = vrcp.pop %v6189
        %v6219 = vrcp.pop %v6191
        %v6220 = vrcp.pop %v6193
        %v6221 = vrcp.pop %v6195
        %v6222 = vrcp.pop %v6197
        %v6223 = vrcp.pop %v6199
        %v6224 = vrcp.pop %v6201
        %v6225 = vrcp.pop %v6203
        %v6226 = vrcp.pop %v6205
        %v6227 = vrcp.pop %v6207
        %v6228 = vrcp.pop %v6209
        %v6229 = vrcp.pop %v6211
        %v6230 = vrcp.pop %v6213
        %v6231 = vrcp.pop %v6215
        %v6232 = vmul.f32 %v6153, %v6216
        %v6233 = vmul.f32 %v6155, %v6217
        %v6234 = vmul.f32 %v6157, %v6218
        %v6235 = vmul.f32 %v6159, %v6219
        %v6236 = vmul.f32 %v6161, %v6220
        %v6237 = vmul.f32 %v6163, %v6221
        %v6238 = vmul.f32 %v6165, %v6222
        %v6239 = vmul.f32 %v6167, %v6223
        %v6240 = vmul.f32 %v6169, %v6224
        %v6241 = vmul.f32 %v6171, %v6225
        %v6242 = vmul.f32 %v6173, %v6226
        %v6243 = vmul.f32 %v6175, %v6227
        %v6244 = vmul.f32 %v6177, %v6228
        %v6245 = vmul.f32 %v6179, %v6229
        %v6246 = vmul.f32 %v6181, %v6230
        %v6247 = vmul.f32 %v6183, %v6231
        %v6248 = vpack.c.bf16 %v6233, %v6232
        %v6249 = vpack.c.bf16 %v6235, %v6234
        %v6250 = vpack.c.bf16 %v6237, %v6236
        %v6251 = vpack.c.bf16 %v6239, %v6238
        %v6252 = vpack.c.bf16 %v6241, %v6240
        %v6253 = vpack.c.bf16 %v6243, %v6242
        %v6254 = vpack.c.bf16 %v6245, %v6244
        %v6255 = vpack.c.bf16 %v6247, %v6246
        %v6257 = vunpack.c.h.b16 %v4165
        %v6258 = vpack.c.b16 %v6257, %v6257
        %6260 = vmatpush.bf16.xpose.msra.mxu0 %v6255
        %6261 = vmatpush.bf16.xpose.msra.mxu0 %v6254
        %6262 = vmatpush.bf16.xpose.msra.mxu0 %v6253
        %6263 = vmatpush.bf16.xpose.msra.mxu0 %v6252
        %6264 = vmatpush.bf16.xpose.msra.mxu0 %v6251
        %6265 = vmatpush.bf16.xpose.msra.mxu0 %v6250
        %6266 = vmatpush.bf16.xpose.msra.mxu0 %v6249
        %6267 = vmatpush.bf16.xpose.msra.mxu0 %v6248
        %6268 = vmatmul.bf16.gmra.mxu0 %v6258
        %v6269 = vpop.f32.mrf.mxu0
        %v6270 = vadd.f32 0.0, %v6269
        %v6271 = vpop.f32.mrf.mxu0
        %6272 = vdwg.mxu0
        %6273 = vst [vmem:[#allocation3 + $0x38] sm:$0xff] %v6270
        %v6274 = vld [vmem:[#allocation3] sm:$0xff]
        %v6275 = vld [vmem:[#allocation3 + $0x8] sm:$0xff]
        %v6276 = vld [vmem:[#allocation3 + $0x10] sm:$0xff]
        %v6277 = vld [vmem:[#allocation3 + $0x18] sm:$0xff]
        %v6278 = vld [vmem:[#allocation3 + $0x20] sm:$0xff]
        %v6279 = vld [vmem:[#allocation3 + $0x28] sm:$0xff]
        %v6280 = vld [vmem:[#allocation3 + $0x30] sm:$0xff]
        %v6281 = vld [vmem:[#allocation3 + $0x38] sm:$0xff]
        %v6282 = vpack.c.bf16 %v6276, %v6274
        %v6283 = vpack.c.bf16 %v6277, %v6275
        %v6284 = vpack.c.bf16 %v6280, %v6278
        %v6285 = vpack.c.bf16 %v6281, %v6279
        %6286 = vmatpush.bf16.msra.mxu0 0
        %6287 = vmatpush.bf16.msra.mxu0 0
        %6288 = vmatpush.bf16.msra.mxu0 0
        %6289 = vmatpush.bf16.msra.mxu0 0
        %6290 = vmatpush.bf16.msra.mxu0 0
        %6291 = vmatpush.bf16.msra.mxu0 0
        %6292 = vmatpush.bf16.msra.mxu0 %v6284
        %6293 = vmatpush.bf16.msra.mxu0 %v6282
        %6294 = vmatmul.bf16.gmra.mxu0 %v3295
        %v6295 = vpop.f32.mrf.mxu0
        %v6296 = vadd.f32 %v3267, %v6295
        %v6297 = vpop.f32.mrf.mxu0
        %v6298 = vadd.f32 %v3272, %v6297
        %6299 = vmatmul.bf16.gmra.mxu0 %v3298
        %v6300 = vpop.f32.mrf.mxu0
        %v6301 = vadd.f32 %v3277, %v6300
        %v6302 = vpop.f32.mrf.mxu0
        %v6303 = vadd.f32 %v3282, %v6302
        %6304 = vdwg.mxu0
        %6305 = vmatpush.bf16.msra.mxu0 0
        %6306 = vmatpush.bf16.msra.mxu0 0
        %6307 = vmatpush.bf16.msra.mxu0 0
        %6308 = vmatpush.bf16.msra.mxu0 0
        %6309 = vmatpush.bf16.msra.mxu0 0
        %6310 = vmatpush.bf16.msra.mxu0 0
        %6311 = vmatpush.bf16.msra.mxu0 %v6285
        %6312 = vmatpush.bf16.msra.mxu0 %v6283
        %6313 = vmatmul.bf16.gmra.mxu0 %v3295
        %v6314 = vpop.f32.mrf.mxu0
        %v6315 = vadd.f32 %v3267, %v6314
        %v6316 = vpop.f32.mrf.mxu0
        %v6317 = vadd.f32 %v3272, %v6316
        %6318 = vmatmul.bf16.gmra.mxu0 %v3298
        %v6319 = vpop.f32.mrf.mxu0
        %v6320 = vadd.f32 %v3277, %v6319
        %v6321 = vpop.f32.mrf.mxu0
        %v6322 = vadd.f32 %v3282, %v6321
        %6323 = vdwg.mxu0
        %v6324 = vpack.c.bf16 %v6298, %v6296
        %v6325 = vpack.c.bf16 %v6317, %v6315
        %v6326 = vpack.c.bf16 %v6303, %v6301
        %v6327 = vpack.c.bf16 %v6322, %v6320
        %6328 = vmatpush.bf16.msra.mxu0 0
        %6329 = vmatpush.bf16.msra.mxu0 0
        %6330 = vmatpush.bf16.msra.mxu0 0
        %6331 = vmatpush.bf16.msra.mxu0 0
        %6332 = vmatpush.bf16.msra.mxu0 0
        %6333 = vmatpush.bf16.msra.mxu0 0
        %6334 = vmatpush.bf16.msra.mxu0 %v6326
        %6335 = vmatpush.bf16.msra.mxu0 %v6324
        %6336 = vmatmul.bf16.gmra.mxu0 %v3363
        %v6337 = vpop.f32.mrf.mxu0
        %v6338 = vadd.f32 0.0, %v6337
        %v6339 = vpop.f32.mrf.mxu0
        %v6340 = vadd.f32 0.0, %v6339
        %6341 = vmatmul.bf16.gmra.mxu0 %v3366
        %v6342 = vpop.f32.mrf.mxu0
        %v6343 = vadd.f32 0.0, %v6342
        %v6344 = vpop.f32.mrf.mxu0
        %v6345 = vadd.f32 0.0, %v6344
        %6346 = vmatmul.bf16.gmra.mxu0 %v3369
        %v6347 = vpop.f32.mrf.mxu0
        %v6348 = vadd.f32 0.0, %v6347
        %v6349 = vpop.f32.mrf.mxu0
        %v6350 = vadd.f32 0.0, %v6349
        %6351 = vmatmul.bf16.gmra.mxu0 %v3372
        %v6352 = vpop.f32.mrf.mxu0
        %v6353 = vadd.f32 0.0, %v6352
        %v6354 = vpop.f32.mrf.mxu0
        %v6355 = vadd.f32 0.0, %v6354
        %6356 = vdwg.mxu0
        %6357 = vmatpush.bf16.msra.mxu0 0
        %6358 = vmatpush.bf16.msra.mxu0 0
        %6359 = vmatpush.bf16.msra.mxu0 0
        %6360 = vmatpush.bf16.msra.mxu0 0
        %6361 = vmatpush.bf16.msra.mxu0 0
        %6362 = vmatpush.bf16.msra.mxu0 0
        %6363 = vmatpush.bf16.msra.mxu0 %v6327
        %6364 = vmatpush.bf16.msra.mxu0 %v6325
        %6365 = vmatmul.bf16.gmra.mxu0 %v3363
        %v6366 = vpop.f32.mrf.mxu0
        %v6367 = vadd.f32 0.0, %v6366
        %v6368 = vpop.f32.mrf.mxu0
        %v6369 = vadd.f32 0.0, %v6368
        %6370 = vmatmul.bf16.gmra.mxu0 %v3366
        %v6371 = vpop.f32.mrf.mxu0
        %v6372 = vadd.f32 0.0, %v6371
        %v6373 = vpop.f32.mrf.mxu0
        %v6374 = vadd.f32 0.0, %v6373
        %6375 = vmatmul.bf16.gmra.mxu0 %v3369
        %v6376 = vpop.f32.mrf.mxu0
        %v6377 = vadd.f32 0.0, %v6376
        %v6378 = vpop.f32.mrf.mxu0
        %v6379 = vadd.f32 0.0, %v6378
        %6380 = vmatmul.bf16.gmra.mxu0 %v3372
        %v6381 = vpop.f32.mrf.mxu0
        %v6382 = vadd.f32 0.0, %v6381
        %v6383 = vpop.f32.mrf.mxu0
        %v6384 = vadd.f32 0.0, %v6383
        %6385 = vdwg.mxu0
        %6386 = vmatpush.bf16.msra.mxu0 0
        %6387 = vmatpush.bf16.msra.mxu0 0
        %6388 = vmatpush.bf16.msra.mxu0 0
        %6389 = vmatpush.bf16.msra.mxu0 0
        %6390 = vmatpush.bf16.msra.mxu0 0
        %6391 = vmatpush.bf16.msra.mxu0 0
        %6392 = vmatpush.bf16.msra.mxu0 %v4044
        %6393 = vmatpush.bf16.msra.mxu0 %v4042
        %6394 = vmatmul.bf16.gmra.mxu0 %v3453
        %v6395 = vpop.f32.mrf.mxu0
        %v6396 = vadd.f32 %v6338, %v6395
        %v6397 = vpop.f32.mrf.mxu0
        %v6398 = vadd.f32 %v6340, %v6397
        %6399 = vmatmul.bf16.gmra.mxu0 %v3456
        %v6400 = vpop.f32.mrf.mxu0
        %v6401 = vadd.f32 %v6343, %v6400
        %v6402 = vpop.f32.mrf.mxu0
        %v6403 = vadd.f32 %v6345, %v6402
        %6404 = vmatmul.bf16.gmra.mxu0 %v3459
        %v6405 = vpop.f32.mrf.mxu0
        %v6406 = vadd.f32 %v6348, %v6405
        %v6407 = vpop.f32.mrf.mxu0
        %v6408 = vadd.f32 %v6350, %v6407
        %6409 = vmatmul.bf16.gmra.mxu0 %v3462
        %v6410 = vpop.f32.mrf.mxu0
        %v6411 = vadd.f32 %v6353, %v6410
        %v6412 = vpop.f32.mrf.mxu0
        %v6413 = vadd.f32 %v6355, %v6412
        %6414 = vdwg.mxu0
        %6415 = vmatpush.bf16.msra.mxu0 0
        %6416 = vmatpush.bf16.msra.mxu0 0
        %6417 = vmatpush.bf16.msra.mxu0 0
        %6418 = vmatpush.bf16.msra.mxu0 0
        %6419 = vmatpush.bf16.msra.mxu0 0
        %6420 = vmatpush.bf16.msra.mxu0 0
        %6421 = vmatpush.bf16.msra.mxu0 %v4045
        %6422 = vmatpush.bf16.msra.mxu0 %v4043
        %6423 = vmatmul.bf16.gmra.mxu0 %v3453
        %v6424 = vpop.f32.mrf.mxu0
        %v6425 = vadd.f32 %v6367, %v6424
        %v6426 = vpop.f32.mrf.mxu0
        %v6427 = vadd.f32 %v6369, %v6426
        %6428 = vmatmul.bf16.gmra.mxu0 %v3456
        %v6429 = vpop.f32.mrf.mxu0
        %v6430 = vadd.f32 %v6372, %v6429
        %v6431 = vpop.f32.mrf.mxu0
        %v6432 = vadd.f32 %v6374, %v6431
        %6433 = vmatmul.bf16.gmra.mxu0 %v3459
        %v6434 = vpop.f32.mrf.mxu0
        %v6435 = vadd.f32 %v6377, %v6434
        %v6436 = vpop.f32.mrf.mxu0
        %v6437 = vadd.f32 %v6379, %v6436
        %6438 = vmatmul.bf16.gmra.mxu0 %v3462
        %v6439 = vpop.f32.mrf.mxu0
        %v6440 = vadd.f32 %v6382, %v6439
        %v6441 = vpop.f32.mrf.mxu0
        %v6442 = vadd.f32 %v6384, %v6441
        %6443 = vdwg.mxu0
        %v6444 = vadd.f32 %v6396, %v3525
        %v6445 = vadd.f32 %v6425, %v3525
        %v6446 = vadd.f32 %v6398, %v3530
        %v6447 = vadd.f32 %v6427, %v3530
        %v6448 = vadd.f32 %v6401, %v3535
        %v6449 = vadd.f32 %v6430, %v3535
        %v6450 = vadd.f32 %v6403, %v3540
        %v6451 = vadd.f32 %v6432, %v3540
        %v6452 = vadd.f32 %v6406, %v3545
        %v6453 = vadd.f32 %v6435, %v3545
        %v6454 = vadd.f32 %v6408, %v3550
        %v6455 = vadd.f32 %v6437, %v3550
        %v6456 = vadd.f32 %v6411, %v3555
        %v6457 = vadd.f32 %v6440, %v3555
        %v6458 = vadd.f32 %v6413, %v3560
        %v6459 = vadd.f32 %v6442, %v3560
        %v6460 = vmul.f32 %v6444, %v3579
        %v6461 = vmul.f32 %v6445, %v3580
        %v6462 = vmul.f32 %v6446, %v3579
        %v6463 = vmul.f32 %v6447, %v3580
        %v6464 = vmul.f32 %v6448, %v3579
        %v6465 = vmul.f32 %v6449, %v3580
        %v6466 = vmul.f32 %v6450, %v3579
        %v6467 = vmul.f32 %v6451, %v3580
        %v6468 = vmul.f32 %v6452, %v3579
        %v6469 = vmul.f32 %v6453, %v3580
        %v6470 = vmul.f32 %v6454, %v3579
        %v6471 = vmul.f32 %v6455, %v3580
        %v6472 = vmul.f32 %v6456, %v3579
        %v6473 = vmul.f32 %v6457, %v3580
        %v6474 = vmul.f32 %v6458, %v3579
        %v6475 = vmul.f32 %v6459, %v3580
        %v6476 = vadd.f32 %v6460, %v6461
        %6477 = vadd.xlane.f32.xlu0 %v6476
        %v6478 = vpop.xlane.xlu0 %6477
        %v6479 = vadd.f32 %v6462, %v6463
        %6480 = vadd.xlane.f32.xlu0 %v6479
        %v6481 = vpop.xlane.xlu0 %6480
        %v6482 = vadd.f32 %v6464, %v6465
        %6483 = vadd.xlane.f32.xlu0 %v6482
        %v6484 = vpop.xlane.xlu0 %6483
        %v6485 = vadd.f32 %v6466, %v6467
        %6486 = vadd.xlane.f32.xlu0 %v6485
        %v6487 = vpop.xlane.xlu0 %6486
        %v6488 = vadd.f32 %v6468, %v6469
        %6489 = vadd.xlane.f32.xlu0 %v6488
        %v6490 = vpop.xlane.xlu0 %6489
        %v6491 = vadd.f32 %v6470, %v6471
        %6492 = vadd.xlane.f32.xlu0 %v6491
        %v6493 = vpop.xlane.xlu0 %6492
        %v6494 = vadd.f32 %v6472, %v6473
        %6495 = vadd.xlane.f32.xlu0 %v6494
        %v6496 = vpop.xlane.xlu0 %6495
        %v6497 = vadd.f32 %v6474, %v6475
        %6498 = vadd.xlane.f32.xlu0 %v6497
        %v6499 = vpop.xlane.xlu0 %6498
        %v6500 = vmul.f32 %v6460, %v6444
        %v6501 = vmul.f32 %v6461, %v6445
        %v6502 = vmul.f32 %v6462, %v6446
        %v6503 = vmul.f32 %v6463, %v6447
        %v6504 = vmul.f32 %v6464, %v6448
        %v6505 = vmul.f32 %v6465, %v6449
        %v6506 = vmul.f32 %v6466, %v6450
        %v6507 = vmul.f32 %v6467, %v6451
        %v6508 = vmul.f32 %v6468, %v6452
        %v6509 = vmul.f32 %v6469, %v6453
        %v6510 = vmul.f32 %v6470, %v6454
        %v6511 = vmul.f32 %v6471, %v6455
        %v6512 = vmul.f32 %v6472, %v6456
        %v6513 = vmul.f32 %v6473, %v6457
        %v6514 = vmul.f32 %v6474, %v6458
        %v6515 = vmul.f32 %v6475, %v6459
        %v6516 = vadd.f32 %v6500, %v6501
        %6517 = vadd.xlane.f32.xlu0 %v6516
        %v6518 = vpop.xlane.xlu0 %6517
        %v6519 = vadd.f32 %v6502, %v6503
        %6520 = vadd.xlane.f32.xlu0 %v6519
        %v6521 = vpop.xlane.xlu0 %6520
        %v6522 = vadd.f32 %v6504, %v6505
        %6523 = vadd.xlane.f32.xlu0 %v6522
        %v6524 = vpop.xlane.xlu0 %6523
        %v6525 = vadd.f32 %v6506, %v6507
        %6526 = vadd.xlane.f32.xlu0 %v6525
        %v6527 = vpop.xlane.xlu0 %6526
        %v6528 = vadd.f32 %v6508, %v6509
        %6529 = vadd.xlane.f32.xlu0 %v6528
        %v6530 = vpop.xlane.xlu0 %6529
        %v6531 = vadd.f32 %v6510, %v6511
        %6532 = vadd.xlane.f32.xlu0 %v6531
        %v6533 = vpop.xlane.xlu0 %6532
        %v6534 = vadd.f32 %v6512, %v6513
        %6535 = vadd.xlane.f32.xlu0 %v6534
        %v6536 = vpop.xlane.xlu0 %6535
        %v6537 = vadd.f32 %v6514, %v6515
        %6538 = vadd.xlane.f32.xlu0 %v6537
        %v6539 = vpop.xlane.xlu0 %6538
        %v6540 = vmul.f32 %v6478, 0.0625
        %v6541 = vmul.f32 %v6481, 0.0625
        %v6542 = vmul.f32 %v6484, 0.0625
        %v6543 = vmul.f32 %v6487, 0.0625
        %v6544 = vmul.f32 %v6490, 0.0625
        %v6545 = vmul.f32 %v6493, 0.0625
        %v6546 = vmul.f32 %v6496, 0.0625
        %v6547 = vmul.f32 %v6499, 0.0625
        %v6548 = vmul.f32 %v6518, 0.0625
        %v6549 = vmul.f32 %v6521, 0.0625
        %v6550 = vmul.f32 %v6524, 0.0625
        %v6551 = vmul.f32 %v6527, 0.0625
        %v6552 = vmul.f32 %v6530, 0.0625
        %v6553 = vmul.f32 %v6533, 0.0625
        %v6554 = vmul.f32 %v6536, 0.0625
        %v6555 = vmul.f32 %v6539, 0.0625
        %v6556 = vmul.f32 %v6540, %v6540
        %v6557 = vmul.f32 %v6541, %v6541
        %v6558 = vmul.f32 %v6542, %v6542
        %v6559 = vmul.f32 %v6543, %v6543
        %v6560 = vmul.f32 %v6544, %v6544
        %v6561 = vmul.f32 %v6545, %v6545
        %v6562 = vmul.f32 %v6546, %v6546
        %v6563 = vmul.f32 %v6547, %v6547
        %v6564 = vsub.f32 %v6548, %v6556
        %v6565 = vsub.f32 %v6549, %v6557
        %v6566 = vsub.f32 %v6550, %v6558
        %v6567 = vsub.f32 %v6551, %v6559
        %v6568 = vsub.f32 %v6552, %v6560
        %v6569 = vsub.f32 %v6553, %v6561
        %v6570 = vsub.f32 %v6554, %v6562
        %v6571 = vsub.f32 %v6555, %v6563
        %v6572 = vmax.f32 %v6564, 0.0
        %v6573 = vmax.f32 %v6565, 0.0
        %v6574 = vmax.f32 %v6566, 0.0
        %v6575 = vmax.f32 %v6567, 0.0
        %v6576 = vmax.f32 %v6568, 0.0
        %v6577 = vmax.f32 %v6569, 0.0
        %v6578 = vmax.f32 %v6570, 0.0
        %v6579 = vmax.f32 %v6571, 0.0
        %v6580 = vsub.f32 %v6444, %v6540
        %v6581 = vsub.f32 %v6445, %v6540
        %v6582 = vsub.f32 %v6446, %v6541
        %v6583 = vsub.f32 %v6447, %v6541
        %v6584 = vsub.f32 %v6448, %v6542
        %v6585 = vsub.f32 %v6449, %v6542
        %v6586 = vsub.f32 %v6450, %v6543
        %v6587 = vsub.f32 %v6451, %v6543
        %v6588 = vsub.f32 %v6452, %v6544
        %v6589 = vsub.f32 %v6453, %v6544
        %v6590 = vsub.f32 %v6454, %v6545
        %v6591 = vsub.f32 %v6455, %v6545
        %v6592 = vsub.f32 %v6456, %v6546
        %v6593 = vsub.f32 %v6457, %v6546
        %v6594 = vsub.f32 %v6458, %v6547
        %v6595 = vsub.f32 %v6459, %v6547
        %v6596 = vadd.f32 %v6572, 1e-05
        %v6597 = vadd.f32 %v6573, 1e-05
        %v6598 = vadd.f32 %v6574, 1e-05
        %v6599 = vadd.f32 %v6575, 1e-05
        %v6600 = vadd.f32 %v6576, 1e-05
        %v6601 = vadd.f32 %v6577, 1e-05
        %v6602 = vadd.f32 %v6578, 1e-05
        %v6603 = vadd.f32 %v6579, 1e-05
        %v6604 = vrsqrt.pop %v6596
        %v6605 = vmul.f32 %v6604, %v6596
        %v6606 = vmul.f32 %v6605, %v6604
        %v6607 = vmul.f32 0.5, %v6606
        %v6608 = vsub.f32 1.5, %v6607
        %v6609 = vmul.f32 %v6604, %v6608
        %vm6610 = vweird.f32 %v6596
        %vm6611 = vweird.f32 %v6604
        %vm6612 = vmor %vm6610, %vm6611
        %v6613 = vsel %vm6612, %v6604, %v6609
        %v6614 = vrsqrt.pop %v6597
        %v6615 = vmul.f32 %v6614, %v6597
        %v6616 = vmul.f32 %v6615, %v6614
        %v6617 = vmul.f32 0.5, %v6616
        %v6618 = vsub.f32 1.5, %v6617
        %v6619 = vmul.f32 %v6614, %v6618
        %vm6620 = vweird.f32 %v6597
        %vm6621 = vweird.f32 %v6614
        %vm6622 = vmor %vm6620, %vm6621
        %v6623 = vsel %vm6622, %v6614, %v6619
        %v6624 = vrsqrt.pop %v6598
        %v6625 = vmul.f32 %v6624, %v6598
        %v6626 = vmul.f32 %v6625, %v6624
        %v6627 = vmul.f32 0.5, %v6626
        %v6628 = vsub.f32 1.5, %v6627
        %v6629 = vmul.f32 %v6624, %v6628
        %vm6630 = vweird.f32 %v6598
        %vm6631 = vweird.f32 %v6624
        %vm6632 = vmor %vm6630, %vm6631
        %v6633 = vsel %vm6632, %v6624, %v6629
        %v6634 = vrsqrt.pop %v6599
        %v6635 = vmul.f32 %v6634, %v6599
        %v6636 = vmul.f32 %v6635, %v6634
        %v6637 = vmul.f32 0.5, %v6636
        %v6638 = vsub.f32 1.5, %v6637
        %v6639 = vmul.f32 %v6634, %v6638
        %vm6640 = vweird.f32 %v6599
        %vm6641 = vweird.f32 %v6634
        %vm6642 = vmor %vm6640, %vm6641
        %v6643 = vsel %vm6642, %v6634, %v6639
        %v6644 = vrsqrt.pop %v6600
        %v6645 = vmul.f32 %v6644, %v6600
        %v6646 = vmul.f32 %v6645, %v6644
        %v6647 = vmul.f32 0.5, %v6646
        %v6648 = vsub.f32 1.5, %v6647
        %v6649 = vmul.f32 %v6644, %v6648
        %vm6650 = vweird.f32 %v6600
        %vm6651 = vweird.f32 %v6644
        %vm6652 = vmor %vm6650, %vm6651
        %v6653 = vsel %vm6652, %v6644, %v6649
        %v6654 = vrsqrt.pop %v6601
        %v6655 = vmul.f32 %v6654, %v6601
        %v6656 = vmul.f32 %v6655, %v6654
        %v6657 = vmul.f32 0.5, %v6656
        %v6658 = vsub.f32 1.5, %v6657
        %v6659 = vmul.f32 %v6654, %v6658
        %vm6660 = vweird.f32 %v6601
        %vm6661 = vweird.f32 %v6654
        %vm6662 = vmor %vm6660, %vm6661
        %v6663 = vsel %vm6662, %v6654, %v6659
        %v6664 = vrsqrt.pop %v6602
        %v6665 = vmul.f32 %v6664, %v6602
        %v6666 = vmul.f32 %v6665, %v6664
        %v6667 = vmul.f32 0.5, %v6666
        %v6668 = vsub.f32 1.5, %v6667
        %v6669 = vmul.f32 %v6664, %v6668
        %vm6670 = vweird.f32 %v6602
        %vm6671 = vweird.f32 %v6664
        %vm6672 = vmor %vm6670, %vm6671
        %v6673 = vsel %vm6672, %v6664, %v6669
        %v6674 = vrsqrt.pop %v6603
        %v6675 = vmul.f32 %v6674, %v6603
        %v6676 = vmul.f32 %v6675, %v6674
        %v6677 = vmul.f32 0.5, %v6676
        %v6678 = vsub.f32 1.5, %v6677
        %v6679 = vmul.f32 %v6674, %v6678
        %vm6680 = vweird.f32 %v6603
        %vm6681 = vweird.f32 %v6674
        %vm6682 = vmor %vm6680, %vm6681
        %v6683 = vsel %vm6682, %v6674, %v6679
        %v6684 = vmul.f32 %v6580, %v6613
        %v6685 = vmul.f32 %v6581, %v6613
        %v6686 = vmul.f32 %v6582, %v6623
        %v6687 = vmul.f32 %v6583, %v6623
        %v6688 = vmul.f32 %v6584, %v6633
        %v6689 = vmul.f32 %v6585, %v6633
        %v6690 = vmul.f32 %v6586, %v6643
        %v6691 = vmul.f32 %v6587, %v6643
        %v6692 = vmul.f32 %v6588, %v6653
        %v6693 = vmul.f32 %v6589, %v6653
        %v6694 = vmul.f32 %v6590, %v6663
        %v6695 = vmul.f32 %v6591, %v6663
        %v6696 = vmul.f32 %v6592, %v6673
        %v6697 = vmul.f32 %v6593, %v6673
        %v6698 = vmul.f32 %v6594, %v6683
        %v6699 = vmul.f32 %v6595, %v6683
        %v6700 = vmul.f32 %v6684, %v3826
        %v6701 = vmul.f32 %v6685, %v3826
        %v6702 = vmul.f32 %v6686, %v3831
        %v6703 = vmul.f32 %v6687, %v3831
        %v6704 = vmul.f32 %v6688, %v3836
        %v6705 = vmul.f32 %v6689, %v3836
        %v6706 = vmul.f32 %v6690, %v3841
        %v6707 = vmul.f32 %v6691, %v3841
        %v6708 = vmul.f32 %v6692, %v3846
        %v6709 = vmul.f32 %v6693, %v3846
        %v6710 = vmul.f32 %v6694, %v3851
        %v6711 = vmul.f32 %v6695, %v3851
        %v6712 = vmul.f32 %v6696, %v3856
        %v6713 = vmul.f32 %v6697, %v3856
        %v6714 = vmul.f32 %v6698, %v3861
        %v6715 = vmul.f32 %v6699, %v3861
        %v6716 = vadd.f32 %v6700, %v3882
        %v6717 = vadd.f32 %v6701, %v3882
        %v6718 = vadd.f32 %v6702, %v3887
        %v6719 = vadd.f32 %v6703, %v3887
        %v6720 = vadd.f32 %v6704, %v3892
        %v6721 = vadd.f32 %v6705, %v3892
        %v6722 = vadd.f32 %v6706, %v3897
        %v6723 = vadd.f32 %v6707, %v3897
        %v6724 = vadd.f32 %v6708, %v3902
        %v6725 = vadd.f32 %v6709, %v3902
        %v6726 = vadd.f32 %v6710, %v3907
        %v6727 = vadd.f32 %v6711, %v3907
        %v6728 = vadd.f32 %v6712, %v3912
        %v6729 = vadd.f32 %v6713, %v3912
        %v6730 = vadd.f32 %v6714, %v3917
        %v6731 = vadd.f32 %v6715, %v3917
        %v6732 = vmax.f32 %v6716, 0.0
        %v6733 = vmax.f32 %v6717, 0.0
        %v6734 = vmax.f32 %v6718, 0.0
        %v6735 = vmax.f32 %v6719, 0.0
        %v6736 = vmax.f32 %v6720, 0.0
        %v6737 = vmax.f32 %v6721, 0.0
        %v6738 = vmax.f32 %v6722, 0.0
        %v6739 = vmax.f32 %v6723, 0.0
        %v6740 = vmax.f32 %v6724, 0.0
        %v6741 = vmax.f32 %v6725, 0.0
        %v6742 = vmax.f32 %v6726, 0.0
        %v6743 = vmax.f32 %v6727, 0.0
        %v6744 = vmax.f32 %v6728, 0.0
        %v6745 = vmax.f32 %v6729, 0.0
        %v6746 = vmax.f32 %v6730, 0.0
        %v6747 = vmax.f32 %v6731, 0.0
        %v6748 = vpack.c.bf16 %v6734, %v6732
        %v6749 = vpack.c.bf16 %v6735, %v6733
        %v6750 = vpack.c.bf16 %v6738, %v6736
        %v6751 = vpack.c.bf16 %v6739, %v6737
        %v6752 = vpack.c.bf16 %v6742, %v6740
        %v6753 = vpack.c.bf16 %v6743, %v6741
        %v6754 = vpack.c.bf16 %v6746, %v6744
        %v6755 = vpack.c.bf16 %v6747, %v6745
        %6756 = vmatpush.bf16.msra.mxu0 0
        %6757 = vmatpush.bf16.msra.mxu0 0
        %6758 = vmatpush.bf16.msra.mxu0 0
        %6759 = vmatpush.bf16.msra.mxu0 0
        %6760 = vmatpush.bf16.msra.mxu0 %v6754
        %6761 = vmatpush.bf16.msra.mxu0 %v6752
        %6762 = vmatpush.bf16.msra.mxu0 %v6750
        %6763 = vmatpush.bf16.msra.mxu0 %v6748
        %6764 = vmatmul.bf16.gmra.mxu0 %v3991
        %v6765 = vpop.f32.mrf.mxu0
        %v6766 = vadd.f32 %v3962, %v6765
        %v6767 = vpop.f32.mrf.mxu0
        %v6768 = vadd.f32 %v3967, %v6767
        %6769 = vmatmul.bf16.gmra.mxu0 %v3994
        %v6770 = vpop.f32.mrf.mxu0
        %v6771 = vadd.f32 %v3972, %v6770
        %v6772 = vpop.f32.mrf.mxu0
        %v6773 = vadd.f32 %v3977, %v6772
        %6774 = vdwg.mxu0
        %6775 = vmatpush.bf16.msra.mxu0 0
        %6776 = vmatpush.bf16.msra.mxu0 0
        %6777 = vmatpush.bf16.msra.mxu0 0
        %6778 = vmatpush.bf16.msra.mxu0 0
        %6779 = vmatpush.bf16.msra.mxu0 %v6755
        %6780 = vmatpush.bf16.msra.mxu0 %v6753
        %6781 = vmatpush.bf16.msra.mxu0 %v6751
        %6782 = vmatpush.bf16.msra.mxu0 %v6749
        %6783 = vmatmul.bf16.gmra.mxu0 %v3991
        %v6784 = vpop.f32.mrf.mxu0
        %v6785 = vadd.f32 %v3962, %v6784
        %v6786 = vpop.f32.mrf.mxu0
        %v6787 = vadd.f32 %v3967, %v6786
        %6788 = vmatmul.bf16.gmra.mxu0 %v3994
        %v6789 = vpop.f32.mrf.mxu0
        %v6790 = vadd.f32 %v3972, %v6789
        %v6791 = vpop.f32.mrf.mxu0
        %v6792 = vadd.f32 %v3977, %v6791
        %6793 = vdwg.mxu0
        %v6794 = vadd.f32 %v878, %v4006
        %v6795 = vadd.f32 %v879, %v4025
        %v6796 = vadd.f32 %v880, %v4008
        %v6797 = vadd.f32 %v881, %v4027
        %v6798 = vadd.f32 %v882, %v4011
        %v6799 = vadd.f32 %v883, %v4030
        %v6800 = vadd.f32 %v884, %v4013
        %v6801 = vadd.f32 %v885, %v4032
        %v6802 = vmul.f32 %v6794, %v3579
        %v6803 = vmul.f32 %v6795, %v3580
        %v6804 = vmul.f32 %v6796, %v3579
        %v6805 = vmul.f32 %v6797, %v3580
        %v6806 = vmul.f32 %v6798, %v3579
        %v6807 = vmul.f32 %v6799, %v3580
        %v6808 = vmul.f32 %v6800, %v3579
        %v6809 = vmul.f32 %v6801, %v3580
        %6810 = vst [vmem:[#allocation2] sm:$0xff] %v6802
        %6811 = vst [vmem:[#allocation2 + $0x8] sm:$0xff] %v6803
        %6812 = vst [vmem:[#allocation2 + $0x10] sm:$0xff] %v6804
        %6813 = vst [vmem:[#allocation2 + $0x18] sm:$0xff] %v6805
        %6814 = vst [vmem:[#allocation2 + $0x20] sm:$0xff] %v6806
        %6815 = vst [vmem:[#allocation2 + $0x28] sm:$0xff] %v6807
        %6816 = vst [vmem:[#allocation2 + $0x30] sm:$0xff] %v6808
        %6817 = vst [vmem:[#allocation2 + $0x38] sm:$0xff] %v6809
        %v6818 = vadd.f32 %v887, %v6766
        %v6819 = vadd.f32 %v888, %v6785
        %v6820 = vadd.f32 %v889, %v6768
        %v6821 = vadd.f32 %v890, %v6787
        %v6822 = vadd.f32 %v891, %v6771
        %v6823 = vadd.f32 %v892, %v6790
        %v6824 = vadd.f32 %v893, %v6773
        %v6825 = vadd.f32 %v894, %v6792
        %v6826 = vmul.f32 %v6818, %v3579
        %v6827 = vmul.f32 %v6819, %v3580
        %v6828 = vmul.f32 %v6820, %v3579
        %v6829 = vmul.f32 %v6821, %v3580
        %v6830 = vmul.f32 %v6822, %v3579
        %v6831 = vmul.f32 %v6823, %v3580
        %v6832 = vmul.f32 %v6824, %v3579
        %v6833 = vmul.f32 %v6825, %v3580
        %6834 = vst [vmem:[%s886] sm:$0xff] %v6826
        %6835 = vst [vmem:[%s886 + $0x8] sm:$0xff] %v6827
        %6836 = vst [vmem:[%s886 + $0x10] sm:$0xff] %v6828
        %6837 = vst [vmem:[%s886 + $0x18] sm:$0xff] %v6829
        %6838 = vst [vmem:[%s886 + $0x20] sm:$0xff] %v6830
        %6839 = vst [vmem:[%s886 + $0x28] sm:$0xff] %v6831
        %6840 = vst [vmem:[%s886 + $0x30] sm:$0xff] %v6832
        %6841 = vst [vmem:[%s886 + $0x38] sm:$0xff] %v6833
        %p6842 = scmp.eq.s32.totalorder %s37, 1
        // Predicated region
        $region89: #{tpu_custom_call.1} parent=83 // pred_check
          %p6843 = pneg %p6842
        $region90: #{tpu_custom_call.1} parent=83 // pred_check_branch
          %6845 = sbr.rel (%p6843) target = $region92
        $region91: #{tpu_custom_call.1} parent=83 // pred_region
          %v6846 = vld [vmem:[#allocation2] sm:$0xff]
          %v6847 = vld [vmem:[#allocation2 + $0x8] sm:$0xff]
          %v6848 = vld [vmem:[#allocation2 + $0x10] sm:$0xff]
          %v6849 = vld [vmem:[#allocation2 + $0x18] sm:$0xff]
          %v6850 = vld [vmem:[#allocation2 + $0x20] sm:$0xff]
          %v6851 = vld [vmem:[#allocation2 + $0x28] sm:$0xff]
          %v6852 = vld [vmem:[#allocation2 + $0x30] sm:$0xff]
          %v6853 = vld [vmem:[#allocation2 + $0x38] sm:$0xff]
          %v6854 = vld [vmem:[#allocation2 + $0x40] sm:$0xff]
          %v6855 = vld [vmem:[#allocation2 + $0x48] sm:$0xff]
          %v6856 = vld [vmem:[#allocation2 + $0x50] sm:$0xff]
          %v6857 = vld [vmem:[#allocation2 + $0x58] sm:$0xff]
          %v6858 = vld [vmem:[#allocation2 + $0x60] sm:$0xff]
          %v6859 = vld [vmem:[#allocation2 + $0x68] sm:$0xff]
          %v6860 = vld [vmem:[#allocation2 + $0x70] sm:$0xff]
          %v6861 = vld [vmem:[#allocation2 + $0x78] sm:$0xff]
          %6862 = vst [vmem:[#allocation6] sm:$0xff] %v6846
          %6863 = vst [vmem:[#allocation6 + $0x8] sm:$0xff] %v6847
          %6864 = vst [vmem:[#allocation6 + $0x10] sm:$0xff] %v6848
          %6865 = vst [vmem:[#allocation6 + $0x18] sm:$0xff] %v6849
          %6866 = vst [vmem:[#allocation6 + $0x20] sm:$0xff] %v6850
          %6867 = vst [vmem:[#allocation6 + $0x28] sm:$0xff] %v6851
          %6868 = vst [vmem:[#allocation6 + $0x30] sm:$0xff] %v6852
          %6869 = vst [vmem:[#allocation6 + $0x38] sm:$0xff] %v6853
          %6870 = vst [vmem:[#allocation6 + $0x40] sm:$0xff] %v6854
          %6871 = vst [vmem:[#allocation6 + $0x48] sm:$0xff] %v6855
          %6872 = vst [vmem:[#allocation6 + $0x50] sm:$0xff] %v6856
          %6873 = vst [vmem:[#allocation6 + $0x58] sm:$0xff] %v6857
          %6874 = vst [vmem:[#allocation6 + $0x60] sm:$0xff] %v6858
          %6875 = vst [vmem:[#allocation6 + $0x68] sm:$0xff] %v6859
          %6876 = vst [vmem:[#allocation6 + $0x70] sm:$0xff] %v6860
          %6877 = vst [vmem:[#allocation6 + $0x78] sm:$0xff] %v6861
        $region92: #{tpu_custom_call.1} parent=83 // pred_fallthru
          _
        // Predicated region
        $region93: #{tpu_custom_call.1} parent=83 // pred_check
          %p6878 = pneg %p451
        $region94: #{tpu_custom_call.1} parent=83 // pred_check_branch
          %6880 = sbr.rel (%p6878) target = $region96
        $region95: #{tpu_custom_call.1} parent=83 // pred_region
          %6882 = vsyncadd [#allocation7], 0
          %s6883 = sshll.u32 [#allocation6], 4
          %s6884 = int_to_ptr.vmem [resolvable:$true] %s6883
          %s6885 = sshll.u32 %s17, 4
          %s6886 = int_to_ptr.hbm [resolvable:$true] %s6885
          %6891 = dma.vmem_to_hbm [thread:$0]  %s6884, 2048, %s6886, [#allocation7], 256, 256, 16
        $region96: #{tpu_custom_call.1} parent=83 // pred_fallthru
          _
        // Predicated region
        $region97: #{tpu_custom_call.1} parent=83 // pred_check
          %p6892 = pneg %p451
        $region98: #{tpu_custom_call.1} parent=83 // pred_check_branch
          %6894 = sbr.rel (%p6892) target = $region100
        $region99: #{tpu_custom_call.1} parent=83 // pred_region
          %6896 = dma.done [#allocation7], 2048
        $region100: #{tpu_custom_call.1} parent=83 // pred_fallthru
          _
      $region84: #{tpu_custom_call.1} parent=5 // pred_fallthru
        _
      %p6897 = scmp.le.s32.totalorder 2, %s32
      // Predicated region
      $region101: #{tpu_custom_call.1} parent=5 // pred_check
        %p6898 = pneg %p6897
      $region102: #{tpu_custom_call.1} parent=5 // pred_check_branch
        %6900 = sbr.rel (%p6898) target = $region104
      $region103: #{tpu_custom_call.1} parent=5 // pred_region
        %s6901 = ssub.s32 %s32, 2
      $region104: #{tpu_custom_call.1} parent=5 // pred_fallthru
        _
    $region6: #{tpu_custom_call.1} parent=1 // loop_footer
      %s36 = sadd.s32 1, %s32
    $region7: #{tpu_custom_call.1} parent=1 // loop_footer_branch
      %31 = sbr.rel target = $region3
    $region8: #{tpu_custom_call.1} parent=1 // loop_exit
      _
    %6902 = vsyncpa [#allocation7], 1
    %s6903 = scalar_lea.sflag [#allocation7], 1
    %6904 = vsyncpa %s6903, 1

</llo_original>
